<compile_context>
chip_gen: v6e
topology: v6e:2x2x1
jax: 0.10.0
libtpu: 0.0.40
codegen_flags: <defaults>
</compile_context>

<pallas_src>
import math
from functools import partial

import jax
import jax.numpy as jnp
import numpy as np
from jax import lax
from jax.experimental import pallas as pl
from jax.experimental.pallas import tpu as pltpu


# ---------------------------------------------------------------------------
# Fused Pallas kernel: dense -> 3x(conv3x3 + LeakyReLU) -> conv3x3
# ---------------------------------------------------------------------------
def _fused_meta_to_image_kernel(x_ref, dw_ref, db_ref, sw_ref, sb_ref,
                                fw_ref, fb_ref, o_ref, pad_ref,
                                *, H, W, Cin, Cf, Cout, n_stack, slope):
    # x_ref : SMEM (B, Cin)                     meta vector (scalar reads)
    # dw_ref: VMEM (Cin, H*W, Cf)               dense weight, pre-permuted to HWC
    # db_ref: VMEM (H*W, Cf)                    dense bias,   pre-permuted to HWC
    # sw_ref: VMEM (n_stack, 9*Cf, Cf)          stack conv weights, im2col-flat
    # sb_ref: VMEM (n_stack, 1, Cf)             stack conv biases
    # fw_ref: VMEM (9*Cf, Cout)                 final conv weight, im2col-flat
    # fb_ref: VMEM (1, Cout)                    final conv bias
    # o_ref : VMEM (H*W, Cout)                  output block (batch squeezed)
    # pad_ref: VMEM scratch (H+2, W+16, Cf)     zero-padded activation buffer
    b = pl.program_id(0)

    # ---- dense layer, emitted directly in NHWC-flat (H*W, Cf) order ----
    # z[hw, c] = sum_i x[b, i] * Wd[i, hw, c] + bd[hw, c]
    # Cin = 4  ->  four cheap scalar-broadcast VPU FMAs (no (1, 8192) relayout).
    z = db_ref[...]
    for i in range(Cin):
        z = z + x_ref[b, i] * dw_ref[i]

    # ---- zero the padded scratch once; borders stay zero for every layer ----
    pad_ref[...] = jnp.zeros((H + 2, W + 16, Cf), jnp.float32)

    def conv3x3(act, w_flat, bias, apply_act):
        # Write the (H, W, Cf) interior at row offset 1 and the sublane-aligned
        # column offset 8 (so the store is aligned; zero border all around).
        pad_ref[1:H + 1, 8:8 + W, :] = act.reshape(H, W, Cf)
        xp = pad_ref[...]                               # (H+2, W+16, Cf)
        # im2col: tap (dh, dw) for output (h, w) reads input (h-1+dh, w-1+dw),
        # which lives at xp[h+dh, w+7+dw, :].
        cols = [xp[dh:dh + H, 7 + dw:7 + dw + W, :].reshape(H * W, Cf)
                for dh in range(3) for dw in range(3)]
        patches = jnp.concatenate(cols, axis=-1)        # (H*W, 9*Cf)
        acc = jnp.dot(patches, w_flat,
                      preferred_element_type=jnp.float32) + bias
        if apply_act:                                   # LeakyReLU(slope)
            acc = jnp.where(acc > 0, acc, slope * acc)
        return acc

    for l in range(n_stack):                            # stack: Cf -> Cf
        z = conv3x3(z, sw_ref[l], sb_ref[l], True)
    out = conv3x3(z, fw_ref[...], fb_ref[...], False)   # final: Cf -> Cout
    o_ref[...] = out.astype(o_ref.dtype)


# ---------------------------------------------------------------------------
# Wrapper around pallas_call
# ---------------------------------------------------------------------------
def meta_to_image_pallas(x, pp, shape, slope=0.2):
    """x: (B, in_channels) meta vectors -> (B, out_channels, H, W)."""
    H, W = shape
    B, Cin = x.shape
    Cf = pp["dense_w"].shape[-1]            # in_feat (= 32)
    Cout = pp["final_w"].shape[-1]
    n_stack = pp["stack_w"].shape[0]

    kernel = partial(_fused_meta_to_image_kernel, H=H, W=W, Cin=Cin, Cf=Cf,
                     Cout=Cout, n_stack=n_stack, slope=slope)

    out = pl.pallas_call(
        kernel,
        out_shape=jax.ShapeDtypeStruct((B, H * W, Cout), x.dtype),
        grid_spec=pltpu.PrefetchScalarGridSpec(
            num_scalar_prefetch=0,
            grid=(B,),
            in_specs=[
                pl.BlockSpec(memory_space=pltpu.MemorySpace.SMEM),        # x
                pl.BlockSpec((Cin, H * W, Cf), lambda b: (0, 0, 0)),      # dense_w
                pl.BlockSpec((H * W, Cf), lambda b: (0, 0)),              # dense_b
                pl.BlockSpec((n_stack, 9 * Cf, Cf), lambda b: (0, 0, 0)), # stack_w
                pl.BlockSpec((n_stack, 1, Cf), lambda b: (0, 0, 0)),      # stack_b
                pl.BlockSpec((9 * Cf, Cout), lambda b: (0, 0)),           # final_w
                pl.BlockSpec((1, Cout), lambda b: (0, 0)),                # final_b
            ],
            out_specs=pl.BlockSpec((pl.Squeezed(), H * W, Cout),
                                   lambda b: (b, 0, 0)),
            scratch_shapes=[pltpu.VMEM((H + 2, W + 16, Cf), jnp.float32)],
        ),
        compiler_params=pltpu.CompilerParams(
            dimension_semantics=("parallel",)),
    )(x, pp["dense_w"], pp["dense_b"], pp["stack_w"], pp["stack_b"],
      pp["final_w"], pp["final_b"])

    # tiny (B, H*W, Cout) NHWC-flat result -> NCHW (B, Cout, H, W)
    return out.reshape(B, H, W, Cout).transpose(0, 3, 1, 2)


# ---------------------------------------------------------------------------
# Parameter construction (torch-layout, deterministic) + one-time prep
# ---------------------------------------------------------------------------
def init_params(key, shape, in_channels, out_channels, in_feat=32,
                stack=(32, 32, 32)):
    H, W = shape
    F = H * W * in_feat
    params = {}

    def uniform(key, shp, fan_in):
        bound = 1.0 / math.sqrt(fan_in)
        return jax.random.uniform(key, shp, jnp.float32, -bound, bound)

    keys = jax.random.split(key, 2 + 2 * (len(stack) + 1))
    ki = iter(keys)

    # Linear: torch layout (out_features, in_features)
    params["dense_w"] = uniform(next(ki), (F, in_channels), in_channels)
    params["dense_b"] = uniform(next(ki), (F,), in_channels)

    # StackedConv (stride-1 convs w/ activation) + final conv (no activation)
    chans = [in_feat] + list(stack) + [out_channels]
    convs = []
    for cin, cout in zip(chans[:-1], chans[1:]):
        fan_in = cin * 9
        w = uniform(next(ki), (cout, cin, 3, 3), fan_in)   # torch OIHW
        b = uniform(next(ki), (cout,), fan_in)
        convs.append((w, b))
    params["convs"] = convs
    return params


def prepare_params(params, shape):
    """One-time weight layout prep (hoisted out of the forward path)."""
    H, W = shape
    dw = params["dense_w"]                      # (F, Cin), F = in_feat*H*W
    db = params["dense_b"]                      # (F,)
    F, Cin = dw.shape
    in_feat = F // (H * W)
    # permute dense outputs from torch (c, h, w) reshape order to (h, w, c)
    dw = dw.reshape(in_feat, H * W, Cin).transpose(2, 1, 0)   # (Cin, H*W, Cf)
    db = db.reshape(in_feat, H * W).T                          # (H*W, Cf)

    def flat(w):                                # OIHW -> (kh,kw,ci,co) -> (9*ci, co)
        co, ci, kh, kw = w.shape
        return jnp.transpose(w, (2, 3, 1, 0)).reshape(kh * kw * ci, co)

    convs = params["convs"]
    stack_w = jnp.stack([flat(w) for w, _ in convs[:-1]])           # (3, 9*Cf, Cf)
    stack_b = jnp.stack([b.reshape(1, -1) for _, b in convs[:-1]])  # (3, 1, Cf)
    fw, fb = convs[-1]
    return dict(dense_w=dw, dense_b=db, stack_w=stack_w, stack_b=stack_b,
                final_w=flat(fw), final_b=fb.reshape(1, -1))


# ---------------------------------------------------------------------------
# Pure-JAX reference (torch semantics, NCHW / OIHW)
# ---------------------------------------------------------------------------
def meta_to_image_ref(x, params, shape, in_feat=32, slope=0.2):
    H, W = shape
    B = x.shape[0]
    z = x @ params["dense_w"].T + params["dense_b"]
    z = z.reshape(B, in_feat, H, W)
    convs = params["convs"]
    dn = ("NCHW", "OIHW", "NCHW")
    for w, b in convs[:-1]:
        z = lax.conv_general_dilated(z, w, (1, 1), "SAME",
                                     dimension_numbers=dn)
        z = z + b[None, :, None, None]
        z = jnp.where(z > 0, z, slope * z)
    w, b = convs[-1]
    z = lax.conv_general_dilated(z, w, (1, 1), "SAME", dimension_numbers=dn)
    z = z + b[None, :, None, None]
    return z


# ---------------------------------------------------------------------------
if __name__ == "__main__":
    B = 2
    in_channels = 4
    out_channels = 4
    shape = (16, 16)

    key = jax.random.PRNGKey(0)
    kx, kp = jax.random.split(key)
    x = jax.random.normal(kx, (B, in_channels), jnp.float32)
    params = init_params(kp, shape, in_channels, out_channels)
    pp = prepare_params(params, shape)          # one-time layout prep

    fwd = jax.jit(partial(meta_to_image_pallas, shape=shape))
    out = jax.block_until_ready(fwd(x, pp))
    ref = jax.block_until_ready(meta_to_image_ref(x, params, shape))

    assert out.shape == (B, out_channels, *shape), out.shape
    np.testing.assert_allclose(np.asarray(out), np.asarray(ref),
                               rtol=1e-4, atol=1e-4)
    print("KERNEL_OK")
</pallas_src>

<mosaic_0001>
module attributes {stable_mosaic.version = 11 : i64} {
  func.func @_fused_meta_to_image_kernel(%arg0: i32, %arg1: memref<2x4xf32, #tpu.memory_space<smem>>, %arg2: memref<4x256x32xf32, #tpu.memory_space<vmem>>, %arg3: memref<256x32xf32, #tpu.memory_space<vmem>>, %arg4: memref<3x288x32xf32, #tpu.memory_space<vmem>>, %arg5: memref<3x1x32xf32, #tpu.memory_space<vmem>>, %arg6: memref<288x4xf32, #tpu.memory_space<vmem>>, %arg7: memref<1x4xf32, #tpu.memory_space<vmem>>, %arg8: memref<1x256x4xf32, #tpu.memory_space<vmem>>, %arg9: memref<18x32x32xf32, #tpu.memory_space<vmem>>) attributes {dimension_semantics = [#tpu.dimension_semantics<parallel>], iteration_bounds = array<i64: 2>, scalar_prefetch = 0 : i64, scratch_operands = 1 : i64, tpu.core_type = #tpu.core_type<tc>, window_params = [{transform_indices = @transform_0, window_bounds = array<i64: 2, 4>}, {pipeline_mode = #tpu.pipeline_mode<synchronous>, transform_indices = @transform_1, window_bounds = array<i64: 4, 256, 32>}, {pipeline_mode = #tpu.pipeline_mode<synchronous>, transform_indices = @transform_2, window_bounds = array<i64: 256, 32>}, {pipeline_mode = #tpu.pipeline_mode<synchronous>, transform_indices = @transform_3, window_bounds = array<i64: 3, 288, 32>}, {pipeline_mode = #tpu.pipeline_mode<synchronous>, transform_indices = @transform_4, window_bounds = array<i64: 3, 1, 32>}, {pipeline_mode = #tpu.pipeline_mode<synchronous>, transform_indices = @transform_5, window_bounds = array<i64: 288, 4>}, {pipeline_mode = #tpu.pipeline_mode<synchronous>, transform_indices = @transform_6, window_bounds = array<i64: 1, 4>}, {transform_indices = @transform_7, window_bounds = array<i64: 1, 256, 4>}]} {
    %c0 = arith.constant 0 : index
    %c0_0 = arith.constant 0 : index
    %0 = vector.load %arg3[%c0, %c0_0] : memref<256x32xf32, #tpu.memory_space<vmem>>, vector<256x32xf32>
    %1 = arith.index_cast %arg0 : i32 to index
    %c0_1 = arith.constant 0 : index
    %2 = memref.load %arg1[%1, %c0_1] : memref<2x4xf32, #tpu.memory_space<smem>>
    %c0_2 = arith.constant 0 : index
    %c0_3 = arith.constant 0 : index
    %c0_4 = arith.constant 0 : index
    %3 = vector.load %arg2[%c0_2, %c0_3, %c0_4] : memref<4x256x32xf32, #tpu.memory_space<vmem>>, vector<1x256x32xf32>
    %4 = vector.shape_cast %3 : vector<1x256x32xf32> to vector<256x32xf32>
    %5 = vector.broadcast %2 : f32 to vector<256x32xf32>
    %6 = arith.mulf %5, %4 : vector<256x32xf32>
    %7 = arith.addf %0, %6 : vector<256x32xf32>
    %8 = arith.index_cast %arg0 : i32 to index
    %c1 = arith.constant 1 : index
    %9 = memref.load %arg1[%8, %c1] : memref<2x4xf32, #tpu.memory_space<smem>>
    %c1_5 = arith.constant 1 : index
    %c0_6 = arith.constant 0 : index
    %c0_7 = arith.constant 0 : index
    %10 = vector.load %arg2[%c1_5, %c0_6, %c0_7] : memref<4x256x32xf32, #tpu.memory_space<vmem>>, vector<1x256x32xf32>
    %11 = vector.shape_cast %10 : vector<1x256x32xf32> to vector<256x32xf32>
    %12 = vector.broadcast %9 : f32 to vector<256x32xf32>
    %13 = arith.mulf %12, %11 : vector<256x32xf32>
    %14 = arith.addf %7, %13 : vector<256x32xf32>
    %15 = arith.index_cast %arg0 : i32 to index
    %c2 = arith.constant 2 : index
    %16 = memref.load %arg1[%15, %c2] : memref<2x4xf32, #tpu.memory_space<smem>>
    %c2_8 = arith.constant 2 : index
    %c0_9 = arith.constant 0 : index
    %c0_10 = arith.constant 0 : index
    %17 = vector.load %arg2[%c2_8, %c0_9, %c0_10] : memref<4x256x32xf32, #tpu.memory_space<vmem>>, vector<1x256x32xf32>
    %18 = vector.shape_cast %17 : vector<1x256x32xf32> to vector<256x32xf32>
    %19 = vector.broadcast %16 : f32 to vector<256x32xf32>
    %20 = arith.mulf %19, %18 : vector<256x32xf32>
    %21 = arith.addf %14, %20 : vector<256x32xf32>
    %22 = arith.index_cast %arg0 : i32 to index
    %c3 = arith.constant 3 : index
    %23 = memref.load %arg1[%22, %c3] : memref<2x4xf32, #tpu.memory_space<smem>>
    %c3_11 = arith.constant 3 : index
    %c0_12 = arith.constant 0 : index
    %c0_13 = arith.constant 0 : index
    %24 = vector.load %arg2[%c3_11, %c0_12, %c0_13] : memref<4x256x32xf32, #tpu.memory_space<vmem>>, vector<1x256x32xf32>
    %25 = vector.shape_cast %24 : vector<1x256x32xf32> to vector<256x32xf32>
    %26 = vector.broadcast %23 : f32 to vector<256x32xf32>
    %27 = arith.mulf %26, %25 : vector<256x32xf32>
    %28 = arith.addf %21, %27 : vector<256x32xf32>
    %cst = arith.constant 0.000000e+00 : f32
    %29 = vector.broadcast %cst : f32 to vector<18x32x32xf32>
    %c0_14 = arith.constant 0 : index
    %c0_15 = arith.constant 0 : index
    %c0_16 = arith.constant 0 : index
    %30 = vector.load %arg9[%c0_14, %c0_15, %c0_16] : memref<18x32x32xf32, #tpu.memory_space<vmem>>, vector<18x32x32xf32>
    tpu.vector_store %arg9[%c0_14, %c0_15, %c0_16], %29 {strides = array<i32>} : memref<18x32x32xf32, #tpu.memory_space<vmem>>, vector<18x32x32xf32>,
    %c0_17 = arith.constant 0 : index
    %c0_18 = arith.constant 0 : index
    %c0_19 = arith.constant 0 : index
    %31 = vector.load %arg4[%c0_17, %c0_18, %c0_19] : memref<3x288x32xf32, #tpu.memory_space<vmem>>, vector<1x288x32xf32>
    %32 = vector.shape_cast %31 : vector<1x288x32xf32> to vector<288x32xf32>
    %c0_20 = arith.constant 0 : index
    %c0_21 = arith.constant 0 : index
    %c0_22 = arith.constant 0 : index
    %33 = vector.load %arg5[%c0_20, %c0_21, %c0_22] : memref<3x1x32xf32, #tpu.memory_space<vmem>>, vector<1x1x32xf32>
    %34 = vector.shape_cast %33 : vector<1x1x32xf32> to vector<1x32xf32>
    %35 = vector.shape_cast %28 : vector<256x32xf32> to vector<16x16x32xf32>
    %c1_23 = arith.constant 1 : index
    %c8 = arith.constant 8 : index
    %c0_24 = arith.constant 0 : index
    %36 = vector.load %arg9[%c1_23, %c8, %c0_24] : memref<18x32x32xf32, #tpu.memory_space<vmem>>, vector<16x16x32xf32>
    tpu.vector_store %arg9[%c1_23, %c8, %c0_24], %35 {strides = array<i32>} : memref<18x32x32xf32, #tpu.memory_space<vmem>>, vector<16x16x32xf32>,
    %c0_25 = arith.constant 0 : index
    %c0_26 = arith.constant 0 : index
    %c0_27 = arith.constant 0 : index
    %37 = vector.load %arg9[%c0_25, %c0_26, %c0_27] : memref<18x32x32xf32, #tpu.memory_space<vmem>>, vector<18x32x32xf32>
    %38 = vector.extract_strided_slice %37 {offsets = [0, 7, 0], sizes = [16, 16, 32], strides = [1, 1, 1]} : vector<18x32x32xf32> to vector<16x16x32xf32>
    %39 = vector.shape_cast %38 : vector<16x16x32xf32> to vector<256x32xf32>
    %40 = vector.extract_strided_slice %37 {offsets = [0, 8, 0], sizes = [16, 16, 32], strides = [1, 1, 1]} : vector<18x32x32xf32> to vector<16x16x32xf32>
    %41 = vector.shape_cast %40 : vector<16x16x32xf32> to vector<256x32xf32>
    %42 = vector.extract_strided_slice %37 {offsets = [0, 9, 0], sizes = [16, 16, 32], strides = [1, 1, 1]} : vector<18x32x32xf32> to vector<16x16x32xf32>
    %43 = vector.shape_cast %42 : vector<16x16x32xf32> to vector<256x32xf32>
    %44 = vector.extract_strided_slice %37 {offsets = [1, 7, 0], sizes = [16, 16, 32], strides = [1, 1, 1]} : vector<18x32x32xf32> to vector<16x16x32xf32>
    %45 = vector.shape_cast %44 : vector<16x16x32xf32> to vector<256x32xf32>
    %46 = vector.extract_strided_slice %37 {offsets = [1, 8, 0], sizes = [16, 16, 32], strides = [1, 1, 1]} : vector<18x32x32xf32> to vector<16x16x32xf32>
    %47 = vector.shape_cast %46 : vector<16x16x32xf32> to vector<256x32xf32>
    %48 = vector.extract_strided_slice %37 {offsets = [1, 9, 0], sizes = [16, 16, 32], strides = [1, 1, 1]} : vector<18x32x32xf32> to vector<16x16x32xf32>
    %49 = vector.shape_cast %48 : vector<16x16x32xf32> to vector<256x32xf32>
    %50 = vector.extract_strided_slice %37 {offsets = [2, 7, 0], sizes = [16, 16, 32], strides = [1, 1, 1]} : vector<18x32x32xf32> to vector<16x16x32xf32>
    %51 = vector.shape_cast %50 : vector<16x16x32xf32> to vector<256x32xf32>
    %52 = vector.extract_strided_slice %37 {offsets = [2, 8, 0], sizes = [16, 16, 32], strides = [1, 1, 1]} : vector<18x32x32xf32> to vector<16x16x32xf32>
    %53 = vector.shape_cast %52 : vector<16x16x32xf32> to vector<256x32xf32>
    %54 = vector.extract_strided_slice %37 {offsets = [2, 9, 0], sizes = [16, 16, 32], strides = [1, 1, 1]} : vector<18x32x32xf32> to vector<16x16x32xf32>
    %55 = vector.shape_cast %54 : vector<16x16x32xf32> to vector<256x32xf32>
    %56 = tpu.concatenate %39, %41, %43, %45, %47, %49, %51, %53, %55 in 1 : vector<256x32xf32>, vector<256x32xf32>, vector<256x32xf32>, vector<256x32xf32>, vector<256x32xf32>, vector<256x32xf32>, vector<256x32xf32>, vector<256x32xf32>, vector<256x32xf32> -> vector<256x288xf32>
    %cst_28 = arith.constant dense<0.000000e+00> : vector<256x32xf32>
    %57 = tpu.matmul %56, %32, %cst_28 {dimension_numbers = #tpu.dot_dimension_numbers<[1], [0], [0], [1], [0, 0, 1, 1], [], []>} : vector<256x288xf32>, vector<288x32xf32>, vector<256x32xf32> -> vector<256x32xf32>
    %58 = vector.broadcast %34 : vector<1x32xf32> to vector<256x32xf32>
    %59 = arith.addf %57, %58 : vector<256x32xf32>
    %cst_29 = arith.constant 0.000000e+00 : f32
    %60 = vector.broadcast %cst_29 : f32 to vector<256x32xf32>
    %61 = arith.cmpf ogt, %59, %60 : vector<256x32xf32>
    %cst_30 = arith.constant 2.000000e-01 : f32
    %62 = vector.broadcast %cst_30 : f32 to vector<256x32xf32>
    %63 = arith.mulf %62, %59 : vector<256x32xf32>
    %64 = arith.select %61, %59, %63 : vector<256x32xi1>, vector<256x32xf32>
    %c1_31 = arith.constant 1 : index
    %c0_32 = arith.constant 0 : index
    %c0_33 = arith.constant 0 : index
    %65 = vector.load %arg4[%c1_31, %c0_32, %c0_33] : memref<3x288x32xf32, #tpu.memory_space<vmem>>, vector<1x288x32xf32>
    %66 = vector.shape_cast %65 : vector<1x288x32xf32> to vector<288x32xf32>
    %c1_34 = arith.constant 1 : index
    %c0_35 = arith.constant 0 : index
    %c0_36 = arith.constant 0 : index
    %67 = vector.load %arg5[%c1_34, %c0_35, %c0_36] : memref<3x1x32xf32, #tpu.memory_space<vmem>>, vector<1x1x32xf32>
    %68 = vector.shape_cast %67 : vector<1x1x32xf32> to vector<1x32xf32>
    %69 = vector.shape_cast %64 : vector<256x32xf32> to vector<16x16x32xf32>
    %c1_37 = arith.constant 1 : index
    %c8_38 = arith.constant 8 : index
    %c0_39 = arith.constant 0 : index
    %70 = vector.load %arg9[%c1_37, %c8_38, %c0_39] : memref<18x32x32xf32, #tpu.memory_space<vmem>>, vector<16x16x32xf32>
    tpu.vector_store %arg9[%c1_37, %c8_38, %c0_39], %69 {strides = array<i32>} : memref<18x32x32xf32, #tpu.memory_space<vmem>>, vector<16x16x32xf32>,
    %c0_40 = arith.constant 0 : index
    %c0_41 = arith.constant 0 : index
    %c0_42 = arith.constant 0 : index
    %71 = vector.load %arg9[%c0_40, %c0_41, %c0_42] : memref<18x32x32xf32, #tpu.memory_space<vmem>>, vector<18x32x32xf32>
    %72 = vector.extract_strided_slice %71 {offsets = [0, 7, 0], sizes = [16, 16, 32], strides = [1, 1, 1]} : vector<18x32x32xf32> to vector<16x16x32xf32>
    %73 = vector.shape_cast %72 : vector<16x16x32xf32> to vector<256x32xf32>
    %74 = vector.extract_strided_slice %71 {offsets = [0, 8, 0], sizes = [16, 16, 32], strides = [1, 1, 1]} : vector<18x32x32xf32> to vector<16x16x32xf32>
    %75 = vector.shape_cast %74 : vector<16x16x32xf32> to vector<256x32xf32>
    %76 = vector.extract_strided_slice %71 {offsets = [0, 9, 0], sizes = [16, 16, 32], strides = [1, 1, 1]} : vector<18x32x32xf32> to vector<16x16x32xf32>
    %77 = vector.shape_cast %76 : vector<16x16x32xf32> to vector<256x32xf32>
    %78 = vector.extract_strided_slice %71 {offsets = [1, 7, 0], sizes = [16, 16, 32], strides = [1, 1, 1]} : vector<18x32x32xf32> to vector<16x16x32xf32>
    %79 = vector.shape_cast %78 : vector<16x16x32xf32> to vector<256x32xf32>
    %80 = vector.extract_strided_slice %71 {offsets = [1, 8, 0], sizes = [16, 16, 32], strides = [1, 1, 1]} : vector<18x32x32xf32> to vector<16x16x32xf32>
    %81 = vector.shape_cast %80 : vector<16x16x32xf32> to vector<256x32xf32>
    %82 = vector.extract_strided_slice %71 {offsets = [1, 9, 0], sizes = [16, 16, 32], strides = [1, 1, 1]} : vector<18x32x32xf32> to vector<16x16x32xf32>
    %83 = vector.shape_cast %82 : vector<16x16x32xf32> to vector<256x32xf32>
    %84 = vector.extract_strided_slice %71 {offsets = [2, 7, 0], sizes = [16, 16, 32], strides = [1, 1, 1]} : vector<18x32x32xf32> to vector<16x16x32xf32>
    %85 = vector.shape_cast %84 : vector<16x16x32xf32> to vector<256x32xf32>
    %86 = vector.extract_strided_slice %71 {offsets = [2, 8, 0], sizes = [16, 16, 32], strides = [1, 1, 1]} : vector<18x32x32xf32> to vector<16x16x32xf32>
    %87 = vector.shape_cast %86 : vector<16x16x32xf32> to vector<256x32xf32>
    %88 = vector.extract_strided_slice %71 {offsets = [2, 9, 0], sizes = [16, 16, 32], strides = [1, 1, 1]} : vector<18x32x32xf32> to vector<16x16x32xf32>
    %89 = vector.shape_cast %88 : vector<16x16x32xf32> to vector<256x32xf32>
    %90 = tpu.concatenate %73, %75, %77, %79, %81, %83, %85, %87, %89 in 1 : vector<256x32xf32>, vector<256x32xf32>, vector<256x32xf32>, vector<256x32xf32>, vector<256x32xf32>, vector<256x32xf32>, vector<256x32xf32>, vector<256x32xf32>, vector<256x32xf32> -> vector<256x288xf32>
    %cst_43 = arith.constant dense<0.000000e+00> : vector<256x32xf32>
    %91 = tpu.matmul %90, %66, %cst_43 {dimension_numbers = #tpu.dot_dimension_numbers<[1], [0], [0], [1], [0, 0, 1, 1], [], []>} : vector<256x288xf32>, vector<288x32xf32>, vector<256x32xf32> -> vector<256x32xf32>
    %92 = vector.broadcast %68 : vector<1x32xf32> to vector<256x32xf32>
    %93 = arith.addf %91, %92 : vector<256x32xf32>
    %cst_44 = arith.constant 0.000000e+00 : f32
    %94 = vector.broadcast %cst_44 : f32 to vector<256x32xf32>
    %95 = arith.cmpf ogt, %93, %94 : vector<256x32xf32>
    %cst_45 = arith.constant 2.000000e-01 : f32
    %96 = vector.broadcast %cst_45 : f32 to vector<256x32xf32>
    %97 = arith.mulf %96, %93 : vector<256x32xf32>
    %98 = arith.select %95, %93, %97 : vector<256x32xi1>, vector<256x32xf32>
    %c2_46 = arith.constant 2 : index
    %c0_47 = arith.constant 0 : index
    %c0_48 = arith.constant 0 : index
    %99 = vector.load %arg4[%c2_46, %c0_47, %c0_48] : memref<3x288x32xf32, #tpu.memory_space<vmem>>, vector<1x288x32xf32>
    %100 = vector.shape_cast %99 : vector<1x288x32xf32> to vector<288x32xf32>
    %c2_49 = arith.constant 2 : index
    %c0_50 = arith.constant 0 : index
    %c0_51 = arith.constant 0 : index
    %101 = vector.load %arg5[%c2_49, %c0_50, %c0_51] : memref<3x1x32xf32, #tpu.memory_space<vmem>>, vector<1x1x32xf32>
    %102 = vector.shape_cast %101 : vector<1x1x32xf32> to vector<1x32xf32>
    %103 = vector.shape_cast %98 : vector<256x32xf32> to vector<16x16x32xf32>
    %c1_52 = arith.constant 1 : index
    %c8_53 = arith.constant 8 : index
    %c0_54 = arith.constant 0 : index
    %104 = vector.load %arg9[%c1_52, %c8_53, %c0_54] : memref<18x32x32xf32, #tpu.memory_space<vmem>>, vector<16x16x32xf32>
    tpu.vector_store %arg9[%c1_52, %c8_53, %c0_54], %103 {strides = array<i32>} : memref<18x32x32xf32, #tpu.memory_space<vmem>>, vector<16x16x32xf32>,
    %c0_55 = arith.constant 0 : index
    %c0_56 = arith.constant 0 : index
    %c0_57 = arith.constant 0 : index
    %105 = vector.load %arg9[%c0_55, %c0_56, %c0_57] : memref<18x32x32xf32, #tpu.memory_space<vmem>>, vector<18x32x32xf32>
    %106 = vector.extract_strided_slice %105 {offsets = [0, 7, 0], sizes = [16, 16, 32], strides = [1, 1, 1]} : vector<18x32x32xf32> to vector<16x16x32xf32>
    %107 = vector.shape_cast %106 : vector<16x16x32xf32> to vector<256x32xf32>
    %108 = vector.extract_strided_slice %105 {offsets = [0, 8, 0], sizes = [16, 16, 32], strides = [1, 1, 1]} : vector<18x32x32xf32> to vector<16x16x32xf32>
    %109 = vector.shape_cast %108 : vector<16x16x32xf32> to vector<256x32xf32>
    %110 = vector.extract_strided_slice %105 {offsets = [0, 9, 0], sizes = [16, 16, 32], strides = [1, 1, 1]} : vector<18x32x32xf32> to vector<16x16x32xf32>
    %111 = vector.shape_cast %110 : vector<16x16x32xf32> to vector<256x32xf32>
    %112 = vector.extract_strided_slice %105 {offsets = [1, 7, 0], sizes = [16, 16, 32], strides = [1, 1, 1]} : vector<18x32x32xf32> to vector<16x16x32xf32>
    %113 = vector.shape_cast %112 : vector<16x16x32xf32> to vector<256x32xf32>
    %114 = vector.extract_strided_slice %105 {offsets = [1, 8, 0], sizes = [16, 16, 32], strides = [1, 1, 1]} : vector<18x32x32xf32> to vector<16x16x32xf32>
    %115 = vector.shape_cast %114 : vector<16x16x32xf32> to vector<256x32xf32>
    %116 = vector.extract_strided_slice %105 {offsets = [1, 9, 0], sizes = [16, 16, 32], strides = [1, 1, 1]} : vector<18x32x32xf32> to vector<16x16x32xf32>
    %117 = vector.shape_cast %116 : vector<16x16x32xf32> to vector<256x32xf32>
    %118 = vector.extract_strided_slice %105 {offsets = [2, 7, 0], sizes = [16, 16, 32], strides = [1, 1, 1]} : vector<18x32x32xf32> to vector<16x16x32xf32>
    %119 = vector.shape_cast %118 : vector<16x16x32xf32> to vector<256x32xf32>
    %120 = vector.extract_strided_slice %105 {offsets = [2, 8, 0], sizes = [16, 16, 32], strides = [1, 1, 1]} : vector<18x32x32xf32> to vector<16x16x32xf32>
    %121 = vector.shape_cast %120 : vector<16x16x32xf32> to vector<256x32xf32>
    %122 = vector.extract_strided_slice %105 {offsets = [2, 9, 0], sizes = [16, 16, 32], strides = [1, 1, 1]} : vector<18x32x32xf32> to vector<16x16x32xf32>
    %123 = vector.shape_cast %122 : vector<16x16x32xf32> to vector<256x32xf32>
    %124 = tpu.concatenate %107, %109, %111, %113, %115, %117, %119, %121, %123 in 1 : vector<256x32xf32>, vector<256x32xf32>, vector<256x32xf32>, vector<256x32xf32>, vector<256x32xf32>, vector<256x32xf32>, vector<256x32xf32>, vector<256x32xf32>, vector<256x32xf32> -> vector<256x288xf32>
    %cst_58 = arith.constant dense<0.000000e+00> : vector<256x32xf32>
    %125 = tpu.matmul %124, %100, %cst_58 {dimension_numbers = #tpu.dot_dimension_numbers<[1], [0], [0], [1], [0, 0, 1, 1], [], []>} : vector<256x288xf32>, vector<288x32xf32>, vector<256x32xf32> -> vector<256x32xf32>
    %126 = vector.broadcast %102 : vector<1x32xf32> to vector<256x32xf32>
    %127 = arith.addf %125, %126 : vector<256x32xf32>
    %cst_59 = arith.constant 0.000000e+00 : f32
    %128 = vector.broadcast %cst_59 : f32 to vector<256x32xf32>
    %129 = arith.cmpf ogt, %127, %128 : vector<256x32xf32>
    %cst_60 = arith.constant 2.000000e-01 : f32
    %130 = vector.broadcast %cst_60 : f32 to vector<256x32xf32>
    %131 = arith.mulf %130, %127 : vector<256x32xf32>
    %132 = arith.select %129, %127, %131 : vector<256x32xi1>, vector<256x32xf32>
    %c0_61 = arith.constant 0 : index
    %c0_62 = arith.constant 0 : index
    %133 = vector.load %arg6[%c0_61, %c0_62] : memref<288x4xf32, #tpu.memory_space<vmem>>, vector<288x4xf32>
    %c0_63 = arith.constant 0 : index
    %c0_64 = arith.constant 0 : index
    %134 = vector.load %arg7[%c0_63, %c0_64] : memref<1x4xf32, #tpu.memory_space<vmem>>, vector<1x4xf32>
    %135 = vector.shape_cast %132 : vector<256x32xf32> to vector<16x16x32xf32>
    %c1_65 = arith.constant 1 : index
    %c8_66 = arith.constant 8 : index
    %c0_67 = arith.constant 0 : index
    %136 = vector.load %arg9[%c1_65, %c8_66, %c0_67] : memref<18x32x32xf32, #tpu.memory_space<vmem>>, vector<16x16x32xf32>
    tpu.vector_store %arg9[%c1_65, %c8_66, %c0_67], %135 {strides = array<i32>} : memref<18x32x32xf32, #tpu.memory_space<vmem>>, vector<16x16x32xf32>,
    %c0_68 = arith.constant 0 : index
    %c0_69 = arith.constant 0 : index
    %c0_70 = arith.constant 0 : index
    %137 = vector.load %arg9[%c0_68, %c0_69, %c0_70] : memref<18x32x32xf32, #tpu.memory_space<vmem>>, vector<18x32x32xf32>
    %138 = vector.extract_strided_slice %137 {offsets = [0, 7, 0], sizes = [16, 16, 32], strides = [1, 1, 1]} : vector<18x32x32xf32> to vector<16x16x32xf32>
    %139 = vector.shape_cast %138 : vector<16x16x32xf32> to vector<256x32xf32>
    %140 = vector.extract_strided_slice %137 {offsets = [0, 8, 0], sizes = [16, 16, 32], strides = [1, 1, 1]} : vector<18x32x32xf32> to vector<16x16x32xf32>
    %141 = vector.shape_cast %140 : vector<16x16x32xf32> to vector<256x32xf32>
    %142 = vector.extract_strided_slice %137 {offsets = [0, 9, 0], sizes = [16, 16, 32], strides = [1, 1, 1]} : vector<18x32x32xf32> to vector<16x16x32xf32>
    %143 = vector.shape_cast %142 : vector<16x16x32xf32> to vector<256x32xf32>
    %144 = vector.extract_strided_slice %137 {offsets = [1, 7, 0], sizes = [16, 16, 32], strides = [1, 1, 1]} : vector<18x32x32xf32> to vector<16x16x32xf32>
    %145 = vector.shape_cast %144 : vector<16x16x32xf32> to vector<256x32xf32>
    %146 = vector.extract_strided_slice %137 {offsets = [1, 8, 0], sizes = [16, 16, 32], strides = [1, 1, 1]} : vector<18x32x32xf32> to vector<16x16x32xf32>
    %147 = vector.shape_cast %146 : vector<16x16x32xf32> to vector<256x32xf32>
    %148 = vector.extract_strided_slice %137 {offsets = [1, 9, 0], sizes = [16, 16, 32], strides = [1, 1, 1]} : vector<18x32x32xf32> to vector<16x16x32xf32>
    %149 = vector.shape_cast %148 : vector<16x16x32xf32> to vector<256x32xf32>
    %150 = vector.extract_strided_slice %137 {offsets = [2, 7, 0], sizes = [16, 16, 32], strides = [1, 1, 1]} : vector<18x32x32xf32> to vector<16x16x32xf32>
    %151 = vector.shape_cast %150 : vector<16x16x32xf32> to vector<256x32xf32>
    %152 = vector.extract_strided_slice %137 {offsets = [2, 8, 0], sizes = [16, 16, 32], strides = [1, 1, 1]} : vector<18x32x32xf32> to vector<16x16x32xf32>
    %153 = vector.shape_cast %152 : vector<16x16x32xf32> to vector<256x32xf32>
    %154 = vector.extract_strided_slice %137 {offsets = [2, 9, 0], sizes = [16, 16, 32], strides = [1, 1, 1]} : vector<18x32x32xf32> to vector<16x16x32xf32>
    %155 = vector.shape_cast %154 : vector<16x16x32xf32> to vector<256x32xf32>
    %156 = tpu.concatenate %139, %141, %143, %145, %147, %149, %151, %153, %155 in 1 : vector<256x32xf32>, vector<256x32xf32>, vector<256x32xf32>, vector<256x32xf32>, vector<256x32xf32>, vector<256x32xf32>, vector<256x32xf32>, vector<256x32xf32>, vector<256x32xf32> -> vector<256x288xf32>
    %cst_71 = arith.constant dense<0.000000e+00> : vector<256x4xf32>
    %157 = tpu.matmul %156, %133, %cst_71 {dimension_numbers = #tpu.dot_dimension_numbers<[1], [0], [0], [1], [0, 0, 1, 1], [], []>} : vector<256x288xf32>, vector<288x4xf32>, vector<256x4xf32> -> vector<256x4xf32>
    %158 = vector.broadcast %134 : vector<1x4xf32> to vector<256x4xf32>
    %159 = arith.addf %157, %158 : vector<256x4xf32>
    %c0_72 = arith.constant 0 : index
    %c0_73 = arith.constant 0 : index
    %c0_74 = arith.constant 0 : index
    %160 = vector.load %arg8[%c0_72, %c0_73, %c0_74] : memref<1x256x4xf32, #tpu.memory_space<vmem>>, vector<1x256x4xf32>
    %161 = vector.shape_cast %160 : vector<1x256x4xf32> to vector<256x4xf32>
    %162 = vector.shape_cast %159 : vector<256x4xf32> to vector<1x256x4xf32>
    tpu.vector_store %arg8[%c0_72, %c0_73, %c0_74], %162 {strides = array<i32>} : memref<1x256x4xf32, #tpu.memory_space<vmem>>, vector<1x256x4xf32>,
    return
  }
  func.func @transform_0(%arg0: i32) -> (i32, i32) {
    %c0_i32 = arith.constant 0 : i32
    %c0_i32_0 = arith.constant 0 : i32
    %c0_i32_1 = arith.constant 0 : i32
    return %c0_i32, %c0_i32_0 : i32, i32
  }
  func.func @transform_1(%arg0: i32) -> (i32, i32, i32) {
    %c0_i32 = arith.constant 0 : i32
    %c0_i32_0 = arith.constant 0 : i32
    %c0_i32_1 = arith.constant 0 : i32
    %c0_i32_2 = arith.constant 0 : i32
    return %c0_i32, %c0_i32_0, %c0_i32_1 : i32, i32, i32
  }
  func.func @transform_2(%arg0: i32) -> (i32, i32) {
    %c0_i32 = arith.constant 0 : i32
    %c0_i32_0 = arith.constant 0 : i32
    %c0_i32_1 = arith.constant 0 : i32
    return %c0_i32, %c0_i32_0 : i32, i32
  }
  func.func @transform_3(%arg0: i32) -> (i32, i32, i32) {
    %c0_i32 = arith.constant 0 : i32
    %c0_i32_0 = arith.constant 0 : i32
    %c0_i32_1 = arith.constant 0 : i32
    %c0_i32_2 = arith.constant 0 : i32
    return %c0_i32, %c0_i32_0, %c0_i32_1 : i32, i32, i32
  }
  func.func @transform_4(%arg0: i32) -> (i32, i32, i32) {
    %c0_i32 = arith.constant 0 : i32
    %c0_i32_0 = arith.constant 0 : i32
    %c0_i32_1 = arith.constant 0 : i32
    %c0_i32_2 = arith.constant 0 : i32
    return %c0_i32, %c0_i32_0, %c0_i32_1 : i32, i32, i32
  }
  func.func @transform_5(%arg0: i32) -> (i32, i32) {
    %c0_i32 = arith.constant 0 : i32
    %c0_i32_0 = arith.constant 0 : i32
    %c0_i32_1 = arith.constant 0 : i32
    return %c0_i32, %c0_i32_0 : i32, i32
  }
  func.func @transform_6(%arg0: i32) -> (i32, i32) {
    %c0_i32 = arith.constant 0 : i32
    %c0_i32_0 = arith.constant 0 : i32
    %c0_i32_1 = arith.constant 0 : i32
    return %c0_i32, %c0_i32_0 : i32, i32
  }
  func.func @transform_7(%arg0: i32) -> (i32, i32, i32) {
    %c0_i32 = arith.constant 0 : i32
    %c0_i32_0 = arith.constant 0 : i32
    %c0_i32_1 = arith.constant 0 : i32
    return %arg0, %c0_i32, %c0_i32_0 : i32, i32, i32
  }
}

</mosaic_0001>

<llo_original>
// kernel: meta_to_image_pallas.1
$region0: #{meta_to_image_pallas.1}
  #allocation0 [shape = 'u32[]', space=smem, size = 0x4, offset = 0x4, fixed_abs, tag = 'smem constant byte address 0x4 - core index']
  #allocation1 [shape = 'u32[144,128]{1,0:T(1,128)}', space=vmem, size = 0x12000, scoped, tag = 'internal scratch']
  #allocation2 [shape = 'f32[18,32,32]{2,1,0:T(8,128)}', space=vmem, size = 0x48000, scoped, tag = 'scratch operand']
  %s0 = inlined_call_operand.vmem [shape: f32[2,4], index: 0, kind: input, shape index: {}]
  %s1 = inlined_call_operand.vmem [shape: f32[4,256,32], index: 1, kind: input, shape index: {}]
  %s2 = inlined_call_operand.vmem [shape: f32[256,32], index: 2, kind: input, shape index: {}]
  %s3 = inlined_call_operand.vmem [shape: f32[3,288,32], index: 3, kind: input, shape index: {}]
  %s4 = inlined_call_operand.vmem [shape: f32[3,1,32], index: 4, kind: input, shape index: {}]
  %s5 = inlined_call_operand.vmem [shape: f32[288,4], index: 5, kind: input, shape index: {}]
  %s6 = inlined_call_operand.vmem [shape: f32[1,4], index: 6, kind: input, shape index: {}]
  %s7 = inlined_call_operand.vmem [shape: f32[2,256,4], index: 7, kind: output, shape index: {}]
  %s8 = sld [smem:[#allocation0]]
  $region65: #{meta_to_image_pallas.1} parent=0
    _
  %s10 = ssub.s32 1, %s8
  %s11 = scalar_select 0, %s10, %s8
  $region1: #{meta_to_image_pallas.1} parent=0
    #allocation3 [shape = 'u8[1024]{0}', space=smem, size = 0x400, scoped, tag = 'input window, operand 0, single buffered']
    #allocation4 [shape = 's32[2]{0}', space=sflag, size = 0x8, scoped, tag = 'scoped memory for meta_to_image_pallas.1']
    %12 = vsyncpa [#allocation4], 0
    loop: start=0, step=1, limit=4
    $region2: #{meta_to_image_pallas.1} parent=1 // loop_pre_header
      _
    $region3: #{meta_to_image_pallas.1} parent=1 // loop_header
      %s14 = sphi 0, %s18
      %p15 = scmp.ge.s32.totalorder %s14, 4
      %s22 = sphi 0, %s22
      %s24 = sphi 0, %s22
      %s25 = sphi 0, %s24
      %s39 = sphi 0, %s25
      %s43 = sphi 0, %s43
      %s45 = sphi 0, %s43
      %s46 = sphi 0, %s45
      %s60 = sphi 0, %s46
      %s64 = sphi 0, %s64
      %s66 = sphi 0, %s64
      %s67 = sphi 0, %s66
      %s81 = sphi 0, %s67
      %s85 = sphi 0, %s85
      %s87 = sphi 0, %s85
      %s88 = sphi 0, %s87
      %s102 = sphi 0, %s88
      %s106 = sphi 0, %s106
      %s108 = sphi 0, %s106
      %s109 = sphi 0, %s108
      %s123 = sphi 0, %s109
      %s127 = sphi 0, %s127
      %s129 = sphi 0, %s127
      %s130 = sphi 0, %s129
      %s144 = sphi 0, %s130
      %s148 = sphi 0, %s148
      %s150 = sphi 0, %s148
      %s151 = sphi 0, %s150
      %s165 = sphi 0, %s151
      %s171 = sphi 0, %s173
      %s174 = sphi 0, %s171
      %s175 = sphi 0, %s174
      %s191 = sphi 0, %s175
    $region4: #{meta_to_image_pallas.1} parent=1 // loop_header_branch
      %17 = sbr.rel (%p15) target = $region8
    $region5: #{meta_to_image_pallas.1} parent=1 // loop_body
      %s19 = ssub.s32 %s14, 1
      %s20 = ssub.s32 %s14, 2
      %s21 = sadd.s32 %s14, 1
      %s23 = sadd.s32 %s22, 1
      %p26 = scmp.eq.s32.totalorder %s14, 1
      %p27 = scmp.ne.s32.totalorder %s22, %s24
      %p28 = scmp.eq.s32.totalorder %s14, 0
      %p29 = por %p27, %p28
      %p30 = scmp.ne.s32.totalorder %s22, %s24
      %p31 = scmp.eq.s32.totalorder %s19, 1
      %p32 = por %p30, %p31
      %p33 = scmp.ne.s32.totalorder %s24, %s25
      %p34 = scmp.eq.s32.totalorder %s19, 0
      %p35 = por %p33, %p34
      %p36 = scmp.ne.s32.totalorder %s24, %s25
      %p37 = scmp.eq.s32.totalorder %s20, 1
      %p38 = por %p36, %p37
      %p40 = scmp.ne.s32.totalorder %s25, %s39
      %p41 = scmp.eq.s32.totalorder %s20, 0
      %p42 = por %p40, %p41
      %s44 = sadd.s32 %s43, 1
      %p47 = scmp.eq.s32.totalorder %s14, 1
      %p48 = scmp.ne.s32.totalorder %s43, %s45
      %p49 = scmp.eq.s32.totalorder %s14, 0
      %p50 = por %p48, %p49
      %p51 = scmp.ne.s32.totalorder %s43, %s45
      %p52 = scmp.eq.s32.totalorder %s19, 1
      %p53 = por %p51, %p52
      %p54 = scmp.ne.s32.totalorder %s45, %s46
      %p55 = scmp.eq.s32.totalorder %s19, 0
      %p56 = por %p54, %p55
      %p57 = scmp.ne.s32.totalorder %s45, %s46
      %p58 = scmp.eq.s32.totalorder %s20, 1
      %p59 = por %p57, %p58
      %p61 = scmp.ne.s32.totalorder %s46, %s60
      %p62 = scmp.eq.s32.totalorder %s20, 0
      %p63 = por %p61, %p62
      %s65 = sadd.s32 %s64, 1
      %p68 = scmp.eq.s32.totalorder %s14, 1
      %p69 = scmp.ne.s32.totalorder %s64, %s66
      %p70 = scmp.eq.s32.totalorder %s14, 0
      %p71 = por %p69, %p70
      %p72 = scmp.ne.s32.totalorder %s64, %s66
      %p73 = scmp.eq.s32.totalorder %s19, 1
      %p74 = por %p72, %p73
      %p75 = scmp.ne.s32.totalorder %s66, %s67
      %p76 = scmp.eq.s32.totalorder %s19, 0
      %p77 = por %p75, %p76
      %p78 = scmp.ne.s32.totalorder %s66, %s67
      %p79 = scmp.eq.s32.totalorder %s20, 1
      %p80 = por %p78, %p79
      %p82 = scmp.ne.s32.totalorder %s67, %s81
      %p83 = scmp.eq.s32.totalorder %s20, 0
      %p84 = por %p82, %p83
      %s86 = sadd.s32 %s85, 1
      %p89 = scmp.eq.s32.totalorder %s14, 1
      %p90 = scmp.ne.s32.totalorder %s85, %s87
      %p91 = scmp.eq.s32.totalorder %s14, 0
      %p92 = por %p90, %p91
      %p93 = scmp.ne.s32.totalorder %s85, %s87
      %p94 = scmp.eq.s32.totalorder %s19, 1
      %p95 = por %p93, %p94
      %p96 = scmp.ne.s32.totalorder %s87, %s88
      %p97 = scmp.eq.s32.totalorder %s19, 0
      %p98 = por %p96, %p97
      %p99 = scmp.ne.s32.totalorder %s87, %s88
      %p100 = scmp.eq.s32.totalorder %s20, 1
      %p101 = por %p99, %p100
      %p103 = scmp.ne.s32.totalorder %s88, %s102
      %p104 = scmp.eq.s32.totalorder %s20, 0
      %p105 = por %p103, %p104
      %s107 = sadd.s32 %s106, 1
      %p110 = scmp.eq.s32.totalorder %s14, 1
      %p111 = scmp.ne.s32.totalorder %s106, %s108
      %p112 = scmp.eq.s32.totalorder %s14, 0
      %p113 = por %p111, %p112
      %p114 = scmp.ne.s32.totalorder %s106, %s108
      %p115 = scmp.eq.s32.totalorder %s19, 1
      %p116 = por %p114, %p115
      %p117 = scmp.ne.s32.totalorder %s108, %s109
      %p118 = scmp.eq.s32.totalorder %s19, 0
      %p119 = por %p117, %p118
      %p120 = scmp.ne.s32.totalorder %s108, %s109
      %p121 = scmp.eq.s32.totalorder %s20, 1
      %p122 = por %p120, %p121
      %p124 = scmp.ne.s32.totalorder %s109, %s123
      %p125 = scmp.eq.s32.totalorder %s20, 0
      %p126 = por %p124, %p125
      %s128 = sadd.s32 %s127, 1
      %p131 = scmp.eq.s32.totalorder %s14, 1
      %p132 = scmp.ne.s32.totalorder %s127, %s129
      %p133 = scmp.eq.s32.totalorder %s14, 0
      %p134 = por %p132, %p133
      %p135 = scmp.ne.s32.totalorder %s127, %s129
      %p136 = scmp.eq.s32.totalorder %s19, 1
      %p137 = por %p135, %p136
      %p138 = scmp.ne.s32.totalorder %s129, %s130
      %p139 = scmp.eq.s32.totalorder %s19, 0
      %p140 = por %p138, %p139
      %p141 = scmp.ne.s32.totalorder %s129, %s130
      %p142 = scmp.eq.s32.totalorder %s20, 1
      %p143 = por %p141, %p142
      %p145 = scmp.ne.s32.totalorder %s130, %s144
      %p146 = scmp.eq.s32.totalorder %s20, 0
      %p147 = por %p145, %p146
      %s149 = sadd.s32 %s148, 1
      %p152 = scmp.eq.s32.totalorder %s14, 1
      %p153 = scmp.ne.s32.totalorder %s148, %s150
      %p154 = scmp.eq.s32.totalorder %s14, 0
      %p155 = por %p153, %p154
      %p156 = scmp.ne.s32.totalorder %s148, %s150
      %p157 = scmp.eq.s32.totalorder %s19, 1
      %p158 = por %p156, %p157
      %p159 = scmp.ne.s32.totalorder %s150, %s151
      %p160 = scmp.eq.s32.totalorder %s19, 0
      %p161 = por %p159, %p160
      %p162 = scmp.ne.s32.totalorder %s150, %s151
      %p163 = scmp.eq.s32.totalorder %s20, 1
      %p164 = por %p162, %p163
      %p166 = scmp.ne.s32.totalorder %s151, %s165
      %p167 = scmp.eq.s32.totalorder %s20, 0
      %p168 = por %p166, %p167
      %s169 = ssub.s32 %s14, %s21
      %p170 = scmp.eq.s32.totalorder %s169, 0
      %s172 = sadd.s32 %s171, 1
      %s173 = scalar_select %p170, %s171, %s172
      %p176 = pneg %p170
      %p177 = scmp.eq.s32.totalorder %s14, 1
      %p178 = por %p176, %p177
      %p179 = scmp.ne.s32.totalorder %s171, %s174
      %p180 = scmp.eq.s32.totalorder %s14, 0
      %p181 = por %p179, %p180
      %p182 = scmp.ne.s32.totalorder %s171, %s174
      %p183 = scmp.eq.s32.totalorder %s19, 1
      %p184 = por %p182, %p183
      %p185 = scmp.ne.s32.totalorder %s174, %s175
      %p186 = scmp.eq.s32.totalorder %s19, 0
      %p187 = por %p185, %p186
      %p188 = scmp.ne.s32.totalorder %s174, %s175
      %p189 = scmp.eq.s32.totalorder %s20, 1
      %p190 = por %p188, %p189
      %p192 = scmp.ne.s32.totalorder %s175, %s191
      %p193 = scmp.eq.s32.totalorder %s20, 0
      %p194 = por %p192, %p193
      %p195 = scmp.le.s32.totalorder 1, %s14
      %p196 = scmp.lt.s32.totalorder %s14, 3
      %p197 = pnand %p195, %p196
      %p198 = pneg %p197
      // Predicated region
      $region9: #{meta_to_image_pallas.1} parent=5 // pred_check
        _
      $region10: #{meta_to_image_pallas.1} parent=5 // pred_check_branch
        %200 = sbr.rel (%p197) target = $region12
      $region11: #{meta_to_image_pallas.1} parent=5 // pred_region
        %s201 = ssub.s32 %s14, 1
        // Predicated region
        $region13: #{meta_to_image_pallas.1} parent=11 // pred_check
          %p202 = pneg %p35
        $region14: #{meta_to_image_pallas.1} parent=11 // pred_check_branch
          %204 = sbr.rel (%p202) target = $region16
        $region15: #{meta_to_image_pallas.1} parent=11 // pred_region
          %s206 = ssub.s32 32, 32
          %207 = vsyncadd [#allocation4], %s206
          %s209 = sshll.u32 %s0, 4
          %s210 = int_to_ptr.vmem [resolvable:$true] %s209
          %212 = dma.vmem_to_smem %s210, 32, [#allocation3], [#allocation4]
        $region16: #{meta_to_image_pallas.1} parent=11 // pred_fallthru
          _
        // Predicated region
        $region17: #{meta_to_image_pallas.1} parent=11 // pred_check
          %p213 = pneg %p56
        $region18: #{meta_to_image_pallas.1} parent=11 // pred_check_branch
          %215 = sbr.rel (%p213) target = $region20
        $region19: #{meta_to_image_pallas.1} parent=11 // pred_region
          _
        $region20: #{meta_to_image_pallas.1} parent=11 // pred_fallthru
          _
        // Predicated region
        $region21: #{meta_to_image_pallas.1} parent=11 // pred_check
          %p216 = pneg %p77
        $region22: #{meta_to_image_pallas.1} parent=11 // pred_check_branch
          %218 = sbr.rel (%p216) target = $region24
        $region23: #{meta_to_image_pallas.1} parent=11 // pred_region
          _
        $region24: #{meta_to_image_pallas.1} parent=11 // pred_fallthru
          _
        // Predicated region
        $region25: #{meta_to_image_pallas.1} parent=11 // pred_check
          %p219 = pneg %p98
        $region26: #{meta_to_image_pallas.1} parent=11 // pred_check_branch
          %221 = sbr.rel (%p219) target = $region28
        $region27: #{meta_to_image_pallas.1} parent=11 // pred_region
          _
        $region28: #{meta_to_image_pallas.1} parent=11 // pred_fallthru
          _
        // Predicated region
        $region29: #{meta_to_image_pallas.1} parent=11 // pred_check
          %p222 = pneg %p119
        $region30: #{meta_to_image_pallas.1} parent=11 // pred_check_branch
          %224 = sbr.rel (%p222) target = $region32
        $region31: #{meta_to_image_pallas.1} parent=11 // pred_region
          _
        $region32: #{meta_to_image_pallas.1} parent=11 // pred_fallthru
          _
        // Predicated region
        $region33: #{meta_to_image_pallas.1} parent=11 // pred_check
          %p225 = pneg %p140
        $region34: #{meta_to_image_pallas.1} parent=11 // pred_check_branch
          %227 = sbr.rel (%p225) target = $region36
        $region35: #{meta_to_image_pallas.1} parent=11 // pred_region
          _
        $region36: #{meta_to_image_pallas.1} parent=11 // pred_fallthru
          _
        // Predicated region
        $region37: #{meta_to_image_pallas.1} parent=11 // pred_check
          %p228 = pneg %p161
        $region38: #{meta_to_image_pallas.1} parent=11 // pred_check_branch
          %230 = sbr.rel (%p228) target = $region40
        $region39: #{meta_to_image_pallas.1} parent=11 // pred_region
          _
        $region40: #{meta_to_image_pallas.1} parent=11 // pred_fallthru
          _
      $region12: #{meta_to_image_pallas.1} parent=5 // pred_fallthru
        _
      %p231 = scmp.lt.s32.totalorder %s14, 2
      // Predicated region
      $region41: #{meta_to_image_pallas.1} parent=5 // pred_check
        %p232 = pneg %p231
      $region42: #{meta_to_image_pallas.1} parent=5 // pred_check_branch
        %234 = sbr.rel (%p232) target = $region44
      $region43: #{meta_to_image_pallas.1} parent=5 // pred_region
        _
      $region44: #{meta_to_image_pallas.1} parent=5 // pred_fallthru
        _
      %p235 = scmp.le.s32.totalorder 1, %s14
      %p236 = scmp.lt.s32.totalorder %s14, 3
      %p237 = pnand %p235, %p236
      %p238 = pneg %p237
      // Predicated region
      $region45: #{meta_to_image_pallas.1} parent=5 // pred_check
        _
      $region46: #{meta_to_image_pallas.1} parent=5 // pred_check_branch
        %240 = sbr.rel (%p237) target = $region48
      $region47: #{meta_to_image_pallas.1} parent=5 // pred_region
        %s241 = ssub.s32 %s14, 1
        // Predicated region
        $region49: #{meta_to_image_pallas.1} parent=47 // pred_check
          %p242 = pneg %p35
        $region50: #{meta_to_image_pallas.1} parent=47 // pred_check_branch
          %244 = sbr.rel (%p242) target = $region52
        $region51: #{meta_to_image_pallas.1} parent=47 // pred_region
          %245 = dma.done [#allocation4], 32
        $region52: #{meta_to_image_pallas.1} parent=47 // pred_fallthru
          _
        %246 = sfence
        %p247 = pneg %p35
        %p248 = pneg %p32
        %p249 = pneg %p56
        %p250 = pneg %p53
        %p251 = pneg %p77
        %p252 = pneg %p74
        %p253 = pneg %p98
        %p254 = pneg %p95
        %p255 = pneg %p119
        %p256 = pneg %p116
        %p257 = pneg %p140
        %p258 = pneg %p137
        %p259 = pneg %p161
        %p260 = pneg %p158
        %p261 = pneg %p187
        %p262 = pneg %p184
        %p263 = scmp.lt.s32.totalorder %s19, 1
        %s264 = scalar_select %p263, %s19, 1
        %s265 = smul.addr %s264, 32
        %s266 = smul.addr %s265, 8
        %s267 = scalar_lea.vmem %s7, %s266
        %p268 = scmp.lt.s32.totalorder %s19, 1
        %s269 = scalar_select %p268, %s19, 1
        %s270 = smul.addr %s269, 32
        %s271 = smul.addr %s270, 8
        %s272 = scalar_lea.vmem %s7, %s271
        %v273 = vld [vmem:[%s2] sm:$0xff]
        %v274 = vld [vmem:[%s2 + $0x8] sm:$0xff]
        %v275 = vld [vmem:[%s2 + $0x10] sm:$0xff]
        %v276 = vld [vmem:[%s2 + $0x18] sm:$0xff]
        %v277 = vld [vmem:[%s2 + $0x20] sm:$0xff]
        %v278 = vld [vmem:[%s2 + $0x28] sm:$0xff]
        %v279 = vld [vmem:[%s2 + $0x30] sm:$0xff]
        %v280 = vld [vmem:[%s2 + $0x38] sm:$0xff]
        %v281 = vld [vmem:[%s2 + $0x40] sm:$0xff]
        %v282 = vld [vmem:[%s2 + $0x48] sm:$0xff]
        %v283 = vld [vmem:[%s2 + $0x50] sm:$0xff]
        %v284 = vld [vmem:[%s2 + $0x58] sm:$0xff]
        %v285 = vld [vmem:[%s2 + $0x60] sm:$0xff]
        %v286 = vld [vmem:[%s2 + $0x68] sm:$0xff]
        %v287 = vld [vmem:[%s2 + $0x70] sm:$0xff]
        %v288 = vld [vmem:[%s2 + $0x78] sm:$0xff]
        %v289 = vld [vmem:[%s2 + $0x80] sm:$0xff]
        %v290 = vld [vmem:[%s2 + $0x88] sm:$0xff]
        %v291 = vld [vmem:[%s2 + $0x90] sm:$0xff]
        %v292 = vld [vmem:[%s2 + $0x98] sm:$0xff]
        %v293 = vld [vmem:[%s2 + $0xa0] sm:$0xff]
        %v294 = vld [vmem:[%s2 + $0xa8] sm:$0xff]
        %v295 = vld [vmem:[%s2 + $0xb0] sm:$0xff]
        %v296 = vld [vmem:[%s2 + $0xb8] sm:$0xff]
        %v297 = vld [vmem:[%s2 + $0xc0] sm:$0xff]
        %v298 = vld [vmem:[%s2 + $0xc8] sm:$0xff]
        %v299 = vld [vmem:[%s2 + $0xd0] sm:$0xff]
        %v300 = vld [vmem:[%s2 + $0xd8] sm:$0xff]
        %v301 = vld [vmem:[%s2 + $0xe0] sm:$0xff]
        %v302 = vld [vmem:[%s2 + $0xe8] sm:$0xff]
        %v303 = vld [vmem:[%s2 + $0xf0] sm:$0xff]
        %v304 = vld [vmem:[%s2 + $0xf8] sm:$0xff]
        %s305 = smul.u32 %s19, 128
        %s306 = sld [smem:[#allocation3 + %s305]]
        %v307 = vld [vmem:[%s1] sm:$0xff]
        %v308 = vld [vmem:[%s1 + $0x8] sm:$0xff]
        %v309 = vld [vmem:[%s1 + $0x10] sm:$0xff]
        %v310 = vld [vmem:[%s1 + $0x18] sm:$0xff]
        %v311 = vld [vmem:[%s1 + $0x20] sm:$0xff]
        %v312 = vld [vmem:[%s1 + $0x28] sm:$0xff]
        %v313 = vld [vmem:[%s1 + $0x30] sm:$0xff]
        %v314 = vld [vmem:[%s1 + $0x38] sm:$0xff]
        %v315 = vld [vmem:[%s1 + $0x40] sm:$0xff]
        %v316 = vld [vmem:[%s1 + $0x48] sm:$0xff]
        %v317 = vld [vmem:[%s1 + $0x50] sm:$0xff]
        %v318 = vld [vmem:[%s1 + $0x58] sm:$0xff]
        %v319 = vld [vmem:[%s1 + $0x60] sm:$0xff]
        %v320 = vld [vmem:[%s1 + $0x68] sm:$0xff]
        %v321 = vld [vmem:[%s1 + $0x70] sm:$0xff]
        %v322 = vld [vmem:[%s1 + $0x78] sm:$0xff]
        %v323 = vld [vmem:[%s1 + $0x80] sm:$0xff]
        %v324 = vld [vmem:[%s1 + $0x88] sm:$0xff]
        %v325 = vld [vmem:[%s1 + $0x90] sm:$0xff]
        %v326 = vld [vmem:[%s1 + $0x98] sm:$0xff]
        %v327 = vld [vmem:[%s1 + $0xa0] sm:$0xff]
        %v328 = vld [vmem:[%s1 + $0xa8] sm:$0xff]
        %v329 = vld [vmem:[%s1 + $0xb0] sm:$0xff]
        %v330 = vld [vmem:[%s1 + $0xb8] sm:$0xff]
        %v331 = vld [vmem:[%s1 + $0xc0] sm:$0xff]
        %v332 = vld [vmem:[%s1 + $0xc8] sm:$0xff]
        %v333 = vld [vmem:[%s1 + $0xd0] sm:$0xff]
        %v334 = vld [vmem:[%s1 + $0xd8] sm:$0xff]
        %v335 = vld [vmem:[%s1 + $0xe0] sm:$0xff]
        %v336 = vld [vmem:[%s1 + $0xe8] sm:$0xff]
        %v337 = vld [vmem:[%s1 + $0xf0] sm:$0xff]
        %v338 = vld [vmem:[%s1 + $0xf8] sm:$0xff]
        %v339 = vstv %s306
        %v340 = vmul.f32 %v339, %v307
        %v341 = vmul.f32 %v339, %v308
        %v342 = vmul.f32 %v339, %v309
        %v343 = vmul.f32 %v339, %v310
        %v344 = vmul.f32 %v339, %v311
        %v345 = vmul.f32 %v339, %v312
        %v346 = vmul.f32 %v339, %v313
        %v347 = vmul.f32 %v339, %v314
        %v348 = vmul.f32 %v339, %v315
        %v349 = vmul.f32 %v339, %v316
        %v350 = vmul.f32 %v339, %v317
        %v351 = vmul.f32 %v339, %v318
        %v352 = vmul.f32 %v339, %v319
        %v353 = vmul.f32 %v339, %v320
        %v354 = vmul.f32 %v339, %v321
        %v355 = vmul.f32 %v339, %v322
        %v356 = vmul.f32 %v339, %v323
        %v357 = vmul.f32 %v339, %v324
        %v358 = vmul.f32 %v339, %v325
        %v359 = vmul.f32 %v339, %v326
        %v360 = vmul.f32 %v339, %v327
        %v361 = vmul.f32 %v339, %v328
        %v362 = vmul.f32 %v339, %v329
        %v363 = vmul.f32 %v339, %v330
        %v364 = vmul.f32 %v339, %v331
        %v365 = vmul.f32 %v339, %v332
        %v366 = vmul.f32 %v339, %v333
        %v367 = vmul.f32 %v339, %v334
        %v368 = vmul.f32 %v339, %v335
        %v369 = vmul.f32 %v339, %v336
        %v370 = vmul.f32 %v339, %v337
        %v371 = vmul.f32 %v339, %v338
        %v372 = vadd.f32 %v273, %v340
        %v373 = vadd.f32 %v274, %v341
        %v374 = vadd.f32 %v275, %v342
        %v375 = vadd.f32 %v276, %v343
        %v376 = vadd.f32 %v277, %v344
        %v377 = vadd.f32 %v278, %v345
        %v378 = vadd.f32 %v279, %v346
        %v379 = vadd.f32 %v280, %v347
        %v380 = vadd.f32 %v281, %v348
        %v381 = vadd.f32 %v282, %v349
        %v382 = vadd.f32 %v283, %v350
        %v383 = vadd.f32 %v284, %v351
        %v384 = vadd.f32 %v285, %v352
        %v385 = vadd.f32 %v286, %v353
        %v386 = vadd.f32 %v287, %v354
        %v387 = vadd.f32 %v288, %v355
        %v388 = vadd.f32 %v289, %v356
        %v389 = vadd.f32 %v290, %v357
        %v390 = vadd.f32 %v291, %v358
        %v391 = vadd.f32 %v292, %v359
        %v392 = vadd.f32 %v293, %v360
        %v393 = vadd.f32 %v294, %v361
        %v394 = vadd.f32 %v295, %v362
        %v395 = vadd.f32 %v296, %v363
        %v396 = vadd.f32 %v297, %v364
        %v397 = vadd.f32 %v298, %v365
        %v398 = vadd.f32 %v299, %v366
        %v399 = vadd.f32 %v300, %v367
        %v400 = vadd.f32 %v301, %v368
        %v401 = vadd.f32 %v302, %v369
        %v402 = vadd.f32 %v303, %v370
        %v403 = vadd.f32 %v304, %v371
        %s404 = sadd.s32 %s305, 1
        %s405 = sld [smem:[#allocation3 + %s404]]
        %s406 = scalar_lea.vmem %s1, 256
        %v407 = vld [vmem:[%s406] sm:$0xff]
        %v408 = vld [vmem:[%s406 + $0x8] sm:$0xff]
        %v409 = vld [vmem:[%s406 + $0x10] sm:$0xff]
        %v410 = vld [vmem:[%s406 + $0x18] sm:$0xff]
        %v411 = vld [vmem:[%s406 + $0x20] sm:$0xff]
        %v412 = vld [vmem:[%s406 + $0x28] sm:$0xff]
        %v413 = vld [vmem:[%s406 + $0x30] sm:$0xff]
        %v414 = vld [vmem:[%s406 + $0x38] sm:$0xff]
        %v415 = vld [vmem:[%s406 + $0x40] sm:$0xff]
        %v416 = vld [vmem:[%s406 + $0x48] sm:$0xff]
        %v417 = vld [vmem:[%s406 + $0x50] sm:$0xff]
        %v418 = vld [vmem:[%s406 + $0x58] sm:$0xff]
        %v419 = vld [vmem:[%s406 + $0x60] sm:$0xff]
        %v420 = vld [vmem:[%s406 + $0x68] sm:$0xff]
        %v421 = vld [vmem:[%s406 + $0x70] sm:$0xff]
        %v422 = vld [vmem:[%s406 + $0x78] sm:$0xff]
        %v423 = vld [vmem:[%s406 + $0x80] sm:$0xff]
        %v424 = vld [vmem:[%s406 + $0x88] sm:$0xff]
        %v425 = vld [vmem:[%s406 + $0x90] sm:$0xff]
        %v426 = vld [vmem:[%s406 + $0x98] sm:$0xff]
        %v427 = vld [vmem:[%s406 + $0xa0] sm:$0xff]
        %v428 = vld [vmem:[%s406 + $0xa8] sm:$0xff]
        %v429 = vld [vmem:[%s406 + $0xb0] sm:$0xff]
        %v430 = vld [vmem:[%s406 + $0xb8] sm:$0xff]
        %v431 = vld [vmem:[%s406 + $0xc0] sm:$0xff]
        %v432 = vld [vmem:[%s406 + $0xc8] sm:$0xff]
        %v433 = vld [vmem:[%s406 + $0xd0] sm:$0xff]
        %v434 = vld [vmem:[%s406 + $0xd8] sm:$0xff]
        %v435 = vld [vmem:[%s406 + $0xe0] sm:$0xff]
        %v436 = vld [vmem:[%s406 + $0xe8] sm:$0xff]
        %v437 = vld [vmem:[%s406 + $0xf0] sm:$0xff]
        %v438 = vld [vmem:[%s406 + $0xf8] sm:$0xff]
        %v439 = vstv %s405
        %v440 = vmul.f32 %v439, %v407
        %v441 = vmul.f32 %v439, %v408
        %v442 = vmul.f32 %v439, %v409
        %v443 = vmul.f32 %v439, %v410
        %v444 = vmul.f32 %v439, %v411
        %v445 = vmul.f32 %v439, %v412
        %v446 = vmul.f32 %v439, %v413
        %v447 = vmul.f32 %v439, %v414
        %v448 = vmul.f32 %v439, %v415
        %v449 = vmul.f32 %v439, %v416
        %v450 = vmul.f32 %v439, %v417
        %v451 = vmul.f32 %v439, %v418
        %v452 = vmul.f32 %v439, %v419
        %v453 = vmul.f32 %v439, %v420
        %v454 = vmul.f32 %v439, %v421
        %v455 = vmul.f32 %v439, %v422
        %v456 = vmul.f32 %v439, %v423
        %v457 = vmul.f32 %v439, %v424
        %v458 = vmul.f32 %v439, %v425
        %v459 = vmul.f32 %v439, %v426
        %v460 = vmul.f32 %v439, %v427
        %v461 = vmul.f32 %v439, %v428
        %v462 = vmul.f32 %v439, %v429
        %v463 = vmul.f32 %v439, %v430
        %v464 = vmul.f32 %v439, %v431
        %v465 = vmul.f32 %v439, %v432
        %v466 = vmul.f32 %v439, %v433
        %v467 = vmul.f32 %v439, %v434
        %v468 = vmul.f32 %v439, %v435
        %v469 = vmul.f32 %v439, %v436
        %v470 = vmul.f32 %v439, %v437
        %v471 = vmul.f32 %v439, %v438
        %v472 = vadd.f32 %v372, %v440
        %v473 = vadd.f32 %v373, %v441
        %v474 = vadd.f32 %v374, %v442
        %v475 = vadd.f32 %v375, %v443
        %v476 = vadd.f32 %v376, %v444
        %v477 = vadd.f32 %v377, %v445
        %v478 = vadd.f32 %v378, %v446
        %v479 = vadd.f32 %v379, %v447
        %v480 = vadd.f32 %v380, %v448
        %v481 = vadd.f32 %v381, %v449
        %v482 = vadd.f32 %v382, %v450
        %v483 = vadd.f32 %v383, %v451
        %v484 = vadd.f32 %v384, %v452
        %v485 = vadd.f32 %v385, %v453
        %v486 = vadd.f32 %v386, %v454
        %v487 = vadd.f32 %v387, %v455
        %v488 = vadd.f32 %v388, %v456
        %v489 = vadd.f32 %v389, %v457
        %v490 = vadd.f32 %v390, %v458
        %v491 = vadd.f32 %v391, %v459
        %v492 = vadd.f32 %v392, %v460
        %v493 = vadd.f32 %v393, %v461
        %v494 = vadd.f32 %v394, %v462
        %v495 = vadd.f32 %v395, %v463
        %v496 = vadd.f32 %v396, %v464
        %v497 = vadd.f32 %v397, %v465
        %v498 = vadd.f32 %v398, %v466
        %v499 = vadd.f32 %v399, %v467
        %v500 = vadd.f32 %v400, %v468
        %v501 = vadd.f32 %v401, %v469
        %v502 = vadd.f32 %v402, %v470
        %v503 = vadd.f32 %v403, %v471
        %s504 = sadd.s32 %s305, 2
        %s505 = sld [smem:[#allocation3 + %s504]]
        %s506 = scalar_lea.vmem %s1, 512
        %v507 = vld [vmem:[%s506] sm:$0xff]
        %v508 = vld [vmem:[%s506 + $0x8] sm:$0xff]
        %v509 = vld [vmem:[%s506 + $0x10] sm:$0xff]
        %v510 = vld [vmem:[%s506 + $0x18] sm:$0xff]
        %v511 = vld [vmem:[%s506 + $0x20] sm:$0xff]
        %v512 = vld [vmem:[%s506 + $0x28] sm:$0xff]
        %v513 = vld [vmem:[%s506 + $0x30] sm:$0xff]
        %v514 = vld [vmem:[%s506 + $0x38] sm:$0xff]
        %v515 = vld [vmem:[%s506 + $0x40] sm:$0xff]
        %v516 = vld [vmem:[%s506 + $0x48] sm:$0xff]
        %v517 = vld [vmem:[%s506 + $0x50] sm:$0xff]
        %v518 = vld [vmem:[%s506 + $0x58] sm:$0xff]
        %v519 = vld [vmem:[%s506 + $0x60] sm:$0xff]
        %v520 = vld [vmem:[%s506 + $0x68] sm:$0xff]
        %v521 = vld [vmem:[%s506 + $0x70] sm:$0xff]
        %v522 = vld [vmem:[%s506 + $0x78] sm:$0xff]
        %v523 = vld [vmem:[%s506 + $0x80] sm:$0xff]
        %v524 = vld [vmem:[%s506 + $0x88] sm:$0xff]
        %v525 = vld [vmem:[%s506 + $0x90] sm:$0xff]
        %v526 = vld [vmem:[%s506 + $0x98] sm:$0xff]
        %v527 = vld [vmem:[%s506 + $0xa0] sm:$0xff]
        %v528 = vld [vmem:[%s506 + $0xa8] sm:$0xff]
        %v529 = vld [vmem:[%s506 + $0xb0] sm:$0xff]
        %v530 = vld [vmem:[%s506 + $0xb8] sm:$0xff]
        %v531 = vld [vmem:[%s506 + $0xc0] sm:$0xff]
        %v532 = vld [vmem:[%s506 + $0xc8] sm:$0xff]
        %v533 = vld [vmem:[%s506 + $0xd0] sm:$0xff]
        %v534 = vld [vmem:[%s506 + $0xd8] sm:$0xff]
        %v535 = vld [vmem:[%s506 + $0xe0] sm:$0xff]
        %v536 = vld [vmem:[%s506 + $0xe8] sm:$0xff]
        %v537 = vld [vmem:[%s506 + $0xf0] sm:$0xff]
        %v538 = vld [vmem:[%s506 + $0xf8] sm:$0xff]
        %v539 = vstv %s505
        %v540 = vmul.f32 %v539, %v507
        %v541 = vmul.f32 %v539, %v508
        %v542 = vmul.f32 %v539, %v509
        %v543 = vmul.f32 %v539, %v510
        %v544 = vmul.f32 %v539, %v511
        %v545 = vmul.f32 %v539, %v512
        %v546 = vmul.f32 %v539, %v513
        %v547 = vmul.f32 %v539, %v514
        %v548 = vmul.f32 %v539, %v515
        %v549 = vmul.f32 %v539, %v516
        %v550 = vmul.f32 %v539, %v517
        %v551 = vmul.f32 %v539, %v518
        %v552 = vmul.f32 %v539, %v519
        %v553 = vmul.f32 %v539, %v520
        %v554 = vmul.f32 %v539, %v521
        %v555 = vmul.f32 %v539, %v522
        %v556 = vmul.f32 %v539, %v523
        %v557 = vmul.f32 %v539, %v524
        %v558 = vmul.f32 %v539, %v525
        %v559 = vmul.f32 %v539, %v526
        %v560 = vmul.f32 %v539, %v527
        %v561 = vmul.f32 %v539, %v528
        %v562 = vmul.f32 %v539, %v529
        %v563 = vmul.f32 %v539, %v530
        %v564 = vmul.f32 %v539, %v531
        %v565 = vmul.f32 %v539, %v532
        %v566 = vmul.f32 %v539, %v533
        %v567 = vmul.f32 %v539, %v534
        %v568 = vmul.f32 %v539, %v535
        %v569 = vmul.f32 %v539, %v536
        %v570 = vmul.f32 %v539, %v537
        %v571 = vmul.f32 %v539, %v538
        %v572 = vadd.f32 %v472, %v540
        %v573 = vadd.f32 %v473, %v541
        %v574 = vadd.f32 %v474, %v542
        %v575 = vadd.f32 %v475, %v543
        %v576 = vadd.f32 %v476, %v544
        %v577 = vadd.f32 %v477, %v545
        %v578 = vadd.f32 %v478, %v546
        %v579 = vadd.f32 %v479, %v547
        %v580 = vadd.f32 %v480, %v548
        %v581 = vadd.f32 %v481, %v549
        %v582 = vadd.f32 %v482, %v550
        %v583 = vadd.f32 %v483, %v551
        %v584 = vadd.f32 %v484, %v552
        %v585 = vadd.f32 %v485, %v553
        %v586 = vadd.f32 %v486, %v554
        %v587 = vadd.f32 %v487, %v555
        %v588 = vadd.f32 %v488, %v556
        %v589 = vadd.f32 %v489, %v557
        %v590 = vadd.f32 %v490, %v558
        %v591 = vadd.f32 %v491, %v559
        %v592 = vadd.f32 %v492, %v560
        %v593 = vadd.f32 %v493, %v561
        %v594 = vadd.f32 %v494, %v562
        %v595 = vadd.f32 %v495, %v563
        %v596 = vadd.f32 %v496, %v564
        %v597 = vadd.f32 %v497, %v565
        %v598 = vadd.f32 %v498, %v566
        %v599 = vadd.f32 %v499, %v567
        %v600 = vadd.f32 %v500, %v568
        %v601 = vadd.f32 %v501, %v569
        %v602 = vadd.f32 %v502, %v570
        %v603 = vadd.f32 %v503, %v571
        %s604 = sadd.s32 %s305, 3
        %s605 = sld [smem:[#allocation3 + %s604]]
        %s606 = scalar_lea.vmem %s1, 768
        %v607 = vld [vmem:[%s606] sm:$0xff]
        %v608 = vld [vmem:[%s606 + $0x8] sm:$0xff]
        %v609 = vld [vmem:[%s606 + $0x10] sm:$0xff]
        %v610 = vld [vmem:[%s606 + $0x18] sm:$0xff]
        %v611 = vld [vmem:[%s606 + $0x20] sm:$0xff]
        %v612 = vld [vmem:[%s606 + $0x28] sm:$0xff]
        %v613 = vld [vmem:[%s606 + $0x30] sm:$0xff]
        %v614 = vld [vmem:[%s606 + $0x38] sm:$0xff]
        %v615 = vld [vmem:[%s606 + $0x40] sm:$0xff]
        %v616 = vld [vmem:[%s606 + $0x48] sm:$0xff]
        %v617 = vld [vmem:[%s606 + $0x50] sm:$0xff]
        %v618 = vld [vmem:[%s606 + $0x58] sm:$0xff]
        %v619 = vld [vmem:[%s606 + $0x60] sm:$0xff]
        %v620 = vld [vmem:[%s606 + $0x68] sm:$0xff]
        %v621 = vld [vmem:[%s606 + $0x70] sm:$0xff]
        %v622 = vld [vmem:[%s606 + $0x78] sm:$0xff]
        %v623 = vld [vmem:[%s606 + $0x80] sm:$0xff]
        %v624 = vld [vmem:[%s606 + $0x88] sm:$0xff]
        %v625 = vld [vmem:[%s606 + $0x90] sm:$0xff]
        %v626 = vld [vmem:[%s606 + $0x98] sm:$0xff]
        %v627 = vld [vmem:[%s606 + $0xa0] sm:$0xff]
        %v628 = vld [vmem:[%s606 + $0xa8] sm:$0xff]
        %v629 = vld [vmem:[%s606 + $0xb0] sm:$0xff]
        %v630 = vld [vmem:[%s606 + $0xb8] sm:$0xff]
        %v631 = vld [vmem:[%s606 + $0xc0] sm:$0xff]
        %v632 = vld [vmem:[%s606 + $0xc8] sm:$0xff]
        %v633 = vld [vmem:[%s606 + $0xd0] sm:$0xff]
        %v634 = vld [vmem:[%s606 + $0xd8] sm:$0xff]
        %v635 = vld [vmem:[%s606 + $0xe0] sm:$0xff]
        %v636 = vld [vmem:[%s606 + $0xe8] sm:$0xff]
        %v637 = vld [vmem:[%s606 + $0xf0] sm:$0xff]
        %v638 = vld [vmem:[%s606 + $0xf8] sm:$0xff]
        %v639 = vstv %s605
        %v640 = vmul.f32 %v639, %v607
        %v641 = vmul.f32 %v639, %v608
        %v642 = vmul.f32 %v639, %v609
        %v643 = vmul.f32 %v639, %v610
        %v644 = vmul.f32 %v639, %v611
        %v645 = vmul.f32 %v639, %v612
        %v646 = vmul.f32 %v639, %v613
        %v647 = vmul.f32 %v639, %v614
        %v648 = vmul.f32 %v639, %v615
        %v649 = vmul.f32 %v639, %v616
        %v650 = vmul.f32 %v639, %v617
        %v651 = vmul.f32 %v639, %v618
        %v652 = vmul.f32 %v639, %v619
        %v653 = vmul.f32 %v639, %v620
        %v654 = vmul.f32 %v639, %v621
        %v655 = vmul.f32 %v639, %v622
        %v656 = vmul.f32 %v639, %v623
        %v657 = vmul.f32 %v639, %v624
        %v658 = vmul.f32 %v639, %v625
        %v659 = vmul.f32 %v639, %v626
        %v660 = vmul.f32 %v639, %v627
        %v661 = vmul.f32 %v639, %v628
        %v662 = vmul.f32 %v639, %v629
        %v663 = vmul.f32 %v639, %v630
        %v664 = vmul.f32 %v639, %v631
        %v665 = vmul.f32 %v639, %v632
        %v666 = vmul.f32 %v639, %v633
        %v667 = vmul.f32 %v639, %v634
        %v668 = vmul.f32 %v639, %v635
        %v669 = vmul.f32 %v639, %v636
        %v670 = vmul.f32 %v639, %v637
        %v671 = vmul.f32 %v639, %v638
        %v672 = vadd.f32 %v572, %v640
        %v673 = vadd.f32 %v573, %v641
        %v674 = vadd.f32 %v574, %v642
        %v675 = vadd.f32 %v575, %v643
        %v676 = vadd.f32 %v576, %v644
        %v677 = vadd.f32 %v577, %v645
        %v678 = vadd.f32 %v578, %v646
        %v679 = vadd.f32 %v579, %v647
        %v680 = vadd.f32 %v580, %v648
        %v681 = vadd.f32 %v581, %v649
        %v682 = vadd.f32 %v582, %v650
        %v683 = vadd.f32 %v583, %v651
        %v684 = vadd.f32 %v584, %v652
        %v685 = vadd.f32 %v585, %v653
        %v686 = vadd.f32 %v586, %v654
        %v687 = vadd.f32 %v587, %v655
        %v688 = vadd.f32 %v588, %v656
        %v689 = vadd.f32 %v589, %v657
        %v690 = vadd.f32 %v590, %v658
        %v691 = vadd.f32 %v591, %v659
        %v692 = vadd.f32 %v592, %v660
        %v693 = vadd.f32 %v593, %v661
        %v694 = vadd.f32 %v594, %v662
        %v695 = vadd.f32 %v595, %v663
        %v696 = vadd.f32 %v596, %v664
        %v697 = vadd.f32 %v597, %v665
        %v698 = vadd.f32 %v598, %v666
        %v699 = vadd.f32 %v599, %v667
        %v700 = vadd.f32 %v600, %v668
        %v701 = vadd.f32 %v601, %v669
        %v702 = vadd.f32 %v602, %v670
        %v703 = vadd.f32 %v603, %v671
        %vm704 = vcmask 261120
        %705 = vst.msk [vmem:[#allocation2] sm:$0xff] %vm704, 0.0
        %706 = vst.msk [vmem:[#allocation2 + $0x8] sm:$0xff] %vm704, 0.0
        %707 = vst.msk [vmem:[#allocation2 + $0x10] sm:$0xff] %vm704, 0.0
        %708 = vst.msk [vmem:[#allocation2 + $0x18] sm:$0xff] %vm704, 0.0
        %709 = vst.msk [vmem:[#allocation2 + $0x20] sm:$0xff] %vm704, 0.0
        %710 = vst.msk [vmem:[#allocation2 + $0x28] sm:$0xff] %vm704, 0.0
        %711 = vst.msk [vmem:[#allocation2 + $0x30] sm:$0xff] %vm704, 0.0
        %712 = vst.msk [vmem:[#allocation2 + $0x38] sm:$0xff] %vm704, 0.0
        %713 = vst.msk [vmem:[#allocation2 + $0x40] sm:$0xff] %vm704, 0.0
        %714 = vst.msk [vmem:[#allocation2 + $0x48] sm:$0xff] %vm704, 0.0
        %715 = vst.msk [vmem:[#allocation2 + $0x50] sm:$0xff] %vm704, 0.0
        %716 = vst.msk [vmem:[#allocation2 + $0x58] sm:$0xff] %vm704, 0.0
        %717 = vst.msk [vmem:[#allocation2 + $0x60] sm:$0xff] %vm704, 0.0
        %718 = vst.msk [vmem:[#allocation2 + $0x68] sm:$0xff] %vm704, 0.0
        %719 = vst.msk [vmem:[#allocation2 + $0x70] sm:$0xff] %vm704, 0.0
        %720 = vst.msk [vmem:[#allocation2 + $0x78] sm:$0xff] %vm704, 0.0
        %721 = vst.msk [vmem:[#allocation2 + $0x80] sm:$0xff] %vm704, 0.0
        %722 = vst.msk [vmem:[#allocation2 + $0x88] sm:$0xff] %vm704, 0.0
        %723 = vst.msk [vmem:[#allocation2 + $0x90] sm:$0xff] %vm704, 0.0
        %724 = vst.msk [vmem:[#allocation2 + $0x98] sm:$0xff] %vm704, 0.0
        %725 = vst.msk [vmem:[#allocation2 + $0xa0] sm:$0xff] %vm704, 0.0
        %726 = vst.msk [vmem:[#allocation2 + $0xa8] sm:$0xff] %vm704, 0.0
        %727 = vst.msk [vmem:[#allocation2 + $0xb0] sm:$0xff] %vm704, 0.0
        %728 = vst.msk [vmem:[#allocation2 + $0xb8] sm:$0xff] %vm704, 0.0
        %729 = vst.msk [vmem:[#allocation2 + $0xc0] sm:$0xff] %vm704, 0.0
        %730 = vst.msk [vmem:[#allocation2 + $0xc8] sm:$0xff] %vm704, 0.0
        %731 = vst.msk [vmem:[#allocation2 + $0xd0] sm:$0xff] %vm704, 0.0
        %732 = vst.msk [vmem:[#allocation2 + $0xd8] sm:$0xff] %vm704, 0.0
        %733 = vst.msk [vmem:[#allocation2 + $0xe0] sm:$0xff] %vm704, 0.0
        %734 = vst.msk [vmem:[#allocation2 + $0xe8] sm:$0xff] %vm704, 0.0
        %735 = vst.msk [vmem:[#allocation2 + $0xf0] sm:$0xff] %vm704, 0.0
        %736 = vst.msk [vmem:[#allocation2 + $0xf8] sm:$0xff] %vm704, 0.0
        %737 = vst.msk [vmem:[#allocation2 + $0x100] sm:$0xff] %vm704, 0.0
        %738 = vst.msk [vmem:[#allocation2 + $0x108] sm:$0xff] %vm704, 0.0
        %739 = vst.msk [vmem:[#allocation2 + $0x110] sm:$0xff] %vm704, 0.0
        %740 = vst.msk [vmem:[#allocation2 + $0x118] sm:$0xff] %vm704, 0.0
        %741 = vst.msk [vmem:[#allocation2 + $0x120] sm:$0xff] %vm704, 0.0
        %742 = vst.msk [vmem:[#allocation2 + $0x128] sm:$0xff] %vm704, 0.0
        %743 = vst.msk [vmem:[#allocation2 + $0x130] sm:$0xff] %vm704, 0.0
        %744 = vst.msk [vmem:[#allocation2 + $0x138] sm:$0xff] %vm704, 0.0
        %745 = vst.msk [vmem:[#allocation2 + $0x140] sm:$0xff] %vm704, 0.0
        %746 = vst.msk [vmem:[#allocation2 + $0x148] sm:$0xff] %vm704, 0.0
        %747 = vst.msk [vmem:[#allocation2 + $0x150] sm:$0xff] %vm704, 0.0
        %748 = vst.msk [vmem:[#allocation2 + $0x158] sm:$0xff] %vm704, 0.0
        %749 = vst.msk [vmem:[#allocation2 + $0x160] sm:$0xff] %vm704, 0.0
        %750 = vst.msk [vmem:[#allocation2 + $0x168] sm:$0xff] %vm704, 0.0
        %751 = vst.msk [vmem:[#allocation2 + $0x170] sm:$0xff] %vm704, 0.0
        %752 = vst.msk [vmem:[#allocation2 + $0x178] sm:$0xff] %vm704, 0.0
        %753 = vst.msk [vmem:[#allocation2 + $0x180] sm:$0xff] %vm704, 0.0
        %754 = vst.msk [vmem:[#allocation2 + $0x188] sm:$0xff] %vm704, 0.0
        %755 = vst.msk [vmem:[#allocation2 + $0x190] sm:$0xff] %vm704, 0.0
        %756 = vst.msk [vmem:[#allocation2 + $0x198] sm:$0xff] %vm704, 0.0
        %757 = vst.msk [vmem:[#allocation2 + $0x1a0] sm:$0xff] %vm704, 0.0
        %758 = vst.msk [vmem:[#allocation2 + $0x1a8] sm:$0xff] %vm704, 0.0
        %759 = vst.msk [vmem:[#allocation2 + $0x1b0] sm:$0xff] %vm704, 0.0
        %760 = vst.msk [vmem:[#allocation2 + $0x1b8] sm:$0xff] %vm704, 0.0
        %761 = vst.msk [vmem:[#allocation2 + $0x1c0] sm:$0xff] %vm704, 0.0
        %762 = vst.msk [vmem:[#allocation2 + $0x1c8] sm:$0xff] %vm704, 0.0
        %763 = vst.msk [vmem:[#allocation2 + $0x1d0] sm:$0xff] %vm704, 0.0
        %764 = vst.msk [vmem:[#allocation2 + $0x1d8] sm:$0xff] %vm704, 0.0
        %765 = vst.msk [vmem:[#allocation2 + $0x1e0] sm:$0xff] %vm704, 0.0
        %766 = vst.msk [vmem:[#allocation2 + $0x1e8] sm:$0xff] %vm704, 0.0
        %767 = vst.msk [vmem:[#allocation2 + $0x1f0] sm:$0xff] %vm704, 0.0
        %768 = vst.msk [vmem:[#allocation2 + $0x1f8] sm:$0xff] %vm704, 0.0
        %769 = vst.msk [vmem:[#allocation2 + $0x200] sm:$0xff] %vm704, 0.0
        %770 = vst.msk [vmem:[#allocation2 + $0x208] sm:$0xff] %vm704, 0.0
        %771 = vst.msk [vmem:[#allocation2 + $0x210] sm:$0xff] %vm704, 0.0
        %772 = vst.msk [vmem:[#allocation2 + $0x218] sm:$0xff] %vm704, 0.0
        %773 = vst.msk [vmem:[#allocation2 + $0x220] sm:$0xff] %vm704, 0.0
        %774 = vst.msk [vmem:[#allocation2 + $0x228] sm:$0xff] %vm704, 0.0
        %775 = vst.msk [vmem:[#allocation2 + $0x230] sm:$0xff] %vm704, 0.0
        %776 = vst.msk [vmem:[#allocation2 + $0x238] sm:$0xff] %vm704, 0.0
        %v777 = vld [vmem:[%s3] sm:$0xff]
        %v778 = vld [vmem:[%s3 + $0x8] sm:$0xff]
        %v779 = vld [vmem:[%s3 + $0x10] sm:$0xff]
        %v780 = vld [vmem:[%s3 + $0x18] sm:$0xff]
        %v781 = vld [vmem:[%s3 + $0x20] sm:$0xff]
        %v782 = vld [vmem:[%s3 + $0x28] sm:$0xff]
        %v783 = vld [vmem:[%s3 + $0x30] sm:$0xff]
        %v784 = vld [vmem:[%s3 + $0x38] sm:$0xff]
        %v785 = vld [vmem:[%s3 + $0x40] sm:$0xff]
        %v786 = vld [vmem:[%s3 + $0x48] sm:$0xff]
        %v787 = vld [vmem:[%s3 + $0x50] sm:$0xff]
        %v788 = vld [vmem:[%s3 + $0x58] sm:$0xff]
        %v789 = vld [vmem:[%s3 + $0x60] sm:$0xff]
        %v790 = vld [vmem:[%s3 + $0x68] sm:$0xff]
        %v791 = vld [vmem:[%s3 + $0x70] sm:$0xff]
        %v792 = vld [vmem:[%s3 + $0x78] sm:$0xff]
        %v793 = vld [vmem:[%s3 + $0x80] sm:$0xff]
        %v794 = vld [vmem:[%s3 + $0x88] sm:$0xff]
        %v795 = vld [vmem:[%s3 + $0x90] sm:$0xff]
        %v796 = vld [vmem:[%s3 + $0x98] sm:$0xff]
        %v797 = vld [vmem:[%s3 + $0xa0] sm:$0xff]
        %v798 = vld [vmem:[%s3 + $0xa8] sm:$0xff]
        %v799 = vld [vmem:[%s3 + $0xb0] sm:$0xff]
        %v800 = vld [vmem:[%s3 + $0xb8] sm:$0xff]
        %v801 = vld [vmem:[%s3 + $0xc0] sm:$0xff]
        %v802 = vld [vmem:[%s3 + $0xc8] sm:$0xff]
        %v803 = vld [vmem:[%s3 + $0xd0] sm:$0xff]
        %v804 = vld [vmem:[%s3 + $0xd8] sm:$0xff]
        %v805 = vld [vmem:[%s3 + $0xe0] sm:$0xff]
        %v806 = vld [vmem:[%s3 + $0xe8] sm:$0xff]
        %v807 = vld [vmem:[%s3 + $0xf0] sm:$0xff]
        %v808 = vld [vmem:[%s3 + $0xf8] sm:$0xff]
        %v809 = vld [vmem:[%s3 + $0x100] sm:$0xff]
        %v810 = vld [vmem:[%s3 + $0x108] sm:$0xff]
        %v811 = vld [vmem:[%s3 + $0x110] sm:$0xff]
        %v812 = vld [vmem:[%s3 + $0x118] sm:$0xff]
        %v813 = vld [vmem:[%s4] sm:$0x1]
        %s814 = scalar_lea.vmem [#allocation2], 32
        %815 = vst.msk [vmem:[%s814 + $0x8] sm:$0xff] %vm704, %v672
        %816 = vst.msk [vmem:[%s814 + $0x10] sm:$0xff] %vm704, %v673
        %817 = vst.msk [vmem:[%s814 + $0x28] sm:$0xff] %vm704, %v674
        %818 = vst.msk [vmem:[%s814 + $0x30] sm:$0xff] %vm704, %v675
        %819 = vst.msk [vmem:[%s814 + $0x48] sm:$0xff] %vm704, %v676
        %820 = vst.msk [vmem:[%s814 + $0x50] sm:$0xff] %vm704, %v677
        %821 = vst.msk [vmem:[%s814 + $0x68] sm:$0xff] %vm704, %v678
        %822 = vst.msk [vmem:[%s814 + $0x70] sm:$0xff] %vm704, %v679
        %823 = vst.msk [vmem:[%s814 + $0x88] sm:$0xff] %vm704, %v680
        %824 = vst.msk [vmem:[%s814 + $0x90] sm:$0xff] %vm704, %v681
        %825 = vst.msk [vmem:[%s814 + $0xa8] sm:$0xff] %vm704, %v682
        %826 = vst.msk [vmem:[%s814 + $0xb0] sm:$0xff] %vm704, %v683
        %827 = vst.msk [vmem:[%s814 + $0xc8] sm:$0xff] %vm704, %v684
        %828 = vst.msk [vmem:[%s814 + $0xd0] sm:$0xff] %vm704, %v685
        %829 = vst.msk [vmem:[%s814 + $0xe8] sm:$0xff] %vm704, %v686
        %830 = vst.msk [vmem:[%s814 + $0xf0] sm:$0xff] %vm704, %v687
        %831 = vst.msk [vmem:[%s814 + $0x108] sm:$0xff] %vm704, %v688
        %832 = vst.msk [vmem:[%s814 + $0x110] sm:$0xff] %vm704, %v689
        %833 = vst.msk [vmem:[%s814 + $0x128] sm:$0xff] %vm704, %v690
        %834 = vst.msk [vmem:[%s814 + $0x130] sm:$0xff] %vm704, %v691
        %835 = vst.msk [vmem:[%s814 + $0x148] sm:$0xff] %vm704, %v692
        %836 = vst.msk [vmem:[%s814 + $0x150] sm:$0xff] %vm704, %v693
        %837 = vst.msk [vmem:[%s814 + $0x168] sm:$0xff] %vm704, %v694
        %838 = vst.msk [vmem:[%s814 + $0x170] sm:$0xff] %vm704, %v695
        %839 = vst.msk [vmem:[%s814 + $0x188] sm:$0xff] %vm704, %v696
        %840 = vst.msk [vmem:[%s814 + $0x190] sm:$0xff] %vm704, %v697
        %841 = vst.msk [vmem:[%s814 + $0x1a8] sm:$0xff] %vm704, %v698
        %842 = vst.msk [vmem:[%s814 + $0x1b0] sm:$0xff] %vm704, %v699
        %843 = vst.msk [vmem:[%s814 + $0x1c8] sm:$0xff] %vm704, %v700
        %844 = vst.msk [vmem:[%s814 + $0x1d0] sm:$0xff] %vm704, %v701
        %845 = vst.msk [vmem:[%s814 + $0x1e8] sm:$0xff] %vm704, %v702
        %846 = vst.msk [vmem:[%s814 + $0x1f0] sm:$0xff] %vm704, %v703
        %v847 = vld [vmem:[#allocation2] sm:$0xff]
        %v848 = vld [vmem:[#allocation2 + $0x8] sm:$0xff]
        %v849 = vld [vmem:[#allocation2 + $0x10] sm:$0xff]
        %v850 = vld [vmem:[#allocation2 + $0x18] sm:$0xff]
        %v851 = vld [vmem:[#allocation2 + $0x20] sm:$0xff]
        %v852 = vld [vmem:[#allocation2 + $0x28] sm:$0xff]
        %v853 = vld [vmem:[#allocation2 + $0x30] sm:$0xff]
        %v854 = vld [vmem:[#allocation2 + $0x38] sm:$0xff]
        %v855 = vld [vmem:[#allocation2 + $0x40] sm:$0xff]
        %v856 = vld [vmem:[#allocation2 + $0x48] sm:$0xff]
        %v857 = vld [vmem:[#allocation2 + $0x50] sm:$0xff]
        %v858 = vld [vmem:[#allocation2 + $0x58] sm:$0xff]
        %v859 = vld [vmem:[#allocation2 + $0x60] sm:$0xff]
        %v860 = vld [vmem:[#allocation2 + $0x68] sm:$0xff]
        %v861 = vld [vmem:[#allocation2 + $0x70] sm:$0xff]
        %v862 = vld [vmem:[#allocation2 + $0x78] sm:$0xff]
        %v863 = vld [vmem:[#allocation2 + $0x80] sm:$0xff]
        %v864 = vld [vmem:[#allocation2 + $0x88] sm:$0xff]
        %v865 = vld [vmem:[#allocation2 + $0x90] sm:$0xff]
        %v866 = vld [vmem:[#allocation2 + $0x98] sm:$0xff]
        %v867 = vld [vmem:[#allocation2 + $0xa0] sm:$0xff]
        %v868 = vld [vmem:[#allocation2 + $0xa8] sm:$0xff]
        %v869 = vld [vmem:[#allocation2 + $0xb0] sm:$0xff]
        %v870 = vld [vmem:[#allocation2 + $0xb8] sm:$0xff]
        %v871 = vld [vmem:[#allocation2 + $0xc0] sm:$0xff]
        %v872 = vld [vmem:[#allocation2 + $0xc8] sm:$0xff]
        %v873 = vld [vmem:[#allocation2 + $0xd0] sm:$0xff]
        %v874 = vld [vmem:[#allocation2 + $0xd8] sm:$0xff]
        %v875 = vld [vmem:[#allocation2 + $0xe0] sm:$0xff]
        %v876 = vld [vmem:[#allocation2 + $0xe8] sm:$0xff]
        %v877 = vld [vmem:[#allocation2 + $0xf0] sm:$0xff]
        %v878 = vld [vmem:[#allocation2 + $0xf8] sm:$0xff]
        %v879 = vld [vmem:[#allocation2 + $0x100] sm:$0xff]
        %v880 = vld [vmem:[#allocation2 + $0x108] sm:$0xff]
        %v881 = vld [vmem:[#allocation2 + $0x110] sm:$0xff]
        %v882 = vld [vmem:[#allocation2 + $0x118] sm:$0xff]
        %v883 = vld [vmem:[#allocation2 + $0x120] sm:$0xff]
        %v884 = vld [vmem:[#allocation2 + $0x128] sm:$0xff]
        %v885 = vld [vmem:[#allocation2 + $0x130] sm:$0xff]
        %v886 = vld [vmem:[#allocation2 + $0x138] sm:$0xff]
        %v887 = vld [vmem:[#allocation2 + $0x140] sm:$0xff]
        %v888 = vld [vmem:[#allocation2 + $0x148] sm:$0xff]
        %v889 = vld [vmem:[#allocation2 + $0x150] sm:$0xff]
        %v890 = vld [vmem:[#allocation2 + $0x158] sm:$0xff]
        %v891 = vld [vmem:[#allocation2 + $0x160] sm:$0xff]
        %v892 = vld [vmem:[#allocation2 + $0x168] sm:$0xff]
        %v893 = vld [vmem:[#allocation2 + $0x170] sm:$0xff]
        %v894 = vld [vmem:[#allocation2 + $0x178] sm:$0xff]
        %v895 = vld [vmem:[#allocation2 + $0x180] sm:$0xff]
        %v896 = vld [vmem:[#allocation2 + $0x188] sm:$0xff]
        %v897 = vld [vmem:[#allocation2 + $0x190] sm:$0xff]
        %v898 = vld [vmem:[#allocation2 + $0x198] sm:$0xff]
        %v899 = vld [vmem:[#allocation2 + $0x1a0] sm:$0xff]
        %v900 = vld [vmem:[#allocation2 + $0x1a8] sm:$0xff]
        %v901 = vld [vmem:[#allocation2 + $0x1b0] sm:$0xff]
        %v902 = vld [vmem:[#allocation2 + $0x1b8] sm:$0xff]
        %v903 = vld [vmem:[#allocation2 + $0x1c0] sm:$0xff]
        %v904 = vld [vmem:[#allocation2 + $0x1c8] sm:$0xff]
        %v905 = vld [vmem:[#allocation2 + $0x1d0] sm:$0xff]
        %v906 = vld [vmem:[#allocation2 + $0x1d8] sm:$0xff]
        %v907 = vld [vmem:[#allocation2 + $0x1e0] sm:$0xff]
        %v908 = vld [vmem:[#allocation2 + $0x1e8] sm:$0xff]
        %v909 = vld [vmem:[#allocation2 + $0x1f0] sm:$0xff]
        %v910 = vld [vmem:[#allocation2 + $0x1f8] sm:$0xff]
        %v911 = vld [vmem:[#allocation2 + $0x200] sm:$0xff]
        %v912 = vld [vmem:[#allocation2 + $0x208] sm:$0xff]
        %v913 = vld [vmem:[#allocation2 + $0x210] sm:$0xff]
        %v914 = vld [vmem:[#allocation2 + $0x218] sm:$0xff]
        %v915 = vld [vmem:[#allocation2 + $0x220] sm:$0xff]
        %v916 = vld [vmem:[#allocation2 + $0x228] sm:$0xff]
        %v917 = vld [vmem:[#allocation2 + $0x230] sm:$0xff]
        %v918 = vld [vmem:[#allocation2 + $0x238] sm:$0xff]
        %vm967 = vcmask 1040384
        %v968 = vrot.slane %v847, 7
        %v969 = vrot.slane %v848, 7
        %v970 = vsel %vm967, %v968, %v969
        %v971 = vrot.slane %v849, 7
        %v972 = vsel %vm967, %v969, %v971
        %v973 = vrot.slane %v851, 7
        %v974 = vrot.slane %v852, 7
        %v975 = vsel %vm967, %v973, %v974
        %v976 = vrot.slane %v853, 7
        %v977 = vsel %vm967, %v974, %v976
        %v978 = vrot.slane %v855, 7
        %v979 = vrot.slane %v856, 7
        %v980 = vsel %vm967, %v978, %v979
        %v981 = vrot.slane %v857, 7
        %v982 = vsel %vm967, %v979, %v981
        %v983 = vrot.slane %v859, 7
        %v984 = vrot.slane %v860, 7
        %v985 = vsel %vm967, %v983, %v984
        %v986 = vrot.slane %v861, 7
        %v987 = vsel %vm967, %v984, %v986
        %v988 = vrot.slane %v863, 7
        %v989 = vrot.slane %v864, 7
        %v990 = vsel %vm967, %v988, %v989
        %v991 = vrot.slane %v865, 7
        %v992 = vsel %vm967, %v989, %v991
        %v993 = vrot.slane %v867, 7
        %v994 = vrot.slane %v868, 7
        %v995 = vsel %vm967, %v993, %v994
        %v996 = vrot.slane %v869, 7
        %v997 = vsel %vm967, %v994, %v996
        %v998 = vrot.slane %v871, 7
        %v999 = vrot.slane %v872, 7
        %v1000 = vsel %vm967, %v998, %v999
        %v1001 = vrot.slane %v873, 7
        %v1002 = vsel %vm967, %v999, %v1001
        %v1003 = vrot.slane %v875, 7
        %v1004 = vrot.slane %v876, 7
        %v1005 = vsel %vm967, %v1003, %v1004
        %v1006 = vrot.slane %v877, 7
        %v1007 = vsel %vm967, %v1004, %v1006
        %v1008 = vrot.slane %v879, 7
        %v1009 = vrot.slane %v880, 7
        %v1010 = vsel %vm967, %v1008, %v1009
        %v1011 = vrot.slane %v881, 7
        %v1012 = vsel %vm967, %v1009, %v1011
        %v1013 = vrot.slane %v883, 7
        %v1014 = vrot.slane %v884, 7
        %v1015 = vsel %vm967, %v1013, %v1014
        %v1016 = vrot.slane %v885, 7
        %v1017 = vsel %vm967, %v1014, %v1016
        %v1018 = vrot.slane %v887, 7
        %v1019 = vrot.slane %v888, 7
        %v1020 = vsel %vm967, %v1018, %v1019
        %v1021 = vrot.slane %v889, 7
        %v1022 = vsel %vm967, %v1019, %v1021
        %v1023 = vrot.slane %v891, 7
        %v1024 = vrot.slane %v892, 7
        %v1025 = vsel %vm967, %v1023, %v1024
        %v1026 = vrot.slane %v893, 7
        %v1027 = vsel %vm967, %v1024, %v1026
        %v1028 = vrot.slane %v895, 7
        %v1029 = vrot.slane %v896, 7
        %v1030 = vsel %vm967, %v1028, %v1029
        %v1031 = vrot.slane %v897, 7
        %v1032 = vsel %vm967, %v1029, %v1031
        %v1033 = vrot.slane %v899, 7
        %v1034 = vrot.slane %v900, 7
        %v1035 = vsel %vm967, %v1033, %v1034
        %v1036 = vrot.slane %v901, 7
        %v1037 = vsel %vm967, %v1034, %v1036
        %v1038 = vrot.slane %v903, 7
        %v1039 = vrot.slane %v904, 7
        %v1040 = vsel %vm967, %v1038, %v1039
        %v1041 = vrot.slane %v905, 7
        %v1042 = vsel %vm967, %v1039, %v1041
        %v1043 = vrot.slane %v907, 7
        %v1044 = vrot.slane %v908, 7
        %v1045 = vsel %vm967, %v1043, %v1044
        %v1046 = vrot.slane %v909, 7
        %v1047 = vsel %vm967, %v1044, %v1046
        %vm1096 = vcmask 1046528
        %v1097 = vrot.slane %v848, 1
        %v1098 = vrot.slane %v849, 1
        %v1099 = vsel %vm1096, %v1097, %v1098
        %v1100 = vrot.slane %v850, 1
        %v1101 = vsel %vm1096, %v1098, %v1100
        %v1102 = vrot.slane %v852, 1
        %v1103 = vrot.slane %v853, 1
        %v1104 = vsel %vm1096, %v1102, %v1103
        %v1105 = vrot.slane %v854, 1
        %v1106 = vsel %vm1096, %v1103, %v1105
        %v1107 = vrot.slane %v856, 1
        %v1108 = vrot.slane %v857, 1
        %v1109 = vsel %vm1096, %v1107, %v1108
        %v1110 = vrot.slane %v858, 1
        %v1111 = vsel %vm1096, %v1108, %v1110
        %v1112 = vrot.slane %v860, 1
        %v1113 = vrot.slane %v861, 1
        %v1114 = vsel %vm1096, %v1112, %v1113
        %v1115 = vrot.slane %v862, 1
        %v1116 = vsel %vm1096, %v1113, %v1115
        %v1117 = vrot.slane %v864, 1
        %v1118 = vrot.slane %v865, 1
        %v1119 = vsel %vm1096, %v1117, %v1118
        %v1120 = vrot.slane %v866, 1
        %v1121 = vsel %vm1096, %v1118, %v1120
        %v1122 = vrot.slane %v868, 1
        %v1123 = vrot.slane %v869, 1
        %v1124 = vsel %vm1096, %v1122, %v1123
        %v1125 = vrot.slane %v870, 1
        %v1126 = vsel %vm1096, %v1123, %v1125
        %v1127 = vrot.slane %v872, 1
        %v1128 = vrot.slane %v873, 1
        %v1129 = vsel %vm1096, %v1127, %v1128
        %v1130 = vrot.slane %v874, 1
        %v1131 = vsel %vm1096, %v1128, %v1130
        %v1132 = vrot.slane %v876, 1
        %v1133 = vrot.slane %v877, 1
        %v1134 = vsel %vm1096, %v1132, %v1133
        %v1135 = vrot.slane %v878, 1
        %v1136 = vsel %vm1096, %v1133, %v1135
        %v1137 = vrot.slane %v880, 1
        %v1138 = vrot.slane %v881, 1
        %v1139 = vsel %vm1096, %v1137, %v1138
        %v1140 = vrot.slane %v882, 1
        %v1141 = vsel %vm1096, %v1138, %v1140
        %v1142 = vrot.slane %v884, 1
        %v1143 = vrot.slane %v885, 1
        %v1144 = vsel %vm1096, %v1142, %v1143
        %v1145 = vrot.slane %v886, 1
        %v1146 = vsel %vm1096, %v1143, %v1145
        %v1147 = vrot.slane %v888, 1
        %v1148 = vrot.slane %v889, 1
        %v1149 = vsel %vm1096, %v1147, %v1148
        %v1150 = vrot.slane %v890, 1
        %v1151 = vsel %vm1096, %v1148, %v1150
        %v1152 = vrot.slane %v892, 1
        %v1153 = vrot.slane %v893, 1
        %v1154 = vsel %vm1096, %v1152, %v1153
        %v1155 = vrot.slane %v894, 1
        %v1156 = vsel %vm1096, %v1153, %v1155
        %v1157 = vrot.slane %v896, 1
        %v1158 = vrot.slane %v897, 1
        %v1159 = vsel %vm1096, %v1157, %v1158
        %v1160 = vrot.slane %v898, 1
        %v1161 = vsel %vm1096, %v1158, %v1160
        %v1162 = vrot.slane %v900, 1
        %v1163 = vrot.slane %v901, 1
        %v1164 = vsel %vm1096, %v1162, %v1163
        %v1165 = vrot.slane %v902, 1
        %v1166 = vsel %vm1096, %v1163, %v1165
        %v1167 = vrot.slane %v904, 1
        %v1168 = vrot.slane %v905, 1
        %v1169 = vsel %vm1096, %v1167, %v1168
        %v1170 = vrot.slane %v906, 1
        %v1171 = vsel %vm1096, %v1168, %v1170
        %v1172 = vrot.slane %v908, 1
        %v1173 = vrot.slane %v909, 1
        %v1174 = vsel %vm1096, %v1172, %v1173
        %v1175 = vrot.slane %v910, 1
        %v1176 = vsel %vm1096, %v1173, %v1175
        %v1180 = vrot.slane %v911, 7
        %v1181 = vrot.slane %v912, 7
        %v1182 = vsel %vm967, %v1180, %v1181
        %v1183 = vrot.slane %v913, 7
        %v1184 = vsel %vm967, %v1181, %v1183
        %v1186 = vrot.slane %v912, 1
        %v1187 = vrot.slane %v913, 1
        %v1188 = vsel %vm1096, %v1186, %v1187
        %v1189 = vrot.slane %v914, 1
        %v1190 = vsel %vm1096, %v1187, %v1189
        %v1194 = vrot.slane %v915, 7
        %v1195 = vrot.slane %v916, 7
        %v1196 = vsel %vm967, %v1194, %v1195
        %v1197 = vrot.slane %v917, 7
        %v1198 = vsel %vm967, %v1195, %v1197
        %v1200 = vrot.slane %v916, 1
        %v1201 = vrot.slane %v917, 1
        %v1202 = vsel %vm1096, %v1200, %v1201
        %v1203 = vrot.slane %v918, 1
        %v1204 = vsel %vm1096, %v1201, %v1203
        %1205 = vrot.lane.b32.xlu0 %v848, 32
        %v1206 = vpop.permute.xlu0 %1205
        %1207 = vrot.lane.b32.xlu0 %v849, 32
        %v1208 = vpop.permute.xlu0 %1207
        %1209 = vrot.lane.b32.xlu0 %v852, 32
        %v1210 = vpop.permute.xlu0 %1209
        %1211 = vrot.lane.b32.xlu0 %v853, 32
        %v1212 = vpop.permute.xlu0 %1211
        %1213 = vrot.lane.b32.xlu0 %v856, 32
        %v1214 = vpop.permute.xlu0 %1213
        %1215 = vrot.lane.b32.xlu0 %v857, 32
        %v1216 = vpop.permute.xlu0 %1215
        %1217 = vrot.lane.b32.xlu0 %v860, 32
        %v1218 = vpop.permute.xlu0 %1217
        %1219 = vrot.lane.b32.xlu0 %v861, 32
        %v1220 = vpop.permute.xlu0 %1219
        %1221 = vrot.lane.b32.xlu0 %v864, 32
        %v1222 = vpop.permute.xlu0 %1221
        %1223 = vrot.lane.b32.xlu0 %v865, 32
        %v1224 = vpop.permute.xlu0 %1223
        %1225 = vrot.lane.b32.xlu0 %v868, 32
        %v1226 = vpop.permute.xlu0 %1225
        %1227 = vrot.lane.b32.xlu0 %v869, 32
        %v1228 = vpop.permute.xlu0 %1227
        %1229 = vrot.lane.b32.xlu0 %v872, 32
        %v1230 = vpop.permute.xlu0 %1229
        %1231 = vrot.lane.b32.xlu0 %v873, 32
        %v1232 = vpop.permute.xlu0 %1231
        %1233 = vrot.lane.b32.xlu0 %v876, 32
        %v1234 = vpop.permute.xlu0 %1233
        %1235 = vrot.lane.b32.xlu0 %v877, 32
        %v1236 = vpop.permute.xlu0 %1235
        %1237 = vrot.lane.b32.xlu0 %v880, 32
        %v1238 = vpop.permute.xlu0 %1237
        %1239 = vrot.lane.b32.xlu0 %v881, 32
        %v1240 = vpop.permute.xlu0 %1239
        %1241 = vrot.lane.b32.xlu0 %v884, 32
        %v1242 = vpop.permute.xlu0 %1241
        %1243 = vrot.lane.b32.xlu0 %v885, 32
        %v1244 = vpop.permute.xlu0 %1243
        %1245 = vrot.lane.b32.xlu0 %v888, 32
        %v1246 = vpop.permute.xlu0 %1245
        %1247 = vrot.lane.b32.xlu0 %v889, 32
        %v1248 = vpop.permute.xlu0 %1247
        %1249 = vrot.lane.b32.xlu0 %v892, 32
        %v1250 = vpop.permute.xlu0 %1249
        %1251 = vrot.lane.b32.xlu0 %v893, 32
        %v1252 = vpop.permute.xlu0 %1251
        %1253 = vrot.lane.b32.xlu0 %v896, 32
        %v1254 = vpop.permute.xlu0 %1253
        %1255 = vrot.lane.b32.xlu0 %v897, 32
        %v1256 = vpop.permute.xlu0 %1255
        %1257 = vrot.lane.b32.xlu0 %v900, 32
        %v1258 = vpop.permute.xlu0 %1257
        %1259 = vrot.lane.b32.xlu0 %v901, 32
        %v1260 = vpop.permute.xlu0 %1259
        %1261 = vrot.lane.b32.xlu0 %v904, 32
        %v1262 = vpop.permute.xlu0 %1261
        %1263 = vrot.lane.b32.xlu0 %v905, 32
        %v1264 = vpop.permute.xlu0 %1263
        %1265 = vrot.lane.b32.xlu0 %v908, 32
        %v1266 = vpop.permute.xlu0 %1265
        %1267 = vrot.lane.b32.xlu0 %v909, 32
        %v1268 = vpop.permute.xlu0 %1267
        %1301 = vrot.lane.b32.xlu0 %v1099, 64
        %v1302 = vpop.permute.xlu0 %1301
        %1303 = vrot.lane.b32.xlu0 %v1101, 64
        %v1304 = vpop.permute.xlu0 %1303
        %1305 = vrot.lane.b32.xlu0 %v1104, 64
        %v1306 = vpop.permute.xlu0 %1305
        %1307 = vrot.lane.b32.xlu0 %v1106, 64
        %v1308 = vpop.permute.xlu0 %1307
        %1309 = vrot.lane.b32.xlu0 %v1109, 64
        %v1310 = vpop.permute.xlu0 %1309
        %1311 = vrot.lane.b32.xlu0 %v1111, 64
        %v1312 = vpop.permute.xlu0 %1311
        %1313 = vrot.lane.b32.xlu0 %v1114, 64
        %v1314 = vpop.permute.xlu0 %1313
        %1315 = vrot.lane.b32.xlu0 %v1116, 64
        %v1316 = vpop.permute.xlu0 %1315
        %1317 = vrot.lane.b32.xlu0 %v1119, 64
        %v1318 = vpop.permute.xlu0 %1317
        %1319 = vrot.lane.b32.xlu0 %v1121, 64
        %v1320 = vpop.permute.xlu0 %1319
        %1321 = vrot.lane.b32.xlu0 %v1124, 64
        %v1322 = vpop.permute.xlu0 %1321
        %1323 = vrot.lane.b32.xlu0 %v1126, 64
        %v1324 = vpop.permute.xlu0 %1323
        %1325 = vrot.lane.b32.xlu0 %v1129, 64
        %v1326 = vpop.permute.xlu0 %1325
        %1327 = vrot.lane.b32.xlu0 %v1131, 64
        %v1328 = vpop.permute.xlu0 %1327
        %1329 = vrot.lane.b32.xlu0 %v1134, 64
        %v1330 = vpop.permute.xlu0 %1329
        %1331 = vrot.lane.b32.xlu0 %v1136, 64
        %v1332 = vpop.permute.xlu0 %1331
        %1333 = vrot.lane.b32.xlu0 %v1139, 64
        %v1334 = vpop.permute.xlu0 %1333
        %1335 = vrot.lane.b32.xlu0 %v1141, 64
        %v1336 = vpop.permute.xlu0 %1335
        %1337 = vrot.lane.b32.xlu0 %v1144, 64
        %v1338 = vpop.permute.xlu0 %1337
        %1339 = vrot.lane.b32.xlu0 %v1146, 64
        %v1340 = vpop.permute.xlu0 %1339
        %1341 = vrot.lane.b32.xlu0 %v1149, 64
        %v1342 = vpop.permute.xlu0 %1341
        %1343 = vrot.lane.b32.xlu0 %v1151, 64
        %v1344 = vpop.permute.xlu0 %1343
        %1345 = vrot.lane.b32.xlu0 %v1154, 64
        %v1346 = vpop.permute.xlu0 %1345
        %1347 = vrot.lane.b32.xlu0 %v1156, 64
        %v1348 = vpop.permute.xlu0 %1347
        %1349 = vrot.lane.b32.xlu0 %v1159, 64
        %v1350 = vpop.permute.xlu0 %1349
        %1351 = vrot.lane.b32.xlu0 %v1161, 64
        %v1352 = vpop.permute.xlu0 %1351
        %1353 = vrot.lane.b32.xlu0 %v1164, 64
        %v1354 = vpop.permute.xlu0 %1353
        %1355 = vrot.lane.b32.xlu0 %v1166, 64
        %v1356 = vpop.permute.xlu0 %1355
        %1357 = vrot.lane.b32.xlu0 %v1169, 64
        %v1358 = vpop.permute.xlu0 %1357
        %1359 = vrot.lane.b32.xlu0 %v1171, 64
        %v1360 = vpop.permute.xlu0 %1359
        %1361 = vrot.lane.b32.xlu0 %v1174, 64
        %v1362 = vpop.permute.xlu0 %1361
        %1363 = vrot.lane.b32.xlu0 %v1176, 64
        %v1364 = vpop.permute.xlu0 %1363
        %1397 = vrot.lane.b32.xlu0 %v975, 96
        %v1398 = vpop.permute.xlu0 %1397
        %1399 = vrot.lane.b32.xlu0 %v977, 96
        %v1400 = vpop.permute.xlu0 %1399
        %1401 = vrot.lane.b32.xlu0 %v980, 96
        %v1402 = vpop.permute.xlu0 %1401
        %1403 = vrot.lane.b32.xlu0 %v982, 96
        %v1404 = vpop.permute.xlu0 %1403
        %1405 = vrot.lane.b32.xlu0 %v985, 96
        %v1406 = vpop.permute.xlu0 %1405
        %1407 = vrot.lane.b32.xlu0 %v987, 96
        %v1408 = vpop.permute.xlu0 %1407
        %1409 = vrot.lane.b32.xlu0 %v990, 96
        %v1410 = vpop.permute.xlu0 %1409
        %1411 = vrot.lane.b32.xlu0 %v992, 96
        %v1412 = vpop.permute.xlu0 %1411
        %1413 = vrot.lane.b32.xlu0 %v995, 96
        %v1414 = vpop.permute.xlu0 %1413
        %1415 = vrot.lane.b32.xlu0 %v997, 96
        %v1416 = vpop.permute.xlu0 %1415
        %1417 = vrot.lane.b32.xlu0 %v1000, 96
        %v1418 = vpop.permute.xlu0 %1417
        %1419 = vrot.lane.b32.xlu0 %v1002, 96
        %v1420 = vpop.permute.xlu0 %1419
        %1421 = vrot.lane.b32.xlu0 %v1005, 96
        %v1422 = vpop.permute.xlu0 %1421
        %1423 = vrot.lane.b32.xlu0 %v1007, 96
        %v1424 = vpop.permute.xlu0 %1423
        %1425 = vrot.lane.b32.xlu0 %v1010, 96
        %v1426 = vpop.permute.xlu0 %1425
        %1427 = vrot.lane.b32.xlu0 %v1012, 96
        %v1428 = vpop.permute.xlu0 %1427
        %1429 = vrot.lane.b32.xlu0 %v1015, 96
        %v1430 = vpop.permute.xlu0 %1429
        %1431 = vrot.lane.b32.xlu0 %v1017, 96
        %v1432 = vpop.permute.xlu0 %1431
        %1433 = vrot.lane.b32.xlu0 %v1020, 96
        %v1434 = vpop.permute.xlu0 %1433
        %1435 = vrot.lane.b32.xlu0 %v1022, 96
        %v1436 = vpop.permute.xlu0 %1435
        %1437 = vrot.lane.b32.xlu0 %v1025, 96
        %v1438 = vpop.permute.xlu0 %1437
        %1439 = vrot.lane.b32.xlu0 %v1027, 96
        %v1440 = vpop.permute.xlu0 %1439
        %1441 = vrot.lane.b32.xlu0 %v1030, 96
        %v1442 = vpop.permute.xlu0 %1441
        %1443 = vrot.lane.b32.xlu0 %v1032, 96
        %v1444 = vpop.permute.xlu0 %1443
        %1445 = vrot.lane.b32.xlu0 %v1035, 96
        %v1446 = vpop.permute.xlu0 %1445
        %1447 = vrot.lane.b32.xlu0 %v1037, 96
        %v1448 = vpop.permute.xlu0 %1447
        %1449 = vrot.lane.b32.xlu0 %v1040, 96
        %v1450 = vpop.permute.xlu0 %1449
        %1451 = vrot.lane.b32.xlu0 %v1042, 96
        %v1452 = vpop.permute.xlu0 %1451
        %1453 = vrot.lane.b32.xlu0 %v1045, 96
        %v1454 = vpop.permute.xlu0 %1453
        %1455 = vrot.lane.b32.xlu0 %v1047, 96
        %v1456 = vpop.permute.xlu0 %1455
        %1457 = vrot.lane.b32.xlu0 %v1182, 96
        %v1458 = vpop.permute.xlu0 %1457
        %1459 = vrot.lane.b32.xlu0 %v1184, 96
        %v1460 = vpop.permute.xlu0 %1459
        %1493 = vrot.lane.b32.xlu0 %v1104, 32
        %v1494 = vpop.permute.xlu0 %1493
        %1495 = vrot.lane.b32.xlu0 %v1106, 32
        %v1496 = vpop.permute.xlu0 %1495
        %1497 = vrot.lane.b32.xlu0 %v1109, 32
        %v1498 = vpop.permute.xlu0 %1497
        %1499 = vrot.lane.b32.xlu0 %v1111, 32
        %v1500 = vpop.permute.xlu0 %1499
        %1501 = vrot.lane.b32.xlu0 %v1114, 32
        %v1502 = vpop.permute.xlu0 %1501
        %1503 = vrot.lane.b32.xlu0 %v1116, 32
        %v1504 = vpop.permute.xlu0 %1503
        %1505 = vrot.lane.b32.xlu0 %v1119, 32
        %v1506 = vpop.permute.xlu0 %1505
        %1507 = vrot.lane.b32.xlu0 %v1121, 32
        %v1508 = vpop.permute.xlu0 %1507
        %1509 = vrot.lane.b32.xlu0 %v1124, 32
        %v1510 = vpop.permute.xlu0 %1509
        %1511 = vrot.lane.b32.xlu0 %v1126, 32
        %v1512 = vpop.permute.xlu0 %1511
        %1513 = vrot.lane.b32.xlu0 %v1129, 32
        %v1514 = vpop.permute.xlu0 %1513
        %1515 = vrot.lane.b32.xlu0 %v1131, 32
        %v1516 = vpop.permute.xlu0 %1515
        %1517 = vrot.lane.b32.xlu0 %v1134, 32
        %v1518 = vpop.permute.xlu0 %1517
        %1519 = vrot.lane.b32.xlu0 %v1136, 32
        %v1520 = vpop.permute.xlu0 %1519
        %1521 = vrot.lane.b32.xlu0 %v1139, 32
        %v1522 = vpop.permute.xlu0 %1521
        %1523 = vrot.lane.b32.xlu0 %v1141, 32
        %v1524 = vpop.permute.xlu0 %1523
        %1525 = vrot.lane.b32.xlu0 %v1144, 32
        %v1526 = vpop.permute.xlu0 %1525
        %1527 = vrot.lane.b32.xlu0 %v1146, 32
        %v1528 = vpop.permute.xlu0 %1527
        %1529 = vrot.lane.b32.xlu0 %v1149, 32
        %v1530 = vpop.permute.xlu0 %1529
        %1531 = vrot.lane.b32.xlu0 %v1151, 32
        %v1532 = vpop.permute.xlu0 %1531
        %1533 = vrot.lane.b32.xlu0 %v1154, 32
        %v1534 = vpop.permute.xlu0 %1533
        %1535 = vrot.lane.b32.xlu0 %v1156, 32
        %v1536 = vpop.permute.xlu0 %1535
        %1537 = vrot.lane.b32.xlu0 %v1159, 32
        %v1538 = vpop.permute.xlu0 %1537
        %1539 = vrot.lane.b32.xlu0 %v1161, 32
        %v1540 = vpop.permute.xlu0 %1539
        %1541 = vrot.lane.b32.xlu0 %v1164, 32
        %v1542 = vpop.permute.xlu0 %1541
        %1543 = vrot.lane.b32.xlu0 %v1166, 32
        %v1544 = vpop.permute.xlu0 %1543
        %1545 = vrot.lane.b32.xlu0 %v1169, 32
        %v1546 = vpop.permute.xlu0 %1545
        %1547 = vrot.lane.b32.xlu0 %v1171, 32
        %v1548 = vpop.permute.xlu0 %1547
        %1549 = vrot.lane.b32.xlu0 %v1174, 32
        %v1550 = vpop.permute.xlu0 %1549
        %1551 = vrot.lane.b32.xlu0 %v1176, 32
        %v1552 = vpop.permute.xlu0 %1551
        %1553 = vrot.lane.b32.xlu0 %v1188, 32
        %v1554 = vpop.permute.xlu0 %1553
        %1555 = vrot.lane.b32.xlu0 %v1190, 32
        %v1556 = vpop.permute.xlu0 %1555
        %1589 = vrot.lane.b32.xlu0 %v980, 64
        %v1590 = vpop.permute.xlu0 %1589
        %1591 = vrot.lane.b32.xlu0 %v982, 64
        %v1592 = vpop.permute.xlu0 %1591
        %1593 = vrot.lane.b32.xlu0 %v985, 64
        %v1594 = vpop.permute.xlu0 %1593
        %1595 = vrot.lane.b32.xlu0 %v987, 64
        %v1596 = vpop.permute.xlu0 %1595
        %1597 = vrot.lane.b32.xlu0 %v990, 64
        %v1598 = vpop.permute.xlu0 %1597
        %1599 = vrot.lane.b32.xlu0 %v992, 64
        %v1600 = vpop.permute.xlu0 %1599
        %1601 = vrot.lane.b32.xlu0 %v995, 64
        %v1602 = vpop.permute.xlu0 %1601
        %1603 = vrot.lane.b32.xlu0 %v997, 64
        %v1604 = vpop.permute.xlu0 %1603
        %1605 = vrot.lane.b32.xlu0 %v1000, 64
        %v1606 = vpop.permute.xlu0 %1605
        %1607 = vrot.lane.b32.xlu0 %v1002, 64
        %v1608 = vpop.permute.xlu0 %1607
        %1609 = vrot.lane.b32.xlu0 %v1005, 64
        %v1610 = vpop.permute.xlu0 %1609
        %1611 = vrot.lane.b32.xlu0 %v1007, 64
        %v1612 = vpop.permute.xlu0 %1611
        %1613 = vrot.lane.b32.xlu0 %v1010, 64
        %v1614 = vpop.permute.xlu0 %1613
        %1615 = vrot.lane.b32.xlu0 %v1012, 64
        %v1616 = vpop.permute.xlu0 %1615
        %1617 = vrot.lane.b32.xlu0 %v1015, 64
        %v1618 = vpop.permute.xlu0 %1617
        %1619 = vrot.lane.b32.xlu0 %v1017, 64
        %v1620 = vpop.permute.xlu0 %1619
        %1621 = vrot.lane.b32.xlu0 %v1020, 64
        %v1622 = vpop.permute.xlu0 %1621
        %1623 = vrot.lane.b32.xlu0 %v1022, 64
        %v1624 = vpop.permute.xlu0 %1623
        %1625 = vrot.lane.b32.xlu0 %v1025, 64
        %v1626 = vpop.permute.xlu0 %1625
        %1627 = vrot.lane.b32.xlu0 %v1027, 64
        %v1628 = vpop.permute.xlu0 %1627
        %1629 = vrot.lane.b32.xlu0 %v1030, 64
        %v1630 = vpop.permute.xlu0 %1629
        %1631 = vrot.lane.b32.xlu0 %v1032, 64
        %v1632 = vpop.permute.xlu0 %1631
        %1633 = vrot.lane.b32.xlu0 %v1035, 64
        %v1634 = vpop.permute.xlu0 %1633
        %1635 = vrot.lane.b32.xlu0 %v1037, 64
        %v1636 = vpop.permute.xlu0 %1635
        %1637 = vrot.lane.b32.xlu0 %v1040, 64
        %v1638 = vpop.permute.xlu0 %1637
        %1639 = vrot.lane.b32.xlu0 %v1042, 64
        %v1640 = vpop.permute.xlu0 %1639
        %1641 = vrot.lane.b32.xlu0 %v1045, 64
        %v1642 = vpop.permute.xlu0 %1641
        %1643 = vrot.lane.b32.xlu0 %v1047, 64
        %v1644 = vpop.permute.xlu0 %1643
        %1645 = vrot.lane.b32.xlu0 %v1182, 64
        %v1646 = vpop.permute.xlu0 %1645
        %1647 = vrot.lane.b32.xlu0 %v1184, 64
        %v1648 = vpop.permute.xlu0 %1647
        %1649 = vrot.lane.b32.xlu0 %v1196, 64
        %v1650 = vpop.permute.xlu0 %1649
        %1651 = vrot.lane.b32.xlu0 %v1198, 64
        %v1652 = vpop.permute.xlu0 %1651
        %1685 = vrot.lane.b32.xlu0 %v856, 96
        %v1686 = vpop.permute.xlu0 %1685
        %1687 = vrot.lane.b32.xlu0 %v857, 96
        %v1688 = vpop.permute.xlu0 %1687
        %1689 = vrot.lane.b32.xlu0 %v860, 96
        %v1690 = vpop.permute.xlu0 %1689
        %1691 = vrot.lane.b32.xlu0 %v861, 96
        %v1692 = vpop.permute.xlu0 %1691
        %1693 = vrot.lane.b32.xlu0 %v864, 96
        %v1694 = vpop.permute.xlu0 %1693
        %1695 = vrot.lane.b32.xlu0 %v865, 96
        %v1696 = vpop.permute.xlu0 %1695
        %1697 = vrot.lane.b32.xlu0 %v868, 96
        %v1698 = vpop.permute.xlu0 %1697
        %1699 = vrot.lane.b32.xlu0 %v869, 96
        %v1700 = vpop.permute.xlu0 %1699
        %1701 = vrot.lane.b32.xlu0 %v872, 96
        %v1702 = vpop.permute.xlu0 %1701
        %1703 = vrot.lane.b32.xlu0 %v873, 96
        %v1704 = vpop.permute.xlu0 %1703
        %1705 = vrot.lane.b32.xlu0 %v876, 96
        %v1706 = vpop.permute.xlu0 %1705
        %1707 = vrot.lane.b32.xlu0 %v877, 96
        %v1708 = vpop.permute.xlu0 %1707
        %1709 = vrot.lane.b32.xlu0 %v880, 96
        %v1710 = vpop.permute.xlu0 %1709
        %1711 = vrot.lane.b32.xlu0 %v881, 96
        %v1712 = vpop.permute.xlu0 %1711
        %1713 = vrot.lane.b32.xlu0 %v884, 96
        %v1714 = vpop.permute.xlu0 %1713
        %1715 = vrot.lane.b32.xlu0 %v885, 96
        %v1716 = vpop.permute.xlu0 %1715
        %1717 = vrot.lane.b32.xlu0 %v888, 96
        %v1718 = vpop.permute.xlu0 %1717
        %1719 = vrot.lane.b32.xlu0 %v889, 96
        %v1720 = vpop.permute.xlu0 %1719
        %1721 = vrot.lane.b32.xlu0 %v892, 96
        %v1722 = vpop.permute.xlu0 %1721
        %1723 = vrot.lane.b32.xlu0 %v893, 96
        %v1724 = vpop.permute.xlu0 %1723
        %1725 = vrot.lane.b32.xlu0 %v896, 96
        %v1726 = vpop.permute.xlu0 %1725
        %1727 = vrot.lane.b32.xlu0 %v897, 96
        %v1728 = vpop.permute.xlu0 %1727
        %1729 = vrot.lane.b32.xlu0 %v900, 96
        %v1730 = vpop.permute.xlu0 %1729
        %1731 = vrot.lane.b32.xlu0 %v901, 96
        %v1732 = vpop.permute.xlu0 %1731
        %1733 = vrot.lane.b32.xlu0 %v904, 96
        %v1734 = vpop.permute.xlu0 %1733
        %1735 = vrot.lane.b32.xlu0 %v905, 96
        %v1736 = vpop.permute.xlu0 %1735
        %1737 = vrot.lane.b32.xlu0 %v908, 96
        %v1738 = vpop.permute.xlu0 %1737
        %1739 = vrot.lane.b32.xlu0 %v909, 96
        %v1740 = vpop.permute.xlu0 %1739
        %1741 = vrot.lane.b32.xlu0 %v912, 96
        %v1742 = vpop.permute.xlu0 %1741
        %1743 = vrot.lane.b32.xlu0 %v913, 96
        %v1744 = vpop.permute.xlu0 %1743
        %1745 = vrot.lane.b32.xlu0 %v916, 96
        %v1746 = vpop.permute.xlu0 %1745
        %1747 = vrot.lane.b32.xlu0 %v917, 96
        %v1748 = vpop.permute.xlu0 %1747
        %v1781 = vsel %vm704, %v970, %v1206
        %v1782 = vsel %vm704, %v972, %v1208
        %v1783 = vsel %vm704, %v975, %v1210
        %v1784 = vsel %vm704, %v977, %v1212
        %v1785 = vsel %vm704, %v980, %v1214
        %v1786 = vsel %vm704, %v982, %v1216
        %v1787 = vsel %vm704, %v985, %v1218
        %v1788 = vsel %vm704, %v987, %v1220
        %v1789 = vsel %vm704, %v990, %v1222
        %v1790 = vsel %vm704, %v992, %v1224
        %v1791 = vsel %vm704, %v995, %v1226
        %v1792 = vsel %vm704, %v997, %v1228
        %v1793 = vsel %vm704, %v1000, %v1230
        %v1794 = vsel %vm704, %v1002, %v1232
        %v1795 = vsel %vm704, %v1005, %v1234
        %v1796 = vsel %vm704, %v1007, %v1236
        %v1797 = vsel %vm704, %v1010, %v1238
        %v1798 = vsel %vm704, %v1012, %v1240
        %v1799 = vsel %vm704, %v1015, %v1242
        %v1800 = vsel %vm704, %v1017, %v1244
        %v1801 = vsel %vm704, %v1020, %v1246
        %v1802 = vsel %vm704, %v1022, %v1248
        %v1803 = vsel %vm704, %v1025, %v1250
        %v1804 = vsel %vm704, %v1027, %v1252
        %v1805 = vsel %vm704, %v1030, %v1254
        %v1806 = vsel %vm704, %v1032, %v1256
        %v1807 = vsel %vm704, %v1035, %v1258
        %v1808 = vsel %vm704, %v1037, %v1260
        %v1809 = vsel %vm704, %v1040, %v1262
        %v1810 = vsel %vm704, %v1042, %v1264
        %v1811 = vsel %vm704, %v1045, %v1266
        %v1812 = vsel %vm704, %v1047, %v1268
        %vm1813 = vcmask 523264
        %v1814 = vsel %vm1813, %v1781, %v1302
        %v1815 = vsel %vm1813, %v1782, %v1304
        %v1816 = vsel %vm1813, %v1783, %v1306
        %v1817 = vsel %vm1813, %v1784, %v1308
        %v1818 = vsel %vm1813, %v1785, %v1310
        %v1819 = vsel %vm1813, %v1786, %v1312
        %v1820 = vsel %vm1813, %v1787, %v1314
        %v1821 = vsel %vm1813, %v1788, %v1316
        %v1822 = vsel %vm1813, %v1789, %v1318
        %v1823 = vsel %vm1813, %v1790, %v1320
        %v1824 = vsel %vm1813, %v1791, %v1322
        %v1825 = vsel %vm1813, %v1792, %v1324
        %v1826 = vsel %vm1813, %v1793, %v1326
        %v1827 = vsel %vm1813, %v1794, %v1328
        %v1828 = vsel %vm1813, %v1795, %v1330
        %v1829 = vsel %vm1813, %v1796, %v1332
        %v1830 = vsel %vm1813, %v1797, %v1334
        %v1831 = vsel %vm1813, %v1798, %v1336
        %v1832 = vsel %vm1813, %v1799, %v1338
        %v1833 = vsel %vm1813, %v1800, %v1340
        %v1834 = vsel %vm1813, %v1801, %v1342
        %v1835 = vsel %vm1813, %v1802, %v1344
        %v1836 = vsel %vm1813, %v1803, %v1346
        %v1837 = vsel %vm1813, %v1804, %v1348
        %v1838 = vsel %vm1813, %v1805, %v1350
        %v1839 = vsel %vm1813, %v1806, %v1352
        %v1840 = vsel %vm1813, %v1807, %v1354
        %v1841 = vsel %vm1813, %v1808, %v1356
        %v1842 = vsel %vm1813, %v1809, %v1358
        %v1843 = vsel %vm1813, %v1810, %v1360
        %v1844 = vsel %vm1813, %v1811, %v1362
        %v1845 = vsel %vm1813, %v1812, %v1364
        %vm1846 = vcmask 785408
        %v1847 = vsel %vm1846, %v1814, %v1398
        %v1848 = vsel %vm1846, %v1815, %v1400
        %v1849 = vsel %vm1846, %v1816, %v1402
        %v1850 = vsel %vm1846, %v1817, %v1404
        %v1851 = vsel %vm1846, %v1818, %v1406
        %v1852 = vsel %vm1846, %v1819, %v1408
        %v1853 = vsel %vm1846, %v1820, %v1410
        %v1854 = vsel %vm1846, %v1821, %v1412
        %v1855 = vsel %vm1846, %v1822, %v1414
        %v1856 = vsel %vm1846, %v1823, %v1416
        %v1857 = vsel %vm1846, %v1824, %v1418
        %v1858 = vsel %vm1846, %v1825, %v1420
        %v1859 = vsel %vm1846, %v1826, %v1422
        %v1860 = vsel %vm1846, %v1827, %v1424
        %v1861 = vsel %vm1846, %v1828, %v1426
        %v1862 = vsel %vm1846, %v1829, %v1428
        %v1863 = vsel %vm1846, %v1830, %v1430
        %v1864 = vsel %vm1846, %v1831, %v1432
        %v1865 = vsel %vm1846, %v1832, %v1434
        %v1866 = vsel %vm1846, %v1833, %v1436
        %v1867 = vsel %vm1846, %v1834, %v1438
        %v1868 = vsel %vm1846, %v1835, %v1440
        %v1869 = vsel %vm1846, %v1836, %v1442
        %v1870 = vsel %vm1846, %v1837, %v1444
        %v1871 = vsel %vm1846, %v1838, %v1446
        %v1872 = vsel %vm1846, %v1839, %v1448
        %v1873 = vsel %vm1846, %v1840, %v1450
        %v1874 = vsel %vm1846, %v1841, %v1452
        %v1875 = vsel %vm1846, %v1842, %v1454
        %v1876 = vsel %vm1846, %v1843, %v1456
        %v1877 = vsel %vm1846, %v1844, %v1458
        %v1878 = vsel %vm1846, %v1845, %v1460
        %v1879 = vsel %vm704, %v852, %v1494
        %v1880 = vsel %vm704, %v853, %v1496
        %v1881 = vsel %vm704, %v856, %v1498
        %v1882 = vsel %vm704, %v857, %v1500
        %v1883 = vsel %vm704, %v860, %v1502
        %v1884 = vsel %vm704, %v861, %v1504
        %v1885 = vsel %vm704, %v864, %v1506
        %v1886 = vsel %vm704, %v865, %v1508
        %v1887 = vsel %vm704, %v868, %v1510
        %v1888 = vsel %vm704, %v869, %v1512
        %v1889 = vsel %vm704, %v872, %v1514
        %v1890 = vsel %vm704, %v873, %v1516
        %v1891 = vsel %vm704, %v876, %v1518
        %v1892 = vsel %vm704, %v877, %v1520
        %v1893 = vsel %vm704, %v880, %v1522
        %v1894 = vsel %vm704, %v881, %v1524
        %v1895 = vsel %vm704, %v884, %v1526
        %v1896 = vsel %vm704, %v885, %v1528
        %v1897 = vsel %vm704, %v888, %v1530
        %v1898 = vsel %vm704, %v889, %v1532
        %v1899 = vsel %vm704, %v892, %v1534
        %v1900 = vsel %vm704, %v893, %v1536
        %v1901 = vsel %vm704, %v896, %v1538
        %v1902 = vsel %vm704, %v897, %v1540
        %v1903 = vsel %vm704, %v900, %v1542
        %v1904 = vsel %vm704, %v901, %v1544
        %v1905 = vsel %vm704, %v904, %v1546
        %v1906 = vsel %vm704, %v905, %v1548
        %v1907 = vsel %vm704, %v908, %v1550
        %v1908 = vsel %vm704, %v909, %v1552
        %v1909 = vsel %vm704, %v912, %v1554
        %v1910 = vsel %vm704, %v913, %v1556
        %v1911 = vsel %vm1813, %v1879, %v1590
        %v1912 = vsel %vm1813, %v1880, %v1592
        %v1913 = vsel %vm1813, %v1881, %v1594
        %v1914 = vsel %vm1813, %v1882, %v1596
        %v1915 = vsel %vm1813, %v1883, %v1598
        %v1916 = vsel %vm1813, %v1884, %v1600
        %v1917 = vsel %vm1813, %v1885, %v1602
        %v1918 = vsel %vm1813, %v1886, %v1604
        %v1919 = vsel %vm1813, %v1887, %v1606
        %v1920 = vsel %vm1813, %v1888, %v1608
        %v1921 = vsel %vm1813, %v1889, %v1610
        %v1922 = vsel %vm1813, %v1890, %v1612
        %v1923 = vsel %vm1813, %v1891, %v1614
        %v1924 = vsel %vm1813, %v1892, %v1616
        %v1925 = vsel %vm1813, %v1893, %v1618
        %v1926 = vsel %vm1813, %v1894, %v1620
        %v1927 = vsel %vm1813, %v1895, %v1622
        %v1928 = vsel %vm1813, %v1896, %v1624
        %v1929 = vsel %vm1813, %v1897, %v1626
        %v1930 = vsel %vm1813, %v1898, %v1628
        %v1931 = vsel %vm1813, %v1899, %v1630
        %v1932 = vsel %vm1813, %v1900, %v1632
        %v1933 = vsel %vm1813, %v1901, %v1634
        %v1934 = vsel %vm1813, %v1902, %v1636
        %v1935 = vsel %vm1813, %v1903, %v1638
        %v1936 = vsel %vm1813, %v1904, %v1640
        %v1937 = vsel %vm1813, %v1905, %v1642
        %v1938 = vsel %vm1813, %v1906, %v1644
        %v1939 = vsel %vm1813, %v1907, %v1646
        %v1940 = vsel %vm1813, %v1908, %v1648
        %v1941 = vsel %vm1813, %v1909, %v1650
        %v1942 = vsel %vm1813, %v1910, %v1652
        %v1943 = vsel %vm1846, %v1911, %v1686
        %v1944 = vsel %vm1846, %v1912, %v1688
        %v1945 = vsel %vm1846, %v1913, %v1690
        %v1946 = vsel %vm1846, %v1914, %v1692
        %v1947 = vsel %vm1846, %v1915, %v1694
        %v1948 = vsel %vm1846, %v1916, %v1696
        %v1949 = vsel %vm1846, %v1917, %v1698
        %v1950 = vsel %vm1846, %v1918, %v1700
        %v1951 = vsel %vm1846, %v1919, %v1702
        %v1952 = vsel %vm1846, %v1920, %v1704
        %v1953 = vsel %vm1846, %v1921, %v1706
        %v1954 = vsel %vm1846, %v1922, %v1708
        %v1955 = vsel %vm1846, %v1923, %v1710
        %v1956 = vsel %vm1846, %v1924, %v1712
        %v1957 = vsel %vm1846, %v1925, %v1714
        %v1958 = vsel %vm1846, %v1926, %v1716
        %v1959 = vsel %vm1846, %v1927, %v1718
        %v1960 = vsel %vm1846, %v1928, %v1720
        %v1961 = vsel %vm1846, %v1929, %v1722
        %v1962 = vsel %vm1846, %v1930, %v1724
        %v1963 = vsel %vm1846, %v1931, %v1726
        %v1964 = vsel %vm1846, %v1932, %v1728
        %v1965 = vsel %vm1846, %v1933, %v1730
        %v1966 = vsel %vm1846, %v1934, %v1732
        %v1967 = vsel %vm1846, %v1935, %v1734
        %v1968 = vsel %vm1846, %v1936, %v1736
        %v1969 = vsel %vm1846, %v1937, %v1738
        %v1970 = vsel %vm1846, %v1938, %v1740
        %v1971 = vsel %vm1846, %v1939, %v1742
        %v1972 = vsel %vm1846, %v1940, %v1744
        %v1973 = vsel %vm1846, %v1941, %v1746
        %v1974 = vsel %vm1846, %v1942, %v1748
        %v1976 = vlaneseq
        %v1977 = vshrl.u32 %v1976, 7
        %v1978 = vsub.s32 0, %v1977
        %v1979 = vrot.slane %v813, %v1978
        %v1981 = vsel %vm704, %v1109, 0
        %v1983 = vsel %vm704, %v1111, 0
        %v1985 = vsel %vm704, %v1114, 0
        %v1987 = vsel %vm704, %v1116, 0
        %v1989 = vsel %vm704, %v1119, 0
        %v1991 = vsel %vm704, %v1121, 0
        %v1993 = vsel %vm704, %v1124, 0
        %v1995 = vsel %vm704, %v1126, 0
        %v1997 = vsel %vm704, %v1129, 0
        %v1999 = vsel %vm704, %v1131, 0
        %v2001 = vsel %vm704, %v1134, 0
        %v2003 = vsel %vm704, %v1136, 0
        %v2005 = vsel %vm704, %v1139, 0
        %v2007 = vsel %vm704, %v1141, 0
        %v2009 = vsel %vm704, %v1144, 0
        %v2011 = vsel %vm704, %v1146, 0
        %v2013 = vsel %vm704, %v1149, 0
        %v2015 = vsel %vm704, %v1151, 0
        %v2017 = vsel %vm704, %v1154, 0
        %v2019 = vsel %vm704, %v1156, 0
        %v2021 = vsel %vm704, %v1159, 0
        %v2023 = vsel %vm704, %v1161, 0
        %v2025 = vsel %vm704, %v1164, 0
        %v2027 = vsel %vm704, %v1166, 0
        %v2029 = vsel %vm704, %v1169, 0
        %v2031 = vsel %vm704, %v1171, 0
        %v2033 = vsel %vm704, %v1174, 0
        %v2035 = vsel %vm704, %v1176, 0
        %v2037 = vsel %vm704, %v1188, 0
        %v2039 = vsel %vm704, %v1190, 0
        %v2041 = vsel %vm704, %v1202, 0
        %v2043 = vsel %vm704, %v1204, 0
        %2045 = vmatprep.subr.mxu0 0.0
        %2046 = vmatpush1.msra.mxu0 %v792
        %2047 = vmatprep.subr.mxu0 0.0
        %2048 = vmatpush1.msra.mxu0 %v791
        %2049 = vmatprep.subr.mxu0 0.0
        %2050 = vmatpush1.msra.mxu0 %v790
        %2051 = vmatprep.subr.mxu0 0.0
        %2052 = vmatpush1.msra.mxu0 %v789
        %2053 = vmatprep.subr.mxu0 0.0
        %2054 = vmatpush1.msra.mxu0 %v788
        %2055 = vmatprep.subr.mxu0 0.0
        %2056 = vmatpush1.msra.mxu0 %v787
        %2057 = vmatprep.subr.mxu0 0.0
        %2058 = vmatpush1.msra.mxu0 %v786
        %2059 = vmatprep.subr.mxu0 0.0
        %2060 = vmatpush1.msra.mxu0 %v785
        %2061 = vmatprep.subr.mxu0 0.0
        %2062 = vmatpush1.msra.mxu0 %v784
        %2063 = vmatprep.subr.mxu0 0.0
        %2064 = vmatpush1.msra.mxu0 %v783
        %2065 = vmatprep.subr.mxu0 0.0
        %2066 = vmatpush1.msra.mxu0 %v782
        %2067 = vmatprep.subr.mxu0 0.0
        %2068 = vmatpush1.msra.mxu0 %v781
        %2069 = vmatprep.subr.mxu0 0.0
        %2070 = vmatpush1.msra.mxu0 %v780
        %2071 = vmatprep.subr.mxu0 0.0
        %2072 = vmatpush1.msra.mxu0 %v779
        %2073 = vmatprep.subr.mxu0 0.0
        %2074 = vmatpush1.msra.mxu0 %v778
        %2075 = vmatprep.subr.mxu0 0.0
        %2076 = vmatpush1.msra.mxu0 %v777
        %2077 = vmatprep.subr.mxu0 0.0
        %2078 = vmatpush2.msra.mxu0 %v808
        %2079 = vmatprep.subr.mxu0 0.0
        %2080 = vmatpush2.msra.mxu0 %v807
        %2081 = vmatprep.subr.mxu0 0.0
        %2082 = vmatpush2.msra.mxu0 %v806
        %2083 = vmatprep.subr.mxu0 0.0
        %2084 = vmatpush2.msra.mxu0 %v805
        %2085 = vmatprep.subr.mxu0 0.0
        %2086 = vmatpush2.msra.mxu0 %v804
        %2087 = vmatprep.subr.mxu0 0.0
        %2088 = vmatpush2.msra.mxu0 %v803
        %2089 = vmatprep.subr.mxu0 0.0
        %2090 = vmatpush2.msra.mxu0 %v802
        %2091 = vmatprep.subr.mxu0 0.0
        %2092 = vmatpush2.msra.mxu0 %v801
        %2093 = vmatprep.subr.mxu0 0.0
        %2094 = vmatpush2.msra.mxu0 %v800
        %2095 = vmatprep.subr.mxu0 0.0
        %2096 = vmatpush2.msra.mxu0 %v799
        %2097 = vmatprep.subr.mxu0 0.0
        %2098 = vmatpush2.msra.mxu0 %v798
        %2099 = vmatprep.subr.mxu0 0.0
        %2100 = vmatpush2.msra.mxu0 %v797
        %2101 = vmatprep.subr.mxu0 0.0
        %2102 = vmatpush2.msra.mxu0 %v796
        %2103 = vmatprep.subr.mxu0 0.0
        %2104 = vmatpush2.msra.mxu0 %v795
        %2105 = vmatprep.subr.mxu0 0.0
        %2106 = vmatpush2.msra.mxu0 %v794
        %2107 = vmatprep.subr.mxu0 0.0
        %2108 = vmatpush2.msra.mxu0 %v793
        %2109 = vmatprep.mubr.f32.mxu0 %v1943
        %2110 = vmatmul.mubr.f32.gmra.mxu0 %v1847
        %v2111 = vpop.f32.mrf.mxu0
        %v2112 = vadd.f32 %v1979, %v2111
        %v2113 = vpop.f32.mrf.mxu0
        %2114 = vmatprep.mubr.f32.mxu0 %v1944
        %2115 = vmatmul.mubr.f32.gmra.mxu0 %v1848
        %v2116 = vpop.f32.mrf.mxu0
        %v2117 = vadd.f32 %v1979, %v2116
        %v2118 = vpop.f32.mrf.mxu0
        %2119 = vmatprep.mubr.f32.mxu0 %v1945
        %2120 = vmatmul.mubr.f32.gmra.mxu0 %v1849
        %v2121 = vpop.f32.mrf.mxu0
        %v2122 = vadd.f32 %v1979, %v2121
        %v2123 = vpop.f32.mrf.mxu0
        %2124 = vmatprep.mubr.f32.mxu0 %v1946
        %2125 = vmatmul.mubr.f32.gmra.mxu0 %v1850
        %v2126 = vpop.f32.mrf.mxu0
        %v2127 = vadd.f32 %v1979, %v2126
        %v2128 = vpop.f32.mrf.mxu0
        %2129 = vmatprep.mubr.f32.mxu0 %v1947
        %2130 = vmatmul.mubr.f32.gmra.mxu0 %v1851
        %v2131 = vpop.f32.mrf.mxu0
        %v2132 = vadd.f32 %v1979, %v2131
        %v2133 = vpop.f32.mrf.mxu0
        %2134 = vmatprep.mubr.f32.mxu0 %v1948
        %2135 = vmatmul.mubr.f32.gmra.mxu0 %v1852
        %v2136 = vpop.f32.mrf.mxu0
        %v2137 = vadd.f32 %v1979, %v2136
        %v2138 = vpop.f32.mrf.mxu0
        %2139 = vmatprep.mubr.f32.mxu0 %v1949
        %2140 = vmatmul.mubr.f32.gmra.mxu0 %v1853
        %v2141 = vpop.f32.mrf.mxu0
        %v2142 = vadd.f32 %v1979, %v2141
        %v2143 = vpop.f32.mrf.mxu0
        %2144 = vmatprep.mubr.f32.mxu0 %v1950
        %2145 = vmatmul.mubr.f32.gmra.mxu0 %v1854
        %v2146 = vpop.f32.mrf.mxu0
        %v2147 = vadd.f32 %v1979, %v2146
        %v2148 = vpop.f32.mrf.mxu0
        %2149 = vmatprep.mubr.f32.mxu0 %v1951
        %2150 = vmatmul.mubr.f32.gmra.mxu0 %v1855
        %v2151 = vpop.f32.mrf.mxu0
        %v2152 = vadd.f32 %v1979, %v2151
        %v2153 = vpop.f32.mrf.mxu0
        %2154 = vmatprep.mubr.f32.mxu0 %v1952
        %2155 = vmatmul.mubr.f32.gmra.mxu0 %v1856
        %v2156 = vpop.f32.mrf.mxu0
        %v2157 = vadd.f32 %v1979, %v2156
        %v2158 = vpop.f32.mrf.mxu0
        %2159 = vmatprep.mubr.f32.mxu0 %v1953
        %2160 = vmatmul.mubr.f32.gmra.mxu0 %v1857
        %v2161 = vpop.f32.mrf.mxu0
        %v2162 = vadd.f32 %v1979, %v2161
        %v2163 = vpop.f32.mrf.mxu0
        %2164 = vmatprep.mubr.f32.mxu0 %v1954
        %2165 = vmatmul.mubr.f32.gmra.mxu0 %v1858
        %v2166 = vpop.f32.mrf.mxu0
        %v2167 = vadd.f32 %v1979, %v2166
        %v2168 = vpop.f32.mrf.mxu0
        %2169 = vmatprep.mubr.f32.mxu0 %v1955
        %2170 = vmatmul.mubr.f32.gmra.mxu0 %v1859
        %v2171 = vpop.f32.mrf.mxu0
        %v2172 = vadd.f32 %v1979, %v2171
        %v2173 = vpop.f32.mrf.mxu0
        %2174 = vmatprep.mubr.f32.mxu0 %v1956
        %2175 = vmatmul.mubr.f32.gmra.mxu0 %v1860
        %v2176 = vpop.f32.mrf.mxu0
        %v2177 = vadd.f32 %v1979, %v2176
        %v2178 = vpop.f32.mrf.mxu0
        %2179 = vmatprep.mubr.f32.mxu0 %v1957
        %2180 = vmatmul.mubr.f32.gmra.mxu0 %v1861
        %v2181 = vpop.f32.mrf.mxu0
        %v2182 = vadd.f32 %v1979, %v2181
        %v2183 = vpop.f32.mrf.mxu0
        %2184 = vmatprep.mubr.f32.mxu0 %v1958
        %2185 = vmatmul.mubr.f32.gmra.mxu0 %v1862
        %v2186 = vpop.f32.mrf.mxu0
        %v2187 = vadd.f32 %v1979, %v2186
        %v2188 = vpop.f32.mrf.mxu0
        %2189 = vmatprep.mubr.f32.mxu0 %v1959
        %2190 = vmatmul.mubr.f32.gmra.mxu0 %v1863
        %v2191 = vpop.f32.mrf.mxu0
        %v2192 = vadd.f32 %v1979, %v2191
        %v2193 = vpop.f32.mrf.mxu0
        %2194 = vmatprep.mubr.f32.mxu0 %v1960
        %2195 = vmatmul.mubr.f32.gmra.mxu0 %v1864
        %v2196 = vpop.f32.mrf.mxu0
        %v2197 = vadd.f32 %v1979, %v2196
        %v2198 = vpop.f32.mrf.mxu0
        %2199 = vmatprep.mubr.f32.mxu0 %v1961
        %2200 = vmatmul.mubr.f32.gmra.mxu0 %v1865
        %v2201 = vpop.f32.mrf.mxu0
        %v2202 = vadd.f32 %v1979, %v2201
        %v2203 = vpop.f32.mrf.mxu0
        %2204 = vmatprep.mubr.f32.mxu0 %v1962
        %2205 = vmatmul.mubr.f32.gmra.mxu0 %v1866
        %v2206 = vpop.f32.mrf.mxu0
        %v2207 = vadd.f32 %v1979, %v2206
        %v2208 = vpop.f32.mrf.mxu0
        %2209 = vmatprep.mubr.f32.mxu0 %v1963
        %2210 = vmatmul.mubr.f32.gmra.mxu0 %v1867
        %v2211 = vpop.f32.mrf.mxu0
        %v2212 = vadd.f32 %v1979, %v2211
        %v2213 = vpop.f32.mrf.mxu0
        %2214 = vmatprep.mubr.f32.mxu0 %v1964
        %2215 = vmatmul.mubr.f32.gmra.mxu0 %v1868
        %v2216 = vpop.f32.mrf.mxu0
        %v2217 = vadd.f32 %v1979, %v2216
        %v2218 = vpop.f32.mrf.mxu0
        %2219 = vmatprep.mubr.f32.mxu0 %v1965
        %2220 = vmatmul.mubr.f32.gmra.mxu0 %v1869
        %v2221 = vpop.f32.mrf.mxu0
        %v2222 = vadd.f32 %v1979, %v2221
        %v2223 = vpop.f32.mrf.mxu0
        %2224 = vmatprep.mubr.f32.mxu0 %v1966
        %2225 = vmatmul.mubr.f32.gmra.mxu0 %v1870
        %v2226 = vpop.f32.mrf.mxu0
        %v2227 = vadd.f32 %v1979, %v2226
        %v2228 = vpop.f32.mrf.mxu0
        %2229 = vmatprep.mubr.f32.mxu0 %v1967
        %2230 = vmatmul.mubr.f32.gmra.mxu0 %v1871
        %v2231 = vpop.f32.mrf.mxu0
        %v2232 = vadd.f32 %v1979, %v2231
        %v2233 = vpop.f32.mrf.mxu0
        %2234 = vmatprep.mubr.f32.mxu0 %v1968
        %2235 = vmatmul.mubr.f32.gmra.mxu0 %v1872
        %v2236 = vpop.f32.mrf.mxu0
        %v2237 = vadd.f32 %v1979, %v2236
        %v2238 = vpop.f32.mrf.mxu0
        %2239 = vmatprep.mubr.f32.mxu0 %v1969
        %2240 = vmatmul.mubr.f32.gmra.mxu0 %v1873
        %v2241 = vpop.f32.mrf.mxu0
        %v2242 = vadd.f32 %v1979, %v2241
        %v2243 = vpop.f32.mrf.mxu0
        %2244 = vmatprep.mubr.f32.mxu0 %v1970
        %2245 = vmatmul.mubr.f32.gmra.mxu0 %v1874
        %v2246 = vpop.f32.mrf.mxu0
        %v2247 = vadd.f32 %v1979, %v2246
        %v2248 = vpop.f32.mrf.mxu0
        %2249 = vmatprep.mubr.f32.mxu0 %v1971
        %2250 = vmatmul.mubr.f32.gmra.mxu0 %v1875
        %v2251 = vpop.f32.mrf.mxu0
        %v2252 = vadd.f32 %v1979, %v2251
        %v2253 = vpop.f32.mrf.mxu0
        %2254 = vmatprep.mubr.f32.mxu0 %v1972
        %2255 = vmatmul.mubr.f32.gmra.mxu0 %v1876
        %v2256 = vpop.f32.mrf.mxu0
        %v2257 = vadd.f32 %v1979, %v2256
        %v2258 = vpop.f32.mrf.mxu0
        %2259 = vmatprep.mubr.f32.mxu0 %v1973
        %2260 = vmatmul.mubr.f32.gmra.mxu0 %v1877
        %v2261 = vpop.f32.mrf.mxu0
        %v2262 = vadd.f32 %v1979, %v2261
        %v2263 = vpop.f32.mrf.mxu0
        %2264 = vmatprep.mubr.f32.mxu0 %v1974
        %2265 = vmatmul.mubr.f32.gmra.mxu0 %v1878
        %v2266 = vpop.f32.mrf.mxu0
        %v2267 = vadd.f32 %v1979, %v2266
        %v2268 = vpop.f32.mrf.mxu0
        %2269 = vdwg.mxu0
        %2270 = vmatprep.subr.mxu0 0.0
        %2271 = vmatpush1.msra.mxu0 0.0
        %2272 = vmatprep.subr.mxu0 0.0
        %2273 = vmatpush1.msra.mxu0 0.0
        %2274 = vmatprep.subr.mxu0 0.0
        %2275 = vmatpush1.msra.mxu0 0.0
        %2276 = vmatprep.subr.mxu0 0.0
        %2277 = vmatpush1.msra.mxu0 0.0
        %2278 = vmatprep.subr.mxu0 0.0
        %2279 = vmatpush1.msra.mxu0 0.0
        %2280 = vmatprep.subr.mxu0 0.0
        %2281 = vmatpush1.msra.mxu0 0.0
        %2282 = vmatprep.subr.mxu0 0.0
        %2283 = vmatpush1.msra.mxu0 0.0
        %2284 = vmatprep.subr.mxu0 0.0
        %2285 = vmatpush1.msra.mxu0 0.0
        %2286 = vmatprep.subr.mxu0 0.0
        %2287 = vmatpush1.msra.mxu0 0.0
        %2288 = vmatprep.subr.mxu0 0.0
        %2289 = vmatpush1.msra.mxu0 0.0
        %2290 = vmatprep.subr.mxu0 0.0
        %2291 = vmatpush1.msra.mxu0 0.0
        %2292 = vmatprep.subr.mxu0 0.0
        %2293 = vmatpush1.msra.mxu0 0.0
        %2294 = vmatprep.subr.mxu0 0.0
        %2295 = vmatpush1.msra.mxu0 %v812
        %2296 = vmatprep.subr.mxu0 0.0
        %2297 = vmatpush1.msra.mxu0 %v811
        %2298 = vmatprep.subr.mxu0 0.0
        %2299 = vmatpush1.msra.mxu0 %v810
        %2300 = vmatprep.subr.mxu0 0.0
        %2301 = vmatpush1.msra.mxu0 %v809
        %2302 = vmatprep.subr.mxu0 0.0
        %2303 = vmatpush2.msra.mxu0 0.0
        %2304 = vmatprep.subr.mxu0 0.0
        %2305 = vmatpush2.msra.mxu0 0.0
        %2306 = vmatprep.subr.mxu0 0.0
        %2307 = vmatpush2.msra.mxu0 0.0
        %2308 = vmatprep.subr.mxu0 0.0
        %2309 = vmatpush2.msra.mxu0 0.0
        %2310 = vmatprep.subr.mxu0 0.0
        %2311 = vmatpush2.msra.mxu0 0.0
        %2312 = vmatprep.subr.mxu0 0.0
        %2313 = vmatpush2.msra.mxu0 0.0
        %2314 = vmatprep.subr.mxu0 0.0
        %2315 = vmatpush2.msra.mxu0 0.0
        %2316 = vmatprep.subr.mxu0 0.0
        %2317 = vmatpush2.msra.mxu0 0.0
        %2318 = vmatprep.subr.mxu0 0.0
        %2319 = vmatpush2.msra.mxu0 0.0
        %2320 = vmatprep.subr.mxu0 0.0
        %2321 = vmatpush2.msra.mxu0 0.0
        %2322 = vmatprep.subr.mxu0 0.0
        %2323 = vmatpush2.msra.mxu0 0.0
        %2324 = vmatprep.subr.mxu0 0.0
        %2325 = vmatpush2.msra.mxu0 0.0
        %2326 = vmatprep.subr.mxu0 0.0
        %2327 = vmatpush2.msra.mxu0 0.0
        %2328 = vmatprep.subr.mxu0 0.0
        %2329 = vmatpush2.msra.mxu0 0.0
        %2330 = vmatprep.subr.mxu0 0.0
        %2331 = vmatpush2.msra.mxu0 0.0
        %2332 = vmatprep.subr.mxu0 0.0
        %2333 = vmatpush2.msra.mxu0 0.0
        %2334 = vmatprep.mubr.f32.mxu0 0.0
        %2335 = vmatmul.mubr.f32.gmra.mxu0 %v1981
        %v2336 = vpop.f32.mrf.mxu0
        %v2337 = vadd.f32 %v2112, %v2336
        %v2338 = vpop.f32.mrf.mxu0
        %2339 = vmatprep.mubr.f32.mxu0 0.0
        %2340 = vmatmul.mubr.f32.gmra.mxu0 %v1983
        %v2341 = vpop.f32.mrf.mxu0
        %v2342 = vadd.f32 %v2117, %v2341
        %v2343 = vpop.f32.mrf.mxu0
        %2344 = vmatprep.mubr.f32.mxu0 0.0
        %2345 = vmatmul.mubr.f32.gmra.mxu0 %v1985
        %v2346 = vpop.f32.mrf.mxu0
        %v2347 = vadd.f32 %v2122, %v2346
        %v2348 = vpop.f32.mrf.mxu0
        %2349 = vmatprep.mubr.f32.mxu0 0.0
        %2350 = vmatmul.mubr.f32.gmra.mxu0 %v1987
        %v2351 = vpop.f32.mrf.mxu0
        %v2352 = vadd.f32 %v2127, %v2351
        %v2353 = vpop.f32.mrf.mxu0
        %2354 = vmatprep.mubr.f32.mxu0 0.0
        %2355 = vmatmul.mubr.f32.gmra.mxu0 %v1989
        %v2356 = vpop.f32.mrf.mxu0
        %v2357 = vadd.f32 %v2132, %v2356
        %v2358 = vpop.f32.mrf.mxu0
        %2359 = vmatprep.mubr.f32.mxu0 0.0
        %2360 = vmatmul.mubr.f32.gmra.mxu0 %v1991
        %v2361 = vpop.f32.mrf.mxu0
        %v2362 = vadd.f32 %v2137, %v2361
        %v2363 = vpop.f32.mrf.mxu0
        %2364 = vmatprep.mubr.f32.mxu0 0.0
        %2365 = vmatmul.mubr.f32.gmra.mxu0 %v1993
        %v2366 = vpop.f32.mrf.mxu0
        %v2367 = vadd.f32 %v2142, %v2366
        %v2368 = vpop.f32.mrf.mxu0
        %2369 = vmatprep.mubr.f32.mxu0 0.0
        %2370 = vmatmul.mubr.f32.gmra.mxu0 %v1995
        %v2371 = vpop.f32.mrf.mxu0
        %v2372 = vadd.f32 %v2147, %v2371
        %v2373 = vpop.f32.mrf.mxu0
        %2374 = vmatprep.mubr.f32.mxu0 0.0
        %2375 = vmatmul.mubr.f32.gmra.mxu0 %v1997
        %v2376 = vpop.f32.mrf.mxu0
        %v2377 = vadd.f32 %v2152, %v2376
        %v2378 = vpop.f32.mrf.mxu0
        %2379 = vmatprep.mubr.f32.mxu0 0.0
        %2380 = vmatmul.mubr.f32.gmra.mxu0 %v1999
        %v2381 = vpop.f32.mrf.mxu0
        %v2382 = vadd.f32 %v2157, %v2381
        %v2383 = vpop.f32.mrf.mxu0
        %2384 = vmatprep.mubr.f32.mxu0 0.0
        %2385 = vmatmul.mubr.f32.gmra.mxu0 %v2001
        %v2386 = vpop.f32.mrf.mxu0
        %v2387 = vadd.f32 %v2162, %v2386
        %v2388 = vpop.f32.mrf.mxu0
        %2389 = vmatprep.mubr.f32.mxu0 0.0
        %2390 = vmatmul.mubr.f32.gmra.mxu0 %v2003
        %v2391 = vpop.f32.mrf.mxu0
        %v2392 = vadd.f32 %v2167, %v2391
        %v2393 = vpop.f32.mrf.mxu0
        %2394 = vmatprep.mubr.f32.mxu0 0.0
        %2395 = vmatmul.mubr.f32.gmra.mxu0 %v2005
        %v2396 = vpop.f32.mrf.mxu0
        %v2397 = vadd.f32 %v2172, %v2396
        %v2398 = vpop.f32.mrf.mxu0
        %2399 = vmatprep.mubr.f32.mxu0 0.0
        %2400 = vmatmul.mubr.f32.gmra.mxu0 %v2007
        %v2401 = vpop.f32.mrf.mxu0
        %v2402 = vadd.f32 %v2177, %v2401
        %v2403 = vpop.f32.mrf.mxu0
        %2404 = vmatprep.mubr.f32.mxu0 0.0
        %2405 = vmatmul.mubr.f32.gmra.mxu0 %v2009
        %v2406 = vpop.f32.mrf.mxu0
        %v2407 = vadd.f32 %v2182, %v2406
        %v2408 = vpop.f32.mrf.mxu0
        %2409 = vmatprep.mubr.f32.mxu0 0.0
        %2410 = vmatmul.mubr.f32.gmra.mxu0 %v2011
        %v2411 = vpop.f32.mrf.mxu0
        %v2412 = vadd.f32 %v2187, %v2411
        %v2413 = vpop.f32.mrf.mxu0
        %2414 = vmatprep.mubr.f32.mxu0 0.0
        %2415 = vmatmul.mubr.f32.gmra.mxu0 %v2013
        %v2416 = vpop.f32.mrf.mxu0
        %v2417 = vadd.f32 %v2192, %v2416
        %v2418 = vpop.f32.mrf.mxu0
        %2419 = vmatprep.mubr.f32.mxu0 0.0
        %2420 = vmatmul.mubr.f32.gmra.mxu0 %v2015
        %v2421 = vpop.f32.mrf.mxu0
        %v2422 = vadd.f32 %v2197, %v2421
        %v2423 = vpop.f32.mrf.mxu0
        %2424 = vmatprep.mubr.f32.mxu0 0.0
        %2425 = vmatmul.mubr.f32.gmra.mxu0 %v2017
        %v2426 = vpop.f32.mrf.mxu0
        %v2427 = vadd.f32 %v2202, %v2426
        %v2428 = vpop.f32.mrf.mxu0
        %2429 = vmatprep.mubr.f32.mxu0 0.0
        %2430 = vmatmul.mubr.f32.gmra.mxu0 %v2019
        %v2431 = vpop.f32.mrf.mxu0
        %v2432 = vadd.f32 %v2207, %v2431
        %v2433 = vpop.f32.mrf.mxu0
        %2434 = vmatprep.mubr.f32.mxu0 0.0
        %2435 = vmatmul.mubr.f32.gmra.mxu0 %v2021
        %v2436 = vpop.f32.mrf.mxu0
        %v2437 = vadd.f32 %v2212, %v2436
        %v2438 = vpop.f32.mrf.mxu0
        %2439 = vmatprep.mubr.f32.mxu0 0.0
        %2440 = vmatmul.mubr.f32.gmra.mxu0 %v2023
        %v2441 = vpop.f32.mrf.mxu0
        %v2442 = vadd.f32 %v2217, %v2441
        %v2443 = vpop.f32.mrf.mxu0
        %2444 = vmatprep.mubr.f32.mxu0 0.0
        %2445 = vmatmul.mubr.f32.gmra.mxu0 %v2025
        %v2446 = vpop.f32.mrf.mxu0
        %v2447 = vadd.f32 %v2222, %v2446
        %v2448 = vpop.f32.mrf.mxu0
        %2449 = vmatprep.mubr.f32.mxu0 0.0
        %2450 = vmatmul.mubr.f32.gmra.mxu0 %v2027
        %v2451 = vpop.f32.mrf.mxu0
        %v2452 = vadd.f32 %v2227, %v2451
        %v2453 = vpop.f32.mrf.mxu0
        %2454 = vmatprep.mubr.f32.mxu0 0.0
        %2455 = vmatmul.mubr.f32.gmra.mxu0 %v2029
        %v2456 = vpop.f32.mrf.mxu0
        %v2457 = vadd.f32 %v2232, %v2456
        %v2458 = vpop.f32.mrf.mxu0
        %2459 = vmatprep.mubr.f32.mxu0 0.0
        %2460 = vmatmul.mubr.f32.gmra.mxu0 %v2031
        %v2461 = vpop.f32.mrf.mxu0
        %v2462 = vadd.f32 %v2237, %v2461
        %v2463 = vpop.f32.mrf.mxu0
        %2464 = vmatprep.mubr.f32.mxu0 0.0
        %2465 = vmatmul.mubr.f32.gmra.mxu0 %v2033
        %v2466 = vpop.f32.mrf.mxu0
        %v2467 = vadd.f32 %v2242, %v2466
        %v2468 = vpop.f32.mrf.mxu0
        %2469 = vmatprep.mubr.f32.mxu0 0.0
        %2470 = vmatmul.mubr.f32.gmra.mxu0 %v2035
        %v2471 = vpop.f32.mrf.mxu0
        %v2472 = vadd.f32 %v2247, %v2471
        %v2473 = vpop.f32.mrf.mxu0
        %2474 = vmatprep.mubr.f32.mxu0 0.0
        %2475 = vmatmul.mubr.f32.gmra.mxu0 %v2037
        %v2476 = vpop.f32.mrf.mxu0
        %v2477 = vadd.f32 %v2252, %v2476
        %v2478 = vpop.f32.mrf.mxu0
        %2479 = vmatprep.mubr.f32.mxu0 0.0
        %2480 = vmatmul.mubr.f32.gmra.mxu0 %v2039
        %v2481 = vpop.f32.mrf.mxu0
        %v2482 = vadd.f32 %v2257, %v2481
        %v2483 = vpop.f32.mrf.mxu0
        %2484 = vmatprep.mubr.f32.mxu0 0.0
        %2485 = vmatmul.mubr.f32.gmra.mxu0 %v2041
        %v2486 = vpop.f32.mrf.mxu0
        %v2487 = vadd.f32 %v2262, %v2486
        %v2488 = vpop.f32.mrf.mxu0
        %2489 = vmatprep.mubr.f32.mxu0 0.0
        %2490 = vmatmul.mubr.f32.gmra.mxu0 %v2043
        %v2491 = vpop.f32.mrf.mxu0
        %v2492 = vadd.f32 %v2267, %v2491
        %v2493 = vpop.f32.mrf.mxu0
        %2494 = vdwg.mxu0
        %vm2495 = vcmp.gt.f32.partialorder %v2337, 0.0
        %vm2496 = vcmp.gt.f32.partialorder %v2342, 0.0
        %vm2497 = vcmp.gt.f32.partialorder %v2347, 0.0
        %vm2498 = vcmp.gt.f32.partialorder %v2352, 0.0
        %vm2499 = vcmp.gt.f32.partialorder %v2357, 0.0
        %vm2500 = vcmp.gt.f32.partialorder %v2362, 0.0
        %vm2501 = vcmp.gt.f32.partialorder %v2367, 0.0
        %vm2502 = vcmp.gt.f32.partialorder %v2372, 0.0
        %vm2503 = vcmp.gt.f32.partialorder %v2377, 0.0
        %vm2504 = vcmp.gt.f32.partialorder %v2382, 0.0
        %vm2505 = vcmp.gt.f32.partialorder %v2387, 0.0
        %vm2506 = vcmp.gt.f32.partialorder %v2392, 0.0
        %vm2507 = vcmp.gt.f32.partialorder %v2397, 0.0
        %vm2508 = vcmp.gt.f32.partialorder %v2402, 0.0
        %vm2509 = vcmp.gt.f32.partialorder %v2407, 0.0
        %vm2510 = vcmp.gt.f32.partialorder %v2412, 0.0
        %vm2511 = vcmp.gt.f32.partialorder %v2417, 0.0
        %vm2512 = vcmp.gt.f32.partialorder %v2422, 0.0
        %vm2513 = vcmp.gt.f32.partialorder %v2427, 0.0
        %vm2514 = vcmp.gt.f32.partialorder %v2432, 0.0
        %vm2515 = vcmp.gt.f32.partialorder %v2437, 0.0
        %vm2516 = vcmp.gt.f32.partialorder %v2442, 0.0
        %vm2517 = vcmp.gt.f32.partialorder %v2447, 0.0
        %vm2518 = vcmp.gt.f32.partialorder %v2452, 0.0
        %vm2519 = vcmp.gt.f32.partialorder %v2457, 0.0
        %vm2520 = vcmp.gt.f32.partialorder %v2462, 0.0
        %vm2521 = vcmp.gt.f32.partialorder %v2467, 0.0
        %vm2522 = vcmp.gt.f32.partialorder %v2472, 0.0
        %vm2523 = vcmp.gt.f32.partialorder %v2477, 0.0
        %vm2524 = vcmp.gt.f32.partialorder %v2482, 0.0
        %vm2525 = vcmp.gt.f32.partialorder %v2487, 0.0
        %vm2526 = vcmp.gt.f32.partialorder %v2492, 0.0
        %v2527 = vmul.f32 %v2337, 0.2
        %v2528 = vmul.f32 %v2342, 0.2
        %v2529 = vmul.f32 %v2347, 0.2
        %v2530 = vmul.f32 %v2352, 0.2
        %v2531 = vmul.f32 %v2357, 0.2
        %v2532 = vmul.f32 %v2362, 0.2
        %v2533 = vmul.f32 %v2367, 0.2
        %v2534 = vmul.f32 %v2372, 0.2
        %v2535 = vmul.f32 %v2377, 0.2
        %v2536 = vmul.f32 %v2382, 0.2
        %v2537 = vmul.f32 %v2387, 0.2
        %v2538 = vmul.f32 %v2392, 0.2
        %v2539 = vmul.f32 %v2397, 0.2
        %v2540 = vmul.f32 %v2402, 0.2
        %v2541 = vmul.f32 %v2407, 0.2
        %v2542 = vmul.f32 %v2412, 0.2
        %v2543 = vmul.f32 %v2417, 0.2
        %v2544 = vmul.f32 %v2422, 0.2
        %v2545 = vmul.f32 %v2427, 0.2
        %v2546 = vmul.f32 %v2432, 0.2
        %v2547 = vmul.f32 %v2437, 0.2
        %v2548 = vmul.f32 %v2442, 0.2
        %v2549 = vmul.f32 %v2447, 0.2
        %v2550 = vmul.f32 %v2452, 0.2
        %v2551 = vmul.f32 %v2457, 0.2
        %v2552 = vmul.f32 %v2462, 0.2
        %v2553 = vmul.f32 %v2467, 0.2
        %v2554 = vmul.f32 %v2472, 0.2
        %v2555 = vmul.f32 %v2477, 0.2
        %v2556 = vmul.f32 %v2482, 0.2
        %v2557 = vmul.f32 %v2487, 0.2
        %v2558 = vmul.f32 %v2492, 0.2
        %v2559 = vsel %vm2495, %v2337, %v2527
        %v2560 = vsel %vm2496, %v2342, %v2528
        %v2561 = vsel %vm2497, %v2347, %v2529
        %v2562 = vsel %vm2498, %v2352, %v2530
        %v2563 = vsel %vm2499, %v2357, %v2531
        %v2564 = vsel %vm2500, %v2362, %v2532
        %v2565 = vsel %vm2501, %v2367, %v2533
        %v2566 = vsel %vm2502, %v2372, %v2534
        %v2567 = vsel %vm2503, %v2377, %v2535
        %v2568 = vsel %vm2504, %v2382, %v2536
        %v2569 = vsel %vm2505, %v2387, %v2537
        %v2570 = vsel %vm2506, %v2392, %v2538
        %v2571 = vsel %vm2507, %v2397, %v2539
        %v2572 = vsel %vm2508, %v2402, %v2540
        %v2573 = vsel %vm2509, %v2407, %v2541
        %v2574 = vsel %vm2510, %v2412, %v2542
        %v2575 = vsel %vm2511, %v2417, %v2543
        %v2576 = vsel %vm2512, %v2422, %v2544
        %v2577 = vsel %vm2513, %v2427, %v2545
        %v2578 = vsel %vm2514, %v2432, %v2546
        %v2579 = vsel %vm2515, %v2437, %v2547
        %v2580 = vsel %vm2516, %v2442, %v2548
        %v2581 = vsel %vm2517, %v2447, %v2549
        %v2582 = vsel %vm2518, %v2452, %v2550
        %v2583 = vsel %vm2519, %v2457, %v2551
        %v2584 = vsel %vm2520, %v2462, %v2552
        %v2585 = vsel %vm2521, %v2467, %v2553
        %v2586 = vsel %vm2522, %v2472, %v2554
        %v2587 = vsel %vm2523, %v2477, %v2555
        %v2588 = vsel %vm2524, %v2482, %v2556
        %v2589 = vsel %vm2525, %v2487, %v2557
        %v2590 = vsel %vm2526, %v2492, %v2558
        %s2591 = scalar_lea.vmem %s3, 288
        %v2592 = vld [vmem:[%s2591] sm:$0xff]
        %v2593 = vld [vmem:[%s2591 + $0x8] sm:$0xff]
        %v2594 = vld [vmem:[%s2591 + $0x10] sm:$0xff]
        %v2595 = vld [vmem:[%s2591 + $0x18] sm:$0xff]
        %v2596 = vld [vmem:[%s2591 + $0x20] sm:$0xff]
        %v2597 = vld [vmem:[%s2591 + $0x28] sm:$0xff]
        %v2598 = vld [vmem:[%s2591 + $0x30] sm:$0xff]
        %v2599 = vld [vmem:[%s2591 + $0x38] sm:$0xff]
        %v2600 = vld [vmem:[%s2591 + $0x40] sm:$0xff]
        %v2601 = vld [vmem:[%s2591 + $0x48] sm:$0xff]
        %v2602 = vld [vmem:[%s2591 + $0x50] sm:$0xff]
        %v2603 = vld [vmem:[%s2591 + $0x58] sm:$0xff]
        %v2604 = vld [vmem:[%s2591 + $0x60] sm:$0xff]
        %v2605 = vld [vmem:[%s2591 + $0x68] sm:$0xff]
        %v2606 = vld [vmem:[%s2591 + $0x70] sm:$0xff]
        %v2607 = vld [vmem:[%s2591 + $0x78] sm:$0xff]
        %v2608 = vld [vmem:[%s2591 + $0x80] sm:$0xff]
        %v2609 = vld [vmem:[%s2591 + $0x88] sm:$0xff]
        %v2610 = vld [vmem:[%s2591 + $0x90] sm:$0xff]
        %v2611 = vld [vmem:[%s2591 + $0x98] sm:$0xff]
        %v2612 = vld [vmem:[%s2591 + $0xa0] sm:$0xff]
        %v2613 = vld [vmem:[%s2591 + $0xa8] sm:$0xff]
        %v2614 = vld [vmem:[%s2591 + $0xb0] sm:$0xff]
        %v2615 = vld [vmem:[%s2591 + $0xb8] sm:$0xff]
        %v2616 = vld [vmem:[%s2591 + $0xc0] sm:$0xff]
        %v2617 = vld [vmem:[%s2591 + $0xc8] sm:$0xff]
        %v2618 = vld [vmem:[%s2591 + $0xd0] sm:$0xff]
        %v2619 = vld [vmem:[%s2591 + $0xd8] sm:$0xff]
        %v2620 = vld [vmem:[%s2591 + $0xe0] sm:$0xff]
        %v2621 = vld [vmem:[%s2591 + $0xe8] sm:$0xff]
        %v2622 = vld [vmem:[%s2591 + $0xf0] sm:$0xff]
        %v2623 = vld [vmem:[%s2591 + $0xf8] sm:$0xff]
        %v2624 = vld [vmem:[%s2591 + $0x100] sm:$0xff]
        %v2625 = vld [vmem:[%s2591 + $0x108] sm:$0xff]
        %v2626 = vld [vmem:[%s2591 + $0x110] sm:$0xff]
        %v2627 = vld [vmem:[%s2591 + $0x118] sm:$0xff]
        %s2628 = scalar_lea.vmem %s4, 1
        %v2629 = vld [vmem:[%s2628] sm:$0x1]
        %2630 = vst.msk [vmem:[%s814 + $0x8] sm:$0xff] %vm704, %v2559
        %2631 = vst.msk [vmem:[%s814 + $0x10] sm:$0xff] %vm704, %v2560
        %2632 = vst.msk [vmem:[%s814 + $0x28] sm:$0xff] %vm704, %v2561
        %2633 = vst.msk [vmem:[%s814 + $0x30] sm:$0xff] %vm704, %v2562
        %2634 = vst.msk [vmem:[%s814 + $0x48] sm:$0xff] %vm704, %v2563
        %2635 = vst.msk [vmem:[%s814 + $0x50] sm:$0xff] %vm704, %v2564
        %2636 = vst.msk [vmem:[%s814 + $0x68] sm:$0xff] %vm704, %v2565
        %2637 = vst.msk [vmem:[%s814 + $0x70] sm:$0xff] %vm704, %v2566
        %2638 = vst.msk [vmem:[%s814 + $0x88] sm:$0xff] %vm704, %v2567
        %2639 = vst.msk [vmem:[%s814 + $0x90] sm:$0xff] %vm704, %v2568
        %2640 = vst.msk [vmem:[%s814 + $0xa8] sm:$0xff] %vm704, %v2569
        %2641 = vst.msk [vmem:[%s814 + $0xb0] sm:$0xff] %vm704, %v2570
        %2642 = vst.msk [vmem:[%s814 + $0xc8] sm:$0xff] %vm704, %v2571
        %2643 = vst.msk [vmem:[%s814 + $0xd0] sm:$0xff] %vm704, %v2572
        %2644 = vst.msk [vmem:[%s814 + $0xe8] sm:$0xff] %vm704, %v2573
        %2645 = vst.msk [vmem:[%s814 + $0xf0] sm:$0xff] %vm704, %v2574
        %2646 = vst.msk [vmem:[%s814 + $0x108] sm:$0xff] %vm704, %v2575
        %2647 = vst.msk [vmem:[%s814 + $0x110] sm:$0xff] %vm704, %v2576
        %2648 = vst.msk [vmem:[%s814 + $0x128] sm:$0xff] %vm704, %v2577
        %2649 = vst.msk [vmem:[%s814 + $0x130] sm:$0xff] %vm704, %v2578
        %2650 = vst.msk [vmem:[%s814 + $0x148] sm:$0xff] %vm704, %v2579
        %2651 = vst.msk [vmem:[%s814 + $0x150] sm:$0xff] %vm704, %v2580
        %2652 = vst.msk [vmem:[%s814 + $0x168] sm:$0xff] %vm704, %v2581
        %2653 = vst.msk [vmem:[%s814 + $0x170] sm:$0xff] %vm704, %v2582
        %2654 = vst.msk [vmem:[%s814 + $0x188] sm:$0xff] %vm704, %v2583
        %2655 = vst.msk [vmem:[%s814 + $0x190] sm:$0xff] %vm704, %v2584
        %2656 = vst.msk [vmem:[%s814 + $0x1a8] sm:$0xff] %vm704, %v2585
        %2657 = vst.msk [vmem:[%s814 + $0x1b0] sm:$0xff] %vm704, %v2586
        %2658 = vst.msk [vmem:[%s814 + $0x1c8] sm:$0xff] %vm704, %v2587
        %2659 = vst.msk [vmem:[%s814 + $0x1d0] sm:$0xff] %vm704, %v2588
        %2660 = vst.msk [vmem:[%s814 + $0x1e8] sm:$0xff] %vm704, %v2589
        %2661 = vst.msk [vmem:[%s814 + $0x1f0] sm:$0xff] %vm704, %v2590
        %v2662 = vld [vmem:[#allocation2] sm:$0xff]
        %v2663 = vld [vmem:[#allocation2 + $0x8] sm:$0xff]
        %v2664 = vld [vmem:[#allocation2 + $0x10] sm:$0xff]
        %v2665 = vld [vmem:[#allocation2 + $0x18] sm:$0xff]
        %v2666 = vld [vmem:[#allocation2 + $0x20] sm:$0xff]
        %v2667 = vld [vmem:[#allocation2 + $0x28] sm:$0xff]
        %v2668 = vld [vmem:[#allocation2 + $0x30] sm:$0xff]
        %v2669 = vld [vmem:[#allocation2 + $0x38] sm:$0xff]
        %v2670 = vld [vmem:[#allocation2 + $0x40] sm:$0xff]
        %v2671 = vld [vmem:[#allocation2 + $0x48] sm:$0xff]
        %v2672 = vld [vmem:[#allocation2 + $0x50] sm:$0xff]
        %v2673 = vld [vmem:[#allocation2 + $0x58] sm:$0xff]
        %v2674 = vld [vmem:[#allocation2 + $0x60] sm:$0xff]
        %v2675 = vld [vmem:[#allocation2 + $0x68] sm:$0xff]
        %v2676 = vld [vmem:[#allocation2 + $0x70] sm:$0xff]
        %v2677 = vld [vmem:[#allocation2 + $0x78] sm:$0xff]
        %v2678 = vld [vmem:[#allocation2 + $0x80] sm:$0xff]
        %v2679 = vld [vmem:[#allocation2 + $0x88] sm:$0xff]
        %v2680 = vld [vmem:[#allocation2 + $0x90] sm:$0xff]
        %v2681 = vld [vmem:[#allocation2 + $0x98] sm:$0xff]
        %v2682 = vld [vmem:[#allocation2 + $0xa0] sm:$0xff]
        %v2683 = vld [vmem:[#allocation2 + $0xa8] sm:$0xff]
        %v2684 = vld [vmem:[#allocation2 + $0xb0] sm:$0xff]
        %v2685 = vld [vmem:[#allocation2 + $0xb8] sm:$0xff]
        %v2686 = vld [vmem:[#allocation2 + $0xc0] sm:$0xff]
        %v2687 = vld [vmem:[#allocation2 + $0xc8] sm:$0xff]
        %v2688 = vld [vmem:[#allocation2 + $0xd0] sm:$0xff]
        %v2689 = vld [vmem:[#allocation2 + $0xd8] sm:$0xff]
        %v2690 = vld [vmem:[#allocation2 + $0xe0] sm:$0xff]
        %v2691 = vld [vmem:[#allocation2 + $0xe8] sm:$0xff]
        %v2692 = vld [vmem:[#allocation2 + $0xf0] sm:$0xff]
        %v2693 = vld [vmem:[#allocation2 + $0xf8] sm:$0xff]
        %v2694 = vld [vmem:[#allocation2 + $0x100] sm:$0xff]
        %v2695 = vld [vmem:[#allocation2 + $0x108] sm:$0xff]
        %v2696 = vld [vmem:[#allocation2 + $0x110] sm:$0xff]
        %v2697 = vld [vmem:[#allocation2 + $0x118] sm:$0xff]
        %v2698 = vld [vmem:[#allocation2 + $0x120] sm:$0xff]
        %v2699 = vld [vmem:[#allocation2 + $0x128] sm:$0xff]
        %v2700 = vld [vmem:[#allocation2 + $0x130] sm:$0xff]
        %v2701 = vld [vmem:[#allocation2 + $0x138] sm:$0xff]
        %v2702 = vld [vmem:[#allocation2 + $0x140] sm:$0xff]
        %v2703 = vld [vmem:[#allocation2 + $0x148] sm:$0xff]
        %v2704 = vld [vmem:[#allocation2 + $0x150] sm:$0xff]
        %v2705 = vld [vmem:[#allocation2 + $0x158] sm:$0xff]
        %v2706 = vld [vmem:[#allocation2 + $0x160] sm:$0xff]
        %v2707 = vld [vmem:[#allocation2 + $0x168] sm:$0xff]
        %v2708 = vld [vmem:[#allocation2 + $0x170] sm:$0xff]
        %v2709 = vld [vmem:[#allocation2 + $0x178] sm:$0xff]
        %v2710 = vld [vmem:[#allocation2 + $0x180] sm:$0xff]
        %v2711 = vld [vmem:[#allocation2 + $0x188] sm:$0xff]
        %v2712 = vld [vmem:[#allocation2 + $0x190] sm:$0xff]
        %v2713 = vld [vmem:[#allocation2 + $0x198] sm:$0xff]
        %v2714 = vld [vmem:[#allocation2 + $0x1a0] sm:$0xff]
        %v2715 = vld [vmem:[#allocation2 + $0x1a8] sm:$0xff]
        %v2716 = vld [vmem:[#allocation2 + $0x1b0] sm:$0xff]
        %v2717 = vld [vmem:[#allocation2 + $0x1b8] sm:$0xff]
        %v2718 = vld [vmem:[#allocation2 + $0x1c0] sm:$0xff]
        %v2719 = vld [vmem:[#allocation2 + $0x1c8] sm:$0xff]
        %v2720 = vld [vmem:[#allocation2 + $0x1d0] sm:$0xff]
        %v2721 = vld [vmem:[#allocation2 + $0x1d8] sm:$0xff]
        %v2722 = vld [vmem:[#allocation2 + $0x1e0] sm:$0xff]
        %v2723 = vld [vmem:[#allocation2 + $0x1e8] sm:$0xff]
        %v2724 = vld [vmem:[#allocation2 + $0x1f0] sm:$0xff]
        %v2725 = vld [vmem:[#allocation2 + $0x1f8] sm:$0xff]
        %v2726 = vld [vmem:[#allocation2 + $0x200] sm:$0xff]
        %v2727 = vld [vmem:[#allocation2 + $0x208] sm:$0xff]
        %v2728 = vld [vmem:[#allocation2 + $0x210] sm:$0xff]
        %v2729 = vld [vmem:[#allocation2 + $0x218] sm:$0xff]
        %v2730 = vld [vmem:[#allocation2 + $0x220] sm:$0xff]
        %v2731 = vld [vmem:[#allocation2 + $0x228] sm:$0xff]
        %v2732 = vld [vmem:[#allocation2 + $0x230] sm:$0xff]
        %v2733 = vld [vmem:[#allocation2 + $0x238] sm:$0xff]
        %v2782 = vrot.slane %v2662, 7
        %v2783 = vrot.slane %v2663, 7
        %v2784 = vsel %vm967, %v2782, %v2783
        %v2785 = vrot.slane %v2664, 7
        %v2786 = vsel %vm967, %v2783, %v2785
        %v2787 = vrot.slane %v2666, 7
        %v2788 = vrot.slane %v2667, 7
        %v2789 = vsel %vm967, %v2787, %v2788
        %v2790 = vrot.slane %v2668, 7
        %v2791 = vsel %vm967, %v2788, %v2790
        %v2792 = vrot.slane %v2670, 7
        %v2793 = vrot.slane %v2671, 7
        %v2794 = vsel %vm967, %v2792, %v2793
        %v2795 = vrot.slane %v2672, 7
        %v2796 = vsel %vm967, %v2793, %v2795
        %v2797 = vrot.slane %v2674, 7
        %v2798 = vrot.slane %v2675, 7
        %v2799 = vsel %vm967, %v2797, %v2798
        %v2800 = vrot.slane %v2676, 7
        %v2801 = vsel %vm967, %v2798, %v2800
        %v2802 = vrot.slane %v2678, 7
        %v2803 = vrot.slane %v2679, 7
        %v2804 = vsel %vm967, %v2802, %v2803
        %v2805 = vrot.slane %v2680, 7
        %v2806 = vsel %vm967, %v2803, %v2805
        %v2807 = vrot.slane %v2682, 7
        %v2808 = vrot.slane %v2683, 7
        %v2809 = vsel %vm967, %v2807, %v2808
        %v2810 = vrot.slane %v2684, 7
        %v2811 = vsel %vm967, %v2808, %v2810
        %v2812 = vrot.slane %v2686, 7
        %v2813 = vrot.slane %v2687, 7
        %v2814 = vsel %vm967, %v2812, %v2813
        %v2815 = vrot.slane %v2688, 7
        %v2816 = vsel %vm967, %v2813, %v2815
        %v2817 = vrot.slane %v2690, 7
        %v2818 = vrot.slane %v2691, 7
        %v2819 = vsel %vm967, %v2817, %v2818
        %v2820 = vrot.slane %v2692, 7
        %v2821 = vsel %vm967, %v2818, %v2820
        %v2822 = vrot.slane %v2694, 7
        %v2823 = vrot.slane %v2695, 7
        %v2824 = vsel %vm967, %v2822, %v2823
        %v2825 = vrot.slane %v2696, 7
        %v2826 = vsel %vm967, %v2823, %v2825
        %v2827 = vrot.slane %v2698, 7
        %v2828 = vrot.slane %v2699, 7
        %v2829 = vsel %vm967, %v2827, %v2828
        %v2830 = vrot.slane %v2700, 7
        %v2831 = vsel %vm967, %v2828, %v2830
        %v2832 = vrot.slane %v2702, 7
        %v2833 = vrot.slane %v2703, 7
        %v2834 = vsel %vm967, %v2832, %v2833
        %v2835 = vrot.slane %v2704, 7
        %v2836 = vsel %vm967, %v2833, %v2835
        %v2837 = vrot.slane %v2706, 7
        %v2838 = vrot.slane %v2707, 7
        %v2839 = vsel %vm967, %v2837, %v2838
        %v2840 = vrot.slane %v2708, 7
        %v2841 = vsel %vm967, %v2838, %v2840
        %v2842 = vrot.slane %v2710, 7
        %v2843 = vrot.slane %v2711, 7
        %v2844 = vsel %vm967, %v2842, %v2843
        %v2845 = vrot.slane %v2712, 7
        %v2846 = vsel %vm967, %v2843, %v2845
        %v2847 = vrot.slane %v2714, 7
        %v2848 = vrot.slane %v2715, 7
        %v2849 = vsel %vm967, %v2847, %v2848
        %v2850 = vrot.slane %v2716, 7
        %v2851 = vsel %vm967, %v2848, %v2850
        %v2852 = vrot.slane %v2718, 7
        %v2853 = vrot.slane %v2719, 7
        %v2854 = vsel %vm967, %v2852, %v2853
        %v2855 = vrot.slane %v2720, 7
        %v2856 = vsel %vm967, %v2853, %v2855
        %v2857 = vrot.slane %v2722, 7
        %v2858 = vrot.slane %v2723, 7
        %v2859 = vsel %vm967, %v2857, %v2858
        %v2860 = vrot.slane %v2724, 7
        %v2861 = vsel %vm967, %v2858, %v2860
        %v2910 = vrot.slane %v2663, 1
        %v2911 = vrot.slane %v2664, 1
        %v2912 = vsel %vm1096, %v2910, %v2911
        %v2913 = vrot.slane %v2665, 1
        %v2914 = vsel %vm1096, %v2911, %v2913
        %v2915 = vrot.slane %v2667, 1
        %v2916 = vrot.slane %v2668, 1
        %v2917 = vsel %vm1096, %v2915, %v2916
        %v2918 = vrot.slane %v2669, 1
        %v2919 = vsel %vm1096, %v2916, %v2918
        %v2920 = vrot.slane %v2671, 1
        %v2921 = vrot.slane %v2672, 1
        %v2922 = vsel %vm1096, %v2920, %v2921
        %v2923 = vrot.slane %v2673, 1
        %v2924 = vsel %vm1096, %v2921, %v2923
        %v2925 = vrot.slane %v2675, 1
        %v2926 = vrot.slane %v2676, 1
        %v2927 = vsel %vm1096, %v2925, %v2926
        %v2928 = vrot.slane %v2677, 1
        %v2929 = vsel %vm1096, %v2926, %v2928
        %v2930 = vrot.slane %v2679, 1
        %v2931 = vrot.slane %v2680, 1
        %v2932 = vsel %vm1096, %v2930, %v2931
        %v2933 = vrot.slane %v2681, 1
        %v2934 = vsel %vm1096, %v2931, %v2933
        %v2935 = vrot.slane %v2683, 1
        %v2936 = vrot.slane %v2684, 1
        %v2937 = vsel %vm1096, %v2935, %v2936
        %v2938 = vrot.slane %v2685, 1
        %v2939 = vsel %vm1096, %v2936, %v2938
        %v2940 = vrot.slane %v2687, 1
        %v2941 = vrot.slane %v2688, 1
        %v2942 = vsel %vm1096, %v2940, %v2941
        %v2943 = vrot.slane %v2689, 1
        %v2944 = vsel %vm1096, %v2941, %v2943
        %v2945 = vrot.slane %v2691, 1
        %v2946 = vrot.slane %v2692, 1
        %v2947 = vsel %vm1096, %v2945, %v2946
        %v2948 = vrot.slane %v2693, 1
        %v2949 = vsel %vm1096, %v2946, %v2948
        %v2950 = vrot.slane %v2695, 1
        %v2951 = vrot.slane %v2696, 1
        %v2952 = vsel %vm1096, %v2950, %v2951
        %v2953 = vrot.slane %v2697, 1
        %v2954 = vsel %vm1096, %v2951, %v2953
        %v2955 = vrot.slane %v2699, 1
        %v2956 = vrot.slane %v2700, 1
        %v2957 = vsel %vm1096, %v2955, %v2956
        %v2958 = vrot.slane %v2701, 1
        %v2959 = vsel %vm1096, %v2956, %v2958
        %v2960 = vrot.slane %v2703, 1
        %v2961 = vrot.slane %v2704, 1
        %v2962 = vsel %vm1096, %v2960, %v2961
        %v2963 = vrot.slane %v2705, 1
        %v2964 = vsel %vm1096, %v2961, %v2963
        %v2965 = vrot.slane %v2707, 1
        %v2966 = vrot.slane %v2708, 1
        %v2967 = vsel %vm1096, %v2965, %v2966
        %v2968 = vrot.slane %v2709, 1
        %v2969 = vsel %vm1096, %v2966, %v2968
        %v2970 = vrot.slane %v2711, 1
        %v2971 = vrot.slane %v2712, 1
        %v2972 = vsel %vm1096, %v2970, %v2971
        %v2973 = vrot.slane %v2713, 1
        %v2974 = vsel %vm1096, %v2971, %v2973
        %v2975 = vrot.slane %v2715, 1
        %v2976 = vrot.slane %v2716, 1
        %v2977 = vsel %vm1096, %v2975, %v2976
        %v2978 = vrot.slane %v2717, 1
        %v2979 = vsel %vm1096, %v2976, %v2978
        %v2980 = vrot.slane %v2719, 1
        %v2981 = vrot.slane %v2720, 1
        %v2982 = vsel %vm1096, %v2980, %v2981
        %v2983 = vrot.slane %v2721, 1
        %v2984 = vsel %vm1096, %v2981, %v2983
        %v2985 = vrot.slane %v2723, 1
        %v2986 = vrot.slane %v2724, 1
        %v2987 = vsel %vm1096, %v2985, %v2986
        %v2988 = vrot.slane %v2725, 1
        %v2989 = vsel %vm1096, %v2986, %v2988
        %v2993 = vrot.slane %v2726, 7
        %v2994 = vrot.slane %v2727, 7
        %v2995 = vsel %vm967, %v2993, %v2994
        %v2996 = vrot.slane %v2728, 7
        %v2997 = vsel %vm967, %v2994, %v2996
        %v2999 = vrot.slane %v2727, 1
        %v3000 = vrot.slane %v2728, 1
        %v3001 = vsel %vm1096, %v2999, %v3000
        %v3002 = vrot.slane %v2729, 1
        %v3003 = vsel %vm1096, %v3000, %v3002
        %v3007 = vrot.slane %v2730, 7
        %v3008 = vrot.slane %v2731, 7
        %v3009 = vsel %vm967, %v3007, %v3008
        %v3010 = vrot.slane %v2732, 7
        %v3011 = vsel %vm967, %v3008, %v3010
        %v3013 = vrot.slane %v2731, 1
        %v3014 = vrot.slane %v2732, 1
        %v3015 = vsel %vm1096, %v3013, %v3014
        %v3016 = vrot.slane %v2733, 1
        %v3017 = vsel %vm1096, %v3014, %v3016
        %3018 = vrot.lane.b32.xlu0 %v2663, 32
        %v3019 = vpop.permute.xlu0 %3018
        %3020 = vrot.lane.b32.xlu0 %v2664, 32
        %v3021 = vpop.permute.xlu0 %3020
        %3022 = vrot.lane.b32.xlu0 %v2667, 32
        %v3023 = vpop.permute.xlu0 %3022
        %3024 = vrot.lane.b32.xlu0 %v2668, 32
        %v3025 = vpop.permute.xlu0 %3024
        %3026 = vrot.lane.b32.xlu0 %v2671, 32
        %v3027 = vpop.permute.xlu0 %3026
        %3028 = vrot.lane.b32.xlu0 %v2672, 32
        %v3029 = vpop.permute.xlu0 %3028
        %3030 = vrot.lane.b32.xlu0 %v2675, 32
        %v3031 = vpop.permute.xlu0 %3030
        %3032 = vrot.lane.b32.xlu0 %v2676, 32
        %v3033 = vpop.permute.xlu0 %3032
        %3034 = vrot.lane.b32.xlu0 %v2679, 32
        %v3035 = vpop.permute.xlu0 %3034
        %3036 = vrot.lane.b32.xlu0 %v2680, 32
        %v3037 = vpop.permute.xlu0 %3036
        %3038 = vrot.lane.b32.xlu0 %v2683, 32
        %v3039 = vpop.permute.xlu0 %3038
        %3040 = vrot.lane.b32.xlu0 %v2684, 32
        %v3041 = vpop.permute.xlu0 %3040
        %3042 = vrot.lane.b32.xlu0 %v2687, 32
        %v3043 = vpop.permute.xlu0 %3042
        %3044 = vrot.lane.b32.xlu0 %v2688, 32
        %v3045 = vpop.permute.xlu0 %3044
        %3046 = vrot.lane.b32.xlu0 %v2691, 32
        %v3047 = vpop.permute.xlu0 %3046
        %3048 = vrot.lane.b32.xlu0 %v2692, 32
        %v3049 = vpop.permute.xlu0 %3048
        %3050 = vrot.lane.b32.xlu0 %v2695, 32
        %v3051 = vpop.permute.xlu0 %3050
        %3052 = vrot.lane.b32.xlu0 %v2696, 32
        %v3053 = vpop.permute.xlu0 %3052
        %3054 = vrot.lane.b32.xlu0 %v2699, 32
        %v3055 = vpop.permute.xlu0 %3054
        %3056 = vrot.lane.b32.xlu0 %v2700, 32
        %v3057 = vpop.permute.xlu0 %3056
        %3058 = vrot.lane.b32.xlu0 %v2703, 32
        %v3059 = vpop.permute.xlu0 %3058
        %3060 = vrot.lane.b32.xlu0 %v2704, 32
        %v3061 = vpop.permute.xlu0 %3060
        %3062 = vrot.lane.b32.xlu0 %v2707, 32
        %v3063 = vpop.permute.xlu0 %3062
        %3064 = vrot.lane.b32.xlu0 %v2708, 32
        %v3065 = vpop.permute.xlu0 %3064
        %3066 = vrot.lane.b32.xlu0 %v2711, 32
        %v3067 = vpop.permute.xlu0 %3066
        %3068 = vrot.lane.b32.xlu0 %v2712, 32
        %v3069 = vpop.permute.xlu0 %3068
        %3070 = vrot.lane.b32.xlu0 %v2715, 32
        %v3071 = vpop.permute.xlu0 %3070
        %3072 = vrot.lane.b32.xlu0 %v2716, 32
        %v3073 = vpop.permute.xlu0 %3072
        %3074 = vrot.lane.b32.xlu0 %v2719, 32
        %v3075 = vpop.permute.xlu0 %3074
        %3076 = vrot.lane.b32.xlu0 %v2720, 32
        %v3077 = vpop.permute.xlu0 %3076
        %3078 = vrot.lane.b32.xlu0 %v2723, 32
        %v3079 = vpop.permute.xlu0 %3078
        %3080 = vrot.lane.b32.xlu0 %v2724, 32
        %v3081 = vpop.permute.xlu0 %3080
        %3114 = vrot.lane.b32.xlu0 %v2912, 64
        %v3115 = vpop.permute.xlu0 %3114
        %3116 = vrot.lane.b32.xlu0 %v2914, 64
        %v3117 = vpop.permute.xlu0 %3116
        %3118 = vrot.lane.b32.xlu0 %v2917, 64
        %v3119 = vpop.permute.xlu0 %3118
        %3120 = vrot.lane.b32.xlu0 %v2919, 64
        %v3121 = vpop.permute.xlu0 %3120
        %3122 = vrot.lane.b32.xlu0 %v2922, 64
        %v3123 = vpop.permute.xlu0 %3122
        %3124 = vrot.lane.b32.xlu0 %v2924, 64
        %v3125 = vpop.permute.xlu0 %3124
        %3126 = vrot.lane.b32.xlu0 %v2927, 64
        %v3127 = vpop.permute.xlu0 %3126
        %3128 = vrot.lane.b32.xlu0 %v2929, 64
        %v3129 = vpop.permute.xlu0 %3128
        %3130 = vrot.lane.b32.xlu0 %v2932, 64
        %v3131 = vpop.permute.xlu0 %3130
        %3132 = vrot.lane.b32.xlu0 %v2934, 64
        %v3133 = vpop.permute.xlu0 %3132
        %3134 = vrot.lane.b32.xlu0 %v2937, 64
        %v3135 = vpop.permute.xlu0 %3134
        %3136 = vrot.lane.b32.xlu0 %v2939, 64
        %v3137 = vpop.permute.xlu0 %3136
        %3138 = vrot.lane.b32.xlu0 %v2942, 64
        %v3139 = vpop.permute.xlu0 %3138
        %3140 = vrot.lane.b32.xlu0 %v2944, 64
        %v3141 = vpop.permute.xlu0 %3140
        %3142 = vrot.lane.b32.xlu0 %v2947, 64
        %v3143 = vpop.permute.xlu0 %3142
        %3144 = vrot.lane.b32.xlu0 %v2949, 64
        %v3145 = vpop.permute.xlu0 %3144
        %3146 = vrot.lane.b32.xlu0 %v2952, 64
        %v3147 = vpop.permute.xlu0 %3146
        %3148 = vrot.lane.b32.xlu0 %v2954, 64
        %v3149 = vpop.permute.xlu0 %3148
        %3150 = vrot.lane.b32.xlu0 %v2957, 64
        %v3151 = vpop.permute.xlu0 %3150
        %3152 = vrot.lane.b32.xlu0 %v2959, 64
        %v3153 = vpop.permute.xlu0 %3152
        %3154 = vrot.lane.b32.xlu0 %v2962, 64
        %v3155 = vpop.permute.xlu0 %3154
        %3156 = vrot.lane.b32.xlu0 %v2964, 64
        %v3157 = vpop.permute.xlu0 %3156
        %3158 = vrot.lane.b32.xlu0 %v2967, 64
        %v3159 = vpop.permute.xlu0 %3158
        %3160 = vrot.lane.b32.xlu0 %v2969, 64
        %v3161 = vpop.permute.xlu0 %3160
        %3162 = vrot.lane.b32.xlu0 %v2972, 64
        %v3163 = vpop.permute.xlu0 %3162
        %3164 = vrot.lane.b32.xlu0 %v2974, 64
        %v3165 = vpop.permute.xlu0 %3164
        %3166 = vrot.lane.b32.xlu0 %v2977, 64
        %v3167 = vpop.permute.xlu0 %3166
        %3168 = vrot.lane.b32.xlu0 %v2979, 64
        %v3169 = vpop.permute.xlu0 %3168
        %3170 = vrot.lane.b32.xlu0 %v2982, 64
        %v3171 = vpop.permute.xlu0 %3170
        %3172 = vrot.lane.b32.xlu0 %v2984, 64
        %v3173 = vpop.permute.xlu0 %3172
        %3174 = vrot.lane.b32.xlu0 %v2987, 64
        %v3175 = vpop.permute.xlu0 %3174
        %3176 = vrot.lane.b32.xlu0 %v2989, 64
        %v3177 = vpop.permute.xlu0 %3176
        %3210 = vrot.lane.b32.xlu0 %v2789, 96
        %v3211 = vpop.permute.xlu0 %3210
        %3212 = vrot.lane.b32.xlu0 %v2791, 96
        %v3213 = vpop.permute.xlu0 %3212
        %3214 = vrot.lane.b32.xlu0 %v2794, 96
        %v3215 = vpop.permute.xlu0 %3214
        %3216 = vrot.lane.b32.xlu0 %v2796, 96
        %v3217 = vpop.permute.xlu0 %3216
        %3218 = vrot.lane.b32.xlu0 %v2799, 96
        %v3219 = vpop.permute.xlu0 %3218
        %3220 = vrot.lane.b32.xlu0 %v2801, 96
        %v3221 = vpop.permute.xlu0 %3220
        %3222 = vrot.lane.b32.xlu0 %v2804, 96
        %v3223 = vpop.permute.xlu0 %3222
        %3224 = vrot.lane.b32.xlu0 %v2806, 96
        %v3225 = vpop.permute.xlu0 %3224
        %3226 = vrot.lane.b32.xlu0 %v2809, 96
        %v3227 = vpop.permute.xlu0 %3226
        %3228 = vrot.lane.b32.xlu0 %v2811, 96
        %v3229 = vpop.permute.xlu0 %3228
        %3230 = vrot.lane.b32.xlu0 %v2814, 96
        %v3231 = vpop.permute.xlu0 %3230
        %3232 = vrot.lane.b32.xlu0 %v2816, 96
        %v3233 = vpop.permute.xlu0 %3232
        %3234 = vrot.lane.b32.xlu0 %v2819, 96
        %v3235 = vpop.permute.xlu0 %3234
        %3236 = vrot.lane.b32.xlu0 %v2821, 96
        %v3237 = vpop.permute.xlu0 %3236
        %3238 = vrot.lane.b32.xlu0 %v2824, 96
        %v3239 = vpop.permute.xlu0 %3238
        %3240 = vrot.lane.b32.xlu0 %v2826, 96
        %v3241 = vpop.permute.xlu0 %3240
        %3242 = vrot.lane.b32.xlu0 %v2829, 96
        %v3243 = vpop.permute.xlu0 %3242
        %3244 = vrot.lane.b32.xlu0 %v2831, 96
        %v3245 = vpop.permute.xlu0 %3244
        %3246 = vrot.lane.b32.xlu0 %v2834, 96
        %v3247 = vpop.permute.xlu0 %3246
        %3248 = vrot.lane.b32.xlu0 %v2836, 96
        %v3249 = vpop.permute.xlu0 %3248
        %3250 = vrot.lane.b32.xlu0 %v2839, 96
        %v3251 = vpop.permute.xlu0 %3250
        %3252 = vrot.lane.b32.xlu0 %v2841, 96
        %v3253 = vpop.permute.xlu0 %3252
        %3254 = vrot.lane.b32.xlu0 %v2844, 96
        %v3255 = vpop.permute.xlu0 %3254
        %3256 = vrot.lane.b32.xlu0 %v2846, 96
        %v3257 = vpop.permute.xlu0 %3256
        %3258 = vrot.lane.b32.xlu0 %v2849, 96
        %v3259 = vpop.permute.xlu0 %3258
        %3260 = vrot.lane.b32.xlu0 %v2851, 96
        %v3261 = vpop.permute.xlu0 %3260
        %3262 = vrot.lane.b32.xlu0 %v2854, 96
        %v3263 = vpop.permute.xlu0 %3262
        %3264 = vrot.lane.b32.xlu0 %v2856, 96
        %v3265 = vpop.permute.xlu0 %3264
        %3266 = vrot.lane.b32.xlu0 %v2859, 96
        %v3267 = vpop.permute.xlu0 %3266
        %3268 = vrot.lane.b32.xlu0 %v2861, 96
        %v3269 = vpop.permute.xlu0 %3268
        %3270 = vrot.lane.b32.xlu0 %v2995, 96
        %v3271 = vpop.permute.xlu0 %3270
        %3272 = vrot.lane.b32.xlu0 %v2997, 96
        %v3273 = vpop.permute.xlu0 %3272
        %3306 = vrot.lane.b32.xlu0 %v2917, 32
        %v3307 = vpop.permute.xlu0 %3306
        %3308 = vrot.lane.b32.xlu0 %v2919, 32
        %v3309 = vpop.permute.xlu0 %3308
        %3310 = vrot.lane.b32.xlu0 %v2922, 32
        %v3311 = vpop.permute.xlu0 %3310
        %3312 = vrot.lane.b32.xlu0 %v2924, 32
        %v3313 = vpop.permute.xlu0 %3312
        %3314 = vrot.lane.b32.xlu0 %v2927, 32
        %v3315 = vpop.permute.xlu0 %3314
        %3316 = vrot.lane.b32.xlu0 %v2929, 32
        %v3317 = vpop.permute.xlu0 %3316
        %3318 = vrot.lane.b32.xlu0 %v2932, 32
        %v3319 = vpop.permute.xlu0 %3318
        %3320 = vrot.lane.b32.xlu0 %v2934, 32
        %v3321 = vpop.permute.xlu0 %3320
        %3322 = vrot.lane.b32.xlu0 %v2937, 32
        %v3323 = vpop.permute.xlu0 %3322
        %3324 = vrot.lane.b32.xlu0 %v2939, 32
        %v3325 = vpop.permute.xlu0 %3324
        %3326 = vrot.lane.b32.xlu0 %v2942, 32
        %v3327 = vpop.permute.xlu0 %3326
        %3328 = vrot.lane.b32.xlu0 %v2944, 32
        %v3329 = vpop.permute.xlu0 %3328
        %3330 = vrot.lane.b32.xlu0 %v2947, 32
        %v3331 = vpop.permute.xlu0 %3330
        %3332 = vrot.lane.b32.xlu0 %v2949, 32
        %v3333 = vpop.permute.xlu0 %3332
        %3334 = vrot.lane.b32.xlu0 %v2952, 32
        %v3335 = vpop.permute.xlu0 %3334
        %3336 = vrot.lane.b32.xlu0 %v2954, 32
        %v3337 = vpop.permute.xlu0 %3336
        %3338 = vrot.lane.b32.xlu0 %v2957, 32
        %v3339 = vpop.permute.xlu0 %3338
        %3340 = vrot.lane.b32.xlu0 %v2959, 32
        %v3341 = vpop.permute.xlu0 %3340
        %3342 = vrot.lane.b32.xlu0 %v2962, 32
        %v3343 = vpop.permute.xlu0 %3342
        %3344 = vrot.lane.b32.xlu0 %v2964, 32
        %v3345 = vpop.permute.xlu0 %3344
        %3346 = vrot.lane.b32.xlu0 %v2967, 32
        %v3347 = vpop.permute.xlu0 %3346
        %3348 = vrot.lane.b32.xlu0 %v2969, 32
        %v3349 = vpop.permute.xlu0 %3348
        %3350 = vrot.lane.b32.xlu0 %v2972, 32
        %v3351 = vpop.permute.xlu0 %3350
        %3352 = vrot.lane.b32.xlu0 %v2974, 32
        %v3353 = vpop.permute.xlu0 %3352
        %3354 = vrot.lane.b32.xlu0 %v2977, 32
        %v3355 = vpop.permute.xlu0 %3354
        %3356 = vrot.lane.b32.xlu0 %v2979, 32
        %v3357 = vpop.permute.xlu0 %3356
        %3358 = vrot.lane.b32.xlu0 %v2982, 32
        %v3359 = vpop.permute.xlu0 %3358
        %3360 = vrot.lane.b32.xlu0 %v2984, 32
        %v3361 = vpop.permute.xlu0 %3360
        %3362 = vrot.lane.b32.xlu0 %v2987, 32
        %v3363 = vpop.permute.xlu0 %3362
        %3364 = vrot.lane.b32.xlu0 %v2989, 32
        %v3365 = vpop.permute.xlu0 %3364
        %3366 = vrot.lane.b32.xlu0 %v3001, 32
        %v3367 = vpop.permute.xlu0 %3366
        %3368 = vrot.lane.b32.xlu0 %v3003, 32
        %v3369 = vpop.permute.xlu0 %3368
        %3402 = vrot.lane.b32.xlu0 %v2794, 64
        %v3403 = vpop.permute.xlu0 %3402
        %3404 = vrot.lane.b32.xlu0 %v2796, 64
        %v3405 = vpop.permute.xlu0 %3404
        %3406 = vrot.lane.b32.xlu0 %v2799, 64
        %v3407 = vpop.permute.xlu0 %3406
        %3408 = vrot.lane.b32.xlu0 %v2801, 64
        %v3409 = vpop.permute.xlu0 %3408
        %3410 = vrot.lane.b32.xlu0 %v2804, 64
        %v3411 = vpop.permute.xlu0 %3410
        %3412 = vrot.lane.b32.xlu0 %v2806, 64
        %v3413 = vpop.permute.xlu0 %3412
        %3414 = vrot.lane.b32.xlu0 %v2809, 64
        %v3415 = vpop.permute.xlu0 %3414
        %3416 = vrot.lane.b32.xlu0 %v2811, 64
        %v3417 = vpop.permute.xlu0 %3416
        %3418 = vrot.lane.b32.xlu0 %v2814, 64
        %v3419 = vpop.permute.xlu0 %3418
        %3420 = vrot.lane.b32.xlu0 %v2816, 64
        %v3421 = vpop.permute.xlu0 %3420
        %3422 = vrot.lane.b32.xlu0 %v2819, 64
        %v3423 = vpop.permute.xlu0 %3422
        %3424 = vrot.lane.b32.xlu0 %v2821, 64
        %v3425 = vpop.permute.xlu0 %3424
        %3426 = vrot.lane.b32.xlu0 %v2824, 64
        %v3427 = vpop.permute.xlu0 %3426
        %3428 = vrot.lane.b32.xlu0 %v2826, 64
        %v3429 = vpop.permute.xlu0 %3428
        %3430 = vrot.lane.b32.xlu0 %v2829, 64
        %v3431 = vpop.permute.xlu0 %3430
        %3432 = vrot.lane.b32.xlu0 %v2831, 64
        %v3433 = vpop.permute.xlu0 %3432
        %3434 = vrot.lane.b32.xlu0 %v2834, 64
        %v3435 = vpop.permute.xlu0 %3434
        %3436 = vrot.lane.b32.xlu0 %v2836, 64
        %v3437 = vpop.permute.xlu0 %3436
        %3438 = vrot.lane.b32.xlu0 %v2839, 64
        %v3439 = vpop.permute.xlu0 %3438
        %3440 = vrot.lane.b32.xlu0 %v2841, 64
        %v3441 = vpop.permute.xlu0 %3440
        %3442 = vrot.lane.b32.xlu0 %v2844, 64
        %v3443 = vpop.permute.xlu0 %3442
        %3444 = vrot.lane.b32.xlu0 %v2846, 64
        %v3445 = vpop.permute.xlu0 %3444
        %3446 = vrot.lane.b32.xlu0 %v2849, 64
        %v3447 = vpop.permute.xlu0 %3446
        %3448 = vrot.lane.b32.xlu0 %v2851, 64
        %v3449 = vpop.permute.xlu0 %3448
        %3450 = vrot.lane.b32.xlu0 %v2854, 64
        %v3451 = vpop.permute.xlu0 %3450
        %3452 = vrot.lane.b32.xlu0 %v2856, 64
        %v3453 = vpop.permute.xlu0 %3452
        %3454 = vrot.lane.b32.xlu0 %v2859, 64
        %v3455 = vpop.permute.xlu0 %3454
        %3456 = vrot.lane.b32.xlu0 %v2861, 64
        %v3457 = vpop.permute.xlu0 %3456
        %3458 = vrot.lane.b32.xlu0 %v2995, 64
        %v3459 = vpop.permute.xlu0 %3458
        %3460 = vrot.lane.b32.xlu0 %v2997, 64
        %v3461 = vpop.permute.xlu0 %3460
        %3462 = vrot.lane.b32.xlu0 %v3009, 64
        %v3463 = vpop.permute.xlu0 %3462
        %3464 = vrot.lane.b32.xlu0 %v3011, 64
        %v3465 = vpop.permute.xlu0 %3464
        %3498 = vrot.lane.b32.xlu0 %v2671, 96
        %v3499 = vpop.permute.xlu0 %3498
        %3500 = vrot.lane.b32.xlu0 %v2672, 96
        %v3501 = vpop.permute.xlu0 %3500
        %3502 = vrot.lane.b32.xlu0 %v2675, 96
        %v3503 = vpop.permute.xlu0 %3502
        %3504 = vrot.lane.b32.xlu0 %v2676, 96
        %v3505 = vpop.permute.xlu0 %3504
        %3506 = vrot.lane.b32.xlu0 %v2679, 96
        %v3507 = vpop.permute.xlu0 %3506
        %3508 = vrot.lane.b32.xlu0 %v2680, 96
        %v3509 = vpop.permute.xlu0 %3508
        %3510 = vrot.lane.b32.xlu0 %v2683, 96
        %v3511 = vpop.permute.xlu0 %3510
        %3512 = vrot.lane.b32.xlu0 %v2684, 96
        %v3513 = vpop.permute.xlu0 %3512
        %3514 = vrot.lane.b32.xlu0 %v2687, 96
        %v3515 = vpop.permute.xlu0 %3514
        %3516 = vrot.lane.b32.xlu0 %v2688, 96
        %v3517 = vpop.permute.xlu0 %3516
        %3518 = vrot.lane.b32.xlu0 %v2691, 96
        %v3519 = vpop.permute.xlu0 %3518
        %3520 = vrot.lane.b32.xlu0 %v2692, 96
        %v3521 = vpop.permute.xlu0 %3520
        %3522 = vrot.lane.b32.xlu0 %v2695, 96
        %v3523 = vpop.permute.xlu0 %3522
        %3524 = vrot.lane.b32.xlu0 %v2696, 96
        %v3525 = vpop.permute.xlu0 %3524
        %3526 = vrot.lane.b32.xlu0 %v2699, 96
        %v3527 = vpop.permute.xlu0 %3526
        %3528 = vrot.lane.b32.xlu0 %v2700, 96
        %v3529 = vpop.permute.xlu0 %3528
        %3530 = vrot.lane.b32.xlu0 %v2703, 96
        %v3531 = vpop.permute.xlu0 %3530
        %3532 = vrot.lane.b32.xlu0 %v2704, 96
        %v3533 = vpop.permute.xlu0 %3532
        %3534 = vrot.lane.b32.xlu0 %v2707, 96
        %v3535 = vpop.permute.xlu0 %3534
        %3536 = vrot.lane.b32.xlu0 %v2708, 96
        %v3537 = vpop.permute.xlu0 %3536
        %3538 = vrot.lane.b32.xlu0 %v2711, 96
        %v3539 = vpop.permute.xlu0 %3538
        %3540 = vrot.lane.b32.xlu0 %v2712, 96
        %v3541 = vpop.permute.xlu0 %3540
        %3542 = vrot.lane.b32.xlu0 %v2715, 96
        %v3543 = vpop.permute.xlu0 %3542
        %3544 = vrot.lane.b32.xlu0 %v2716, 96
        %v3545 = vpop.permute.xlu0 %3544
        %3546 = vrot.lane.b32.xlu0 %v2719, 96
        %v3547 = vpop.permute.xlu0 %3546
        %3548 = vrot.lane.b32.xlu0 %v2720, 96
        %v3549 = vpop.permute.xlu0 %3548
        %3550 = vrot.lane.b32.xlu0 %v2723, 96
        %v3551 = vpop.permute.xlu0 %3550
        %3552 = vrot.lane.b32.xlu0 %v2724, 96
        %v3553 = vpop.permute.xlu0 %3552
        %3554 = vrot.lane.b32.xlu0 %v2727, 96
        %v3555 = vpop.permute.xlu0 %3554
        %3556 = vrot.lane.b32.xlu0 %v2728, 96
        %v3557 = vpop.permute.xlu0 %3556
        %3558 = vrot.lane.b32.xlu0 %v2731, 96
        %v3559 = vpop.permute.xlu0 %3558
        %3560 = vrot.lane.b32.xlu0 %v2732, 96
        %v3561 = vpop.permute.xlu0 %3560
        %v3594 = vsel %vm704, %v2784, %v3019
        %v3595 = vsel %vm704, %v2786, %v3021
        %v3596 = vsel %vm704, %v2789, %v3023
        %v3597 = vsel %vm704, %v2791, %v3025
        %v3598 = vsel %vm704, %v2794, %v3027
        %v3599 = vsel %vm704, %v2796, %v3029
        %v3600 = vsel %vm704, %v2799, %v3031
        %v3601 = vsel %vm704, %v2801, %v3033
        %v3602 = vsel %vm704, %v2804, %v3035
        %v3603 = vsel %vm704, %v2806, %v3037
        %v3604 = vsel %vm704, %v2809, %v3039
        %v3605 = vsel %vm704, %v2811, %v3041
        %v3606 = vsel %vm704, %v2814, %v3043
        %v3607 = vsel %vm704, %v2816, %v3045
        %v3608 = vsel %vm704, %v2819, %v3047
        %v3609 = vsel %vm704, %v2821, %v3049
        %v3610 = vsel %vm704, %v2824, %v3051
        %v3611 = vsel %vm704, %v2826, %v3053
        %v3612 = vsel %vm704, %v2829, %v3055
        %v3613 = vsel %vm704, %v2831, %v3057
        %v3614 = vsel %vm704, %v2834, %v3059
        %v3615 = vsel %vm704, %v2836, %v3061
        %v3616 = vsel %vm704, %v2839, %v3063
        %v3617 = vsel %vm704, %v2841, %v3065
        %v3618 = vsel %vm704, %v2844, %v3067
        %v3619 = vsel %vm704, %v2846, %v3069
        %v3620 = vsel %vm704, %v2849, %v3071
        %v3621 = vsel %vm704, %v2851, %v3073
        %v3622 = vsel %vm704, %v2854, %v3075
        %v3623 = vsel %vm704, %v2856, %v3077
        %v3624 = vsel %vm704, %v2859, %v3079
        %v3625 = vsel %vm704, %v2861, %v3081
        %v3626 = vsel %vm1813, %v3594, %v3115
        %v3627 = vsel %vm1813, %v3595, %v3117
        %v3628 = vsel %vm1813, %v3596, %v3119
        %v3629 = vsel %vm1813, %v3597, %v3121
        %v3630 = vsel %vm1813, %v3598, %v3123
        %v3631 = vsel %vm1813, %v3599, %v3125
        %v3632 = vsel %vm1813, %v3600, %v3127
        %v3633 = vsel %vm1813, %v3601, %v3129
        %v3634 = vsel %vm1813, %v3602, %v3131
        %v3635 = vsel %vm1813, %v3603, %v3133
        %v3636 = vsel %vm1813, %v3604, %v3135
        %v3637 = vsel %vm1813, %v3605, %v3137
        %v3638 = vsel %vm1813, %v3606, %v3139
        %v3639 = vsel %vm1813, %v3607, %v3141
        %v3640 = vsel %vm1813, %v3608, %v3143
        %v3641 = vsel %vm1813, %v3609, %v3145
        %v3642 = vsel %vm1813, %v3610, %v3147
        %v3643 = vsel %vm1813, %v3611, %v3149
        %v3644 = vsel %vm1813, %v3612, %v3151
        %v3645 = vsel %vm1813, %v3613, %v3153
        %v3646 = vsel %vm1813, %v3614, %v3155
        %v3647 = vsel %vm1813, %v3615, %v3157
        %v3648 = vsel %vm1813, %v3616, %v3159
        %v3649 = vsel %vm1813, %v3617, %v3161
        %v3650 = vsel %vm1813, %v3618, %v3163
        %v3651 = vsel %vm1813, %v3619, %v3165
        %v3652 = vsel %vm1813, %v3620, %v3167
        %v3653 = vsel %vm1813, %v3621, %v3169
        %v3654 = vsel %vm1813, %v3622, %v3171
        %v3655 = vsel %vm1813, %v3623, %v3173
        %v3656 = vsel %vm1813, %v3624, %v3175
        %v3657 = vsel %vm1813, %v3625, %v3177
        %v3658 = vsel %vm1846, %v3626, %v3211
        %v3659 = vsel %vm1846, %v3627, %v3213
        %v3660 = vsel %vm1846, %v3628, %v3215
        %v3661 = vsel %vm1846, %v3629, %v3217
        %v3662 = vsel %vm1846, %v3630, %v3219
        %v3663 = vsel %vm1846, %v3631, %v3221
        %v3664 = vsel %vm1846, %v3632, %v3223
        %v3665 = vsel %vm1846, %v3633, %v3225
        %v3666 = vsel %vm1846, %v3634, %v3227
        %v3667 = vsel %vm1846, %v3635, %v3229
        %v3668 = vsel %vm1846, %v3636, %v3231
        %v3669 = vsel %vm1846, %v3637, %v3233
        %v3670 = vsel %vm1846, %v3638, %v3235
        %v3671 = vsel %vm1846, %v3639, %v3237
        %v3672 = vsel %vm1846, %v3640, %v3239
        %v3673 = vsel %vm1846, %v3641, %v3241
        %v3674 = vsel %vm1846, %v3642, %v3243
        %v3675 = vsel %vm1846, %v3643, %v3245
        %v3676 = vsel %vm1846, %v3644, %v3247
        %v3677 = vsel %vm1846, %v3645, %v3249
        %v3678 = vsel %vm1846, %v3646, %v3251
        %v3679 = vsel %vm1846, %v3647, %v3253
        %v3680 = vsel %vm1846, %v3648, %v3255
        %v3681 = vsel %vm1846, %v3649, %v3257
        %v3682 = vsel %vm1846, %v3650, %v3259
        %v3683 = vsel %vm1846, %v3651, %v3261
        %v3684 = vsel %vm1846, %v3652, %v3263
        %v3685 = vsel %vm1846, %v3653, %v3265
        %v3686 = vsel %vm1846, %v3654, %v3267
        %v3687 = vsel %vm1846, %v3655, %v3269
        %v3688 = vsel %vm1846, %v3656, %v3271
        %v3689 = vsel %vm1846, %v3657, %v3273
        %v3690 = vsel %vm704, %v2667, %v3307
        %v3691 = vsel %vm704, %v2668, %v3309
        %v3692 = vsel %vm704, %v2671, %v3311
        %v3693 = vsel %vm704, %v2672, %v3313
        %v3694 = vsel %vm704, %v2675, %v3315
        %v3695 = vsel %vm704, %v2676, %v3317
        %v3696 = vsel %vm704, %v2679, %v3319
        %v3697 = vsel %vm704, %v2680, %v3321
        %v3698 = vsel %vm704, %v2683, %v3323
        %v3699 = vsel %vm704, %v2684, %v3325
        %v3700 = vsel %vm704, %v2687, %v3327
        %v3701 = vsel %vm704, %v2688, %v3329
        %v3702 = vsel %vm704, %v2691, %v3331
        %v3703 = vsel %vm704, %v2692, %v3333
        %v3704 = vsel %vm704, %v2695, %v3335
        %v3705 = vsel %vm704, %v2696, %v3337
        %v3706 = vsel %vm704, %v2699, %v3339
        %v3707 = vsel %vm704, %v2700, %v3341
        %v3708 = vsel %vm704, %v2703, %v3343
        %v3709 = vsel %vm704, %v2704, %v3345
        %v3710 = vsel %vm704, %v2707, %v3347
        %v3711 = vsel %vm704, %v2708, %v3349
        %v3712 = vsel %vm704, %v2711, %v3351
        %v3713 = vsel %vm704, %v2712, %v3353
        %v3714 = vsel %vm704, %v2715, %v3355
        %v3715 = vsel %vm704, %v2716, %v3357
        %v3716 = vsel %vm704, %v2719, %v3359
        %v3717 = vsel %vm704, %v2720, %v3361
        %v3718 = vsel %vm704, %v2723, %v3363
        %v3719 = vsel %vm704, %v2724, %v3365
        %v3720 = vsel %vm704, %v2727, %v3367
        %v3721 = vsel %vm704, %v2728, %v3369
        %v3722 = vsel %vm1813, %v3690, %v3403
        %v3723 = vsel %vm1813, %v3691, %v3405
        %v3724 = vsel %vm1813, %v3692, %v3407
        %v3725 = vsel %vm1813, %v3693, %v3409
        %v3726 = vsel %vm1813, %v3694, %v3411
        %v3727 = vsel %vm1813, %v3695, %v3413
        %v3728 = vsel %vm1813, %v3696, %v3415
        %v3729 = vsel %vm1813, %v3697, %v3417
        %v3730 = vsel %vm1813, %v3698, %v3419
        %v3731 = vsel %vm1813, %v3699, %v3421
        %v3732 = vsel %vm1813, %v3700, %v3423
        %v3733 = vsel %vm1813, %v3701, %v3425
        %v3734 = vsel %vm1813, %v3702, %v3427
        %v3735 = vsel %vm1813, %v3703, %v3429
        %v3736 = vsel %vm1813, %v3704, %v3431
        %v3737 = vsel %vm1813, %v3705, %v3433
        %v3738 = vsel %vm1813, %v3706, %v3435
        %v3739 = vsel %vm1813, %v3707, %v3437
        %v3740 = vsel %vm1813, %v3708, %v3439
        %v3741 = vsel %vm1813, %v3709, %v3441
        %v3742 = vsel %vm1813, %v3710, %v3443
        %v3743 = vsel %vm1813, %v3711, %v3445
        %v3744 = vsel %vm1813, %v3712, %v3447
        %v3745 = vsel %vm1813, %v3713, %v3449
        %v3746 = vsel %vm1813, %v3714, %v3451
        %v3747 = vsel %vm1813, %v3715, %v3453
        %v3748 = vsel %vm1813, %v3716, %v3455
        %v3749 = vsel %vm1813, %v3717, %v3457
        %v3750 = vsel %vm1813, %v3718, %v3459
        %v3751 = vsel %vm1813, %v3719, %v3461
        %v3752 = vsel %vm1813, %v3720, %v3463
        %v3753 = vsel %vm1813, %v3721, %v3465
        %v3754 = vsel %vm1846, %v3722, %v3499
        %v3755 = vsel %vm1846, %v3723, %v3501
        %v3756 = vsel %vm1846, %v3724, %v3503
        %v3757 = vsel %vm1846, %v3725, %v3505
        %v3758 = vsel %vm1846, %v3726, %v3507
        %v3759 = vsel %vm1846, %v3727, %v3509
        %v3760 = vsel %vm1846, %v3728, %v3511
        %v3761 = vsel %vm1846, %v3729, %v3513
        %v3762 = vsel %vm1846, %v3730, %v3515
        %v3763 = vsel %vm1846, %v3731, %v3517
        %v3764 = vsel %vm1846, %v3732, %v3519
        %v3765 = vsel %vm1846, %v3733, %v3521
        %v3766 = vsel %vm1846, %v3734, %v3523
        %v3767 = vsel %vm1846, %v3735, %v3525
        %v3768 = vsel %vm1846, %v3736, %v3527
        %v3769 = vsel %vm1846, %v3737, %v3529
        %v3770 = vsel %vm1846, %v3738, %v3531
        %v3771 = vsel %vm1846, %v3739, %v3533
        %v3772 = vsel %vm1846, %v3740, %v3535
        %v3773 = vsel %vm1846, %v3741, %v3537
        %v3774 = vsel %vm1846, %v3742, %v3539
        %v3775 = vsel %vm1846, %v3743, %v3541
        %v3776 = vsel %vm1846, %v3744, %v3543
        %v3777 = vsel %vm1846, %v3745, %v3545
        %v3778 = vsel %vm1846, %v3746, %v3547
        %v3779 = vsel %vm1846, %v3747, %v3549
        %v3780 = vsel %vm1846, %v3748, %v3551
        %v3781 = vsel %vm1846, %v3749, %v3553
        %v3782 = vsel %vm1846, %v3750, %v3555
        %v3783 = vsel %vm1846, %v3751, %v3557
        %v3784 = vsel %vm1846, %v3752, %v3559
        %v3785 = vsel %vm1846, %v3753, %v3561
        %v3787 = vlaneseq
        %v3788 = vshrl.u32 %v3787, 7
        %v3789 = vsub.s32 0, %v3788
        %v3790 = vrot.slane %v2629, %v3789
        %v3792 = vsel %vm704, %v2922, 0
        %v3794 = vsel %vm704, %v2924, 0
        %v3796 = vsel %vm704, %v2927, 0
        %v3798 = vsel %vm704, %v2929, 0
        %v3800 = vsel %vm704, %v2932, 0
        %v3802 = vsel %vm704, %v2934, 0
        %v3804 = vsel %vm704, %v2937, 0
        %v3806 = vsel %vm704, %v2939, 0
        %v3808 = vsel %vm704, %v2942, 0
        %v3810 = vsel %vm704, %v2944, 0
        %v3812 = vsel %vm704, %v2947, 0
        %v3814 = vsel %vm704, %v2949, 0
        %v3816 = vsel %vm704, %v2952, 0
        %v3818 = vsel %vm704, %v2954, 0
        %v3820 = vsel %vm704, %v2957, 0
        %v3822 = vsel %vm704, %v2959, 0
        %v3824 = vsel %vm704, %v2962, 0
        %v3826 = vsel %vm704, %v2964, 0
        %v3828 = vsel %vm704, %v2967, 0
        %v3830 = vsel %vm704, %v2969, 0
        %v3832 = vsel %vm704, %v2972, 0
        %v3834 = vsel %vm704, %v2974, 0
        %v3836 = vsel %vm704, %v2977, 0
        %v3838 = vsel %vm704, %v2979, 0
        %v3840 = vsel %vm704, %v2982, 0
        %v3842 = vsel %vm704, %v2984, 0
        %v3844 = vsel %vm704, %v2987, 0
        %v3846 = vsel %vm704, %v2989, 0
        %v3848 = vsel %vm704, %v3001, 0
        %v3850 = vsel %vm704, %v3003, 0
        %v3852 = vsel %vm704, %v3015, 0
        %v3854 = vsel %vm704, %v3017, 0
        %3856 = vmatprep.subr.mxu0 0.0
        %3857 = vmatpush1.msra.mxu0 %v2607
        %3858 = vmatprep.subr.mxu0 0.0
        %3859 = vmatpush1.msra.mxu0 %v2606
        %3860 = vmatprep.subr.mxu0 0.0
        %3861 = vmatpush1.msra.mxu0 %v2605
        %3862 = vmatprep.subr.mxu0 0.0
        %3863 = vmatpush1.msra.mxu0 %v2604
        %3864 = vmatprep.subr.mxu0 0.0
        %3865 = vmatpush1.msra.mxu0 %v2603
        %3866 = vmatprep.subr.mxu0 0.0
        %3867 = vmatpush1.msra.mxu0 %v2602
        %3868 = vmatprep.subr.mxu0 0.0
        %3869 = vmatpush1.msra.mxu0 %v2601
        %3870 = vmatprep.subr.mxu0 0.0
        %3871 = vmatpush1.msra.mxu0 %v2600
        %3872 = vmatprep.subr.mxu0 0.0
        %3873 = vmatpush1.msra.mxu0 %v2599
        %3874 = vmatprep.subr.mxu0 0.0
        %3875 = vmatpush1.msra.mxu0 %v2598
        %3876 = vmatprep.subr.mxu0 0.0
        %3877 = vmatpush1.msra.mxu0 %v2597
        %3878 = vmatprep.subr.mxu0 0.0
        %3879 = vmatpush1.msra.mxu0 %v2596
        %3880 = vmatprep.subr.mxu0 0.0
        %3881 = vmatpush1.msra.mxu0 %v2595
        %3882 = vmatprep.subr.mxu0 0.0
        %3883 = vmatpush1.msra.mxu0 %v2594
        %3884 = vmatprep.subr.mxu0 0.0
        %3885 = vmatpush1.msra.mxu0 %v2593
        %3886 = vmatprep.subr.mxu0 0.0
        %3887 = vmatpush1.msra.mxu0 %v2592
        %3888 = vmatprep.subr.mxu0 0.0
        %3889 = vmatpush2.msra.mxu0 %v2623
        %3890 = vmatprep.subr.mxu0 0.0
        %3891 = vmatpush2.msra.mxu0 %v2622
        %3892 = vmatprep.subr.mxu0 0.0
        %3893 = vmatpush2.msra.mxu0 %v2621
        %3894 = vmatprep.subr.mxu0 0.0
        %3895 = vmatpush2.msra.mxu0 %v2620
        %3896 = vmatprep.subr.mxu0 0.0
        %3897 = vmatpush2.msra.mxu0 %v2619
        %3898 = vmatprep.subr.mxu0 0.0
        %3899 = vmatpush2.msra.mxu0 %v2618
        %3900 = vmatprep.subr.mxu0 0.0
        %3901 = vmatpush2.msra.mxu0 %v2617
        %3902 = vmatprep.subr.mxu0 0.0
        %3903 = vmatpush2.msra.mxu0 %v2616
        %3904 = vmatprep.subr.mxu0 0.0
        %3905 = vmatpush2.msra.mxu0 %v2615
        %3906 = vmatprep.subr.mxu0 0.0
        %3907 = vmatpush2.msra.mxu0 %v2614
        %3908 = vmatprep.subr.mxu0 0.0
        %3909 = vmatpush2.msra.mxu0 %v2613
        %3910 = vmatprep.subr.mxu0 0.0
        %3911 = vmatpush2.msra.mxu0 %v2612
        %3912 = vmatprep.subr.mxu0 0.0
        %3913 = vmatpush2.msra.mxu0 %v2611
        %3914 = vmatprep.subr.mxu0 0.0
        %3915 = vmatpush2.msra.mxu0 %v2610
        %3916 = vmatprep.subr.mxu0 0.0
        %3917 = vmatpush2.msra.mxu0 %v2609
        %3918 = vmatprep.subr.mxu0 0.0
        %3919 = vmatpush2.msra.mxu0 %v2608
        %3920 = vmatprep.mubr.f32.mxu0 %v3754
        %3921 = vmatmul.mubr.f32.gmra.mxu0 %v3658
        %v3922 = vpop.f32.mrf.mxu0
        %v3923 = vadd.f32 %v3790, %v3922
        %v3924 = vpop.f32.mrf.mxu0
        %3925 = vmatprep.mubr.f32.mxu0 %v3755
        %3926 = vmatmul.mubr.f32.gmra.mxu0 %v3659
        %v3927 = vpop.f32.mrf.mxu0
        %v3928 = vadd.f32 %v3790, %v3927
        %v3929 = vpop.f32.mrf.mxu0
        %3930 = vmatprep.mubr.f32.mxu0 %v3756
        %3931 = vmatmul.mubr.f32.gmra.mxu0 %v3660
        %v3932 = vpop.f32.mrf.mxu0
        %v3933 = vadd.f32 %v3790, %v3932
        %v3934 = vpop.f32.mrf.mxu0
        %3935 = vmatprep.mubr.f32.mxu0 %v3757
        %3936 = vmatmul.mubr.f32.gmra.mxu0 %v3661
        %v3937 = vpop.f32.mrf.mxu0
        %v3938 = vadd.f32 %v3790, %v3937
        %v3939 = vpop.f32.mrf.mxu0
        %3940 = vmatprep.mubr.f32.mxu0 %v3758
        %3941 = vmatmul.mubr.f32.gmra.mxu0 %v3662
        %v3942 = vpop.f32.mrf.mxu0
        %v3943 = vadd.f32 %v3790, %v3942
        %v3944 = vpop.f32.mrf.mxu0
        %3945 = vmatprep.mubr.f32.mxu0 %v3759
        %3946 = vmatmul.mubr.f32.gmra.mxu0 %v3663
        %v3947 = vpop.f32.mrf.mxu0
        %v3948 = vadd.f32 %v3790, %v3947
        %v3949 = vpop.f32.mrf.mxu0
        %3950 = vmatprep.mubr.f32.mxu0 %v3760
        %3951 = vmatmul.mubr.f32.gmra.mxu0 %v3664
        %v3952 = vpop.f32.mrf.mxu0
        %v3953 = vadd.f32 %v3790, %v3952
        %v3954 = vpop.f32.mrf.mxu0
        %3955 = vmatprep.mubr.f32.mxu0 %v3761
        %3956 = vmatmul.mubr.f32.gmra.mxu0 %v3665
        %v3957 = vpop.f32.mrf.mxu0
        %v3958 = vadd.f32 %v3790, %v3957
        %v3959 = vpop.f32.mrf.mxu0
        %3960 = vmatprep.mubr.f32.mxu0 %v3762
        %3961 = vmatmul.mubr.f32.gmra.mxu0 %v3666
        %v3962 = vpop.f32.mrf.mxu0
        %v3963 = vadd.f32 %v3790, %v3962
        %v3964 = vpop.f32.mrf.mxu0
        %3965 = vmatprep.mubr.f32.mxu0 %v3763
        %3966 = vmatmul.mubr.f32.gmra.mxu0 %v3667
        %v3967 = vpop.f32.mrf.mxu0
        %v3968 = vadd.f32 %v3790, %v3967
        %v3969 = vpop.f32.mrf.mxu0
        %3970 = vmatprep.mubr.f32.mxu0 %v3764
        %3971 = vmatmul.mubr.f32.gmra.mxu0 %v3668
        %v3972 = vpop.f32.mrf.mxu0
        %v3973 = vadd.f32 %v3790, %v3972
        %v3974 = vpop.f32.mrf.mxu0
        %3975 = vmatprep.mubr.f32.mxu0 %v3765
        %3976 = vmatmul.mubr.f32.gmra.mxu0 %v3669
        %v3977 = vpop.f32.mrf.mxu0
        %v3978 = vadd.f32 %v3790, %v3977
        %v3979 = vpop.f32.mrf.mxu0
        %3980 = vmatprep.mubr.f32.mxu0 %v3766
        %3981 = vmatmul.mubr.f32.gmra.mxu0 %v3670
        %v3982 = vpop.f32.mrf.mxu0
        %v3983 = vadd.f32 %v3790, %v3982
        %v3984 = vpop.f32.mrf.mxu0
        %3985 = vmatprep.mubr.f32.mxu0 %v3767
        %3986 = vmatmul.mubr.f32.gmra.mxu0 %v3671
        %v3987 = vpop.f32.mrf.mxu0
        %v3988 = vadd.f32 %v3790, %v3987
        %v3989 = vpop.f32.mrf.mxu0
        %3990 = vmatprep.mubr.f32.mxu0 %v3768
        %3991 = vmatmul.mubr.f32.gmra.mxu0 %v3672
        %v3992 = vpop.f32.mrf.mxu0
        %v3993 = vadd.f32 %v3790, %v3992
        %v3994 = vpop.f32.mrf.mxu0
        %3995 = vmatprep.mubr.f32.mxu0 %v3769
        %3996 = vmatmul.mubr.f32.gmra.mxu0 %v3673
        %v3997 = vpop.f32.mrf.mxu0
        %v3998 = vadd.f32 %v3790, %v3997
        %v3999 = vpop.f32.mrf.mxu0
        %4000 = vmatprep.mubr.f32.mxu0 %v3770
        %4001 = vmatmul.mubr.f32.gmra.mxu0 %v3674
        %v4002 = vpop.f32.mrf.mxu0
        %v4003 = vadd.f32 %v3790, %v4002
        %v4004 = vpop.f32.mrf.mxu0
        %4005 = vmatprep.mubr.f32.mxu0 %v3771
        %4006 = vmatmul.mubr.f32.gmra.mxu0 %v3675
        %v4007 = vpop.f32.mrf.mxu0
        %v4008 = vadd.f32 %v3790, %v4007
        %v4009 = vpop.f32.mrf.mxu0
        %4010 = vmatprep.mubr.f32.mxu0 %v3772
        %4011 = vmatmul.mubr.f32.gmra.mxu0 %v3676
        %v4012 = vpop.f32.mrf.mxu0
        %v4013 = vadd.f32 %v3790, %v4012
        %v4014 = vpop.f32.mrf.mxu0
        %4015 = vmatprep.mubr.f32.mxu0 %v3773
        %4016 = vmatmul.mubr.f32.gmra.mxu0 %v3677
        %v4017 = vpop.f32.mrf.mxu0
        %v4018 = vadd.f32 %v3790, %v4017
        %v4019 = vpop.f32.mrf.mxu0
        %4020 = vmatprep.mubr.f32.mxu0 %v3774
        %4021 = vmatmul.mubr.f32.gmra.mxu0 %v3678
        %v4022 = vpop.f32.mrf.mxu0
        %v4023 = vadd.f32 %v3790, %v4022
        %v4024 = vpop.f32.mrf.mxu0
        %4025 = vmatprep.mubr.f32.mxu0 %v3775
        %4026 = vmatmul.mubr.f32.gmra.mxu0 %v3679
        %v4027 = vpop.f32.mrf.mxu0
        %v4028 = vadd.f32 %v3790, %v4027
        %v4029 = vpop.f32.mrf.mxu0
        %4030 = vmatprep.mubr.f32.mxu0 %v3776
        %4031 = vmatmul.mubr.f32.gmra.mxu0 %v3680
        %v4032 = vpop.f32.mrf.mxu0
        %v4033 = vadd.f32 %v3790, %v4032
        %v4034 = vpop.f32.mrf.mxu0
        %4035 = vmatprep.mubr.f32.mxu0 %v3777
        %4036 = vmatmul.mubr.f32.gmra.mxu0 %v3681
        %v4037 = vpop.f32.mrf.mxu0
        %v4038 = vadd.f32 %v3790, %v4037
        %v4039 = vpop.f32.mrf.mxu0
        %4040 = vmatprep.mubr.f32.mxu0 %v3778
        %4041 = vmatmul.mubr.f32.gmra.mxu0 %v3682
        %v4042 = vpop.f32.mrf.mxu0
        %v4043 = vadd.f32 %v3790, %v4042
        %v4044 = vpop.f32.mrf.mxu0
        %4045 = vmatprep.mubr.f32.mxu0 %v3779
        %4046 = vmatmul.mubr.f32.gmra.mxu0 %v3683
        %v4047 = vpop.f32.mrf.mxu0
        %v4048 = vadd.f32 %v3790, %v4047
        %v4049 = vpop.f32.mrf.mxu0
        %4050 = vmatprep.mubr.f32.mxu0 %v3780
        %4051 = vmatmul.mubr.f32.gmra.mxu0 %v3684
        %v4052 = vpop.f32.mrf.mxu0
        %v4053 = vadd.f32 %v3790, %v4052
        %v4054 = vpop.f32.mrf.mxu0
        %4055 = vmatprep.mubr.f32.mxu0 %v3781
        %4056 = vmatmul.mubr.f32.gmra.mxu0 %v3685
        %v4057 = vpop.f32.mrf.mxu0
        %v4058 = vadd.f32 %v3790, %v4057
        %v4059 = vpop.f32.mrf.mxu0
        %4060 = vmatprep.mubr.f32.mxu0 %v3782
        %4061 = vmatmul.mubr.f32.gmra.mxu0 %v3686
        %v4062 = vpop.f32.mrf.mxu0
        %v4063 = vadd.f32 %v3790, %v4062
        %v4064 = vpop.f32.mrf.mxu0
        %4065 = vmatprep.mubr.f32.mxu0 %v3783
        %4066 = vmatmul.mubr.f32.gmra.mxu0 %v3687
        %v4067 = vpop.f32.mrf.mxu0
        %v4068 = vadd.f32 %v3790, %v4067
        %v4069 = vpop.f32.mrf.mxu0
        %4070 = vmatprep.mubr.f32.mxu0 %v3784
        %4071 = vmatmul.mubr.f32.gmra.mxu0 %v3688
        %v4072 = vpop.f32.mrf.mxu0
        %v4073 = vadd.f32 %v3790, %v4072
        %v4074 = vpop.f32.mrf.mxu0
        %4075 = vmatprep.mubr.f32.mxu0 %v3785
        %4076 = vmatmul.mubr.f32.gmra.mxu0 %v3689
        %v4077 = vpop.f32.mrf.mxu0
        %v4078 = vadd.f32 %v3790, %v4077
        %v4079 = vpop.f32.mrf.mxu0
        %4080 = vdwg.mxu0
        %4081 = vmatprep.subr.mxu0 0.0
        %4082 = vmatpush1.msra.mxu0 0.0
        %4083 = vmatprep.subr.mxu0 0.0
        %4084 = vmatpush1.msra.mxu0 0.0
        %4085 = vmatprep.subr.mxu0 0.0
        %4086 = vmatpush1.msra.mxu0 0.0
        %4087 = vmatprep.subr.mxu0 0.0
        %4088 = vmatpush1.msra.mxu0 0.0
        %4089 = vmatprep.subr.mxu0 0.0
        %4090 = vmatpush1.msra.mxu0 0.0
        %4091 = vmatprep.subr.mxu0 0.0
        %4092 = vmatpush1.msra.mxu0 0.0
        %4093 = vmatprep.subr.mxu0 0.0
        %4094 = vmatpush1.msra.mxu0 0.0
        %4095 = vmatprep.subr.mxu0 0.0
        %4096 = vmatpush1.msra.mxu0 0.0
        %4097 = vmatprep.subr.mxu0 0.0
        %4098 = vmatpush1.msra.mxu0 0.0
        %4099 = vmatprep.subr.mxu0 0.0
        %4100 = vmatpush1.msra.mxu0 0.0
        %4101 = vmatprep.subr.mxu0 0.0
        %4102 = vmatpush1.msra.mxu0 0.0
        %4103 = vmatprep.subr.mxu0 0.0
        %4104 = vmatpush1.msra.mxu0 0.0
        %4105 = vmatprep.subr.mxu0 0.0
        %4106 = vmatpush1.msra.mxu0 %v2627
        %4107 = vmatprep.subr.mxu0 0.0
        %4108 = vmatpush1.msra.mxu0 %v2626
        %4109 = vmatprep.subr.mxu0 0.0
        %4110 = vmatpush1.msra.mxu0 %v2625
        %4111 = vmatprep.subr.mxu0 0.0
        %4112 = vmatpush1.msra.mxu0 %v2624
        %4113 = vmatprep.subr.mxu0 0.0
        %4114 = vmatpush2.msra.mxu0 0.0
        %4115 = vmatprep.subr.mxu0 0.0
        %4116 = vmatpush2.msra.mxu0 0.0
        %4117 = vmatprep.subr.mxu0 0.0
        %4118 = vmatpush2.msra.mxu0 0.0
        %4119 = vmatprep.subr.mxu0 0.0
        %4120 = vmatpush2.msra.mxu0 0.0
        %4121 = vmatprep.subr.mxu0 0.0
        %4122 = vmatpush2.msra.mxu0 0.0
        %4123 = vmatprep.subr.mxu0 0.0
        %4124 = vmatpush2.msra.mxu0 0.0
        %4125 = vmatprep.subr.mxu0 0.0
        %4126 = vmatpush2.msra.mxu0 0.0
        %4127 = vmatprep.subr.mxu0 0.0
        %4128 = vmatpush2.msra.mxu0 0.0
        %4129 = vmatprep.subr.mxu0 0.0
        %4130 = vmatpush2.msra.mxu0 0.0
        %4131 = vmatprep.subr.mxu0 0.0
        %4132 = vmatpush2.msra.mxu0 0.0
        %4133 = vmatprep.subr.mxu0 0.0
        %4134 = vmatpush2.msra.mxu0 0.0
        %4135 = vmatprep.subr.mxu0 0.0
        %4136 = vmatpush2.msra.mxu0 0.0
        %4137 = vmatprep.subr.mxu0 0.0
        %4138 = vmatpush2.msra.mxu0 0.0
        %4139 = vmatprep.subr.mxu0 0.0
        %4140 = vmatpush2.msra.mxu0 0.0
        %4141 = vmatprep.subr.mxu0 0.0
        %4142 = vmatpush2.msra.mxu0 0.0
        %4143 = vmatprep.subr.mxu0 0.0
        %4144 = vmatpush2.msra.mxu0 0.0
        %4145 = vmatprep.mubr.f32.mxu0 0.0
        %4146 = vmatmul.mubr.f32.gmra.mxu0 %v3792
        %v4147 = vpop.f32.mrf.mxu0
        %v4148 = vadd.f32 %v3923, %v4147
        %v4149 = vpop.f32.mrf.mxu0
        %4150 = vmatprep.mubr.f32.mxu0 0.0
        %4151 = vmatmul.mubr.f32.gmra.mxu0 %v3794
        %v4152 = vpop.f32.mrf.mxu0
        %v4153 = vadd.f32 %v3928, %v4152
        %v4154 = vpop.f32.mrf.mxu0
        %4155 = vmatprep.mubr.f32.mxu0 0.0
        %4156 = vmatmul.mubr.f32.gmra.mxu0 %v3796
        %v4157 = vpop.f32.mrf.mxu0
        %v4158 = vadd.f32 %v3933, %v4157
        %v4159 = vpop.f32.mrf.mxu0
        %4160 = vmatprep.mubr.f32.mxu0 0.0
        %4161 = vmatmul.mubr.f32.gmra.mxu0 %v3798
        %v4162 = vpop.f32.mrf.mxu0
        %v4163 = vadd.f32 %v3938, %v4162
        %v4164 = vpop.f32.mrf.mxu0
        %4165 = vmatprep.mubr.f32.mxu0 0.0
        %4166 = vmatmul.mubr.f32.gmra.mxu0 %v3800
        %v4167 = vpop.f32.mrf.mxu0
        %v4168 = vadd.f32 %v3943, %v4167
        %v4169 = vpop.f32.mrf.mxu0
        %4170 = vmatprep.mubr.f32.mxu0 0.0
        %4171 = vmatmul.mubr.f32.gmra.mxu0 %v3802
        %v4172 = vpop.f32.mrf.mxu0
        %v4173 = vadd.f32 %v3948, %v4172
        %v4174 = vpop.f32.mrf.mxu0
        %4175 = vmatprep.mubr.f32.mxu0 0.0
        %4176 = vmatmul.mubr.f32.gmra.mxu0 %v3804
        %v4177 = vpop.f32.mrf.mxu0
        %v4178 = vadd.f32 %v3953, %v4177
        %v4179 = vpop.f32.mrf.mxu0
        %4180 = vmatprep.mubr.f32.mxu0 0.0
        %4181 = vmatmul.mubr.f32.gmra.mxu0 %v3806
        %v4182 = vpop.f32.mrf.mxu0
        %v4183 = vadd.f32 %v3958, %v4182
        %v4184 = vpop.f32.mrf.mxu0
        %4185 = vmatprep.mubr.f32.mxu0 0.0
        %4186 = vmatmul.mubr.f32.gmra.mxu0 %v3808
        %v4187 = vpop.f32.mrf.mxu0
        %v4188 = vadd.f32 %v3963, %v4187
        %v4189 = vpop.f32.mrf.mxu0
        %4190 = vmatprep.mubr.f32.mxu0 0.0
        %4191 = vmatmul.mubr.f32.gmra.mxu0 %v3810
        %v4192 = vpop.f32.mrf.mxu0
        %v4193 = vadd.f32 %v3968, %v4192
        %v4194 = vpop.f32.mrf.mxu0
        %4195 = vmatprep.mubr.f32.mxu0 0.0
        %4196 = vmatmul.mubr.f32.gmra.mxu0 %v3812
        %v4197 = vpop.f32.mrf.mxu0
        %v4198 = vadd.f32 %v3973, %v4197
        %v4199 = vpop.f32.mrf.mxu0
        %4200 = vmatprep.mubr.f32.mxu0 0.0
        %4201 = vmatmul.mubr.f32.gmra.mxu0 %v3814
        %v4202 = vpop.f32.mrf.mxu0
        %v4203 = vadd.f32 %v3978, %v4202
        %v4204 = vpop.f32.mrf.mxu0
        %4205 = vmatprep.mubr.f32.mxu0 0.0
        %4206 = vmatmul.mubr.f32.gmra.mxu0 %v3816
        %v4207 = vpop.f32.mrf.mxu0
        %v4208 = vadd.f32 %v3983, %v4207
        %v4209 = vpop.f32.mrf.mxu0
        %4210 = vmatprep.mubr.f32.mxu0 0.0
        %4211 = vmatmul.mubr.f32.gmra.mxu0 %v3818
        %v4212 = vpop.f32.mrf.mxu0
        %v4213 = vadd.f32 %v3988, %v4212
        %v4214 = vpop.f32.mrf.mxu0
        %4215 = vmatprep.mubr.f32.mxu0 0.0
        %4216 = vmatmul.mubr.f32.gmra.mxu0 %v3820
        %v4217 = vpop.f32.mrf.mxu0
        %v4218 = vadd.f32 %v3993, %v4217
        %v4219 = vpop.f32.mrf.mxu0
        %4220 = vmatprep.mubr.f32.mxu0 0.0
        %4221 = vmatmul.mubr.f32.gmra.mxu0 %v3822
        %v4222 = vpop.f32.mrf.mxu0
        %v4223 = vadd.f32 %v3998, %v4222
        %v4224 = vpop.f32.mrf.mxu0
        %4225 = vmatprep.mubr.f32.mxu0 0.0
        %4226 = vmatmul.mubr.f32.gmra.mxu0 %v3824
        %v4227 = vpop.f32.mrf.mxu0
        %v4228 = vadd.f32 %v4003, %v4227
        %v4229 = vpop.f32.mrf.mxu0
        %4230 = vmatprep.mubr.f32.mxu0 0.0
        %4231 = vmatmul.mubr.f32.gmra.mxu0 %v3826
        %v4232 = vpop.f32.mrf.mxu0
        %v4233 = vadd.f32 %v4008, %v4232
        %v4234 = vpop.f32.mrf.mxu0
        %4235 = vmatprep.mubr.f32.mxu0 0.0
        %4236 = vmatmul.mubr.f32.gmra.mxu0 %v3828
        %v4237 = vpop.f32.mrf.mxu0
        %v4238 = vadd.f32 %v4013, %v4237
        %v4239 = vpop.f32.mrf.mxu0
        %4240 = vmatprep.mubr.f32.mxu0 0.0
        %4241 = vmatmul.mubr.f32.gmra.mxu0 %v3830
        %v4242 = vpop.f32.mrf.mxu0
        %v4243 = vadd.f32 %v4018, %v4242
        %v4244 = vpop.f32.mrf.mxu0
        %4245 = vmatprep.mubr.f32.mxu0 0.0
        %4246 = vmatmul.mubr.f32.gmra.mxu0 %v3832
        %v4247 = vpop.f32.mrf.mxu0
        %v4248 = vadd.f32 %v4023, %v4247
        %v4249 = vpop.f32.mrf.mxu0
        %4250 = vmatprep.mubr.f32.mxu0 0.0
        %4251 = vmatmul.mubr.f32.gmra.mxu0 %v3834
        %v4252 = vpop.f32.mrf.mxu0
        %v4253 = vadd.f32 %v4028, %v4252
        %v4254 = vpop.f32.mrf.mxu0
        %4255 = vmatprep.mubr.f32.mxu0 0.0
        %4256 = vmatmul.mubr.f32.gmra.mxu0 %v3836
        %v4257 = vpop.f32.mrf.mxu0
        %v4258 = vadd.f32 %v4033, %v4257
        %v4259 = vpop.f32.mrf.mxu0
        %4260 = vmatprep.mubr.f32.mxu0 0.0
        %4261 = vmatmul.mubr.f32.gmra.mxu0 %v3838
        %v4262 = vpop.f32.mrf.mxu0
        %v4263 = vadd.f32 %v4038, %v4262
        %v4264 = vpop.f32.mrf.mxu0
        %4265 = vmatprep.mubr.f32.mxu0 0.0
        %4266 = vmatmul.mubr.f32.gmra.mxu0 %v3840
        %v4267 = vpop.f32.mrf.mxu0
        %v4268 = vadd.f32 %v4043, %v4267
        %v4269 = vpop.f32.mrf.mxu0
        %4270 = vmatprep.mubr.f32.mxu0 0.0
        %4271 = vmatmul.mubr.f32.gmra.mxu0 %v3842
        %v4272 = vpop.f32.mrf.mxu0
        %v4273 = vadd.f32 %v4048, %v4272
        %v4274 = vpop.f32.mrf.mxu0
        %4275 = vmatprep.mubr.f32.mxu0 0.0
        %4276 = vmatmul.mubr.f32.gmra.mxu0 %v3844
        %v4277 = vpop.f32.mrf.mxu0
        %v4278 = vadd.f32 %v4053, %v4277
        %v4279 = vpop.f32.mrf.mxu0
        %4280 = vmatprep.mubr.f32.mxu0 0.0
        %4281 = vmatmul.mubr.f32.gmra.mxu0 %v3846
        %v4282 = vpop.f32.mrf.mxu0
        %v4283 = vadd.f32 %v4058, %v4282
        %v4284 = vpop.f32.mrf.mxu0
        %4285 = vmatprep.mubr.f32.mxu0 0.0
        %4286 = vmatmul.mubr.f32.gmra.mxu0 %v3848
        %v4287 = vpop.f32.mrf.mxu0
        %v4288 = vadd.f32 %v4063, %v4287
        %v4289 = vpop.f32.mrf.mxu0
        %4290 = vmatprep.mubr.f32.mxu0 0.0
        %4291 = vmatmul.mubr.f32.gmra.mxu0 %v3850
        %v4292 = vpop.f32.mrf.mxu0
        %v4293 = vadd.f32 %v4068, %v4292
        %v4294 = vpop.f32.mrf.mxu0
        %4295 = vmatprep.mubr.f32.mxu0 0.0
        %4296 = vmatmul.mubr.f32.gmra.mxu0 %v3852
        %v4297 = vpop.f32.mrf.mxu0
        %v4298 = vadd.f32 %v4073, %v4297
        %v4299 = vpop.f32.mrf.mxu0
        %4300 = vmatprep.mubr.f32.mxu0 0.0
        %4301 = vmatmul.mubr.f32.gmra.mxu0 %v3854
        %v4302 = vpop.f32.mrf.mxu0
        %v4303 = vadd.f32 %v4078, %v4302
        %v4304 = vpop.f32.mrf.mxu0
        %4305 = vdwg.mxu0
        %vm4306 = vcmp.gt.f32.partialorder %v4148, 0.0
        %vm4307 = vcmp.gt.f32.partialorder %v4153, 0.0
        %vm4308 = vcmp.gt.f32.partialorder %v4158, 0.0
        %vm4309 = vcmp.gt.f32.partialorder %v4163, 0.0
        %vm4310 = vcmp.gt.f32.partialorder %v4168, 0.0
        %vm4311 = vcmp.gt.f32.partialorder %v4173, 0.0
        %vm4312 = vcmp.gt.f32.partialorder %v4178, 0.0
        %vm4313 = vcmp.gt.f32.partialorder %v4183, 0.0
        %vm4314 = vcmp.gt.f32.partialorder %v4188, 0.0
        %vm4315 = vcmp.gt.f32.partialorder %v4193, 0.0
        %vm4316 = vcmp.gt.f32.partialorder %v4198, 0.0
        %vm4317 = vcmp.gt.f32.partialorder %v4203, 0.0
        %vm4318 = vcmp.gt.f32.partialorder %v4208, 0.0
        %vm4319 = vcmp.gt.f32.partialorder %v4213, 0.0
        %vm4320 = vcmp.gt.f32.partialorder %v4218, 0.0
        %vm4321 = vcmp.gt.f32.partialorder %v4223, 0.0
        %vm4322 = vcmp.gt.f32.partialorder %v4228, 0.0
        %vm4323 = vcmp.gt.f32.partialorder %v4233, 0.0
        %vm4324 = vcmp.gt.f32.partialorder %v4238, 0.0
        %vm4325 = vcmp.gt.f32.partialorder %v4243, 0.0
        %vm4326 = vcmp.gt.f32.partialorder %v4248, 0.0
        %vm4327 = vcmp.gt.f32.partialorder %v4253, 0.0
        %vm4328 = vcmp.gt.f32.partialorder %v4258, 0.0
        %vm4329 = vcmp.gt.f32.partialorder %v4263, 0.0
        %vm4330 = vcmp.gt.f32.partialorder %v4268, 0.0
        %vm4331 = vcmp.gt.f32.partialorder %v4273, 0.0
        %vm4332 = vcmp.gt.f32.partialorder %v4278, 0.0
        %vm4333 = vcmp.gt.f32.partialorder %v4283, 0.0
        %vm4334 = vcmp.gt.f32.partialorder %v4288, 0.0
        %vm4335 = vcmp.gt.f32.partialorder %v4293, 0.0
        %vm4336 = vcmp.gt.f32.partialorder %v4298, 0.0
        %vm4337 = vcmp.gt.f32.partialorder %v4303, 0.0
        %v4338 = vmul.f32 %v4148, 0.2
        %v4339 = vmul.f32 %v4153, 0.2
        %v4340 = vmul.f32 %v4158, 0.2
        %v4341 = vmul.f32 %v4163, 0.2
        %v4342 = vmul.f32 %v4168, 0.2
        %v4343 = vmul.f32 %v4173, 0.2
        %v4344 = vmul.f32 %v4178, 0.2
        %v4345 = vmul.f32 %v4183, 0.2
        %v4346 = vmul.f32 %v4188, 0.2
        %v4347 = vmul.f32 %v4193, 0.2
        %v4348 = vmul.f32 %v4198, 0.2
        %v4349 = vmul.f32 %v4203, 0.2
        %v4350 = vmul.f32 %v4208, 0.2
        %v4351 = vmul.f32 %v4213, 0.2
        %v4352 = vmul.f32 %v4218, 0.2
        %v4353 = vmul.f32 %v4223, 0.2
        %v4354 = vmul.f32 %v4228, 0.2
        %v4355 = vmul.f32 %v4233, 0.2
        %v4356 = vmul.f32 %v4238, 0.2
        %v4357 = vmul.f32 %v4243, 0.2
        %v4358 = vmul.f32 %v4248, 0.2
        %v4359 = vmul.f32 %v4253, 0.2
        %v4360 = vmul.f32 %v4258, 0.2
        %v4361 = vmul.f32 %v4263, 0.2
        %v4362 = vmul.f32 %v4268, 0.2
        %v4363 = vmul.f32 %v4273, 0.2
        %v4364 = vmul.f32 %v4278, 0.2
        %v4365 = vmul.f32 %v4283, 0.2
        %v4366 = vmul.f32 %v4288, 0.2
        %v4367 = vmul.f32 %v4293, 0.2
        %v4368 = vmul.f32 %v4298, 0.2
        %v4369 = vmul.f32 %v4303, 0.2
        %v4370 = vsel %vm4306, %v4148, %v4338
        %v4371 = vsel %vm4307, %v4153, %v4339
        %v4372 = vsel %vm4308, %v4158, %v4340
        %v4373 = vsel %vm4309, %v4163, %v4341
        %v4374 = vsel %vm4310, %v4168, %v4342
        %v4375 = vsel %vm4311, %v4173, %v4343
        %v4376 = vsel %vm4312, %v4178, %v4344
        %v4377 = vsel %vm4313, %v4183, %v4345
        %v4378 = vsel %vm4314, %v4188, %v4346
        %v4379 = vsel %vm4315, %v4193, %v4347
        %v4380 = vsel %vm4316, %v4198, %v4348
        %v4381 = vsel %vm4317, %v4203, %v4349
        %v4382 = vsel %vm4318, %v4208, %v4350
        %v4383 = vsel %vm4319, %v4213, %v4351
        %v4384 = vsel %vm4320, %v4218, %v4352
        %v4385 = vsel %vm4321, %v4223, %v4353
        %v4386 = vsel %vm4322, %v4228, %v4354
        %v4387 = vsel %vm4323, %v4233, %v4355
        %v4388 = vsel %vm4324, %v4238, %v4356
        %v4389 = vsel %vm4325, %v4243, %v4357
        %v4390 = vsel %vm4326, %v4248, %v4358
        %v4391 = vsel %vm4327, %v4253, %v4359
        %v4392 = vsel %vm4328, %v4258, %v4360
        %v4393 = vsel %vm4329, %v4263, %v4361
        %v4394 = vsel %vm4330, %v4268, %v4362
        %v4395 = vsel %vm4331, %v4273, %v4363
        %v4396 = vsel %vm4332, %v4278, %v4364
        %v4397 = vsel %vm4333, %v4283, %v4365
        %v4398 = vsel %vm4334, %v4288, %v4366
        %v4399 = vsel %vm4335, %v4293, %v4367
        %v4400 = vsel %vm4336, %v4298, %v4368
        %v4401 = vsel %vm4337, %v4303, %v4369
        %s4402 = scalar_lea.vmem %s3, 576
        %v4403 = vld [vmem:[%s4402] sm:$0xff]
        %v4404 = vld [vmem:[%s4402 + $0x8] sm:$0xff]
        %v4405 = vld [vmem:[%s4402 + $0x10] sm:$0xff]
        %v4406 = vld [vmem:[%s4402 + $0x18] sm:$0xff]
        %v4407 = vld [vmem:[%s4402 + $0x20] sm:$0xff]
        %v4408 = vld [vmem:[%s4402 + $0x28] sm:$0xff]
        %v4409 = vld [vmem:[%s4402 + $0x30] sm:$0xff]
        %v4410 = vld [vmem:[%s4402 + $0x38] sm:$0xff]
        %v4411 = vld [vmem:[%s4402 + $0x40] sm:$0xff]
        %v4412 = vld [vmem:[%s4402 + $0x48] sm:$0xff]
        %v4413 = vld [vmem:[%s4402 + $0x50] sm:$0xff]
        %v4414 = vld [vmem:[%s4402 + $0x58] sm:$0xff]
        %v4415 = vld [vmem:[%s4402 + $0x60] sm:$0xff]
        %v4416 = vld [vmem:[%s4402 + $0x68] sm:$0xff]
        %v4417 = vld [vmem:[%s4402 + $0x70] sm:$0xff]
        %v4418 = vld [vmem:[%s4402 + $0x78] sm:$0xff]
        %v4419 = vld [vmem:[%s4402 + $0x80] sm:$0xff]
        %v4420 = vld [vmem:[%s4402 + $0x88] sm:$0xff]
        %v4421 = vld [vmem:[%s4402 + $0x90] sm:$0xff]
        %v4422 = vld [vmem:[%s4402 + $0x98] sm:$0xff]
        %v4423 = vld [vmem:[%s4402 + $0xa0] sm:$0xff]
        %v4424 = vld [vmem:[%s4402 + $0xa8] sm:$0xff]
        %v4425 = vld [vmem:[%s4402 + $0xb0] sm:$0xff]
        %v4426 = vld [vmem:[%s4402 + $0xb8] sm:$0xff]
        %v4427 = vld [vmem:[%s4402 + $0xc0] sm:$0xff]
        %v4428 = vld [vmem:[%s4402 + $0xc8] sm:$0xff]
        %v4429 = vld [vmem:[%s4402 + $0xd0] sm:$0xff]
        %v4430 = vld [vmem:[%s4402 + $0xd8] sm:$0xff]
        %v4431 = vld [vmem:[%s4402 + $0xe0] sm:$0xff]
        %v4432 = vld [vmem:[%s4402 + $0xe8] sm:$0xff]
        %v4433 = vld [vmem:[%s4402 + $0xf0] sm:$0xff]
        %v4434 = vld [vmem:[%s4402 + $0xf8] sm:$0xff]
        %v4435 = vld [vmem:[%s4402 + $0x100] sm:$0xff]
        %v4436 = vld [vmem:[%s4402 + $0x108] sm:$0xff]
        %v4437 = vld [vmem:[%s4402 + $0x110] sm:$0xff]
        %v4438 = vld [vmem:[%s4402 + $0x118] sm:$0xff]
        %s4439 = scalar_lea.vmem %s4, 2
        %v4440 = vld [vmem:[%s4439] sm:$0x1]
        %4441 = vst.msk [vmem:[%s814 + $0x8] sm:$0xff] %vm704, %v4370
        %4442 = vst.msk [vmem:[%s814 + $0x10] sm:$0xff] %vm704, %v4371
        %4443 = vst.msk [vmem:[%s814 + $0x28] sm:$0xff] %vm704, %v4372
        %4444 = vst.msk [vmem:[%s814 + $0x30] sm:$0xff] %vm704, %v4373
        %4445 = vst.msk [vmem:[%s814 + $0x48] sm:$0xff] %vm704, %v4374
        %4446 = vst.msk [vmem:[%s814 + $0x50] sm:$0xff] %vm704, %v4375
        %4447 = vst.msk [vmem:[%s814 + $0x68] sm:$0xff] %vm704, %v4376
        %4448 = vst.msk [vmem:[%s814 + $0x70] sm:$0xff] %vm704, %v4377
        %4449 = vst.msk [vmem:[%s814 + $0x88] sm:$0xff] %vm704, %v4378
        %4450 = vst.msk [vmem:[%s814 + $0x90] sm:$0xff] %vm704, %v4379
        %4451 = vst.msk [vmem:[%s814 + $0xa8] sm:$0xff] %vm704, %v4380
        %4452 = vst.msk [vmem:[%s814 + $0xb0] sm:$0xff] %vm704, %v4381
        %4453 = vst.msk [vmem:[%s814 + $0xc8] sm:$0xff] %vm704, %v4382
        %4454 = vst.msk [vmem:[%s814 + $0xd0] sm:$0xff] %vm704, %v4383
        %4455 = vst.msk [vmem:[%s814 + $0xe8] sm:$0xff] %vm704, %v4384
        %4456 = vst.msk [vmem:[%s814 + $0xf0] sm:$0xff] %vm704, %v4385
        %4457 = vst.msk [vmem:[%s814 + $0x108] sm:$0xff] %vm704, %v4386
        %4458 = vst.msk [vmem:[%s814 + $0x110] sm:$0xff] %vm704, %v4387
        %4459 = vst.msk [vmem:[%s814 + $0x128] sm:$0xff] %vm704, %v4388
        %4460 = vst.msk [vmem:[%s814 + $0x130] sm:$0xff] %vm704, %v4389
        %4461 = vst.msk [vmem:[%s814 + $0x148] sm:$0xff] %vm704, %v4390
        %4462 = vst.msk [vmem:[%s814 + $0x150] sm:$0xff] %vm704, %v4391
        %4463 = vst.msk [vmem:[%s814 + $0x168] sm:$0xff] %vm704, %v4392
        %4464 = vst.msk [vmem:[%s814 + $0x170] sm:$0xff] %vm704, %v4393
        %4465 = vst.msk [vmem:[%s814 + $0x188] sm:$0xff] %vm704, %v4394
        %4466 = vst.msk [vmem:[%s814 + $0x190] sm:$0xff] %vm704, %v4395
        %4467 = vst.msk [vmem:[%s814 + $0x1a8] sm:$0xff] %vm704, %v4396
        %4468 = vst.msk [vmem:[%s814 + $0x1b0] sm:$0xff] %vm704, %v4397
        %4469 = vst.msk [vmem:[%s814 + $0x1c8] sm:$0xff] %vm704, %v4398
        %4470 = vst.msk [vmem:[%s814 + $0x1d0] sm:$0xff] %vm704, %v4399
        %4471 = vst.msk [vmem:[%s814 + $0x1e8] sm:$0xff] %vm704, %v4400
        %4472 = vst.msk [vmem:[%s814 + $0x1f0] sm:$0xff] %vm704, %v4401
        %v4473 = vld [vmem:[#allocation2] sm:$0xff]
        %v4474 = vld [vmem:[#allocation2 + $0x8] sm:$0xff]
        %v4475 = vld [vmem:[#allocation2 + $0x10] sm:$0xff]
        %v4476 = vld [vmem:[#allocation2 + $0x18] sm:$0xff]
        %v4477 = vld [vmem:[#allocation2 + $0x20] sm:$0xff]
        %v4478 = vld [vmem:[#allocation2 + $0x28] sm:$0xff]
        %v4479 = vld [vmem:[#allocation2 + $0x30] sm:$0xff]
        %v4480 = vld [vmem:[#allocation2 + $0x38] sm:$0xff]
        %v4481 = vld [vmem:[#allocation2 + $0x40] sm:$0xff]
        %v4482 = vld [vmem:[#allocation2 + $0x48] sm:$0xff]
        %v4483 = vld [vmem:[#allocation2 + $0x50] sm:$0xff]
        %v4484 = vld [vmem:[#allocation2 + $0x58] sm:$0xff]
        %v4485 = vld [vmem:[#allocation2 + $0x60] sm:$0xff]
        %v4486 = vld [vmem:[#allocation2 + $0x68] sm:$0xff]
        %v4487 = vld [vmem:[#allocation2 + $0x70] sm:$0xff]
        %v4488 = vld [vmem:[#allocation2 + $0x78] sm:$0xff]
        %v4489 = vld [vmem:[#allocation2 + $0x80] sm:$0xff]
        %v4490 = vld [vmem:[#allocation2 + $0x88] sm:$0xff]
        %v4491 = vld [vmem:[#allocation2 + $0x90] sm:$0xff]
        %v4492 = vld [vmem:[#allocation2 + $0x98] sm:$0xff]
        %v4493 = vld [vmem:[#allocation2 + $0xa0] sm:$0xff]
        %v4494 = vld [vmem:[#allocation2 + $0xa8] sm:$0xff]
        %v4495 = vld [vmem:[#allocation2 + $0xb0] sm:$0xff]
        %v4496 = vld [vmem:[#allocation2 + $0xb8] sm:$0xff]
        %v4497 = vld [vmem:[#allocation2 + $0xc0] sm:$0xff]
        %v4498 = vld [vmem:[#allocation2 + $0xc8] sm:$0xff]
        %v4499 = vld [vmem:[#allocation2 + $0xd0] sm:$0xff]
        %v4500 = vld [vmem:[#allocation2 + $0xd8] sm:$0xff]
        %v4501 = vld [vmem:[#allocation2 + $0xe0] sm:$0xff]
        %v4502 = vld [vmem:[#allocation2 + $0xe8] sm:$0xff]
        %v4503 = vld [vmem:[#allocation2 + $0xf0] sm:$0xff]
        %v4504 = vld [vmem:[#allocation2 + $0xf8] sm:$0xff]
        %v4505 = vld [vmem:[#allocation2 + $0x100] sm:$0xff]
        %v4506 = vld [vmem:[#allocation2 + $0x108] sm:$0xff]
        %v4507 = vld [vmem:[#allocation2 + $0x110] sm:$0xff]
        %v4508 = vld [vmem:[#allocation2 + $0x118] sm:$0xff]
        %v4509 = vld [vmem:[#allocation2 + $0x120] sm:$0xff]
        %v4510 = vld [vmem:[#allocation2 + $0x128] sm:$0xff]
        %v4511 = vld [vmem:[#allocation2 + $0x130] sm:$0xff]
        %v4512 = vld [vmem:[#allocation2 + $0x138] sm:$0xff]
        %v4513 = vld [vmem:[#allocation2 + $0x140] sm:$0xff]
        %v4514 = vld [vmem:[#allocation2 + $0x148] sm:$0xff]
        %v4515 = vld [vmem:[#allocation2 + $0x150] sm:$0xff]
        %v4516 = vld [vmem:[#allocation2 + $0x158] sm:$0xff]
        %v4517 = vld [vmem:[#allocation2 + $0x160] sm:$0xff]
        %v4518 = vld [vmem:[#allocation2 + $0x168] sm:$0xff]
        %v4519 = vld [vmem:[#allocation2 + $0x170] sm:$0xff]
        %v4520 = vld [vmem:[#allocation2 + $0x178] sm:$0xff]
        %v4521 = vld [vmem:[#allocation2 + $0x180] sm:$0xff]
        %v4522 = vld [vmem:[#allocation2 + $0x188] sm:$0xff]
        %v4523 = vld [vmem:[#allocation2 + $0x190] sm:$0xff]
        %v4524 = vld [vmem:[#allocation2 + $0x198] sm:$0xff]
        %v4525 = vld [vmem:[#allocation2 + $0x1a0] sm:$0xff]
        %v4526 = vld [vmem:[#allocation2 + $0x1a8] sm:$0xff]
        %v4527 = vld [vmem:[#allocation2 + $0x1b0] sm:$0xff]
        %v4528 = vld [vmem:[#allocation2 + $0x1b8] sm:$0xff]
        %v4529 = vld [vmem:[#allocation2 + $0x1c0] sm:$0xff]
        %v4530 = vld [vmem:[#allocation2 + $0x1c8] sm:$0xff]
        %v4531 = vld [vmem:[#allocation2 + $0x1d0] sm:$0xff]
        %v4532 = vld [vmem:[#allocation2 + $0x1d8] sm:$0xff]
        %v4533 = vld [vmem:[#allocation2 + $0x1e0] sm:$0xff]
        %v4534 = vld [vmem:[#allocation2 + $0x1e8] sm:$0xff]
        %v4535 = vld [vmem:[#allocation2 + $0x1f0] sm:$0xff]
        %v4536 = vld [vmem:[#allocation2 + $0x1f8] sm:$0xff]
        %v4537 = vld [vmem:[#allocation2 + $0x200] sm:$0xff]
        %v4538 = vld [vmem:[#allocation2 + $0x208] sm:$0xff]
        %v4539 = vld [vmem:[#allocation2 + $0x210] sm:$0xff]
        %v4540 = vld [vmem:[#allocation2 + $0x218] sm:$0xff]
        %v4541 = vld [vmem:[#allocation2 + $0x220] sm:$0xff]
        %v4542 = vld [vmem:[#allocation2 + $0x228] sm:$0xff]
        %v4543 = vld [vmem:[#allocation2 + $0x230] sm:$0xff]
        %v4544 = vld [vmem:[#allocation2 + $0x238] sm:$0xff]
        %v4593 = vrot.slane %v4473, 7
        %v4594 = vrot.slane %v4474, 7
        %v4595 = vsel %vm967, %v4593, %v4594
        %v4596 = vrot.slane %v4475, 7
        %v4597 = vsel %vm967, %v4594, %v4596
        %v4598 = vrot.slane %v4477, 7
        %v4599 = vrot.slane %v4478, 7
        %v4600 = vsel %vm967, %v4598, %v4599
        %v4601 = vrot.slane %v4479, 7
        %v4602 = vsel %vm967, %v4599, %v4601
        %v4603 = vrot.slane %v4481, 7
        %v4604 = vrot.slane %v4482, 7
        %v4605 = vsel %vm967, %v4603, %v4604
        %v4606 = vrot.slane %v4483, 7
        %v4607 = vsel %vm967, %v4604, %v4606
        %v4608 = vrot.slane %v4485, 7
        %v4609 = vrot.slane %v4486, 7
        %v4610 = vsel %vm967, %v4608, %v4609
        %v4611 = vrot.slane %v4487, 7
        %v4612 = vsel %vm967, %v4609, %v4611
        %v4613 = vrot.slane %v4489, 7
        %v4614 = vrot.slane %v4490, 7
        %v4615 = vsel %vm967, %v4613, %v4614
        %v4616 = vrot.slane %v4491, 7
        %v4617 = vsel %vm967, %v4614, %v4616
        %v4618 = vrot.slane %v4493, 7
        %v4619 = vrot.slane %v4494, 7
        %v4620 = vsel %vm967, %v4618, %v4619
        %v4621 = vrot.slane %v4495, 7
        %v4622 = vsel %vm967, %v4619, %v4621
        %v4623 = vrot.slane %v4497, 7
        %v4624 = vrot.slane %v4498, 7
        %v4625 = vsel %vm967, %v4623, %v4624
        %v4626 = vrot.slane %v4499, 7
        %v4627 = vsel %vm967, %v4624, %v4626
        %v4628 = vrot.slane %v4501, 7
        %v4629 = vrot.slane %v4502, 7
        %v4630 = vsel %vm967, %v4628, %v4629
        %v4631 = vrot.slane %v4503, 7
        %v4632 = vsel %vm967, %v4629, %v4631
        %v4633 = vrot.slane %v4505, 7
        %v4634 = vrot.slane %v4506, 7
        %v4635 = vsel %vm967, %v4633, %v4634
        %v4636 = vrot.slane %v4507, 7
        %v4637 = vsel %vm967, %v4634, %v4636
        %v4638 = vrot.slane %v4509, 7
        %v4639 = vrot.slane %v4510, 7
        %v4640 = vsel %vm967, %v4638, %v4639
        %v4641 = vrot.slane %v4511, 7
        %v4642 = vsel %vm967, %v4639, %v4641
        %v4643 = vrot.slane %v4513, 7
        %v4644 = vrot.slane %v4514, 7
        %v4645 = vsel %vm967, %v4643, %v4644
        %v4646 = vrot.slane %v4515, 7
        %v4647 = vsel %vm967, %v4644, %v4646
        %v4648 = vrot.slane %v4517, 7
        %v4649 = vrot.slane %v4518, 7
        %v4650 = vsel %vm967, %v4648, %v4649
        %v4651 = vrot.slane %v4519, 7
        %v4652 = vsel %vm967, %v4649, %v4651
        %v4653 = vrot.slane %v4521, 7
        %v4654 = vrot.slane %v4522, 7
        %v4655 = vsel %vm967, %v4653, %v4654
        %v4656 = vrot.slane %v4523, 7
        %v4657 = vsel %vm967, %v4654, %v4656
        %v4658 = vrot.slane %v4525, 7
        %v4659 = vrot.slane %v4526, 7
        %v4660 = vsel %vm967, %v4658, %v4659
        %v4661 = vrot.slane %v4527, 7
        %v4662 = vsel %vm967, %v4659, %v4661
        %v4663 = vrot.slane %v4529, 7
        %v4664 = vrot.slane %v4530, 7
        %v4665 = vsel %vm967, %v4663, %v4664
        %v4666 = vrot.slane %v4531, 7
        %v4667 = vsel %vm967, %v4664, %v4666
        %v4668 = vrot.slane %v4533, 7
        %v4669 = vrot.slane %v4534, 7
        %v4670 = vsel %vm967, %v4668, %v4669
        %v4671 = vrot.slane %v4535, 7
        %v4672 = vsel %vm967, %v4669, %v4671
        %v4721 = vrot.slane %v4474, 1
        %v4722 = vrot.slane %v4475, 1
        %v4723 = vsel %vm1096, %v4721, %v4722
        %v4724 = vrot.slane %v4476, 1
        %v4725 = vsel %vm1096, %v4722, %v4724
        %v4726 = vrot.slane %v4478, 1
        %v4727 = vrot.slane %v4479, 1
        %v4728 = vsel %vm1096, %v4726, %v4727
        %v4729 = vrot.slane %v4480, 1
        %v4730 = vsel %vm1096, %v4727, %v4729
        %v4731 = vrot.slane %v4482, 1
        %v4732 = vrot.slane %v4483, 1
        %v4733 = vsel %vm1096, %v4731, %v4732
        %v4734 = vrot.slane %v4484, 1
        %v4735 = vsel %vm1096, %v4732, %v4734
        %v4736 = vrot.slane %v4486, 1
        %v4737 = vrot.slane %v4487, 1
        %v4738 = vsel %vm1096, %v4736, %v4737
        %v4739 = vrot.slane %v4488, 1
        %v4740 = vsel %vm1096, %v4737, %v4739
        %v4741 = vrot.slane %v4490, 1
        %v4742 = vrot.slane %v4491, 1
        %v4743 = vsel %vm1096, %v4741, %v4742
        %v4744 = vrot.slane %v4492, 1
        %v4745 = vsel %vm1096, %v4742, %v4744
        %v4746 = vrot.slane %v4494, 1
        %v4747 = vrot.slane %v4495, 1
        %v4748 = vsel %vm1096, %v4746, %v4747
        %v4749 = vrot.slane %v4496, 1
        %v4750 = vsel %vm1096, %v4747, %v4749
        %v4751 = vrot.slane %v4498, 1
        %v4752 = vrot.slane %v4499, 1
        %v4753 = vsel %vm1096, %v4751, %v4752
        %v4754 = vrot.slane %v4500, 1
        %v4755 = vsel %vm1096, %v4752, %v4754
        %v4756 = vrot.slane %v4502, 1
        %v4757 = vrot.slane %v4503, 1
        %v4758 = vsel %vm1096, %v4756, %v4757
        %v4759 = vrot.slane %v4504, 1
        %v4760 = vsel %vm1096, %v4757, %v4759
        %v4761 = vrot.slane %v4506, 1
        %v4762 = vrot.slane %v4507, 1
        %v4763 = vsel %vm1096, %v4761, %v4762
        %v4764 = vrot.slane %v4508, 1
        %v4765 = vsel %vm1096, %v4762, %v4764
        %v4766 = vrot.slane %v4510, 1
        %v4767 = vrot.slane %v4511, 1
        %v4768 = vsel %vm1096, %v4766, %v4767
        %v4769 = vrot.slane %v4512, 1
        %v4770 = vsel %vm1096, %v4767, %v4769
        %v4771 = vrot.slane %v4514, 1
        %v4772 = vrot.slane %v4515, 1
        %v4773 = vsel %vm1096, %v4771, %v4772
        %v4774 = vrot.slane %v4516, 1
        %v4775 = vsel %vm1096, %v4772, %v4774
        %v4776 = vrot.slane %v4518, 1
        %v4777 = vrot.slane %v4519, 1
        %v4778 = vsel %vm1096, %v4776, %v4777
        %v4779 = vrot.slane %v4520, 1
        %v4780 = vsel %vm1096, %v4777, %v4779
        %v4781 = vrot.slane %v4522, 1
        %v4782 = vrot.slane %v4523, 1
        %v4783 = vsel %vm1096, %v4781, %v4782
        %v4784 = vrot.slane %v4524, 1
        %v4785 = vsel %vm1096, %v4782, %v4784
        %v4786 = vrot.slane %v4526, 1
        %v4787 = vrot.slane %v4527, 1
        %v4788 = vsel %vm1096, %v4786, %v4787
        %v4789 = vrot.slane %v4528, 1
        %v4790 = vsel %vm1096, %v4787, %v4789
        %v4791 = vrot.slane %v4530, 1
        %v4792 = vrot.slane %v4531, 1
        %v4793 = vsel %vm1096, %v4791, %v4792
        %v4794 = vrot.slane %v4532, 1
        %v4795 = vsel %vm1096, %v4792, %v4794
        %v4796 = vrot.slane %v4534, 1
        %v4797 = vrot.slane %v4535, 1
        %v4798 = vsel %vm1096, %v4796, %v4797
        %v4799 = vrot.slane %v4536, 1
        %v4800 = vsel %vm1096, %v4797, %v4799
        %v4804 = vrot.slane %v4537, 7
        %v4805 = vrot.slane %v4538, 7
        %v4806 = vsel %vm967, %v4804, %v4805
        %v4807 = vrot.slane %v4539, 7
        %v4808 = vsel %vm967, %v4805, %v4807
        %v4810 = vrot.slane %v4538, 1
        %v4811 = vrot.slane %v4539, 1
        %v4812 = vsel %vm1096, %v4810, %v4811
        %v4813 = vrot.slane %v4540, 1
        %v4814 = vsel %vm1096, %v4811, %v4813
        %v4818 = vrot.slane %v4541, 7
        %v4819 = vrot.slane %v4542, 7
        %v4820 = vsel %vm967, %v4818, %v4819
        %v4821 = vrot.slane %v4543, 7
        %v4822 = vsel %vm967, %v4819, %v4821
        %v4824 = vrot.slane %v4542, 1
        %v4825 = vrot.slane %v4543, 1
        %v4826 = vsel %vm1096, %v4824, %v4825
        %v4827 = vrot.slane %v4544, 1
        %v4828 = vsel %vm1096, %v4825, %v4827
        %4829 = vrot.lane.b32.xlu0 %v4474, 32
        %v4830 = vpop.permute.xlu0 %4829
        %4831 = vrot.lane.b32.xlu0 %v4475, 32
        %v4832 = vpop.permute.xlu0 %4831
        %4833 = vrot.lane.b32.xlu0 %v4478, 32
        %v4834 = vpop.permute.xlu0 %4833
        %4835 = vrot.lane.b32.xlu0 %v4479, 32
        %v4836 = vpop.permute.xlu0 %4835
        %4837 = vrot.lane.b32.xlu0 %v4482, 32
        %v4838 = vpop.permute.xlu0 %4837
        %4839 = vrot.lane.b32.xlu0 %v4483, 32
        %v4840 = vpop.permute.xlu0 %4839
        %4841 = vrot.lane.b32.xlu0 %v4486, 32
        %v4842 = vpop.permute.xlu0 %4841
        %4843 = vrot.lane.b32.xlu0 %v4487, 32
        %v4844 = vpop.permute.xlu0 %4843
        %4845 = vrot.lane.b32.xlu0 %v4490, 32
        %v4846 = vpop.permute.xlu0 %4845
        %4847 = vrot.lane.b32.xlu0 %v4491, 32
        %v4848 = vpop.permute.xlu0 %4847
        %4849 = vrot.lane.b32.xlu0 %v4494, 32
        %v4850 = vpop.permute.xlu0 %4849
        %4851 = vrot.lane.b32.xlu0 %v4495, 32
        %v4852 = vpop.permute.xlu0 %4851
        %4853 = vrot.lane.b32.xlu0 %v4498, 32
        %v4854 = vpop.permute.xlu0 %4853
        %4855 = vrot.lane.b32.xlu0 %v4499, 32
        %v4856 = vpop.permute.xlu0 %4855
        %4857 = vrot.lane.b32.xlu0 %v4502, 32
        %v4858 = vpop.permute.xlu0 %4857
        %4859 = vrot.lane.b32.xlu0 %v4503, 32
        %v4860 = vpop.permute.xlu0 %4859
        %4861 = vrot.lane.b32.xlu0 %v4506, 32
        %v4862 = vpop.permute.xlu0 %4861
        %4863 = vrot.lane.b32.xlu0 %v4507, 32
        %v4864 = vpop.permute.xlu0 %4863
        %4865 = vrot.lane.b32.xlu0 %v4510, 32
        %v4866 = vpop.permute.xlu0 %4865
        %4867 = vrot.lane.b32.xlu0 %v4511, 32
        %v4868 = vpop.permute.xlu0 %4867
        %4869 = vrot.lane.b32.xlu0 %v4514, 32
        %v4870 = vpop.permute.xlu0 %4869
        %4871 = vrot.lane.b32.xlu0 %v4515, 32
        %v4872 = vpop.permute.xlu0 %4871
        %4873 = vrot.lane.b32.xlu0 %v4518, 32
        %v4874 = vpop.permute.xlu0 %4873
        %4875 = vrot.lane.b32.xlu0 %v4519, 32
        %v4876 = vpop.permute.xlu0 %4875
        %4877 = vrot.lane.b32.xlu0 %v4522, 32
        %v4878 = vpop.permute.xlu0 %4877
        %4879 = vrot.lane.b32.xlu0 %v4523, 32
        %v4880 = vpop.permute.xlu0 %4879
        %4881 = vrot.lane.b32.xlu0 %v4526, 32
        %v4882 = vpop.permute.xlu0 %4881
        %4883 = vrot.lane.b32.xlu0 %v4527, 32
        %v4884 = vpop.permute.xlu0 %4883
        %4885 = vrot.lane.b32.xlu0 %v4530, 32
        %v4886 = vpop.permute.xlu0 %4885
        %4887 = vrot.lane.b32.xlu0 %v4531, 32
        %v4888 = vpop.permute.xlu0 %4887
        %4889 = vrot.lane.b32.xlu0 %v4534, 32
        %v4890 = vpop.permute.xlu0 %4889
        %4891 = vrot.lane.b32.xlu0 %v4535, 32
        %v4892 = vpop.permute.xlu0 %4891
        %4925 = vrot.lane.b32.xlu0 %v4723, 64
        %v4926 = vpop.permute.xlu0 %4925
        %4927 = vrot.lane.b32.xlu0 %v4725, 64
        %v4928 = vpop.permute.xlu0 %4927
        %4929 = vrot.lane.b32.xlu0 %v4728, 64
        %v4930 = vpop.permute.xlu0 %4929
        %4931 = vrot.lane.b32.xlu0 %v4730, 64
        %v4932 = vpop.permute.xlu0 %4931
        %4933 = vrot.lane.b32.xlu0 %v4733, 64
        %v4934 = vpop.permute.xlu0 %4933
        %4935 = vrot.lane.b32.xlu0 %v4735, 64
        %v4936 = vpop.permute.xlu0 %4935
        %4937 = vrot.lane.b32.xlu0 %v4738, 64
        %v4938 = vpop.permute.xlu0 %4937
        %4939 = vrot.lane.b32.xlu0 %v4740, 64
        %v4940 = vpop.permute.xlu0 %4939
        %4941 = vrot.lane.b32.xlu0 %v4743, 64
        %v4942 = vpop.permute.xlu0 %4941
        %4943 = vrot.lane.b32.xlu0 %v4745, 64
        %v4944 = vpop.permute.xlu0 %4943
        %4945 = vrot.lane.b32.xlu0 %v4748, 64
        %v4946 = vpop.permute.xlu0 %4945
        %4947 = vrot.lane.b32.xlu0 %v4750, 64
        %v4948 = vpop.permute.xlu0 %4947
        %4949 = vrot.lane.b32.xlu0 %v4753, 64
        %v4950 = vpop.permute.xlu0 %4949
        %4951 = vrot.lane.b32.xlu0 %v4755, 64
        %v4952 = vpop.permute.xlu0 %4951
        %4953 = vrot.lane.b32.xlu0 %v4758, 64
        %v4954 = vpop.permute.xlu0 %4953
        %4955 = vrot.lane.b32.xlu0 %v4760, 64
        %v4956 = vpop.permute.xlu0 %4955
        %4957 = vrot.lane.b32.xlu0 %v4763, 64
        %v4958 = vpop.permute.xlu0 %4957
        %4959 = vrot.lane.b32.xlu0 %v4765, 64
        %v4960 = vpop.permute.xlu0 %4959
        %4961 = vrot.lane.b32.xlu0 %v4768, 64
        %v4962 = vpop.permute.xlu0 %4961
        %4963 = vrot.lane.b32.xlu0 %v4770, 64
        %v4964 = vpop.permute.xlu0 %4963
        %4965 = vrot.lane.b32.xlu0 %v4773, 64
        %v4966 = vpop.permute.xlu0 %4965
        %4967 = vrot.lane.b32.xlu0 %v4775, 64
        %v4968 = vpop.permute.xlu0 %4967
        %4969 = vrot.lane.b32.xlu0 %v4778, 64
        %v4970 = vpop.permute.xlu0 %4969
        %4971 = vrot.lane.b32.xlu0 %v4780, 64
        %v4972 = vpop.permute.xlu0 %4971
        %4973 = vrot.lane.b32.xlu0 %v4783, 64
        %v4974 = vpop.permute.xlu0 %4973
        %4975 = vrot.lane.b32.xlu0 %v4785, 64
        %v4976 = vpop.permute.xlu0 %4975
        %4977 = vrot.lane.b32.xlu0 %v4788, 64
        %v4978 = vpop.permute.xlu0 %4977
        %4979 = vrot.lane.b32.xlu0 %v4790, 64
        %v4980 = vpop.permute.xlu0 %4979
        %4981 = vrot.lane.b32.xlu0 %v4793, 64
        %v4982 = vpop.permute.xlu0 %4981
        %4983 = vrot.lane.b32.xlu0 %v4795, 64
        %v4984 = vpop.permute.xlu0 %4983
        %4985 = vrot.lane.b32.xlu0 %v4798, 64
        %v4986 = vpop.permute.xlu0 %4985
        %4987 = vrot.lane.b32.xlu0 %v4800, 64
        %v4988 = vpop.permute.xlu0 %4987
        %5021 = vrot.lane.b32.xlu0 %v4600, 96
        %v5022 = vpop.permute.xlu0 %5021
        %5023 = vrot.lane.b32.xlu0 %v4602, 96
        %v5024 = vpop.permute.xlu0 %5023
        %5025 = vrot.lane.b32.xlu0 %v4605, 96
        %v5026 = vpop.permute.xlu0 %5025
        %5027 = vrot.lane.b32.xlu0 %v4607, 96
        %v5028 = vpop.permute.xlu0 %5027
        %5029 = vrot.lane.b32.xlu0 %v4610, 96
        %v5030 = vpop.permute.xlu0 %5029
        %5031 = vrot.lane.b32.xlu0 %v4612, 96
        %v5032 = vpop.permute.xlu0 %5031
        %5033 = vrot.lane.b32.xlu0 %v4615, 96
        %v5034 = vpop.permute.xlu0 %5033
        %5035 = vrot.lane.b32.xlu0 %v4617, 96
        %v5036 = vpop.permute.xlu0 %5035
        %5037 = vrot.lane.b32.xlu0 %v4620, 96
        %v5038 = vpop.permute.xlu0 %5037
        %5039 = vrot.lane.b32.xlu0 %v4622, 96
        %v5040 = vpop.permute.xlu0 %5039
        %5041 = vrot.lane.b32.xlu0 %v4625, 96
        %v5042 = vpop.permute.xlu0 %5041
        %5043 = vrot.lane.b32.xlu0 %v4627, 96
        %v5044 = vpop.permute.xlu0 %5043
        %5045 = vrot.lane.b32.xlu0 %v4630, 96
        %v5046 = vpop.permute.xlu0 %5045
        %5047 = vrot.lane.b32.xlu0 %v4632, 96
        %v5048 = vpop.permute.xlu0 %5047
        %5049 = vrot.lane.b32.xlu0 %v4635, 96
        %v5050 = vpop.permute.xlu0 %5049
        %5051 = vrot.lane.b32.xlu0 %v4637, 96
        %v5052 = vpop.permute.xlu0 %5051
        %5053 = vrot.lane.b32.xlu0 %v4640, 96
        %v5054 = vpop.permute.xlu0 %5053
        %5055 = vrot.lane.b32.xlu0 %v4642, 96
        %v5056 = vpop.permute.xlu0 %5055
        %5057 = vrot.lane.b32.xlu0 %v4645, 96
        %v5058 = vpop.permute.xlu0 %5057
        %5059 = vrot.lane.b32.xlu0 %v4647, 96
        %v5060 = vpop.permute.xlu0 %5059
        %5061 = vrot.lane.b32.xlu0 %v4650, 96
        %v5062 = vpop.permute.xlu0 %5061
        %5063 = vrot.lane.b32.xlu0 %v4652, 96
        %v5064 = vpop.permute.xlu0 %5063
        %5065 = vrot.lane.b32.xlu0 %v4655, 96
        %v5066 = vpop.permute.xlu0 %5065
        %5067 = vrot.lane.b32.xlu0 %v4657, 96
        %v5068 = vpop.permute.xlu0 %5067
        %5069 = vrot.lane.b32.xlu0 %v4660, 96
        %v5070 = vpop.permute.xlu0 %5069
        %5071 = vrot.lane.b32.xlu0 %v4662, 96
        %v5072 = vpop.permute.xlu0 %5071
        %5073 = vrot.lane.b32.xlu0 %v4665, 96
        %v5074 = vpop.permute.xlu0 %5073
        %5075 = vrot.lane.b32.xlu0 %v4667, 96
        %v5076 = vpop.permute.xlu0 %5075
        %5077 = vrot.lane.b32.xlu0 %v4670, 96
        %v5078 = vpop.permute.xlu0 %5077
        %5079 = vrot.lane.b32.xlu0 %v4672, 96
        %v5080 = vpop.permute.xlu0 %5079
        %5081 = vrot.lane.b32.xlu0 %v4806, 96
        %v5082 = vpop.permute.xlu0 %5081
        %5083 = vrot.lane.b32.xlu0 %v4808, 96
        %v5084 = vpop.permute.xlu0 %5083
        %5117 = vrot.lane.b32.xlu0 %v4728, 32
        %v5118 = vpop.permute.xlu0 %5117
        %5119 = vrot.lane.b32.xlu0 %v4730, 32
        %v5120 = vpop.permute.xlu0 %5119
        %5121 = vrot.lane.b32.xlu0 %v4733, 32
        %v5122 = vpop.permute.xlu0 %5121
        %5123 = vrot.lane.b32.xlu0 %v4735, 32
        %v5124 = vpop.permute.xlu0 %5123
        %5125 = vrot.lane.b32.xlu0 %v4738, 32
        %v5126 = vpop.permute.xlu0 %5125
        %5127 = vrot.lane.b32.xlu0 %v4740, 32
        %v5128 = vpop.permute.xlu0 %5127
        %5129 = vrot.lane.b32.xlu0 %v4743, 32
        %v5130 = vpop.permute.xlu0 %5129
        %5131 = vrot.lane.b32.xlu0 %v4745, 32
        %v5132 = vpop.permute.xlu0 %5131
        %5133 = vrot.lane.b32.xlu0 %v4748, 32
        %v5134 = vpop.permute.xlu0 %5133
        %5135 = vrot.lane.b32.xlu0 %v4750, 32
        %v5136 = vpop.permute.xlu0 %5135
        %5137 = vrot.lane.b32.xlu0 %v4753, 32
        %v5138 = vpop.permute.xlu0 %5137
        %5139 = vrot.lane.b32.xlu0 %v4755, 32
        %v5140 = vpop.permute.xlu0 %5139
        %5141 = vrot.lane.b32.xlu0 %v4758, 32
        %v5142 = vpop.permute.xlu0 %5141
        %5143 = vrot.lane.b32.xlu0 %v4760, 32
        %v5144 = vpop.permute.xlu0 %5143
        %5145 = vrot.lane.b32.xlu0 %v4763, 32
        %v5146 = vpop.permute.xlu0 %5145
        %5147 = vrot.lane.b32.xlu0 %v4765, 32
        %v5148 = vpop.permute.xlu0 %5147
        %5149 = vrot.lane.b32.xlu0 %v4768, 32
        %v5150 = vpop.permute.xlu0 %5149
        %5151 = vrot.lane.b32.xlu0 %v4770, 32
        %v5152 = vpop.permute.xlu0 %5151
        %5153 = vrot.lane.b32.xlu0 %v4773, 32
        %v5154 = vpop.permute.xlu0 %5153
        %5155 = vrot.lane.b32.xlu0 %v4775, 32
        %v5156 = vpop.permute.xlu0 %5155
        %5157 = vrot.lane.b32.xlu0 %v4778, 32
        %v5158 = vpop.permute.xlu0 %5157
        %5159 = vrot.lane.b32.xlu0 %v4780, 32
        %v5160 = vpop.permute.xlu0 %5159
        %5161 = vrot.lane.b32.xlu0 %v4783, 32
        %v5162 = vpop.permute.xlu0 %5161
        %5163 = vrot.lane.b32.xlu0 %v4785, 32
        %v5164 = vpop.permute.xlu0 %5163
        %5165 = vrot.lane.b32.xlu0 %v4788, 32
        %v5166 = vpop.permute.xlu0 %5165
        %5167 = vrot.lane.b32.xlu0 %v4790, 32
        %v5168 = vpop.permute.xlu0 %5167
        %5169 = vrot.lane.b32.xlu0 %v4793, 32
        %v5170 = vpop.permute.xlu0 %5169
        %5171 = vrot.lane.b32.xlu0 %v4795, 32
        %v5172 = vpop.permute.xlu0 %5171
        %5173 = vrot.lane.b32.xlu0 %v4798, 32
        %v5174 = vpop.permute.xlu0 %5173
        %5175 = vrot.lane.b32.xlu0 %v4800, 32
        %v5176 = vpop.permute.xlu0 %5175
        %5177 = vrot.lane.b32.xlu0 %v4812, 32
        %v5178 = vpop.permute.xlu0 %5177
        %5179 = vrot.lane.b32.xlu0 %v4814, 32
        %v5180 = vpop.permute.xlu0 %5179
        %5213 = vrot.lane.b32.xlu0 %v4605, 64
        %v5214 = vpop.permute.xlu0 %5213
        %5215 = vrot.lane.b32.xlu0 %v4607, 64
        %v5216 = vpop.permute.xlu0 %5215
        %5217 = vrot.lane.b32.xlu0 %v4610, 64
        %v5218 = vpop.permute.xlu0 %5217
        %5219 = vrot.lane.b32.xlu0 %v4612, 64
        %v5220 = vpop.permute.xlu0 %5219
        %5221 = vrot.lane.b32.xlu0 %v4615, 64
        %v5222 = vpop.permute.xlu0 %5221
        %5223 = vrot.lane.b32.xlu0 %v4617, 64
        %v5224 = vpop.permute.xlu0 %5223
        %5225 = vrot.lane.b32.xlu0 %v4620, 64
        %v5226 = vpop.permute.xlu0 %5225
        %5227 = vrot.lane.b32.xlu0 %v4622, 64
        %v5228 = vpop.permute.xlu0 %5227
        %5229 = vrot.lane.b32.xlu0 %v4625, 64
        %v5230 = vpop.permute.xlu0 %5229
        %5231 = vrot.lane.b32.xlu0 %v4627, 64
        %v5232 = vpop.permute.xlu0 %5231
        %5233 = vrot.lane.b32.xlu0 %v4630, 64
        %v5234 = vpop.permute.xlu0 %5233
        %5235 = vrot.lane.b32.xlu0 %v4632, 64
        %v5236 = vpop.permute.xlu0 %5235
        %5237 = vrot.lane.b32.xlu0 %v4635, 64
        %v5238 = vpop.permute.xlu0 %5237
        %5239 = vrot.lane.b32.xlu0 %v4637, 64
        %v5240 = vpop.permute.xlu0 %5239
        %5241 = vrot.lane.b32.xlu0 %v4640, 64
        %v5242 = vpop.permute.xlu0 %5241
        %5243 = vrot.lane.b32.xlu0 %v4642, 64
        %v5244 = vpop.permute.xlu0 %5243
        %5245 = vrot.lane.b32.xlu0 %v4645, 64
        %v5246 = vpop.permute.xlu0 %5245
        %5247 = vrot.lane.b32.xlu0 %v4647, 64
        %v5248 = vpop.permute.xlu0 %5247
        %5249 = vrot.lane.b32.xlu0 %v4650, 64
        %v5250 = vpop.permute.xlu0 %5249
        %5251 = vrot.lane.b32.xlu0 %v4652, 64
        %v5252 = vpop.permute.xlu0 %5251
        %5253 = vrot.lane.b32.xlu0 %v4655, 64
        %v5254 = vpop.permute.xlu0 %5253
        %5255 = vrot.lane.b32.xlu0 %v4657, 64
        %v5256 = vpop.permute.xlu0 %5255
        %5257 = vrot.lane.b32.xlu0 %v4660, 64
        %v5258 = vpop.permute.xlu0 %5257
        %5259 = vrot.lane.b32.xlu0 %v4662, 64
        %v5260 = vpop.permute.xlu0 %5259
        %5261 = vrot.lane.b32.xlu0 %v4665, 64
        %v5262 = vpop.permute.xlu0 %5261
        %5263 = vrot.lane.b32.xlu0 %v4667, 64
        %v5264 = vpop.permute.xlu0 %5263
        %5265 = vrot.lane.b32.xlu0 %v4670, 64
        %v5266 = vpop.permute.xlu0 %5265
        %5267 = vrot.lane.b32.xlu0 %v4672, 64
        %v5268 = vpop.permute.xlu0 %5267
        %5269 = vrot.lane.b32.xlu0 %v4806, 64
        %v5270 = vpop.permute.xlu0 %5269
        %5271 = vrot.lane.b32.xlu0 %v4808, 64
        %v5272 = vpop.permute.xlu0 %5271
        %5273 = vrot.lane.b32.xlu0 %v4820, 64
        %v5274 = vpop.permute.xlu0 %5273
        %5275 = vrot.lane.b32.xlu0 %v4822, 64
        %v5276 = vpop.permute.xlu0 %5275
        %5309 = vrot.lane.b32.xlu0 %v4482, 96
        %v5310 = vpop.permute.xlu0 %5309
        %5311 = vrot.lane.b32.xlu0 %v4483, 96
        %v5312 = vpop.permute.xlu0 %5311
        %5313 = vrot.lane.b32.xlu0 %v4486, 96
        %v5314 = vpop.permute.xlu0 %5313
        %5315 = vrot.lane.b32.xlu0 %v4487, 96
        %v5316 = vpop.permute.xlu0 %5315
        %5317 = vrot.lane.b32.xlu0 %v4490, 96
        %v5318 = vpop.permute.xlu0 %5317
        %5319 = vrot.lane.b32.xlu0 %v4491, 96
        %v5320 = vpop.permute.xlu0 %5319
        %5321 = vrot.lane.b32.xlu0 %v4494, 96
        %v5322 = vpop.permute.xlu0 %5321
        %5323 = vrot.lane.b32.xlu0 %v4495, 96
        %v5324 = vpop.permute.xlu0 %5323
        %5325 = vrot.lane.b32.xlu0 %v4498, 96
        %v5326 = vpop.permute.xlu0 %5325
        %5327 = vrot.lane.b32.xlu0 %v4499, 96
        %v5328 = vpop.permute.xlu0 %5327
        %5329 = vrot.lane.b32.xlu0 %v4502, 96
        %v5330 = vpop.permute.xlu0 %5329
        %5331 = vrot.lane.b32.xlu0 %v4503, 96
        %v5332 = vpop.permute.xlu0 %5331
        %5333 = vrot.lane.b32.xlu0 %v4506, 96
        %v5334 = vpop.permute.xlu0 %5333
        %5335 = vrot.lane.b32.xlu0 %v4507, 96
        %v5336 = vpop.permute.xlu0 %5335
        %5337 = vrot.lane.b32.xlu0 %v4510, 96
        %v5338 = vpop.permute.xlu0 %5337
        %5339 = vrot.lane.b32.xlu0 %v4511, 96
        %v5340 = vpop.permute.xlu0 %5339
        %5341 = vrot.lane.b32.xlu0 %v4514, 96
        %v5342 = vpop.permute.xlu0 %5341
        %5343 = vrot.lane.b32.xlu0 %v4515, 96
        %v5344 = vpop.permute.xlu0 %5343
        %5345 = vrot.lane.b32.xlu0 %v4518, 96
        %v5346 = vpop.permute.xlu0 %5345
        %5347 = vrot.lane.b32.xlu0 %v4519, 96
        %v5348 = vpop.permute.xlu0 %5347
        %5349 = vrot.lane.b32.xlu0 %v4522, 96
        %v5350 = vpop.permute.xlu0 %5349
        %5351 = vrot.lane.b32.xlu0 %v4523, 96
        %v5352 = vpop.permute.xlu0 %5351
        %5353 = vrot.lane.b32.xlu0 %v4526, 96
        %v5354 = vpop.permute.xlu0 %5353
        %5355 = vrot.lane.b32.xlu0 %v4527, 96
        %v5356 = vpop.permute.xlu0 %5355
        %5357 = vrot.lane.b32.xlu0 %v4530, 96
        %v5358 = vpop.permute.xlu0 %5357
        %5359 = vrot.lane.b32.xlu0 %v4531, 96
        %v5360 = vpop.permute.xlu0 %5359
        %5361 = vrot.lane.b32.xlu0 %v4534, 96
        %v5362 = vpop.permute.xlu0 %5361
        %5363 = vrot.lane.b32.xlu0 %v4535, 96
        %v5364 = vpop.permute.xlu0 %5363
        %5365 = vrot.lane.b32.xlu0 %v4538, 96
        %v5366 = vpop.permute.xlu0 %5365
        %5367 = vrot.lane.b32.xlu0 %v4539, 96
        %v5368 = vpop.permute.xlu0 %5367
        %5369 = vrot.lane.b32.xlu0 %v4542, 96
        %v5370 = vpop.permute.xlu0 %5369
        %5371 = vrot.lane.b32.xlu0 %v4543, 96
        %v5372 = vpop.permute.xlu0 %5371
        %v5405 = vsel %vm704, %v4595, %v4830
        %v5406 = vsel %vm704, %v4597, %v4832
        %v5407 = vsel %vm704, %v4600, %v4834
        %v5408 = vsel %vm704, %v4602, %v4836
        %v5409 = vsel %vm704, %v4605, %v4838
        %v5410 = vsel %vm704, %v4607, %v4840
        %v5411 = vsel %vm704, %v4610, %v4842
        %v5412 = vsel %vm704, %v4612, %v4844
        %v5413 = vsel %vm704, %v4615, %v4846
        %v5414 = vsel %vm704, %v4617, %v4848
        %v5415 = vsel %vm704, %v4620, %v4850
        %v5416 = vsel %vm704, %v4622, %v4852
        %v5417 = vsel %vm704, %v4625, %v4854
        %v5418 = vsel %vm704, %v4627, %v4856
        %v5419 = vsel %vm704, %v4630, %v4858
        %v5420 = vsel %vm704, %v4632, %v4860
        %v5421 = vsel %vm704, %v4635, %v4862
        %v5422 = vsel %vm704, %v4637, %v4864
        %v5423 = vsel %vm704, %v4640, %v4866
        %v5424 = vsel %vm704, %v4642, %v4868
        %v5425 = vsel %vm704, %v4645, %v4870
        %v5426 = vsel %vm704, %v4647, %v4872
        %v5427 = vsel %vm704, %v4650, %v4874
        %v5428 = vsel %vm704, %v4652, %v4876
        %v5429 = vsel %vm704, %v4655, %v4878
        %v5430 = vsel %vm704, %v4657, %v4880
        %v5431 = vsel %vm704, %v4660, %v4882
        %v5432 = vsel %vm704, %v4662, %v4884
        %v5433 = vsel %vm704, %v4665, %v4886
        %v5434 = vsel %vm704, %v4667, %v4888
        %v5435 = vsel %vm704, %v4670, %v4890
        %v5436 = vsel %vm704, %v4672, %v4892
        %v5437 = vsel %vm1813, %v5405, %v4926
        %v5438 = vsel %vm1813, %v5406, %v4928
        %v5439 = vsel %vm1813, %v5407, %v4930
        %v5440 = vsel %vm1813, %v5408, %v4932
        %v5441 = vsel %vm1813, %v5409, %v4934
        %v5442 = vsel %vm1813, %v5410, %v4936
        %v5443 = vsel %vm1813, %v5411, %v4938
        %v5444 = vsel %vm1813, %v5412, %v4940
        %v5445 = vsel %vm1813, %v5413, %v4942
        %v5446 = vsel %vm1813, %v5414, %v4944
        %v5447 = vsel %vm1813, %v5415, %v4946
        %v5448 = vsel %vm1813, %v5416, %v4948
        %v5449 = vsel %vm1813, %v5417, %v4950
        %v5450 = vsel %vm1813, %v5418, %v4952
        %v5451 = vsel %vm1813, %v5419, %v4954
        %v5452 = vsel %vm1813, %v5420, %v4956
        %v5453 = vsel %vm1813, %v5421, %v4958
        %v5454 = vsel %vm1813, %v5422, %v4960
        %v5455 = vsel %vm1813, %v5423, %v4962
        %v5456 = vsel %vm1813, %v5424, %v4964
        %v5457 = vsel %vm1813, %v5425, %v4966
        %v5458 = vsel %vm1813, %v5426, %v4968
        %v5459 = vsel %vm1813, %v5427, %v4970
        %v5460 = vsel %vm1813, %v5428, %v4972
        %v5461 = vsel %vm1813, %v5429, %v4974
        %v5462 = vsel %vm1813, %v5430, %v4976
        %v5463 = vsel %vm1813, %v5431, %v4978
        %v5464 = vsel %vm1813, %v5432, %v4980
        %v5465 = vsel %vm1813, %v5433, %v4982
        %v5466 = vsel %vm1813, %v5434, %v4984
        %v5467 = vsel %vm1813, %v5435, %v4986
        %v5468 = vsel %vm1813, %v5436, %v4988
        %v5469 = vsel %vm1846, %v5437, %v5022
        %v5470 = vsel %vm1846, %v5438, %v5024
        %v5471 = vsel %vm1846, %v5439, %v5026
        %v5472 = vsel %vm1846, %v5440, %v5028
        %v5473 = vsel %vm1846, %v5441, %v5030
        %v5474 = vsel %vm1846, %v5442, %v5032
        %v5475 = vsel %vm1846, %v5443, %v5034
        %v5476 = vsel %vm1846, %v5444, %v5036
        %v5477 = vsel %vm1846, %v5445, %v5038
        %v5478 = vsel %vm1846, %v5446, %v5040
        %v5479 = vsel %vm1846, %v5447, %v5042
        %v5480 = vsel %vm1846, %v5448, %v5044
        %v5481 = vsel %vm1846, %v5449, %v5046
        %v5482 = vsel %vm1846, %v5450, %v5048
        %v5483 = vsel %vm1846, %v5451, %v5050
        %v5484 = vsel %vm1846, %v5452, %v5052
        %v5485 = vsel %vm1846, %v5453, %v5054
        %v5486 = vsel %vm1846, %v5454, %v5056
        %v5487 = vsel %vm1846, %v5455, %v5058
        %v5488 = vsel %vm1846, %v5456, %v5060
        %v5489 = vsel %vm1846, %v5457, %v5062
        %v5490 = vsel %vm1846, %v5458, %v5064
        %v5491 = vsel %vm1846, %v5459, %v5066
        %v5492 = vsel %vm1846, %v5460, %v5068
        %v5493 = vsel %vm1846, %v5461, %v5070
        %v5494 = vsel %vm1846, %v5462, %v5072
        %v5495 = vsel %vm1846, %v5463, %v5074
        %v5496 = vsel %vm1846, %v5464, %v5076
        %v5497 = vsel %vm1846, %v5465, %v5078
        %v5498 = vsel %vm1846, %v5466, %v5080
        %v5499 = vsel %vm1846, %v5467, %v5082
        %v5500 = vsel %vm1846, %v5468, %v5084
        %v5501 = vsel %vm704, %v4478, %v5118
        %v5502 = vsel %vm704, %v4479, %v5120
        %v5503 = vsel %vm704, %v4482, %v5122
        %v5504 = vsel %vm704, %v4483, %v5124
        %v5505 = vsel %vm704, %v4486, %v5126
        %v5506 = vsel %vm704, %v4487, %v5128
        %v5507 = vsel %vm704, %v4490, %v5130
        %v5508 = vsel %vm704, %v4491, %v5132
        %v5509 = vsel %vm704, %v4494, %v5134
        %v5510 = vsel %vm704, %v4495, %v5136
        %v5511 = vsel %vm704, %v4498, %v5138
        %v5512 = vsel %vm704, %v4499, %v5140
        %v5513 = vsel %vm704, %v4502, %v5142
        %v5514 = vsel %vm704, %v4503, %v5144
        %v5515 = vsel %vm704, %v4506, %v5146
        %v5516 = vsel %vm704, %v4507, %v5148
        %v5517 = vsel %vm704, %v4510, %v5150
        %v5518 = vsel %vm704, %v4511, %v5152
        %v5519 = vsel %vm704, %v4514, %v5154
        %v5520 = vsel %vm704, %v4515, %v5156
        %v5521 = vsel %vm704, %v4518, %v5158
        %v5522 = vsel %vm704, %v4519, %v5160
        %v5523 = vsel %vm704, %v4522, %v5162
        %v5524 = vsel %vm704, %v4523, %v5164
        %v5525 = vsel %vm704, %v4526, %v5166
        %v5526 = vsel %vm704, %v4527, %v5168
        %v5527 = vsel %vm704, %v4530, %v5170
        %v5528 = vsel %vm704, %v4531, %v5172
        %v5529 = vsel %vm704, %v4534, %v5174
        %v5530 = vsel %vm704, %v4535, %v5176
        %v5531 = vsel %vm704, %v4538, %v5178
        %v5532 = vsel %vm704, %v4539, %v5180
        %v5533 = vsel %vm1813, %v5501, %v5214
        %v5534 = vsel %vm1813, %v5502, %v5216
        %v5535 = vsel %vm1813, %v5503, %v5218
        %v5536 = vsel %vm1813, %v5504, %v5220
        %v5537 = vsel %vm1813, %v5505, %v5222
        %v5538 = vsel %vm1813, %v5506, %v5224
        %v5539 = vsel %vm1813, %v5507, %v5226
        %v5540 = vsel %vm1813, %v5508, %v5228
        %v5541 = vsel %vm1813, %v5509, %v5230
        %v5542 = vsel %vm1813, %v5510, %v5232
        %v5543 = vsel %vm1813, %v5511, %v5234
        %v5544 = vsel %vm1813, %v5512, %v5236
        %v5545 = vsel %vm1813, %v5513, %v5238
        %v5546 = vsel %vm1813, %v5514, %v5240
        %v5547 = vsel %vm1813, %v5515, %v5242
        %v5548 = vsel %vm1813, %v5516, %v5244
        %v5549 = vsel %vm1813, %v5517, %v5246
        %v5550 = vsel %vm1813, %v5518, %v5248
        %v5551 = vsel %vm1813, %v5519, %v5250
        %v5552 = vsel %vm1813, %v5520, %v5252
        %v5553 = vsel %vm1813, %v5521, %v5254
        %v5554 = vsel %vm1813, %v5522, %v5256
        %v5555 = vsel %vm1813, %v5523, %v5258
        %v5556 = vsel %vm1813, %v5524, %v5260
        %v5557 = vsel %vm1813, %v5525, %v5262
        %v5558 = vsel %vm1813, %v5526, %v5264
        %v5559 = vsel %vm1813, %v5527, %v5266
        %v5560 = vsel %vm1813, %v5528, %v5268
        %v5561 = vsel %vm1813, %v5529, %v5270
        %v5562 = vsel %vm1813, %v5530, %v5272
        %v5563 = vsel %vm1813, %v5531, %v5274
        %v5564 = vsel %vm1813, %v5532, %v5276
        %v5565 = vsel %vm1846, %v5533, %v5310
        %v5566 = vsel %vm1846, %v5534, %v5312
        %v5567 = vsel %vm1846, %v5535, %v5314
        %v5568 = vsel %vm1846, %v5536, %v5316
        %v5569 = vsel %vm1846, %v5537, %v5318
        %v5570 = vsel %vm1846, %v5538, %v5320
        %v5571 = vsel %vm1846, %v5539, %v5322
        %v5572 = vsel %vm1846, %v5540, %v5324
        %v5573 = vsel %vm1846, %v5541, %v5326
        %v5574 = vsel %vm1846, %v5542, %v5328
        %v5575 = vsel %vm1846, %v5543, %v5330
        %v5576 = vsel %vm1846, %v5544, %v5332
        %v5577 = vsel %vm1846, %v5545, %v5334
        %v5578 = vsel %vm1846, %v5546, %v5336
        %v5579 = vsel %vm1846, %v5547, %v5338
        %v5580 = vsel %vm1846, %v5548, %v5340
        %v5581 = vsel %vm1846, %v5549, %v5342
        %v5582 = vsel %vm1846, %v5550, %v5344
        %v5583 = vsel %vm1846, %v5551, %v5346
        %v5584 = vsel %vm1846, %v5552, %v5348
        %v5585 = vsel %vm1846, %v5553, %v5350
        %v5586 = vsel %vm1846, %v5554, %v5352
        %v5587 = vsel %vm1846, %v5555, %v5354
        %v5588 = vsel %vm1846, %v5556, %v5356
        %v5589 = vsel %vm1846, %v5557, %v5358
        %v5590 = vsel %vm1846, %v5558, %v5360
        %v5591 = vsel %vm1846, %v5559, %v5362
        %v5592 = vsel %vm1846, %v5560, %v5364
        %v5593 = vsel %vm1846, %v5561, %v5366
        %v5594 = vsel %vm1846, %v5562, %v5368
        %v5595 = vsel %vm1846, %v5563, %v5370
        %v5596 = vsel %vm1846, %v5564, %v5372
        %v5598 = vlaneseq
        %v5599 = vshrl.u32 %v5598, 7
        %v5600 = vsub.s32 0, %v5599
        %v5601 = vrot.slane %v4440, %v5600
        %v5603 = vsel %vm704, %v4733, 0
        %v5605 = vsel %vm704, %v4735, 0
        %v5607 = vsel %vm704, %v4738, 0
        %v5609 = vsel %vm704, %v4740, 0
        %v5611 = vsel %vm704, %v4743, 0
        %v5613 = vsel %vm704, %v4745, 0
        %v5615 = vsel %vm704, %v4748, 0
        %v5617 = vsel %vm704, %v4750, 0
        %v5619 = vsel %vm704, %v4753, 0
        %v5621 = vsel %vm704, %v4755, 0
        %v5623 = vsel %vm704, %v4758, 0
        %v5625 = vsel %vm704, %v4760, 0
        %v5627 = vsel %vm704, %v4763, 0
        %v5629 = vsel %vm704, %v4765, 0
        %v5631 = vsel %vm704, %v4768, 0
        %v5633 = vsel %vm704, %v4770, 0
        %v5635 = vsel %vm704, %v4773, 0
        %v5637 = vsel %vm704, %v4775, 0
        %v5639 = vsel %vm704, %v4778, 0
        %v5641 = vsel %vm704, %v4780, 0
        %v5643 = vsel %vm704, %v4783, 0
        %v5645 = vsel %vm704, %v4785, 0
        %v5647 = vsel %vm704, %v4788, 0
        %v5649 = vsel %vm704, %v4790, 0
        %v5651 = vsel %vm704, %v4793, 0
        %v5653 = vsel %vm704, %v4795, 0
        %v5655 = vsel %vm704, %v4798, 0
        %v5657 = vsel %vm704, %v4800, 0
        %v5659 = vsel %vm704, %v4812, 0
        %v5661 = vsel %vm704, %v4814, 0
        %v5663 = vsel %vm704, %v4826, 0
        %v5665 = vsel %vm704, %v4828, 0
        %5667 = vmatprep.subr.mxu0 0.0
        %5668 = vmatpush1.msra.mxu0 %v4418
        %5669 = vmatprep.subr.mxu0 0.0
        %5670 = vmatpush1.msra.mxu0 %v4417
        %5671 = vmatprep.subr.mxu0 0.0
        %5672 = vmatpush1.msra.mxu0 %v4416
        %5673 = vmatprep.subr.mxu0 0.0
        %5674 = vmatpush1.msra.mxu0 %v4415
        %5675 = vmatprep.subr.mxu0 0.0
        %5676 = vmatpush1.msra.mxu0 %v4414
        %5677 = vmatprep.subr.mxu0 0.0
        %5678 = vmatpush1.msra.mxu0 %v4413
        %5679 = vmatprep.subr.mxu0 0.0
        %5680 = vmatpush1.msra.mxu0 %v4412
        %5681 = vmatprep.subr.mxu0 0.0
        %5682 = vmatpush1.msra.mxu0 %v4411
        %5683 = vmatprep.subr.mxu0 0.0
        %5684 = vmatpush1.msra.mxu0 %v4410
        %5685 = vmatprep.subr.mxu0 0.0
        %5686 = vmatpush1.msra.mxu0 %v4409
        %5687 = vmatprep.subr.mxu0 0.0
        %5688 = vmatpush1.msra.mxu0 %v4408
        %5689 = vmatprep.subr.mxu0 0.0
        %5690 = vmatpush1.msra.mxu0 %v4407
        %5691 = vmatprep.subr.mxu0 0.0
        %5692 = vmatpush1.msra.mxu0 %v4406
        %5693 = vmatprep.subr.mxu0 0.0
        %5694 = vmatpush1.msra.mxu0 %v4405
        %5695 = vmatprep.subr.mxu0 0.0
        %5696 = vmatpush1.msra.mxu0 %v4404
        %5697 = vmatprep.subr.mxu0 0.0
        %5698 = vmatpush1.msra.mxu0 %v4403
        %5699 = vmatprep.subr.mxu0 0.0
        %5700 = vmatpush2.msra.mxu0 %v4434
        %5701 = vmatprep.subr.mxu0 0.0
        %5702 = vmatpush2.msra.mxu0 %v4433
        %5703 = vmatprep.subr.mxu0 0.0
        %5704 = vmatpush2.msra.mxu0 %v4432
        %5705 = vmatprep.subr.mxu0 0.0
        %5706 = vmatpush2.msra.mxu0 %v4431
        %5707 = vmatprep.subr.mxu0 0.0
        %5708 = vmatpush2.msra.mxu0 %v4430
        %5709 = vmatprep.subr.mxu0 0.0
        %5710 = vmatpush2.msra.mxu0 %v4429
        %5711 = vmatprep.subr.mxu0 0.0
        %5712 = vmatpush2.msra.mxu0 %v4428
        %5713 = vmatprep.subr.mxu0 0.0
        %5714 = vmatpush2.msra.mxu0 %v4427
        %5715 = vmatprep.subr.mxu0 0.0
        %5716 = vmatpush2.msra.mxu0 %v4426
        %5717 = vmatprep.subr.mxu0 0.0
        %5718 = vmatpush2.msra.mxu0 %v4425
        %5719 = vmatprep.subr.mxu0 0.0
        %5720 = vmatpush2.msra.mxu0 %v4424
        %5721 = vmatprep.subr.mxu0 0.0
        %5722 = vmatpush2.msra.mxu0 %v4423
        %5723 = vmatprep.subr.mxu0 0.0
        %5724 = vmatpush2.msra.mxu0 %v4422
        %5725 = vmatprep.subr.mxu0 0.0
        %5726 = vmatpush2.msra.mxu0 %v4421
        %5727 = vmatprep.subr.mxu0 0.0
        %5728 = vmatpush2.msra.mxu0 %v4420
        %5729 = vmatprep.subr.mxu0 0.0
        %5730 = vmatpush2.msra.mxu0 %v4419
        %5731 = vmatprep.mubr.f32.mxu0 %v5565
        %5732 = vmatmul.mubr.f32.gmra.mxu0 %v5469
        %v5733 = vpop.f32.mrf.mxu0
        %v5734 = vadd.f32 %v5601, %v5733
        %v5735 = vpop.f32.mrf.mxu0
        %5736 = vmatprep.mubr.f32.mxu0 %v5566
        %5737 = vmatmul.mubr.f32.gmra.mxu0 %v5470
        %v5738 = vpop.f32.mrf.mxu0
        %v5739 = vadd.f32 %v5601, %v5738
        %v5740 = vpop.f32.mrf.mxu0
        %5741 = vmatprep.mubr.f32.mxu0 %v5567
        %5742 = vmatmul.mubr.f32.gmra.mxu0 %v5471
        %v5743 = vpop.f32.mrf.mxu0
        %v5744 = vadd.f32 %v5601, %v5743
        %v5745 = vpop.f32.mrf.mxu0
        %5746 = vmatprep.mubr.f32.mxu0 %v5568
        %5747 = vmatmul.mubr.f32.gmra.mxu0 %v5472
        %v5748 = vpop.f32.mrf.mxu0
        %v5749 = vadd.f32 %v5601, %v5748
        %v5750 = vpop.f32.mrf.mxu0
        %5751 = vmatprep.mubr.f32.mxu0 %v5569
        %5752 = vmatmul.mubr.f32.gmra.mxu0 %v5473
        %v5753 = vpop.f32.mrf.mxu0
        %v5754 = vadd.f32 %v5601, %v5753
        %v5755 = vpop.f32.mrf.mxu0
        %5756 = vmatprep.mubr.f32.mxu0 %v5570
        %5757 = vmatmul.mubr.f32.gmra.mxu0 %v5474
        %v5758 = vpop.f32.mrf.mxu0
        %v5759 = vadd.f32 %v5601, %v5758
        %v5760 = vpop.f32.mrf.mxu0
        %5761 = vmatprep.mubr.f32.mxu0 %v5571
        %5762 = vmatmul.mubr.f32.gmra.mxu0 %v5475
        %v5763 = vpop.f32.mrf.mxu0
        %v5764 = vadd.f32 %v5601, %v5763
        %v5765 = vpop.f32.mrf.mxu0
        %5766 = vmatprep.mubr.f32.mxu0 %v5572
        %5767 = vmatmul.mubr.f32.gmra.mxu0 %v5476
        %v5768 = vpop.f32.mrf.mxu0
        %v5769 = vadd.f32 %v5601, %v5768
        %v5770 = vpop.f32.mrf.mxu0
        %5771 = vmatprep.mubr.f32.mxu0 %v5573
        %5772 = vmatmul.mubr.f32.gmra.mxu0 %v5477
        %v5773 = vpop.f32.mrf.mxu0
        %v5774 = vadd.f32 %v5601, %v5773
        %v5775 = vpop.f32.mrf.mxu0
        %5776 = vmatprep.mubr.f32.mxu0 %v5574
        %5777 = vmatmul.mubr.f32.gmra.mxu0 %v5478
        %v5778 = vpop.f32.mrf.mxu0
        %v5779 = vadd.f32 %v5601, %v5778
        %v5780 = vpop.f32.mrf.mxu0
        %5781 = vmatprep.mubr.f32.mxu0 %v5575
        %5782 = vmatmul.mubr.f32.gmra.mxu0 %v5479
        %v5783 = vpop.f32.mrf.mxu0
        %v5784 = vadd.f32 %v5601, %v5783
        %v5785 = vpop.f32.mrf.mxu0
        %5786 = vmatprep.mubr.f32.mxu0 %v5576
        %5787 = vmatmul.mubr.f32.gmra.mxu0 %v5480
        %v5788 = vpop.f32.mrf.mxu0
        %v5789 = vadd.f32 %v5601, %v5788
        %v5790 = vpop.f32.mrf.mxu0
        %5791 = vmatprep.mubr.f32.mxu0 %v5577
        %5792 = vmatmul.mubr.f32.gmra.mxu0 %v5481
        %v5793 = vpop.f32.mrf.mxu0
        %v5794 = vadd.f32 %v5601, %v5793
        %v5795 = vpop.f32.mrf.mxu0
        %5796 = vmatprep.mubr.f32.mxu0 %v5578
        %5797 = vmatmul.mubr.f32.gmra.mxu0 %v5482
        %v5798 = vpop.f32.mrf.mxu0
        %v5799 = vadd.f32 %v5601, %v5798
        %v5800 = vpop.f32.mrf.mxu0
        %5801 = vmatprep.mubr.f32.mxu0 %v5579
        %5802 = vmatmul.mubr.f32.gmra.mxu0 %v5483
        %v5803 = vpop.f32.mrf.mxu0
        %v5804 = vadd.f32 %v5601, %v5803
        %v5805 = vpop.f32.mrf.mxu0
        %5806 = vmatprep.mubr.f32.mxu0 %v5580
        %5807 = vmatmul.mubr.f32.gmra.mxu0 %v5484
        %v5808 = vpop.f32.mrf.mxu0
        %v5809 = vadd.f32 %v5601, %v5808
        %v5810 = vpop.f32.mrf.mxu0
        %5811 = vmatprep.mubr.f32.mxu0 %v5581
        %5812 = vmatmul.mubr.f32.gmra.mxu0 %v5485
        %v5813 = vpop.f32.mrf.mxu0
        %v5814 = vadd.f32 %v5601, %v5813
        %v5815 = vpop.f32.mrf.mxu0
        %5816 = vmatprep.mubr.f32.mxu0 %v5582
        %5817 = vmatmul.mubr.f32.gmra.mxu0 %v5486
        %v5818 = vpop.f32.mrf.mxu0
        %v5819 = vadd.f32 %v5601, %v5818
        %v5820 = vpop.f32.mrf.mxu0
        %5821 = vmatprep.mubr.f32.mxu0 %v5583
        %5822 = vmatmul.mubr.f32.gmra.mxu0 %v5487
        %v5823 = vpop.f32.mrf.mxu0
        %v5824 = vadd.f32 %v5601, %v5823
        %v5825 = vpop.f32.mrf.mxu0
        %5826 = vmatprep.mubr.f32.mxu0 %v5584
        %5827 = vmatmul.mubr.f32.gmra.mxu0 %v5488
        %v5828 = vpop.f32.mrf.mxu0
        %v5829 = vadd.f32 %v5601, %v5828
        %v5830 = vpop.f32.mrf.mxu0
        %5831 = vmatprep.mubr.f32.mxu0 %v5585
        %5832 = vmatmul.mubr.f32.gmra.mxu0 %v5489
        %v5833 = vpop.f32.mrf.mxu0
        %v5834 = vadd.f32 %v5601, %v5833
        %v5835 = vpop.f32.mrf.mxu0
        %5836 = vmatprep.mubr.f32.mxu0 %v5586
        %5837 = vmatmul.mubr.f32.gmra.mxu0 %v5490
        %v5838 = vpop.f32.mrf.mxu0
        %v5839 = vadd.f32 %v5601, %v5838
        %v5840 = vpop.f32.mrf.mxu0
        %5841 = vmatprep.mubr.f32.mxu0 %v5587
        %5842 = vmatmul.mubr.f32.gmra.mxu0 %v5491
        %v5843 = vpop.f32.mrf.mxu0
        %v5844 = vadd.f32 %v5601, %v5843
        %v5845 = vpop.f32.mrf.mxu0
        %5846 = vmatprep.mubr.f32.mxu0 %v5588
        %5847 = vmatmul.mubr.f32.gmra.mxu0 %v5492
        %v5848 = vpop.f32.mrf.mxu0
        %v5849 = vadd.f32 %v5601, %v5848
        %v5850 = vpop.f32.mrf.mxu0
        %5851 = vmatprep.mubr.f32.mxu0 %v5589
        %5852 = vmatmul.mubr.f32.gmra.mxu0 %v5493
        %v5853 = vpop.f32.mrf.mxu0
        %v5854 = vadd.f32 %v5601, %v5853
        %v5855 = vpop.f32.mrf.mxu0
        %5856 = vmatprep.mubr.f32.mxu0 %v5590
        %5857 = vmatmul.mubr.f32.gmra.mxu0 %v5494
        %v5858 = vpop.f32.mrf.mxu0
        %v5859 = vadd.f32 %v5601, %v5858
        %v5860 = vpop.f32.mrf.mxu0
        %5861 = vmatprep.mubr.f32.mxu0 %v5591
        %5862 = vmatmul.mubr.f32.gmra.mxu0 %v5495
        %v5863 = vpop.f32.mrf.mxu0
        %v5864 = vadd.f32 %v5601, %v5863
        %v5865 = vpop.f32.mrf.mxu0
        %5866 = vmatprep.mubr.f32.mxu0 %v5592
        %5867 = vmatmul.mubr.f32.gmra.mxu0 %v5496
        %v5868 = vpop.f32.mrf.mxu0
        %v5869 = vadd.f32 %v5601, %v5868
        %v5870 = vpop.f32.mrf.mxu0
        %5871 = vmatprep.mubr.f32.mxu0 %v5593
        %5872 = vmatmul.mubr.f32.gmra.mxu0 %v5497
        %v5873 = vpop.f32.mrf.mxu0
        %v5874 = vadd.f32 %v5601, %v5873
        %v5875 = vpop.f32.mrf.mxu0
        %5876 = vmatprep.mubr.f32.mxu0 %v5594
        %5877 = vmatmul.mubr.f32.gmra.mxu0 %v5498
        %v5878 = vpop.f32.mrf.mxu0
        %v5879 = vadd.f32 %v5601, %v5878
        %v5880 = vpop.f32.mrf.mxu0
        %5881 = vmatprep.mubr.f32.mxu0 %v5595
        %5882 = vmatmul.mubr.f32.gmra.mxu0 %v5499
        %v5883 = vpop.f32.mrf.mxu0
        %v5884 = vadd.f32 %v5601, %v5883
        %v5885 = vpop.f32.mrf.mxu0
        %5886 = vmatprep.mubr.f32.mxu0 %v5596
        %5887 = vmatmul.mubr.f32.gmra.mxu0 %v5500
        %v5888 = vpop.f32.mrf.mxu0
        %v5889 = vadd.f32 %v5601, %v5888
        %v5890 = vpop.f32.mrf.mxu0
        %5891 = vdwg.mxu0
        %5892 = vmatprep.subr.mxu0 0.0
        %5893 = vmatpush1.msra.mxu0 0.0
        %5894 = vmatprep.subr.mxu0 0.0
        %5895 = vmatpush1.msra.mxu0 0.0
        %5896 = vmatprep.subr.mxu0 0.0
        %5897 = vmatpush1.msra.mxu0 0.0
        %5898 = vmatprep.subr.mxu0 0.0
        %5899 = vmatpush1.msra.mxu0 0.0
        %5900 = vmatprep.subr.mxu0 0.0
        %5901 = vmatpush1.msra.mxu0 0.0
        %5902 = vmatprep.subr.mxu0 0.0
        %5903 = vmatpush1.msra.mxu0 0.0
        %5904 = vmatprep.subr.mxu0 0.0
        %5905 = vmatpush1.msra.mxu0 0.0
        %5906 = vmatprep.subr.mxu0 0.0
        %5907 = vmatpush1.msra.mxu0 0.0
        %5908 = vmatprep.subr.mxu0 0.0
        %5909 = vmatpush1.msra.mxu0 0.0
        %5910 = vmatprep.subr.mxu0 0.0
        %5911 = vmatpush1.msra.mxu0 0.0
        %5912 = vmatprep.subr.mxu0 0.0
        %5913 = vmatpush1.msra.mxu0 0.0
        %5914 = vmatprep.subr.mxu0 0.0
        %5915 = vmatpush1.msra.mxu0 0.0
        %5916 = vmatprep.subr.mxu0 0.0
        %5917 = vmatpush1.msra.mxu0 %v4438
        %5918 = vmatprep.subr.mxu0 0.0
        %5919 = vmatpush1.msra.mxu0 %v4437
        %5920 = vmatprep.subr.mxu0 0.0
        %5921 = vmatpush1.msra.mxu0 %v4436
        %5922 = vmatprep.subr.mxu0 0.0
        %5923 = vmatpush1.msra.mxu0 %v4435
        %5924 = vmatprep.subr.mxu0 0.0
        %5925 = vmatpush2.msra.mxu0 0.0
        %5926 = vmatprep.subr.mxu0 0.0
        %5927 = vmatpush2.msra.mxu0 0.0
        %5928 = vmatprep.subr.mxu0 0.0
        %5929 = vmatpush2.msra.mxu0 0.0
        %5930 = vmatprep.subr.mxu0 0.0
        %5931 = vmatpush2.msra.mxu0 0.0
        %5932 = vmatprep.subr.mxu0 0.0
        %5933 = vmatpush2.msra.mxu0 0.0
        %5934 = vmatprep.subr.mxu0 0.0
        %5935 = vmatpush2.msra.mxu0 0.0
        %5936 = vmatprep.subr.mxu0 0.0
        %5937 = vmatpush2.msra.mxu0 0.0
        %5938 = vmatprep.subr.mxu0 0.0
        %5939 = vmatpush2.msra.mxu0 0.0
        %5940 = vmatprep.subr.mxu0 0.0
        %5941 = vmatpush2.msra.mxu0 0.0
        %5942 = vmatprep.subr.mxu0 0.0
        %5943 = vmatpush2.msra.mxu0 0.0
        %5944 = vmatprep.subr.mxu0 0.0
        %5945 = vmatpush2.msra.mxu0 0.0
        %5946 = vmatprep.subr.mxu0 0.0
        %5947 = vmatpush2.msra.mxu0 0.0
        %5948 = vmatprep.subr.mxu0 0.0
        %5949 = vmatpush2.msra.mxu0 0.0
        %5950 = vmatprep.subr.mxu0 0.0
        %5951 = vmatpush2.msra.mxu0 0.0
        %5952 = vmatprep.subr.mxu0 0.0
        %5953 = vmatpush2.msra.mxu0 0.0
        %5954 = vmatprep.subr.mxu0 0.0
        %5955 = vmatpush2.msra.mxu0 0.0
        %5956 = vmatprep.mubr.f32.mxu0 0.0
        %5957 = vmatmul.mubr.f32.gmra.mxu0 %v5603
        %v5958 = vpop.f32.mrf.mxu0
        %v5959 = vadd.f32 %v5734, %v5958
        %v5960 = vpop.f32.mrf.mxu0
        %5961 = vmatprep.mubr.f32.mxu0 0.0
        %5962 = vmatmul.mubr.f32.gmra.mxu0 %v5605
        %v5963 = vpop.f32.mrf.mxu0
        %v5964 = vadd.f32 %v5739, %v5963
        %v5965 = vpop.f32.mrf.mxu0
        %5966 = vmatprep.mubr.f32.mxu0 0.0
        %5967 = vmatmul.mubr.f32.gmra.mxu0 %v5607
        %v5968 = vpop.f32.mrf.mxu0
        %v5969 = vadd.f32 %v5744, %v5968
        %v5970 = vpop.f32.mrf.mxu0
        %5971 = vmatprep.mubr.f32.mxu0 0.0
        %5972 = vmatmul.mubr.f32.gmra.mxu0 %v5609
        %v5973 = vpop.f32.mrf.mxu0
        %v5974 = vadd.f32 %v5749, %v5973
        %v5975 = vpop.f32.mrf.mxu0
        %5976 = vmatprep.mubr.f32.mxu0 0.0
        %5977 = vmatmul.mubr.f32.gmra.mxu0 %v5611
        %v5978 = vpop.f32.mrf.mxu0
        %v5979 = vadd.f32 %v5754, %v5978
        %v5980 = vpop.f32.mrf.mxu0
        %5981 = vmatprep.mubr.f32.mxu0 0.0
        %5982 = vmatmul.mubr.f32.gmra.mxu0 %v5613
        %v5983 = vpop.f32.mrf.mxu0
        %v5984 = vadd.f32 %v5759, %v5983
        %v5985 = vpop.f32.mrf.mxu0
        %5986 = vmatprep.mubr.f32.mxu0 0.0
        %5987 = vmatmul.mubr.f32.gmra.mxu0 %v5615
        %v5988 = vpop.f32.mrf.mxu0
        %v5989 = vadd.f32 %v5764, %v5988
        %v5990 = vpop.f32.mrf.mxu0
        %5991 = vmatprep.mubr.f32.mxu0 0.0
        %5992 = vmatmul.mubr.f32.gmra.mxu0 %v5617
        %v5993 = vpop.f32.mrf.mxu0
        %v5994 = vadd.f32 %v5769, %v5993
        %v5995 = vpop.f32.mrf.mxu0
        %5996 = vmatprep.mubr.f32.mxu0 0.0
        %5997 = vmatmul.mubr.f32.gmra.mxu0 %v5619
        %v5998 = vpop.f32.mrf.mxu0
        %v5999 = vadd.f32 %v5774, %v5998
        %v6000 = vpop.f32.mrf.mxu0
        %6001 = vmatprep.mubr.f32.mxu0 0.0
        %6002 = vmatmul.mubr.f32.gmra.mxu0 %v5621
        %v6003 = vpop.f32.mrf.mxu0
        %v6004 = vadd.f32 %v5779, %v6003
        %v6005 = vpop.f32.mrf.mxu0
        %6006 = vmatprep.mubr.f32.mxu0 0.0
        %6007 = vmatmul.mubr.f32.gmra.mxu0 %v5623
        %v6008 = vpop.f32.mrf.mxu0
        %v6009 = vadd.f32 %v5784, %v6008
        %v6010 = vpop.f32.mrf.mxu0
        %6011 = vmatprep.mubr.f32.mxu0 0.0
        %6012 = vmatmul.mubr.f32.gmra.mxu0 %v5625
        %v6013 = vpop.f32.mrf.mxu0
        %v6014 = vadd.f32 %v5789, %v6013
        %v6015 = vpop.f32.mrf.mxu0
        %6016 = vmatprep.mubr.f32.mxu0 0.0
        %6017 = vmatmul.mubr.f32.gmra.mxu0 %v5627
        %v6018 = vpop.f32.mrf.mxu0
        %v6019 = vadd.f32 %v5794, %v6018
        %v6020 = vpop.f32.mrf.mxu0
        %6021 = vmatprep.mubr.f32.mxu0 0.0
        %6022 = vmatmul.mubr.f32.gmra.mxu0 %v5629
        %v6023 = vpop.f32.mrf.mxu0
        %v6024 = vadd.f32 %v5799, %v6023
        %v6025 = vpop.f32.mrf.mxu0
        %6026 = vmatprep.mubr.f32.mxu0 0.0
        %6027 = vmatmul.mubr.f32.gmra.mxu0 %v5631
        %v6028 = vpop.f32.mrf.mxu0
        %v6029 = vadd.f32 %v5804, %v6028
        %v6030 = vpop.f32.mrf.mxu0
        %6031 = vmatprep.mubr.f32.mxu0 0.0
        %6032 = vmatmul.mubr.f32.gmra.mxu0 %v5633
        %v6033 = vpop.f32.mrf.mxu0
        %v6034 = vadd.f32 %v5809, %v6033
        %v6035 = vpop.f32.mrf.mxu0
        %6036 = vmatprep.mubr.f32.mxu0 0.0
        %6037 = vmatmul.mubr.f32.gmra.mxu0 %v5635
        %v6038 = vpop.f32.mrf.mxu0
        %v6039 = vadd.f32 %v5814, %v6038
        %v6040 = vpop.f32.mrf.mxu0
        %6041 = vmatprep.mubr.f32.mxu0 0.0
        %6042 = vmatmul.mubr.f32.gmra.mxu0 %v5637
        %v6043 = vpop.f32.mrf.mxu0
        %v6044 = vadd.f32 %v5819, %v6043
        %v6045 = vpop.f32.mrf.mxu0
        %6046 = vmatprep.mubr.f32.mxu0 0.0
        %6047 = vmatmul.mubr.f32.gmra.mxu0 %v5639
        %v6048 = vpop.f32.mrf.mxu0
        %v6049 = vadd.f32 %v5824, %v6048
        %v6050 = vpop.f32.mrf.mxu0
        %6051 = vmatprep.mubr.f32.mxu0 0.0
        %6052 = vmatmul.mubr.f32.gmra.mxu0 %v5641
        %v6053 = vpop.f32.mrf.mxu0
        %v6054 = vadd.f32 %v5829, %v6053
        %v6055 = vpop.f32.mrf.mxu0
        %6056 = vmatprep.mubr.f32.mxu0 0.0
        %6057 = vmatmul.mubr.f32.gmra.mxu0 %v5643
        %v6058 = vpop.f32.mrf.mxu0
        %v6059 = vadd.f32 %v5834, %v6058
        %v6060 = vpop.f32.mrf.mxu0
        %6061 = vmatprep.mubr.f32.mxu0 0.0
        %6062 = vmatmul.mubr.f32.gmra.mxu0 %v5645
        %v6063 = vpop.f32.mrf.mxu0
        %v6064 = vadd.f32 %v5839, %v6063
        %v6065 = vpop.f32.mrf.mxu0
        %6066 = vmatprep.mubr.f32.mxu0 0.0
        %6067 = vmatmul.mubr.f32.gmra.mxu0 %v5647
        %v6068 = vpop.f32.mrf.mxu0
        %v6069 = vadd.f32 %v5844, %v6068
        %v6070 = vpop.f32.mrf.mxu0
        %6071 = vmatprep.mubr.f32.mxu0 0.0
        %6072 = vmatmul.mubr.f32.gmra.mxu0 %v5649
        %v6073 = vpop.f32.mrf.mxu0
        %v6074 = vadd.f32 %v5849, %v6073
        %v6075 = vpop.f32.mrf.mxu0
        %6076 = vmatprep.mubr.f32.mxu0 0.0
        %6077 = vmatmul.mubr.f32.gmra.mxu0 %v5651
        %v6078 = vpop.f32.mrf.mxu0
        %v6079 = vadd.f32 %v5854, %v6078
        %v6080 = vpop.f32.mrf.mxu0
        %6081 = vmatprep.mubr.f32.mxu0 0.0
        %6082 = vmatmul.mubr.f32.gmra.mxu0 %v5653
        %v6083 = vpop.f32.mrf.mxu0
        %v6084 = vadd.f32 %v5859, %v6083
        %v6085 = vpop.f32.mrf.mxu0
        %6086 = vmatprep.mubr.f32.mxu0 0.0
        %6087 = vmatmul.mubr.f32.gmra.mxu0 %v5655
        %v6088 = vpop.f32.mrf.mxu0
        %v6089 = vadd.f32 %v5864, %v6088
        %v6090 = vpop.f32.mrf.mxu0
        %6091 = vmatprep.mubr.f32.mxu0 0.0
        %6092 = vmatmul.mubr.f32.gmra.mxu0 %v5657
        %v6093 = vpop.f32.mrf.mxu0
        %v6094 = vadd.f32 %v5869, %v6093
        %v6095 = vpop.f32.mrf.mxu0
        %6096 = vmatprep.mubr.f32.mxu0 0.0
        %6097 = vmatmul.mubr.f32.gmra.mxu0 %v5659
        %v6098 = vpop.f32.mrf.mxu0
        %v6099 = vadd.f32 %v5874, %v6098
        %v6100 = vpop.f32.mrf.mxu0
        %6101 = vmatprep.mubr.f32.mxu0 0.0
        %6102 = vmatmul.mubr.f32.gmra.mxu0 %v5661
        %v6103 = vpop.f32.mrf.mxu0
        %v6104 = vadd.f32 %v5879, %v6103
        %v6105 = vpop.f32.mrf.mxu0
        %6106 = vmatprep.mubr.f32.mxu0 0.0
        %6107 = vmatmul.mubr.f32.gmra.mxu0 %v5663
        %v6108 = vpop.f32.mrf.mxu0
        %v6109 = vadd.f32 %v5884, %v6108
        %v6110 = vpop.f32.mrf.mxu0
        %6111 = vmatprep.mubr.f32.mxu0 0.0
        %6112 = vmatmul.mubr.f32.gmra.mxu0 %v5665
        %v6113 = vpop.f32.mrf.mxu0
        %v6114 = vadd.f32 %v5889, %v6113
        %v6115 = vpop.f32.mrf.mxu0
        %6116 = vdwg.mxu0
        %vm6117 = vcmp.gt.f32.partialorder %v5959, 0.0
        %vm6118 = vcmp.gt.f32.partialorder %v5964, 0.0
        %vm6119 = vcmp.gt.f32.partialorder %v5969, 0.0
        %vm6120 = vcmp.gt.f32.partialorder %v5974, 0.0
        %vm6121 = vcmp.gt.f32.partialorder %v5979, 0.0
        %vm6122 = vcmp.gt.f32.partialorder %v5984, 0.0
        %vm6123 = vcmp.gt.f32.partialorder %v5989, 0.0
        %vm6124 = vcmp.gt.f32.partialorder %v5994, 0.0
        %vm6125 = vcmp.gt.f32.partialorder %v5999, 0.0
        %vm6126 = vcmp.gt.f32.partialorder %v6004, 0.0
        %vm6127 = vcmp.gt.f32.partialorder %v6009, 0.0
        %vm6128 = vcmp.gt.f32.partialorder %v6014, 0.0
        %vm6129 = vcmp.gt.f32.partialorder %v6019, 0.0
        %vm6130 = vcmp.gt.f32.partialorder %v6024, 0.0
        %vm6131 = vcmp.gt.f32.partialorder %v6029, 0.0
        %vm6132 = vcmp.gt.f32.partialorder %v6034, 0.0
        %vm6133 = vcmp.gt.f32.partialorder %v6039, 0.0
        %vm6134 = vcmp.gt.f32.partialorder %v6044, 0.0
        %vm6135 = vcmp.gt.f32.partialorder %v6049, 0.0
        %vm6136 = vcmp.gt.f32.partialorder %v6054, 0.0
        %vm6137 = vcmp.gt.f32.partialorder %v6059, 0.0
        %vm6138 = vcmp.gt.f32.partialorder %v6064, 0.0
        %vm6139 = vcmp.gt.f32.partialorder %v6069, 0.0
        %vm6140 = vcmp.gt.f32.partialorder %v6074, 0.0
        %vm6141 = vcmp.gt.f32.partialorder %v6079, 0.0
        %vm6142 = vcmp.gt.f32.partialorder %v6084, 0.0
        %vm6143 = vcmp.gt.f32.partialorder %v6089, 0.0
        %vm6144 = vcmp.gt.f32.partialorder %v6094, 0.0
        %vm6145 = vcmp.gt.f32.partialorder %v6099, 0.0
        %vm6146 = vcmp.gt.f32.partialorder %v6104, 0.0
        %vm6147 = vcmp.gt.f32.partialorder %v6109, 0.0
        %vm6148 = vcmp.gt.f32.partialorder %v6114, 0.0
        %v6149 = vmul.f32 %v5959, 0.2
        %v6150 = vmul.f32 %v5964, 0.2
        %v6151 = vmul.f32 %v5969, 0.2
        %v6152 = vmul.f32 %v5974, 0.2
        %v6153 = vmul.f32 %v5979, 0.2
        %v6154 = vmul.f32 %v5984, 0.2
        %v6155 = vmul.f32 %v5989, 0.2
        %v6156 = vmul.f32 %v5994, 0.2
        %v6157 = vmul.f32 %v5999, 0.2
        %v6158 = vmul.f32 %v6004, 0.2
        %v6159 = vmul.f32 %v6009, 0.2
        %v6160 = vmul.f32 %v6014, 0.2
        %v6161 = vmul.f32 %v6019, 0.2
        %v6162 = vmul.f32 %v6024, 0.2
        %v6163 = vmul.f32 %v6029, 0.2
        %v6164 = vmul.f32 %v6034, 0.2
        %v6165 = vmul.f32 %v6039, 0.2
        %v6166 = vmul.f32 %v6044, 0.2
        %v6167 = vmul.f32 %v6049, 0.2
        %v6168 = vmul.f32 %v6054, 0.2
        %v6169 = vmul.f32 %v6059, 0.2
        %v6170 = vmul.f32 %v6064, 0.2
        %v6171 = vmul.f32 %v6069, 0.2
        %v6172 = vmul.f32 %v6074, 0.2
        %v6173 = vmul.f32 %v6079, 0.2
        %v6174 = vmul.f32 %v6084, 0.2
        %v6175 = vmul.f32 %v6089, 0.2
        %v6176 = vmul.f32 %v6094, 0.2
        %v6177 = vmul.f32 %v6099, 0.2
        %v6178 = vmul.f32 %v6104, 0.2
        %v6179 = vmul.f32 %v6109, 0.2
        %v6180 = vmul.f32 %v6114, 0.2
        %v6181 = vsel %vm6117, %v5959, %v6149
        %v6182 = vsel %vm6118, %v5964, %v6150
        %v6183 = vsel %vm6119, %v5969, %v6151
        %v6184 = vsel %vm6120, %v5974, %v6152
        %v6185 = vsel %vm6121, %v5979, %v6153
        %v6186 = vsel %vm6122, %v5984, %v6154
        %v6187 = vsel %vm6123, %v5989, %v6155
        %v6188 = vsel %vm6124, %v5994, %v6156
        %v6189 = vsel %vm6125, %v5999, %v6157
        %v6190 = vsel %vm6126, %v6004, %v6158
        %v6191 = vsel %vm6127, %v6009, %v6159
        %v6192 = vsel %vm6128, %v6014, %v6160
        %v6193 = vsel %vm6129, %v6019, %v6161
        %v6194 = vsel %vm6130, %v6024, %v6162
        %v6195 = vsel %vm6131, %v6029, %v6163
        %v6196 = vsel %vm6132, %v6034, %v6164
        %v6197 = vsel %vm6133, %v6039, %v6165
        %v6198 = vsel %vm6134, %v6044, %v6166
        %v6199 = vsel %vm6135, %v6049, %v6167
        %v6200 = vsel %vm6136, %v6054, %v6168
        %v6201 = vsel %vm6137, %v6059, %v6169
        %v6202 = vsel %vm6138, %v6064, %v6170
        %v6203 = vsel %vm6139, %v6069, %v6171
        %v6204 = vsel %vm6140, %v6074, %v6172
        %v6205 = vsel %vm6141, %v6079, %v6173
        %v6206 = vsel %vm6142, %v6084, %v6174
        %v6207 = vsel %vm6143, %v6089, %v6175
        %v6208 = vsel %vm6144, %v6094, %v6176
        %v6209 = vsel %vm6145, %v6099, %v6177
        %v6210 = vsel %vm6146, %v6104, %v6178
        %v6211 = vsel %vm6147, %v6109, %v6179
        %v6212 = vsel %vm6148, %v6114, %v6180
        %v6213 = vld [vmem:[%s5] sm:$0xff]
        %v6214 = vld [vmem:[%s5 + $0x8] sm:$0xff]
        %v6215 = vld [vmem:[%s5 + $0x10] sm:$0xff]
        %v6216 = vld [vmem:[%s5 + $0x18] sm:$0xff]
        %v6217 = vld [vmem:[%s5 + $0x20] sm:$0xff]
        %v6218 = vld [vmem:[%s5 + $0x28] sm:$0xff]
        %v6219 = vld [vmem:[%s5 + $0x30] sm:$0xff]
        %v6220 = vld [vmem:[%s5 + $0x38] sm:$0xff]
        %v6221 = vld [vmem:[%s5 + $0x40] sm:$0xff]
        %v6222 = vld [vmem:[%s5 + $0x48] sm:$0xff]
        %v6223 = vld [vmem:[%s5 + $0x50] sm:$0xff]
        %v6224 = vld [vmem:[%s5 + $0x58] sm:$0xff]
        %v6225 = vld [vmem:[%s5 + $0x60] sm:$0xff]
        %v6226 = vld [vmem:[%s5 + $0x68] sm:$0xff]
        %v6227 = vld [vmem:[%s5 + $0x70] sm:$0xff]
        %v6228 = vld [vmem:[%s5 + $0x78] sm:$0xff]
        %v6229 = vld [vmem:[%s5 + $0x80] sm:$0xff]
        %v6230 = vld [vmem:[%s5 + $0x88] sm:$0xff]
        %v6231 = vld [vmem:[%s5 + $0x90] sm:$0xff]
        %v6232 = vld [vmem:[%s5 + $0x98] sm:$0xff]
        %v6233 = vld [vmem:[%s5 + $0xa0] sm:$0xff]
        %v6234 = vld [vmem:[%s5 + $0xa8] sm:$0xff]
        %v6235 = vld [vmem:[%s5 + $0xb0] sm:$0xff]
        %v6236 = vld [vmem:[%s5 + $0xb8] sm:$0xff]
        %v6237 = vld [vmem:[%s5 + $0xc0] sm:$0xff]
        %v6238 = vld [vmem:[%s5 + $0xc8] sm:$0xff]
        %v6239 = vld [vmem:[%s5 + $0xd0] sm:$0xff]
        %v6240 = vld [vmem:[%s5 + $0xd8] sm:$0xff]
        %v6241 = vld [vmem:[%s5 + $0xe0] sm:$0xff]
        %v6242 = vld [vmem:[%s5 + $0xe8] sm:$0xff]
        %v6243 = vld [vmem:[%s5 + $0xf0] sm:$0xff]
        %v6244 = vld [vmem:[%s5 + $0xf8] sm:$0xff]
        %v6245 = vld [vmem:[%s5 + $0x100] sm:$0xff]
        %v6246 = vld [vmem:[%s5 + $0x108] sm:$0xff]
        %v6247 = vld [vmem:[%s5 + $0x110] sm:$0xff]
        %v6248 = vld [vmem:[%s5 + $0x118] sm:$0xff]
        %v6249 = vld [vmem:[%s6] sm:$0x1]
        %6250 = vst.msk [vmem:[%s814 + $0x8] sm:$0xff] %vm704, %v6181
        %6251 = vst.msk [vmem:[%s814 + $0x10] sm:$0xff] %vm704, %v6182
        %6252 = vst.msk [vmem:[%s814 + $0x28] sm:$0xff] %vm704, %v6183
        %6253 = vst.msk [vmem:[%s814 + $0x30] sm:$0xff] %vm704, %v6184
        %6254 = vst.msk [vmem:[%s814 + $0x48] sm:$0xff] %vm704, %v6185
        %6255 = vst.msk [vmem:[%s814 + $0x50] sm:$0xff] %vm704, %v6186
        %6256 = vst.msk [vmem:[%s814 + $0x68] sm:$0xff] %vm704, %v6187
        %6257 = vst.msk [vmem:[%s814 + $0x70] sm:$0xff] %vm704, %v6188
        %6258 = vst.msk [vmem:[%s814 + $0x88] sm:$0xff] %vm704, %v6189
        %6259 = vst.msk [vmem:[%s814 + $0x90] sm:$0xff] %vm704, %v6190
        %6260 = vst.msk [vmem:[%s814 + $0xa8] sm:$0xff] %vm704, %v6191
        %6261 = vst.msk [vmem:[%s814 + $0xb0] sm:$0xff] %vm704, %v6192
        %6262 = vst.msk [vmem:[%s814 + $0xc8] sm:$0xff] %vm704, %v6193
        %6263 = vst.msk [vmem:[%s814 + $0xd0] sm:$0xff] %vm704, %v6194
        %6264 = vst.msk [vmem:[%s814 + $0xe8] sm:$0xff] %vm704, %v6195
        %6265 = vst.msk [vmem:[%s814 + $0xf0] sm:$0xff] %vm704, %v6196
        %6266 = vst.msk [vmem:[%s814 + $0x108] sm:$0xff] %vm704, %v6197
        %6267 = vst.msk [vmem:[%s814 + $0x110] sm:$0xff] %vm704, %v6198
        %6268 = vst.msk [vmem:[%s814 + $0x128] sm:$0xff] %vm704, %v6199
        %6269 = vst.msk [vmem:[%s814 + $0x130] sm:$0xff] %vm704, %v6200
        %6270 = vst.msk [vmem:[%s814 + $0x148] sm:$0xff] %vm704, %v6201
        %6271 = vst.msk [vmem:[%s814 + $0x150] sm:$0xff] %vm704, %v6202
        %6272 = vst.msk [vmem:[%s814 + $0x168] sm:$0xff] %vm704, %v6203
        %6273 = vst.msk [vmem:[%s814 + $0x170] sm:$0xff] %vm704, %v6204
        %6274 = vst.msk [vmem:[%s814 + $0x188] sm:$0xff] %vm704, %v6205
        %6275 = vst.msk [vmem:[%s814 + $0x190] sm:$0xff] %vm704, %v6206
        %6276 = vst.msk [vmem:[%s814 + $0x1a8] sm:$0xff] %vm704, %v6207
        %6277 = vst.msk [vmem:[%s814 + $0x1b0] sm:$0xff] %vm704, %v6208
        %6278 = vst.msk [vmem:[%s814 + $0x1c8] sm:$0xff] %vm704, %v6209
        %6279 = vst.msk [vmem:[%s814 + $0x1d0] sm:$0xff] %vm704, %v6210
        %6280 = vst.msk [vmem:[%s814 + $0x1e8] sm:$0xff] %vm704, %v6211
        %6281 = vst.msk [vmem:[%s814 + $0x1f0] sm:$0xff] %vm704, %v6212
        %v6282 = vld [vmem:[#allocation2] sm:$0xff]
        %v6283 = vld [vmem:[#allocation2 + $0x8] sm:$0xff]
        %v6284 = vld [vmem:[#allocation2 + $0x10] sm:$0xff]
        %v6285 = vld [vmem:[#allocation2 + $0x18] sm:$0xff]
        %v6286 = vld [vmem:[#allocation2 + $0x20] sm:$0xff]
        %v6287 = vld [vmem:[#allocation2 + $0x28] sm:$0xff]
        %v6288 = vld [vmem:[#allocation2 + $0x30] sm:$0xff]
        %v6289 = vld [vmem:[#allocation2 + $0x38] sm:$0xff]
        %v6290 = vld [vmem:[#allocation2 + $0x40] sm:$0xff]
        %v6291 = vld [vmem:[#allocation2 + $0x48] sm:$0xff]
        %v6292 = vld [vmem:[#allocation2 + $0x50] sm:$0xff]
        %v6293 = vld [vmem:[#allocation2 + $0x58] sm:$0xff]
        %v6294 = vld [vmem:[#allocation2 + $0x60] sm:$0xff]
        %v6295 = vld [vmem:[#allocation2 + $0x68] sm:$0xff]
        %v6296 = vld [vmem:[#allocation2 + $0x70] sm:$0xff]
        %v6297 = vld [vmem:[#allocation2 + $0x78] sm:$0xff]
        %v6298 = vld [vmem:[#allocation2 + $0x80] sm:$0xff]
        %v6299 = vld [vmem:[#allocation2 + $0x88] sm:$0xff]
        %v6300 = vld [vmem:[#allocation2 + $0x90] sm:$0xff]
        %v6301 = vld [vmem:[#allocation2 + $0x98] sm:$0xff]
        %v6302 = vld [vmem:[#allocation2 + $0xa0] sm:$0xff]
        %v6303 = vld [vmem:[#allocation2 + $0xa8] sm:$0xff]
        %v6304 = vld [vmem:[#allocation2 + $0xb0] sm:$0xff]
        %v6305 = vld [vmem:[#allocation2 + $0xb8] sm:$0xff]
        %v6306 = vld [vmem:[#allocation2 + $0xc0] sm:$0xff]
        %v6307 = vld [vmem:[#allocation2 + $0xc8] sm:$0xff]
        %v6308 = vld [vmem:[#allocation2 + $0xd0] sm:$0xff]
        %v6309 = vld [vmem:[#allocation2 + $0xd8] sm:$0xff]
        %v6310 = vld [vmem:[#allocation2 + $0xe0] sm:$0xff]
        %v6311 = vld [vmem:[#allocation2 + $0xe8] sm:$0xff]
        %v6312 = vld [vmem:[#allocation2 + $0xf0] sm:$0xff]
        %v6313 = vld [vmem:[#allocation2 + $0xf8] sm:$0xff]
        %v6314 = vld [vmem:[#allocation2 + $0x100] sm:$0xff]
        %v6315 = vld [vmem:[#allocation2 + $0x108] sm:$0xff]
        %v6316 = vld [vmem:[#allocation2 + $0x110] sm:$0xff]
        %v6317 = vld [vmem:[#allocation2 + $0x118] sm:$0xff]
        %v6318 = vld [vmem:[#allocation2 + $0x120] sm:$0xff]
        %v6319 = vld [vmem:[#allocation2 + $0x128] sm:$0xff]
        %v6320 = vld [vmem:[#allocation2 + $0x130] sm:$0xff]
        %v6321 = vld [vmem:[#allocation2 + $0x138] sm:$0xff]
        %v6322 = vld [vmem:[#allocation2 + $0x140] sm:$0xff]
        %v6323 = vld [vmem:[#allocation2 + $0x148] sm:$0xff]
        %v6324 = vld [vmem:[#allocation2 + $0x150] sm:$0xff]
        %v6325 = vld [vmem:[#allocation2 + $0x158] sm:$0xff]
        %v6326 = vld [vmem:[#allocation2 + $0x160] sm:$0xff]
        %v6327 = vld [vmem:[#allocation2 + $0x168] sm:$0xff]
        %v6328 = vld [vmem:[#allocation2 + $0x170] sm:$0xff]
        %v6329 = vld [vmem:[#allocation2 + $0x178] sm:$0xff]
        %v6330 = vld [vmem:[#allocation2 + $0x180] sm:$0xff]
        %v6331 = vld [vmem:[#allocation2 + $0x188] sm:$0xff]
        %v6332 = vld [vmem:[#allocation2 + $0x190] sm:$0xff]
        %v6333 = vld [vmem:[#allocation2 + $0x198] sm:$0xff]
        %v6334 = vld [vmem:[#allocation2 + $0x1a0] sm:$0xff]
        %v6335 = vld [vmem:[#allocation2 + $0x1a8] sm:$0xff]
        %v6336 = vld [vmem:[#allocation2 + $0x1b0] sm:$0xff]
        %v6337 = vld [vmem:[#allocation2 + $0x1b8] sm:$0xff]
        %v6338 = vld [vmem:[#allocation2 + $0x1c0] sm:$0xff]
        %v6339 = vld [vmem:[#allocation2 + $0x1c8] sm:$0xff]
        %v6340 = vld [vmem:[#allocation2 + $0x1d0] sm:$0xff]
        %v6341 = vld [vmem:[#allocation2 + $0x1d8] sm:$0xff]
        %v6342 = vld [vmem:[#allocation2 + $0x1e0] sm:$0xff]
        %v6343 = vld [vmem:[#allocation2 + $0x1e8] sm:$0xff]
        %v6344 = vld [vmem:[#allocation2 + $0x1f0] sm:$0xff]
        %v6345 = vld [vmem:[#allocation2 + $0x1f8] sm:$0xff]
        %v6346 = vld [vmem:[#allocation2 + $0x200] sm:$0xff]
        %v6347 = vld [vmem:[#allocation2 + $0x208] sm:$0xff]
        %v6348 = vld [vmem:[#allocation2 + $0x210] sm:$0xff]
        %v6349 = vld [vmem:[#allocation2 + $0x218] sm:$0xff]
        %v6350 = vld [vmem:[#allocation2 + $0x220] sm:$0xff]
        %v6351 = vld [vmem:[#allocation2 + $0x228] sm:$0xff]
        %v6352 = vld [vmem:[#allocation2 + $0x230] sm:$0xff]
        %v6353 = vld [vmem:[#allocation2 + $0x238] sm:$0xff]
        %v6402 = vrot.slane %v6282, 7
        %v6403 = vrot.slane %v6283, 7
        %v6404 = vsel %vm967, %v6402, %v6403
        %v6405 = vrot.slane %v6284, 7
        %v6406 = vsel %vm967, %v6403, %v6405
        %v6407 = vrot.slane %v6286, 7
        %v6408 = vrot.slane %v6287, 7
        %v6409 = vsel %vm967, %v6407, %v6408
        %v6410 = vrot.slane %v6288, 7
        %v6411 = vsel %vm967, %v6408, %v6410
        %v6412 = vrot.slane %v6290, 7
        %v6413 = vrot.slane %v6291, 7
        %v6414 = vsel %vm967, %v6412, %v6413
        %v6415 = vrot.slane %v6292, 7
        %v6416 = vsel %vm967, %v6413, %v6415
        %v6417 = vrot.slane %v6294, 7
        %v6418 = vrot.slane %v6295, 7
        %v6419 = vsel %vm967, %v6417, %v6418
        %v6420 = vrot.slane %v6296, 7
        %v6421 = vsel %vm967, %v6418, %v6420
        %v6422 = vrot.slane %v6298, 7
        %v6423 = vrot.slane %v6299, 7
        %v6424 = vsel %vm967, %v6422, %v6423
        %v6425 = vrot.slane %v6300, 7
        %v6426 = vsel %vm967, %v6423, %v6425
        %v6427 = vrot.slane %v6302, 7
        %v6428 = vrot.slane %v6303, 7
        %v6429 = vsel %vm967, %v6427, %v6428
        %v6430 = vrot.slane %v6304, 7
        %v6431 = vsel %vm967, %v6428, %v6430
        %v6432 = vrot.slane %v6306, 7
        %v6433 = vrot.slane %v6307, 7
        %v6434 = vsel %vm967, %v6432, %v6433
        %v6435 = vrot.slane %v6308, 7
        %v6436 = vsel %vm967, %v6433, %v6435
        %v6437 = vrot.slane %v6310, 7
        %v6438 = vrot.slane %v6311, 7
        %v6439 = vsel %vm967, %v6437, %v6438
        %v6440 = vrot.slane %v6312, 7
        %v6441 = vsel %vm967, %v6438, %v6440
        %v6442 = vrot.slane %v6314, 7
        %v6443 = vrot.slane %v6315, 7
        %v6444 = vsel %vm967, %v6442, %v6443
        %v6445 = vrot.slane %v6316, 7
        %v6446 = vsel %vm967, %v6443, %v6445
        %v6447 = vrot.slane %v6318, 7
        %v6448 = vrot.slane %v6319, 7
        %v6449 = vsel %vm967, %v6447, %v6448
        %v6450 = vrot.slane %v6320, 7
        %v6451 = vsel %vm967, %v6448, %v6450
        %v6452 = vrot.slane %v6322, 7
        %v6453 = vrot.slane %v6323, 7
        %v6454 = vsel %vm967, %v6452, %v6453
        %v6455 = vrot.slane %v6324, 7
        %v6456 = vsel %vm967, %v6453, %v6455
        %v6457 = vrot.slane %v6326, 7
        %v6458 = vrot.slane %v6327, 7
        %v6459 = vsel %vm967, %v6457, %v6458
        %v6460 = vrot.slane %v6328, 7
        %v6461 = vsel %vm967, %v6458, %v6460
        %v6462 = vrot.slane %v6330, 7
        %v6463 = vrot.slane %v6331, 7
        %v6464 = vsel %vm967, %v6462, %v6463
        %v6465 = vrot.slane %v6332, 7
        %v6466 = vsel %vm967, %v6463, %v6465
        %v6467 = vrot.slane %v6334, 7
        %v6468 = vrot.slane %v6335, 7
        %v6469 = vsel %vm967, %v6467, %v6468
        %v6470 = vrot.slane %v6336, 7
        %v6471 = vsel %vm967, %v6468, %v6470
        %v6472 = vrot.slane %v6338, 7
        %v6473 = vrot.slane %v6339, 7
        %v6474 = vsel %vm967, %v6472, %v6473
        %v6475 = vrot.slane %v6340, 7
        %v6476 = vsel %vm967, %v6473, %v6475
        %v6477 = vrot.slane %v6342, 7
        %v6478 = vrot.slane %v6343, 7
        %v6479 = vsel %vm967, %v6477, %v6478
        %v6480 = vrot.slane %v6344, 7
        %v6481 = vsel %vm967, %v6478, %v6480
        %v6530 = vrot.slane %v6283, 1
        %v6531 = vrot.slane %v6284, 1
        %v6532 = vsel %vm1096, %v6530, %v6531
        %v6533 = vrot.slane %v6285, 1
        %v6534 = vsel %vm1096, %v6531, %v6533
        %v6535 = vrot.slane %v6287, 1
        %v6536 = vrot.slane %v6288, 1
        %v6537 = vsel %vm1096, %v6535, %v6536
        %v6538 = vrot.slane %v6289, 1
        %v6539 = vsel %vm1096, %v6536, %v6538
        %v6540 = vrot.slane %v6291, 1
        %v6541 = vrot.slane %v6292, 1
        %v6542 = vsel %vm1096, %v6540, %v6541
        %v6543 = vrot.slane %v6293, 1
        %v6544 = vsel %vm1096, %v6541, %v6543
        %v6545 = vrot.slane %v6295, 1
        %v6546 = vrot.slane %v6296, 1
        %v6547 = vsel %vm1096, %v6545, %v6546
        %v6548 = vrot.slane %v6297, 1
        %v6549 = vsel %vm1096, %v6546, %v6548
        %v6550 = vrot.slane %v6299, 1
        %v6551 = vrot.slane %v6300, 1
        %v6552 = vsel %vm1096, %v6550, %v6551
        %v6553 = vrot.slane %v6301, 1
        %v6554 = vsel %vm1096, %v6551, %v6553
        %v6555 = vrot.slane %v6303, 1
        %v6556 = vrot.slane %v6304, 1
        %v6557 = vsel %vm1096, %v6555, %v6556
        %v6558 = vrot.slane %v6305, 1
        %v6559 = vsel %vm1096, %v6556, %v6558
        %v6560 = vrot.slane %v6307, 1
        %v6561 = vrot.slane %v6308, 1
        %v6562 = vsel %vm1096, %v6560, %v6561
        %v6563 = vrot.slane %v6309, 1
        %v6564 = vsel %vm1096, %v6561, %v6563
        %v6565 = vrot.slane %v6311, 1
        %v6566 = vrot.slane %v6312, 1
        %v6567 = vsel %vm1096, %v6565, %v6566
        %v6568 = vrot.slane %v6313, 1
        %v6569 = vsel %vm1096, %v6566, %v6568
        %v6570 = vrot.slane %v6315, 1
        %v6571 = vrot.slane %v6316, 1
        %v6572 = vsel %vm1096, %v6570, %v6571
        %v6573 = vrot.slane %v6317, 1
        %v6574 = vsel %vm1096, %v6571, %v6573
        %v6575 = vrot.slane %v6319, 1
        %v6576 = vrot.slane %v6320, 1
        %v6577 = vsel %vm1096, %v6575, %v6576
        %v6578 = vrot.slane %v6321, 1
        %v6579 = vsel %vm1096, %v6576, %v6578
        %v6580 = vrot.slane %v6323, 1
        %v6581 = vrot.slane %v6324, 1
        %v6582 = vsel %vm1096, %v6580, %v6581
        %v6583 = vrot.slane %v6325, 1
        %v6584 = vsel %vm1096, %v6581, %v6583
        %v6585 = vrot.slane %v6327, 1
        %v6586 = vrot.slane %v6328, 1
        %v6587 = vsel %vm1096, %v6585, %v6586
        %v6588 = vrot.slane %v6329, 1
        %v6589 = vsel %vm1096, %v6586, %v6588
        %v6590 = vrot.slane %v6331, 1
        %v6591 = vrot.slane %v6332, 1
        %v6592 = vsel %vm1096, %v6590, %v6591
        %v6593 = vrot.slane %v6333, 1
        %v6594 = vsel %vm1096, %v6591, %v6593
        %v6595 = vrot.slane %v6335, 1
        %v6596 = vrot.slane %v6336, 1
        %v6597 = vsel %vm1096, %v6595, %v6596
        %v6598 = vrot.slane %v6337, 1
        %v6599 = vsel %vm1096, %v6596, %v6598
        %v6600 = vrot.slane %v6339, 1
        %v6601 = vrot.slane %v6340, 1
        %v6602 = vsel %vm1096, %v6600, %v6601
        %v6603 = vrot.slane %v6341, 1
        %v6604 = vsel %vm1096, %v6601, %v6603
        %v6605 = vrot.slane %v6343, 1
        %v6606 = vrot.slane %v6344, 1
        %v6607 = vsel %vm1096, %v6605, %v6606
        %v6608 = vrot.slane %v6345, 1
        %v6609 = vsel %vm1096, %v6606, %v6608
        %v6613 = vrot.slane %v6346, 7
        %v6614 = vrot.slane %v6347, 7
        %v6615 = vsel %vm967, %v6613, %v6614
        %v6616 = vrot.slane %v6348, 7
        %v6617 = vsel %vm967, %v6614, %v6616
        %v6619 = vrot.slane %v6347, 1
        %v6620 = vrot.slane %v6348, 1
        %v6621 = vsel %vm1096, %v6619, %v6620
        %v6622 = vrot.slane %v6349, 1
        %v6623 = vsel %vm1096, %v6620, %v6622
        %v6627 = vrot.slane %v6350, 7
        %v6628 = vrot.slane %v6351, 7
        %v6629 = vsel %vm967, %v6627, %v6628
        %v6630 = vrot.slane %v6352, 7
        %v6631 = vsel %vm967, %v6628, %v6630
        %v6633 = vrot.slane %v6351, 1
        %v6634 = vrot.slane %v6352, 1
        %v6635 = vsel %vm1096, %v6633, %v6634
        %v6636 = vrot.slane %v6353, 1
        %v6637 = vsel %vm1096, %v6634, %v6636
        %6638 = vrot.lane.b32.xlu0 %v6283, 32
        %v6639 = vpop.permute.xlu0 %6638
        %6640 = vrot.lane.b32.xlu0 %v6284, 32
        %v6641 = vpop.permute.xlu0 %6640
        %6642 = vrot.lane.b32.xlu0 %v6287, 32
        %v6643 = vpop.permute.xlu0 %6642
        %6644 = vrot.lane.b32.xlu0 %v6288, 32
        %v6645 = vpop.permute.xlu0 %6644
        %6646 = vrot.lane.b32.xlu0 %v6291, 32
        %v6647 = vpop.permute.xlu0 %6646
        %6648 = vrot.lane.b32.xlu0 %v6292, 32
        %v6649 = vpop.permute.xlu0 %6648
        %6650 = vrot.lane.b32.xlu0 %v6295, 32
        %v6651 = vpop.permute.xlu0 %6650
        %6652 = vrot.lane.b32.xlu0 %v6296, 32
        %v6653 = vpop.permute.xlu0 %6652
        %6654 = vrot.lane.b32.xlu0 %v6299, 32
        %v6655 = vpop.permute.xlu0 %6654
        %6656 = vrot.lane.b32.xlu0 %v6300, 32
        %v6657 = vpop.permute.xlu0 %6656
        %6658 = vrot.lane.b32.xlu0 %v6303, 32
        %v6659 = vpop.permute.xlu0 %6658
        %6660 = vrot.lane.b32.xlu0 %v6304, 32
        %v6661 = vpop.permute.xlu0 %6660
        %6662 = vrot.lane.b32.xlu0 %v6307, 32
        %v6663 = vpop.permute.xlu0 %6662
        %6664 = vrot.lane.b32.xlu0 %v6308, 32
        %v6665 = vpop.permute.xlu0 %6664
        %6666 = vrot.lane.b32.xlu0 %v6311, 32
        %v6667 = vpop.permute.xlu0 %6666
        %6668 = vrot.lane.b32.xlu0 %v6312, 32
        %v6669 = vpop.permute.xlu0 %6668
        %6670 = vrot.lane.b32.xlu0 %v6315, 32
        %v6671 = vpop.permute.xlu0 %6670
        %6672 = vrot.lane.b32.xlu0 %v6316, 32
        %v6673 = vpop.permute.xlu0 %6672
        %6674 = vrot.lane.b32.xlu0 %v6319, 32
        %v6675 = vpop.permute.xlu0 %6674
        %6676 = vrot.lane.b32.xlu0 %v6320, 32
        %v6677 = vpop.permute.xlu0 %6676
        %6678 = vrot.lane.b32.xlu0 %v6323, 32
        %v6679 = vpop.permute.xlu0 %6678
        %6680 = vrot.lane.b32.xlu0 %v6324, 32
        %v6681 = vpop.permute.xlu0 %6680
        %6682 = vrot.lane.b32.xlu0 %v6327, 32
        %v6683 = vpop.permute.xlu0 %6682
        %6684 = vrot.lane.b32.xlu0 %v6328, 32
        %v6685 = vpop.permute.xlu0 %6684
        %6686 = vrot.lane.b32.xlu0 %v6331, 32
        %v6687 = vpop.permute.xlu0 %6686
        %6688 = vrot.lane.b32.xlu0 %v6332, 32
        %v6689 = vpop.permute.xlu0 %6688
        %6690 = vrot.lane.b32.xlu0 %v6335, 32
        %v6691 = vpop.permute.xlu0 %6690
        %6692 = vrot.lane.b32.xlu0 %v6336, 32
        %v6693 = vpop.permute.xlu0 %6692
        %6694 = vrot.lane.b32.xlu0 %v6339, 32
        %v6695 = vpop.permute.xlu0 %6694
        %6696 = vrot.lane.b32.xlu0 %v6340, 32
        %v6697 = vpop.permute.xlu0 %6696
        %6698 = vrot.lane.b32.xlu0 %v6343, 32
        %v6699 = vpop.permute.xlu0 %6698
        %6700 = vrot.lane.b32.xlu0 %v6344, 32
        %v6701 = vpop.permute.xlu0 %6700
        %6734 = vrot.lane.b32.xlu0 %v6532, 64
        %v6735 = vpop.permute.xlu0 %6734
        %6736 = vrot.lane.b32.xlu0 %v6534, 64
        %v6737 = vpop.permute.xlu0 %6736
        %6738 = vrot.lane.b32.xlu0 %v6537, 64
        %v6739 = vpop.permute.xlu0 %6738
        %6740 = vrot.lane.b32.xlu0 %v6539, 64
        %v6741 = vpop.permute.xlu0 %6740
        %6742 = vrot.lane.b32.xlu0 %v6542, 64
        %v6743 = vpop.permute.xlu0 %6742
        %6744 = vrot.lane.b32.xlu0 %v6544, 64
        %v6745 = vpop.permute.xlu0 %6744
        %6746 = vrot.lane.b32.xlu0 %v6547, 64
        %v6747 = vpop.permute.xlu0 %6746
        %6748 = vrot.lane.b32.xlu0 %v6549, 64
        %v6749 = vpop.permute.xlu0 %6748
        %6750 = vrot.lane.b32.xlu0 %v6552, 64
        %v6751 = vpop.permute.xlu0 %6750
        %6752 = vrot.lane.b32.xlu0 %v6554, 64
        %v6753 = vpop.permute.xlu0 %6752
        %6754 = vrot.lane.b32.xlu0 %v6557, 64
        %v6755 = vpop.permute.xlu0 %6754
        %6756 = vrot.lane.b32.xlu0 %v6559, 64
        %v6757 = vpop.permute.xlu0 %6756
        %6758 = vrot.lane.b32.xlu0 %v6562, 64
        %v6759 = vpop.permute.xlu0 %6758
        %6760 = vrot.lane.b32.xlu0 %v6564, 64
        %v6761 = vpop.permute.xlu0 %6760
        %6762 = vrot.lane.b32.xlu0 %v6567, 64
        %v6763 = vpop.permute.xlu0 %6762
        %6764 = vrot.lane.b32.xlu0 %v6569, 64
        %v6765 = vpop.permute.xlu0 %6764
        %6766 = vrot.lane.b32.xlu0 %v6572, 64
        %v6767 = vpop.permute.xlu0 %6766
        %6768 = vrot.lane.b32.xlu0 %v6574, 64
        %v6769 = vpop.permute.xlu0 %6768
        %6770 = vrot.lane.b32.xlu0 %v6577, 64
        %v6771 = vpop.permute.xlu0 %6770
        %6772 = vrot.lane.b32.xlu0 %v6579, 64
        %v6773 = vpop.permute.xlu0 %6772
        %6774 = vrot.lane.b32.xlu0 %v6582, 64
        %v6775 = vpop.permute.xlu0 %6774
        %6776 = vrot.lane.b32.xlu0 %v6584, 64
        %v6777 = vpop.permute.xlu0 %6776
        %6778 = vrot.lane.b32.xlu0 %v6587, 64
        %v6779 = vpop.permute.xlu0 %6778
        %6780 = vrot.lane.b32.xlu0 %v6589, 64
        %v6781 = vpop.permute.xlu0 %6780
        %6782 = vrot.lane.b32.xlu0 %v6592, 64
        %v6783 = vpop.permute.xlu0 %6782
        %6784 = vrot.lane.b32.xlu0 %v6594, 64
        %v6785 = vpop.permute.xlu0 %6784
        %6786 = vrot.lane.b32.xlu0 %v6597, 64
        %v6787 = vpop.permute.xlu0 %6786
        %6788 = vrot.lane.b32.xlu0 %v6599, 64
        %v6789 = vpop.permute.xlu0 %6788
        %6790 = vrot.lane.b32.xlu0 %v6602, 64
        %v6791 = vpop.permute.xlu0 %6790
        %6792 = vrot.lane.b32.xlu0 %v6604, 64
        %v6793 = vpop.permute.xlu0 %6792
        %6794 = vrot.lane.b32.xlu0 %v6607, 64
        %v6795 = vpop.permute.xlu0 %6794
        %6796 = vrot.lane.b32.xlu0 %v6609, 64
        %v6797 = vpop.permute.xlu0 %6796
        %6830 = vrot.lane.b32.xlu0 %v6409, 96
        %v6831 = vpop.permute.xlu0 %6830
        %6832 = vrot.lane.b32.xlu0 %v6411, 96
        %v6833 = vpop.permute.xlu0 %6832
        %6834 = vrot.lane.b32.xlu0 %v6414, 96
        %v6835 = vpop.permute.xlu0 %6834
        %6836 = vrot.lane.b32.xlu0 %v6416, 96
        %v6837 = vpop.permute.xlu0 %6836
        %6838 = vrot.lane.b32.xlu0 %v6419, 96
        %v6839 = vpop.permute.xlu0 %6838
        %6840 = vrot.lane.b32.xlu0 %v6421, 96
        %v6841 = vpop.permute.xlu0 %6840
        %6842 = vrot.lane.b32.xlu0 %v6424, 96
        %v6843 = vpop.permute.xlu0 %6842
        %6844 = vrot.lane.b32.xlu0 %v6426, 96
        %v6845 = vpop.permute.xlu0 %6844
        %6846 = vrot.lane.b32.xlu0 %v6429, 96
        %v6847 = vpop.permute.xlu0 %6846
        %6848 = vrot.lane.b32.xlu0 %v6431, 96
        %v6849 = vpop.permute.xlu0 %6848
        %6850 = vrot.lane.b32.xlu0 %v6434, 96
        %v6851 = vpop.permute.xlu0 %6850
        %6852 = vrot.lane.b32.xlu0 %v6436, 96
        %v6853 = vpop.permute.xlu0 %6852
        %6854 = vrot.lane.b32.xlu0 %v6439, 96
        %v6855 = vpop.permute.xlu0 %6854
        %6856 = vrot.lane.b32.xlu0 %v6441, 96
        %v6857 = vpop.permute.xlu0 %6856
        %6858 = vrot.lane.b32.xlu0 %v6444, 96
        %v6859 = vpop.permute.xlu0 %6858
        %6860 = vrot.lane.b32.xlu0 %v6446, 96
        %v6861 = vpop.permute.xlu0 %6860
        %6862 = vrot.lane.b32.xlu0 %v6449, 96
        %v6863 = vpop.permute.xlu0 %6862
        %6864 = vrot.lane.b32.xlu0 %v6451, 96
        %v6865 = vpop.permute.xlu0 %6864
        %6866 = vrot.lane.b32.xlu0 %v6454, 96
        %v6867 = vpop.permute.xlu0 %6866
        %6868 = vrot.lane.b32.xlu0 %v6456, 96
        %v6869 = vpop.permute.xlu0 %6868
        %6870 = vrot.lane.b32.xlu0 %v6459, 96
        %v6871 = vpop.permute.xlu0 %6870
        %6872 = vrot.lane.b32.xlu0 %v6461, 96
        %v6873 = vpop.permute.xlu0 %6872
        %6874 = vrot.lane.b32.xlu0 %v6464, 96
        %v6875 = vpop.permute.xlu0 %6874
        %6876 = vrot.lane.b32.xlu0 %v6466, 96
        %v6877 = vpop.permute.xlu0 %6876
        %6878 = vrot.lane.b32.xlu0 %v6469, 96
        %v6879 = vpop.permute.xlu0 %6878
        %6880 = vrot.lane.b32.xlu0 %v6471, 96
        %v6881 = vpop.permute.xlu0 %6880
        %6882 = vrot.lane.b32.xlu0 %v6474, 96
        %v6883 = vpop.permute.xlu0 %6882
        %6884 = vrot.lane.b32.xlu0 %v6476, 96
        %v6885 = vpop.permute.xlu0 %6884
        %6886 = vrot.lane.b32.xlu0 %v6479, 96
        %v6887 = vpop.permute.xlu0 %6886
        %6888 = vrot.lane.b32.xlu0 %v6481, 96
        %v6889 = vpop.permute.xlu0 %6888
        %6890 = vrot.lane.b32.xlu0 %v6615, 96
        %v6891 = vpop.permute.xlu0 %6890
        %6892 = vrot.lane.b32.xlu0 %v6617, 96
        %v6893 = vpop.permute.xlu0 %6892
        %6926 = vrot.lane.b32.xlu0 %v6537, 32
        %v6927 = vpop.permute.xlu0 %6926
        %6928 = vrot.lane.b32.xlu0 %v6539, 32
        %v6929 = vpop.permute.xlu0 %6928
        %6930 = vrot.lane.b32.xlu0 %v6542, 32
        %v6931 = vpop.permute.xlu0 %6930
        %6932 = vrot.lane.b32.xlu0 %v6544, 32
        %v6933 = vpop.permute.xlu0 %6932
        %6934 = vrot.lane.b32.xlu0 %v6547, 32
        %v6935 = vpop.permute.xlu0 %6934
        %6936 = vrot.lane.b32.xlu0 %v6549, 32
        %v6937 = vpop.permute.xlu0 %6936
        %6938 = vrot.lane.b32.xlu0 %v6552, 32
        %v6939 = vpop.permute.xlu0 %6938
        %6940 = vrot.lane.b32.xlu0 %v6554, 32
        %v6941 = vpop.permute.xlu0 %6940
        %6942 = vrot.lane.b32.xlu0 %v6557, 32
        %v6943 = vpop.permute.xlu0 %6942
        %6944 = vrot.lane.b32.xlu0 %v6559, 32
        %v6945 = vpop.permute.xlu0 %6944
        %6946 = vrot.lane.b32.xlu0 %v6562, 32
        %v6947 = vpop.permute.xlu0 %6946
        %6948 = vrot.lane.b32.xlu0 %v6564, 32
        %v6949 = vpop.permute.xlu0 %6948
        %6950 = vrot.lane.b32.xlu0 %v6567, 32
        %v6951 = vpop.permute.xlu0 %6950
        %6952 = vrot.lane.b32.xlu0 %v6569, 32
        %v6953 = vpop.permute.xlu0 %6952
        %6954 = vrot.lane.b32.xlu0 %v6572, 32
        %v6955 = vpop.permute.xlu0 %6954
        %6956 = vrot.lane.b32.xlu0 %v6574, 32
        %v6957 = vpop.permute.xlu0 %6956
        %6958 = vrot.lane.b32.xlu0 %v6577, 32
        %v6959 = vpop.permute.xlu0 %6958
        %6960 = vrot.lane.b32.xlu0 %v6579, 32
        %v6961 = vpop.permute.xlu0 %6960
        %6962 = vrot.lane.b32.xlu0 %v6582, 32
        %v6963 = vpop.permute.xlu0 %6962
        %6964 = vrot.lane.b32.xlu0 %v6584, 32
        %v6965 = vpop.permute.xlu0 %6964
        %6966 = vrot.lane.b32.xlu0 %v6587, 32
        %v6967 = vpop.permute.xlu0 %6966
        %6968 = vrot.lane.b32.xlu0 %v6589, 32
        %v6969 = vpop.permute.xlu0 %6968
        %6970 = vrot.lane.b32.xlu0 %v6592, 32
        %v6971 = vpop.permute.xlu0 %6970
        %6972 = vrot.lane.b32.xlu0 %v6594, 32
        %v6973 = vpop.permute.xlu0 %6972
        %6974 = vrot.lane.b32.xlu0 %v6597, 32
        %v6975 = vpop.permute.xlu0 %6974
        %6976 = vrot.lane.b32.xlu0 %v6599, 32
        %v6977 = vpop.permute.xlu0 %6976
        %6978 = vrot.lane.b32.xlu0 %v6602, 32
        %v6979 = vpop.permute.xlu0 %6978
        %6980 = vrot.lane.b32.xlu0 %v6604, 32
        %v6981 = vpop.permute.xlu0 %6980
        %6982 = vrot.lane.b32.xlu0 %v6607, 32
        %v6983 = vpop.permute.xlu0 %6982
        %6984 = vrot.lane.b32.xlu0 %v6609, 32
        %v6985 = vpop.permute.xlu0 %6984
        %6986 = vrot.lane.b32.xlu0 %v6621, 32
        %v6987 = vpop.permute.xlu0 %6986
        %6988 = vrot.lane.b32.xlu0 %v6623, 32
        %v6989 = vpop.permute.xlu0 %6988
        %7022 = vrot.lane.b32.xlu0 %v6414, 64
        %v7023 = vpop.permute.xlu0 %7022
        %7024 = vrot.lane.b32.xlu0 %v6416, 64
        %v7025 = vpop.permute.xlu0 %7024
        %7026 = vrot.lane.b32.xlu0 %v6419, 64
        %v7027 = vpop.permute.xlu0 %7026
        %7028 = vrot.lane.b32.xlu0 %v6421, 64
        %v7029 = vpop.permute.xlu0 %7028
        %7030 = vrot.lane.b32.xlu0 %v6424, 64
        %v7031 = vpop.permute.xlu0 %7030
        %7032 = vrot.lane.b32.xlu0 %v6426, 64
        %v7033 = vpop.permute.xlu0 %7032
        %7034 = vrot.lane.b32.xlu0 %v6429, 64
        %v7035 = vpop.permute.xlu0 %7034
        %7036 = vrot.lane.b32.xlu0 %v6431, 64
        %v7037 = vpop.permute.xlu0 %7036
        %7038 = vrot.lane.b32.xlu0 %v6434, 64
        %v7039 = vpop.permute.xlu0 %7038
        %7040 = vrot.lane.b32.xlu0 %v6436, 64
        %v7041 = vpop.permute.xlu0 %7040
        %7042 = vrot.lane.b32.xlu0 %v6439, 64
        %v7043 = vpop.permute.xlu0 %7042
        %7044 = vrot.lane.b32.xlu0 %v6441, 64
        %v7045 = vpop.permute.xlu0 %7044
        %7046 = vrot.lane.b32.xlu0 %v6444, 64
        %v7047 = vpop.permute.xlu0 %7046
        %7048 = vrot.lane.b32.xlu0 %v6446, 64
        %v7049 = vpop.permute.xlu0 %7048
        %7050 = vrot.lane.b32.xlu0 %v6449, 64
        %v7051 = vpop.permute.xlu0 %7050
        %7052 = vrot.lane.b32.xlu0 %v6451, 64
        %v7053 = vpop.permute.xlu0 %7052
        %7054 = vrot.lane.b32.xlu0 %v6454, 64
        %v7055 = vpop.permute.xlu0 %7054
        %7056 = vrot.lane.b32.xlu0 %v6456, 64
        %v7057 = vpop.permute.xlu0 %7056
        %7058 = vrot.lane.b32.xlu0 %v6459, 64
        %v7059 = vpop.permute.xlu0 %7058
        %7060 = vrot.lane.b32.xlu0 %v6461, 64
        %v7061 = vpop.permute.xlu0 %7060
        %7062 = vrot.lane.b32.xlu0 %v6464, 64
        %v7063 = vpop.permute.xlu0 %7062
        %7064 = vrot.lane.b32.xlu0 %v6466, 64
        %v7065 = vpop.permute.xlu0 %7064
        %7066 = vrot.lane.b32.xlu0 %v6469, 64
        %v7067 = vpop.permute.xlu0 %7066
        %7068 = vrot.lane.b32.xlu0 %v6471, 64
        %v7069 = vpop.permute.xlu0 %7068
        %7070 = vrot.lane.b32.xlu0 %v6474, 64
        %v7071 = vpop.permute.xlu0 %7070
        %7072 = vrot.lane.b32.xlu0 %v6476, 64
        %v7073 = vpop.permute.xlu0 %7072
        %7074 = vrot.lane.b32.xlu0 %v6479, 64
        %v7075 = vpop.permute.xlu0 %7074
        %7076 = vrot.lane.b32.xlu0 %v6481, 64
        %v7077 = vpop.permute.xlu0 %7076
        %7078 = vrot.lane.b32.xlu0 %v6615, 64
        %v7079 = vpop.permute.xlu0 %7078
        %7080 = vrot.lane.b32.xlu0 %v6617, 64
        %v7081 = vpop.permute.xlu0 %7080
        %7082 = vrot.lane.b32.xlu0 %v6629, 64
        %v7083 = vpop.permute.xlu0 %7082
        %7084 = vrot.lane.b32.xlu0 %v6631, 64
        %v7085 = vpop.permute.xlu0 %7084
        %7118 = vrot.lane.b32.xlu0 %v6291, 96
        %v7119 = vpop.permute.xlu0 %7118
        %7120 = vrot.lane.b32.xlu0 %v6292, 96
        %v7121 = vpop.permute.xlu0 %7120
        %7122 = vrot.lane.b32.xlu0 %v6295, 96
        %v7123 = vpop.permute.xlu0 %7122
        %7124 = vrot.lane.b32.xlu0 %v6296, 96
        %v7125 = vpop.permute.xlu0 %7124
        %7126 = vrot.lane.b32.xlu0 %v6299, 96
        %v7127 = vpop.permute.xlu0 %7126
        %7128 = vrot.lane.b32.xlu0 %v6300, 96
        %v7129 = vpop.permute.xlu0 %7128
        %7130 = vrot.lane.b32.xlu0 %v6303, 96
        %v7131 = vpop.permute.xlu0 %7130
        %7132 = vrot.lane.b32.xlu0 %v6304, 96
        %v7133 = vpop.permute.xlu0 %7132
        %7134 = vrot.lane.b32.xlu0 %v6307, 96
        %v7135 = vpop.permute.xlu0 %7134
        %7136 = vrot.lane.b32.xlu0 %v6308, 96
        %v7137 = vpop.permute.xlu0 %7136
        %7138 = vrot.lane.b32.xlu0 %v6311, 96
        %v7139 = vpop.permute.xlu0 %7138
        %7140 = vrot.lane.b32.xlu0 %v6312, 96
        %v7141 = vpop.permute.xlu0 %7140
        %7142 = vrot.lane.b32.xlu0 %v6315, 96
        %v7143 = vpop.permute.xlu0 %7142
        %7144 = vrot.lane.b32.xlu0 %v6316, 96
        %v7145 = vpop.permute.xlu0 %7144
        %7146 = vrot.lane.b32.xlu0 %v6319, 96
        %v7147 = vpop.permute.xlu0 %7146
        %7148 = vrot.lane.b32.xlu0 %v6320, 96
        %v7149 = vpop.permute.xlu0 %7148
        %7150 = vrot.lane.b32.xlu0 %v6323, 96
        %v7151 = vpop.permute.xlu0 %7150
        %7152 = vrot.lane.b32.xlu0 %v6324, 96
        %v7153 = vpop.permute.xlu0 %7152
        %7154 = vrot.lane.b32.xlu0 %v6327, 96
        %v7155 = vpop.permute.xlu0 %7154
        %7156 = vrot.lane.b32.xlu0 %v6328, 96
        %v7157 = vpop.permute.xlu0 %7156
        %7158 = vrot.lane.b32.xlu0 %v6331, 96
        %v7159 = vpop.permute.xlu0 %7158
        %7160 = vrot.lane.b32.xlu0 %v6332, 96
        %v7161 = vpop.permute.xlu0 %7160
        %7162 = vrot.lane.b32.xlu0 %v6335, 96
        %v7163 = vpop.permute.xlu0 %7162
        %7164 = vrot.lane.b32.xlu0 %v6336, 96
        %v7165 = vpop.permute.xlu0 %7164
        %7166 = vrot.lane.b32.xlu0 %v6339, 96
        %v7167 = vpop.permute.xlu0 %7166
        %7168 = vrot.lane.b32.xlu0 %v6340, 96
        %v7169 = vpop.permute.xlu0 %7168
        %7170 = vrot.lane.b32.xlu0 %v6343, 96
        %v7171 = vpop.permute.xlu0 %7170
        %7172 = vrot.lane.b32.xlu0 %v6344, 96
        %v7173 = vpop.permute.xlu0 %7172
        %7174 = vrot.lane.b32.xlu0 %v6347, 96
        %v7175 = vpop.permute.xlu0 %7174
        %7176 = vrot.lane.b32.xlu0 %v6348, 96
        %v7177 = vpop.permute.xlu0 %7176
        %7178 = vrot.lane.b32.xlu0 %v6351, 96
        %v7179 = vpop.permute.xlu0 %7178
        %7180 = vrot.lane.b32.xlu0 %v6352, 96
        %v7181 = vpop.permute.xlu0 %7180
        %v7214 = vsel %vm704, %v6404, %v6639
        %v7215 = vsel %vm704, %v6406, %v6641
        %v7216 = vsel %vm704, %v6409, %v6643
        %v7217 = vsel %vm704, %v6411, %v6645
        %v7218 = vsel %vm704, %v6414, %v6647
        %v7219 = vsel %vm704, %v6416, %v6649
        %v7220 = vsel %vm704, %v6419, %v6651
        %v7221 = vsel %vm704, %v6421, %v6653
        %v7222 = vsel %vm704, %v6424, %v6655
        %v7223 = vsel %vm704, %v6426, %v6657
        %v7224 = vsel %vm704, %v6429, %v6659
        %v7225 = vsel %vm704, %v6431, %v6661
        %v7226 = vsel %vm704, %v6434, %v6663
        %v7227 = vsel %vm704, %v6436, %v6665
        %v7228 = vsel %vm704, %v6439, %v6667
        %v7229 = vsel %vm704, %v6441, %v6669
        %v7230 = vsel %vm704, %v6444, %v6671
        %v7231 = vsel %vm704, %v6446, %v6673
        %v7232 = vsel %vm704, %v6449, %v6675
        %v7233 = vsel %vm704, %v6451, %v6677
        %v7234 = vsel %vm704, %v6454, %v6679
        %v7235 = vsel %vm704, %v6456, %v6681
        %v7236 = vsel %vm704, %v6459, %v6683
        %v7237 = vsel %vm704, %v6461, %v6685
        %v7238 = vsel %vm704, %v6464, %v6687
        %v7239 = vsel %vm704, %v6466, %v6689
        %v7240 = vsel %vm704, %v6469, %v6691
        %v7241 = vsel %vm704, %v6471, %v6693
        %v7242 = vsel %vm704, %v6474, %v6695
        %v7243 = vsel %vm704, %v6476, %v6697
        %v7244 = vsel %vm704, %v6479, %v6699
        %v7245 = vsel %vm704, %v6481, %v6701
        %v7246 = vsel %vm1813, %v7214, %v6735
        %v7247 = vsel %vm1813, %v7215, %v6737
        %v7248 = vsel %vm1813, %v7216, %v6739
        %v7249 = vsel %vm1813, %v7217, %v6741
        %v7250 = vsel %vm1813, %v7218, %v6743
        %v7251 = vsel %vm1813, %v7219, %v6745
        %v7252 = vsel %vm1813, %v7220, %v6747
        %v7253 = vsel %vm1813, %v7221, %v6749
        %v7254 = vsel %vm1813, %v7222, %v6751
        %v7255 = vsel %vm1813, %v7223, %v6753
        %v7256 = vsel %vm1813, %v7224, %v6755
        %v7257 = vsel %vm1813, %v7225, %v6757
        %v7258 = vsel %vm1813, %v7226, %v6759
        %v7259 = vsel %vm1813, %v7227, %v6761
        %v7260 = vsel %vm1813, %v7228, %v6763
        %v7261 = vsel %vm1813, %v7229, %v6765
        %v7262 = vsel %vm1813, %v7230, %v6767
        %v7263 = vsel %vm1813, %v7231, %v6769
        %v7264 = vsel %vm1813, %v7232, %v6771
        %v7265 = vsel %vm1813, %v7233, %v6773
        %v7266 = vsel %vm1813, %v7234, %v6775
        %v7267 = vsel %vm1813, %v7235, %v6777
        %v7268 = vsel %vm1813, %v7236, %v6779
        %v7269 = vsel %vm1813, %v7237, %v6781
        %v7270 = vsel %vm1813, %v7238, %v6783
        %v7271 = vsel %vm1813, %v7239, %v6785
        %v7272 = vsel %vm1813, %v7240, %v6787
        %v7273 = vsel %vm1813, %v7241, %v6789
        %v7274 = vsel %vm1813, %v7242, %v6791
        %v7275 = vsel %vm1813, %v7243, %v6793
        %v7276 = vsel %vm1813, %v7244, %v6795
        %v7277 = vsel %vm1813, %v7245, %v6797
        %v7278 = vsel %vm1846, %v7246, %v6831
        %v7279 = vsel %vm1846, %v7247, %v6833
        %v7280 = vsel %vm1846, %v7248, %v6835
        %v7281 = vsel %vm1846, %v7249, %v6837
        %v7282 = vsel %vm1846, %v7250, %v6839
        %v7283 = vsel %vm1846, %v7251, %v6841
        %v7284 = vsel %vm1846, %v7252, %v6843
        %v7285 = vsel %vm1846, %v7253, %v6845
        %v7286 = vsel %vm1846, %v7254, %v6847
        %v7287 = vsel %vm1846, %v7255, %v6849
        %v7288 = vsel %vm1846, %v7256, %v6851
        %v7289 = vsel %vm1846, %v7257, %v6853
        %v7290 = vsel %vm1846, %v7258, %v6855
        %v7291 = vsel %vm1846, %v7259, %v6857
        %v7292 = vsel %vm1846, %v7260, %v6859
        %v7293 = vsel %vm1846, %v7261, %v6861
        %v7294 = vsel %vm1846, %v7262, %v6863
        %v7295 = vsel %vm1846, %v7263, %v6865
        %v7296 = vsel %vm1846, %v7264, %v6867
        %v7297 = vsel %vm1846, %v7265, %v6869
        %v7298 = vsel %vm1846, %v7266, %v6871
        %v7299 = vsel %vm1846, %v7267, %v6873
        %v7300 = vsel %vm1846, %v7268, %v6875
        %v7301 = vsel %vm1846, %v7269, %v6877
        %v7302 = vsel %vm1846, %v7270, %v6879
        %v7303 = vsel %vm1846, %v7271, %v6881
        %v7304 = vsel %vm1846, %v7272, %v6883
        %v7305 = vsel %vm1846, %v7273, %v6885
        %v7306 = vsel %vm1846, %v7274, %v6887
        %v7307 = vsel %vm1846, %v7275, %v6889
        %v7308 = vsel %vm1846, %v7276, %v6891
        %v7309 = vsel %vm1846, %v7277, %v6893
        %v7310 = vsel %vm704, %v6287, %v6927
        %v7311 = vsel %vm704, %v6288, %v6929
        %v7312 = vsel %vm704, %v6291, %v6931
        %v7313 = vsel %vm704, %v6292, %v6933
        %v7314 = vsel %vm704, %v6295, %v6935
        %v7315 = vsel %vm704, %v6296, %v6937
        %v7316 = vsel %vm704, %v6299, %v6939
        %v7317 = vsel %vm704, %v6300, %v6941
        %v7318 = vsel %vm704, %v6303, %v6943
        %v7319 = vsel %vm704, %v6304, %v6945
        %v7320 = vsel %vm704, %v6307, %v6947
        %v7321 = vsel %vm704, %v6308, %v6949
        %v7322 = vsel %vm704, %v6311, %v6951
        %v7323 = vsel %vm704, %v6312, %v6953
        %v7324 = vsel %vm704, %v6315, %v6955
        %v7325 = vsel %vm704, %v6316, %v6957
        %v7326 = vsel %vm704, %v6319, %v6959
        %v7327 = vsel %vm704, %v6320, %v6961
        %v7328 = vsel %vm704, %v6323, %v6963
        %v7329 = vsel %vm704, %v6324, %v6965
        %v7330 = vsel %vm704, %v6327, %v6967
        %v7331 = vsel %vm704, %v6328, %v6969
        %v7332 = vsel %vm704, %v6331, %v6971
        %v7333 = vsel %vm704, %v6332, %v6973
        %v7334 = vsel %vm704, %v6335, %v6975
        %v7335 = vsel %vm704, %v6336, %v6977
        %v7336 = vsel %vm704, %v6339, %v6979
        %v7337 = vsel %vm704, %v6340, %v6981
        %v7338 = vsel %vm704, %v6343, %v6983
        %v7339 = vsel %vm704, %v6344, %v6985
        %v7340 = vsel %vm704, %v6347, %v6987
        %v7341 = vsel %vm704, %v6348, %v6989
        %v7342 = vsel %vm1813, %v7310, %v7023
        %v7343 = vsel %vm1813, %v7311, %v7025
        %v7344 = vsel %vm1813, %v7312, %v7027
        %v7345 = vsel %vm1813, %v7313, %v7029
        %v7346 = vsel %vm1813, %v7314, %v7031
        %v7347 = vsel %vm1813, %v7315, %v7033
        %v7348 = vsel %vm1813, %v7316, %v7035
        %v7349 = vsel %vm1813, %v7317, %v7037
        %v7350 = vsel %vm1813, %v7318, %v7039
        %v7351 = vsel %vm1813, %v7319, %v7041
        %v7352 = vsel %vm1813, %v7320, %v7043
        %v7353 = vsel %vm1813, %v7321, %v7045
        %v7354 = vsel %vm1813, %v7322, %v7047
        %v7355 = vsel %vm1813, %v7323, %v7049
        %v7356 = vsel %vm1813, %v7324, %v7051
        %v7357 = vsel %vm1813, %v7325, %v7053
        %v7358 = vsel %vm1813, %v7326, %v7055
        %v7359 = vsel %vm1813, %v7327, %v7057
        %v7360 = vsel %vm1813, %v7328, %v7059
        %v7361 = vsel %vm1813, %v7329, %v7061
        %v7362 = vsel %vm1813, %v7330, %v7063
        %v7363 = vsel %vm1813, %v7331, %v7065
        %v7364 = vsel %vm1813, %v7332, %v7067
        %v7365 = vsel %vm1813, %v7333, %v7069
        %v7366 = vsel %vm1813, %v7334, %v7071
        %v7367 = vsel %vm1813, %v7335, %v7073
        %v7368 = vsel %vm1813, %v7336, %v7075
        %v7369 = vsel %vm1813, %v7337, %v7077
        %v7370 = vsel %vm1813, %v7338, %v7079
        %v7371 = vsel %vm1813, %v7339, %v7081
        %v7372 = vsel %vm1813, %v7340, %v7083
        %v7373 = vsel %vm1813, %v7341, %v7085
        %v7374 = vsel %vm1846, %v7342, %v7119
        %v7375 = vsel %vm1846, %v7343, %v7121
        %v7376 = vsel %vm1846, %v7344, %v7123
        %v7377 = vsel %vm1846, %v7345, %v7125
        %v7378 = vsel %vm1846, %v7346, %v7127
        %v7379 = vsel %vm1846, %v7347, %v7129
        %v7380 = vsel %vm1846, %v7348, %v7131
        %v7381 = vsel %vm1846, %v7349, %v7133
        %v7382 = vsel %vm1846, %v7350, %v7135
        %v7383 = vsel %vm1846, %v7351, %v7137
        %v7384 = vsel %vm1846, %v7352, %v7139
        %v7385 = vsel %vm1846, %v7353, %v7141
        %v7386 = vsel %vm1846, %v7354, %v7143
        %v7387 = vsel %vm1846, %v7355, %v7145
        %v7388 = vsel %vm1846, %v7356, %v7147
        %v7389 = vsel %vm1846, %v7357, %v7149
        %v7390 = vsel %vm1846, %v7358, %v7151
        %v7391 = vsel %vm1846, %v7359, %v7153
        %v7392 = vsel %vm1846, %v7360, %v7155
        %v7393 = vsel %vm1846, %v7361, %v7157
        %v7394 = vsel %vm1846, %v7362, %v7159
        %v7395 = vsel %vm1846, %v7363, %v7161
        %v7396 = vsel %vm1846, %v7364, %v7163
        %v7397 = vsel %vm1846, %v7365, %v7165
        %v7398 = vsel %vm1846, %v7366, %v7167
        %v7399 = vsel %vm1846, %v7367, %v7169
        %v7400 = vsel %vm1846, %v7368, %v7171
        %v7401 = vsel %vm1846, %v7369, %v7173
        %v7402 = vsel %vm1846, %v7370, %v7175
        %v7403 = vsel %vm1846, %v7371, %v7177
        %v7404 = vsel %vm1846, %v7372, %v7179
        %v7405 = vsel %vm1846, %v7373, %v7181
        %v7407 = vlaneseq
        %v7408 = vshrl.u32 %v7407, 7
        %v7409 = vsub.s32 0, %v7408
        %v7410 = vrot.slane %v6249, %v7409
        %v7412 = vsel %vm704, %v6542, 0
        %v7414 = vsel %vm704, %v6544, 0
        %v7416 = vsel %vm704, %v6547, 0
        %v7418 = vsel %vm704, %v6549, 0
        %v7420 = vsel %vm704, %v6552, 0
        %v7422 = vsel %vm704, %v6554, 0
        %v7424 = vsel %vm704, %v6557, 0
        %v7426 = vsel %vm704, %v6559, 0
        %v7428 = vsel %vm704, %v6562, 0
        %v7430 = vsel %vm704, %v6564, 0
        %v7432 = vsel %vm704, %v6567, 0
        %v7434 = vsel %vm704, %v6569, 0
        %v7436 = vsel %vm704, %v6572, 0
        %v7438 = vsel %vm704, %v6574, 0
        %v7440 = vsel %vm704, %v6577, 0
        %v7442 = vsel %vm704, %v6579, 0
        %v7444 = vsel %vm704, %v6582, 0
        %v7446 = vsel %vm704, %v6584, 0
        %v7448 = vsel %vm704, %v6587, 0
        %v7450 = vsel %vm704, %v6589, 0
        %v7452 = vsel %vm704, %v6592, 0
        %v7454 = vsel %vm704, %v6594, 0
        %v7456 = vsel %vm704, %v6597, 0
        %v7458 = vsel %vm704, %v6599, 0
        %v7460 = vsel %vm704, %v6602, 0
        %v7462 = vsel %vm704, %v6604, 0
        %v7464 = vsel %vm704, %v6607, 0
        %v7466 = vsel %vm704, %v6609, 0
        %v7468 = vsel %vm704, %v6621, 0
        %v7470 = vsel %vm704, %v6623, 0
        %v7472 = vsel %vm704, %v6635, 0
        %v7474 = vsel %vm704, %v6637, 0
        %7476 = vmatprep.subr.mxu0 0.0
        %7477 = vmatpush1.msra.mxu0 %v6228
        %7478 = vmatprep.subr.mxu0 0.0
        %7479 = vmatpush1.msra.mxu0 %v6227
        %7480 = vmatprep.subr.mxu0 0.0
        %7481 = vmatpush1.msra.mxu0 %v6226
        %7482 = vmatprep.subr.mxu0 0.0
        %7483 = vmatpush1.msra.mxu0 %v6225
        %7484 = vmatprep.subr.mxu0 0.0
        %7485 = vmatpush1.msra.mxu0 %v6224
        %7486 = vmatprep.subr.mxu0 0.0
        %7487 = vmatpush1.msra.mxu0 %v6223
        %7488 = vmatprep.subr.mxu0 0.0
        %7489 = vmatpush1.msra.mxu0 %v6222
        %7490 = vmatprep.subr.mxu0 0.0
        %7491 = vmatpush1.msra.mxu0 %v6221
        %7492 = vmatprep.subr.mxu0 0.0
        %7493 = vmatpush1.msra.mxu0 %v6220
        %7494 = vmatprep.subr.mxu0 0.0
        %7495 = vmatpush1.msra.mxu0 %v6219
        %7496 = vmatprep.subr.mxu0 0.0
        %7497 = vmatpush1.msra.mxu0 %v6218
        %7498 = vmatprep.subr.mxu0 0.0
        %7499 = vmatpush1.msra.mxu0 %v6217
        %7500 = vmatprep.subr.mxu0 0.0
        %7501 = vmatpush1.msra.mxu0 %v6216
        %7502 = vmatprep.subr.mxu0 0.0
        %7503 = vmatpush1.msra.mxu0 %v6215
        %7504 = vmatprep.subr.mxu0 0.0
        %7505 = vmatpush1.msra.mxu0 %v6214
        %7506 = vmatprep.subr.mxu0 0.0
        %7507 = vmatpush1.msra.mxu0 %v6213
        %7508 = vmatprep.subr.mxu0 0.0
        %7509 = vmatpush2.msra.mxu0 %v6244
        %7510 = vmatprep.subr.mxu0 0.0
        %7511 = vmatpush2.msra.mxu0 %v6243
        %7512 = vmatprep.subr.mxu0 0.0
        %7513 = vmatpush2.msra.mxu0 %v6242
        %7514 = vmatprep.subr.mxu0 0.0
        %7515 = vmatpush2.msra.mxu0 %v6241
        %7516 = vmatprep.subr.mxu0 0.0
        %7517 = vmatpush2.msra.mxu0 %v6240
        %7518 = vmatprep.subr.mxu0 0.0
        %7519 = vmatpush2.msra.mxu0 %v6239
        %7520 = vmatprep.subr.mxu0 0.0
        %7521 = vmatpush2.msra.mxu0 %v6238
        %7522 = vmatprep.subr.mxu0 0.0
        %7523 = vmatpush2.msra.mxu0 %v6237
        %7524 = vmatprep.subr.mxu0 0.0
        %7525 = vmatpush2.msra.mxu0 %v6236
        %7526 = vmatprep.subr.mxu0 0.0
        %7527 = vmatpush2.msra.mxu0 %v6235
        %7528 = vmatprep.subr.mxu0 0.0
        %7529 = vmatpush2.msra.mxu0 %v6234
        %7530 = vmatprep.subr.mxu0 0.0
        %7531 = vmatpush2.msra.mxu0 %v6233
        %7532 = vmatprep.subr.mxu0 0.0
        %7533 = vmatpush2.msra.mxu0 %v6232
        %7534 = vmatprep.subr.mxu0 0.0
        %7535 = vmatpush2.msra.mxu0 %v6231
        %7536 = vmatprep.subr.mxu0 0.0
        %7537 = vmatpush2.msra.mxu0 %v6230
        %7538 = vmatprep.subr.mxu0 0.0
        %7539 = vmatpush2.msra.mxu0 %v6229
        %7540 = vmatprep.mubr.f32.mxu0 %v7374
        %7541 = vmatmul.mubr.f32.gmra.mxu0 %v7278
        %v7542 = vpop.f32.mrf.mxu0
        %v7543 = vadd.f32 %v7410, %v7542
        %v7544 = vpop.f32.mrf.mxu0
        %7545 = vmatprep.mubr.f32.mxu0 %v7375
        %7546 = vmatmul.mubr.f32.gmra.mxu0 %v7279
        %v7547 = vpop.f32.mrf.mxu0
        %v7548 = vadd.f32 %v7410, %v7547
        %v7549 = vpop.f32.mrf.mxu0
        %7550 = vmatprep.mubr.f32.mxu0 %v7376
        %7551 = vmatmul.mubr.f32.gmra.mxu0 %v7280
        %v7552 = vpop.f32.mrf.mxu0
        %v7553 = vadd.f32 %v7410, %v7552
        %v7554 = vpop.f32.mrf.mxu0
        %7555 = vmatprep.mubr.f32.mxu0 %v7377
        %7556 = vmatmul.mubr.f32.gmra.mxu0 %v7281
        %v7557 = vpop.f32.mrf.mxu0
        %v7558 = vadd.f32 %v7410, %v7557
        %v7559 = vpop.f32.mrf.mxu0
        %7560 = vmatprep.mubr.f32.mxu0 %v7378
        %7561 = vmatmul.mubr.f32.gmra.mxu0 %v7282
        %v7562 = vpop.f32.mrf.mxu0
        %v7563 = vadd.f32 %v7410, %v7562
        %v7564 = vpop.f32.mrf.mxu0
        %7565 = vmatprep.mubr.f32.mxu0 %v7379
        %7566 = vmatmul.mubr.f32.gmra.mxu0 %v7283
        %v7567 = vpop.f32.mrf.mxu0
        %v7568 = vadd.f32 %v7410, %v7567
        %v7569 = vpop.f32.mrf.mxu0
        %7570 = vmatprep.mubr.f32.mxu0 %v7380
        %7571 = vmatmul.mubr.f32.gmra.mxu0 %v7284
        %v7572 = vpop.f32.mrf.mxu0
        %v7573 = vadd.f32 %v7410, %v7572
        %v7574 = vpop.f32.mrf.mxu0
        %7575 = vmatprep.mubr.f32.mxu0 %v7381
        %7576 = vmatmul.mubr.f32.gmra.mxu0 %v7285
        %v7577 = vpop.f32.mrf.mxu0
        %v7578 = vadd.f32 %v7410, %v7577
        %v7579 = vpop.f32.mrf.mxu0
        %7580 = vmatprep.mubr.f32.mxu0 %v7382
        %7581 = vmatmul.mubr.f32.gmra.mxu0 %v7286
        %v7582 = vpop.f32.mrf.mxu0
        %v7583 = vadd.f32 %v7410, %v7582
        %v7584 = vpop.f32.mrf.mxu0
        %7585 = vmatprep.mubr.f32.mxu0 %v7383
        %7586 = vmatmul.mubr.f32.gmra.mxu0 %v7287
        %v7587 = vpop.f32.mrf.mxu0
        %v7588 = vadd.f32 %v7410, %v7587
        %v7589 = vpop.f32.mrf.mxu0
        %7590 = vmatprep.mubr.f32.mxu0 %v7384
        %7591 = vmatmul.mubr.f32.gmra.mxu0 %v7288
        %v7592 = vpop.f32.mrf.mxu0
        %v7593 = vadd.f32 %v7410, %v7592
        %v7594 = vpop.f32.mrf.mxu0
        %7595 = vmatprep.mubr.f32.mxu0 %v7385
        %7596 = vmatmul.mubr.f32.gmra.mxu0 %v7289
        %v7597 = vpop.f32.mrf.mxu0
        %v7598 = vadd.f32 %v7410, %v7597
        %v7599 = vpop.f32.mrf.mxu0
        %7600 = vmatprep.mubr.f32.mxu0 %v7386
        %7601 = vmatmul.mubr.f32.gmra.mxu0 %v7290
        %v7602 = vpop.f32.mrf.mxu0
        %v7603 = vadd.f32 %v7410, %v7602
        %v7604 = vpop.f32.mrf.mxu0
        %7605 = vmatprep.mubr.f32.mxu0 %v7387
        %7606 = vmatmul.mubr.f32.gmra.mxu0 %v7291
        %v7607 = vpop.f32.mrf.mxu0
        %v7608 = vadd.f32 %v7410, %v7607
        %v7609 = vpop.f32.mrf.mxu0
        %7610 = vmatprep.mubr.f32.mxu0 %v7388
        %7611 = vmatmul.mubr.f32.gmra.mxu0 %v7292
        %v7612 = vpop.f32.mrf.mxu0
        %v7613 = vadd.f32 %v7410, %v7612
        %v7614 = vpop.f32.mrf.mxu0
        %7615 = vmatprep.mubr.f32.mxu0 %v7389
        %7616 = vmatmul.mubr.f32.gmra.mxu0 %v7293
        %v7617 = vpop.f32.mrf.mxu0
        %v7618 = vadd.f32 %v7410, %v7617
        %v7619 = vpop.f32.mrf.mxu0
        %7620 = vmatprep.mubr.f32.mxu0 %v7390
        %7621 = vmatmul.mubr.f32.gmra.mxu0 %v7294
        %v7622 = vpop.f32.mrf.mxu0
        %v7623 = vadd.f32 %v7410, %v7622
        %v7624 = vpop.f32.mrf.mxu0
        %7625 = vmatprep.mubr.f32.mxu0 %v7391
        %7626 = vmatmul.mubr.f32.gmra.mxu0 %v7295
        %v7627 = vpop.f32.mrf.mxu0
        %v7628 = vadd.f32 %v7410, %v7627
        %v7629 = vpop.f32.mrf.mxu0
        %7630 = vmatprep.mubr.f32.mxu0 %v7392
        %7631 = vmatmul.mubr.f32.gmra.mxu0 %v7296
        %v7632 = vpop.f32.mrf.mxu0
        %v7633 = vadd.f32 %v7410, %v7632
        %v7634 = vpop.f32.mrf.mxu0
        %7635 = vmatprep.mubr.f32.mxu0 %v7393
        %7636 = vmatmul.mubr.f32.gmra.mxu0 %v7297
        %v7637 = vpop.f32.mrf.mxu0
        %v7638 = vadd.f32 %v7410, %v7637
        %v7639 = vpop.f32.mrf.mxu0
        %7640 = vmatprep.mubr.f32.mxu0 %v7394
        %7641 = vmatmul.mubr.f32.gmra.mxu0 %v7298
        %v7642 = vpop.f32.mrf.mxu0
        %v7643 = vadd.f32 %v7410, %v7642
        %v7644 = vpop.f32.mrf.mxu0
        %7645 = vmatprep.mubr.f32.mxu0 %v7395
        %7646 = vmatmul.mubr.f32.gmra.mxu0 %v7299
        %v7647 = vpop.f32.mrf.mxu0
        %v7648 = vadd.f32 %v7410, %v7647
        %v7649 = vpop.f32.mrf.mxu0
        %7650 = vmatprep.mubr.f32.mxu0 %v7396
        %7651 = vmatmul.mubr.f32.gmra.mxu0 %v7300
        %v7652 = vpop.f32.mrf.mxu0
        %v7653 = vadd.f32 %v7410, %v7652
        %v7654 = vpop.f32.mrf.mxu0
        %7655 = vmatprep.mubr.f32.mxu0 %v7397
        %7656 = vmatmul.mubr.f32.gmra.mxu0 %v7301
        %v7657 = vpop.f32.mrf.mxu0
        %v7658 = vadd.f32 %v7410, %v7657
        %v7659 = vpop.f32.mrf.mxu0
        %7660 = vmatprep.mubr.f32.mxu0 %v7398
        %7661 = vmatmul.mubr.f32.gmra.mxu0 %v7302
        %v7662 = vpop.f32.mrf.mxu0
        %v7663 = vadd.f32 %v7410, %v7662
        %v7664 = vpop.f32.mrf.mxu0
        %7665 = vmatprep.mubr.f32.mxu0 %v7399
        %7666 = vmatmul.mubr.f32.gmra.mxu0 %v7303
        %v7667 = vpop.f32.mrf.mxu0
        %v7668 = vadd.f32 %v7410, %v7667
        %v7669 = vpop.f32.mrf.mxu0
        %7670 = vmatprep.mubr.f32.mxu0 %v7400
        %7671 = vmatmul.mubr.f32.gmra.mxu0 %v7304
        %v7672 = vpop.f32.mrf.mxu0
        %v7673 = vadd.f32 %v7410, %v7672
        %v7674 = vpop.f32.mrf.mxu0
        %7675 = vmatprep.mubr.f32.mxu0 %v7401
        %7676 = vmatmul.mubr.f32.gmra.mxu0 %v7305
        %v7677 = vpop.f32.mrf.mxu0
        %v7678 = vadd.f32 %v7410, %v7677
        %v7679 = vpop.f32.mrf.mxu0
        %7680 = vmatprep.mubr.f32.mxu0 %v7402
        %7681 = vmatmul.mubr.f32.gmra.mxu0 %v7306
        %v7682 = vpop.f32.mrf.mxu0
        %v7683 = vadd.f32 %v7410, %v7682
        %v7684 = vpop.f32.mrf.mxu0
        %7685 = vmatprep.mubr.f32.mxu0 %v7403
        %7686 = vmatmul.mubr.f32.gmra.mxu0 %v7307
        %v7687 = vpop.f32.mrf.mxu0
        %v7688 = vadd.f32 %v7410, %v7687
        %v7689 = vpop.f32.mrf.mxu0
        %7690 = vmatprep.mubr.f32.mxu0 %v7404
        %7691 = vmatmul.mubr.f32.gmra.mxu0 %v7308
        %v7692 = vpop.f32.mrf.mxu0
        %v7693 = vadd.f32 %v7410, %v7692
        %v7694 = vpop.f32.mrf.mxu0
        %7695 = vmatprep.mubr.f32.mxu0 %v7405
        %7696 = vmatmul.mubr.f32.gmra.mxu0 %v7309
        %v7697 = vpop.f32.mrf.mxu0
        %v7698 = vadd.f32 %v7410, %v7697
        %v7699 = vpop.f32.mrf.mxu0
        %7700 = vdwg.mxu0
        %7701 = vmatprep.subr.mxu0 0.0
        %7702 = vmatpush1.msra.mxu0 0.0
        %7703 = vmatprep.subr.mxu0 0.0
        %7704 = vmatpush1.msra.mxu0 0.0
        %7705 = vmatprep.subr.mxu0 0.0
        %7706 = vmatpush1.msra.mxu0 0.0
        %7707 = vmatprep.subr.mxu0 0.0
        %7708 = vmatpush1.msra.mxu0 0.0
        %7709 = vmatprep.subr.mxu0 0.0
        %7710 = vmatpush1.msra.mxu0 0.0
        %7711 = vmatprep.subr.mxu0 0.0
        %7712 = vmatpush1.msra.mxu0 0.0
        %7713 = vmatprep.subr.mxu0 0.0
        %7714 = vmatpush1.msra.mxu0 0.0
        %7715 = vmatprep.subr.mxu0 0.0
        %7716 = vmatpush1.msra.mxu0 0.0
        %7717 = vmatprep.subr.mxu0 0.0
        %7718 = vmatpush1.msra.mxu0 0.0
        %7719 = vmatprep.subr.mxu0 0.0
        %7720 = vmatpush1.msra.mxu0 0.0
        %7721 = vmatprep.subr.mxu0 0.0
        %7722 = vmatpush1.msra.mxu0 0.0
        %7723 = vmatprep.subr.mxu0 0.0
        %7724 = vmatpush1.msra.mxu0 0.0
        %7725 = vmatprep.subr.mxu0 0.0
        %7726 = vmatpush1.msra.mxu0 %v6248
        %7727 = vmatprep.subr.mxu0 0.0
        %7728 = vmatpush1.msra.mxu0 %v6247
        %7729 = vmatprep.subr.mxu0 0.0
        %7730 = vmatpush1.msra.mxu0 %v6246
        %7731 = vmatprep.subr.mxu0 0.0
        %7732 = vmatpush1.msra.mxu0 %v6245
        %7733 = vmatprep.subr.mxu0 0.0
        %7734 = vmatpush2.msra.mxu0 0.0
        %7735 = vmatprep.subr.mxu0 0.0
        %7736 = vmatpush2.msra.mxu0 0.0
        %7737 = vmatprep.subr.mxu0 0.0
        %7738 = vmatpush2.msra.mxu0 0.0
        %7739 = vmatprep.subr.mxu0 0.0
        %7740 = vmatpush2.msra.mxu0 0.0
        %7741 = vmatprep.subr.mxu0 0.0
        %7742 = vmatpush2.msra.mxu0 0.0
        %7743 = vmatprep.subr.mxu0 0.0
        %7744 = vmatpush2.msra.mxu0 0.0
        %7745 = vmatprep.subr.mxu0 0.0
        %7746 = vmatpush2.msra.mxu0 0.0
        %7747 = vmatprep.subr.mxu0 0.0
        %7748 = vmatpush2.msra.mxu0 0.0
        %7749 = vmatprep.subr.mxu0 0.0
        %7750 = vmatpush2.msra.mxu0 0.0
        %7751 = vmatprep.subr.mxu0 0.0
        %7752 = vmatpush2.msra.mxu0 0.0
        %7753 = vmatprep.subr.mxu0 0.0
        %7754 = vmatpush2.msra.mxu0 0.0
        %7755 = vmatprep.subr.mxu0 0.0
        %7756 = vmatpush2.msra.mxu0 0.0
        %7757 = vmatprep.subr.mxu0 0.0
        %7758 = vmatpush2.msra.mxu0 0.0
        %7759 = vmatprep.subr.mxu0 0.0
        %7760 = vmatpush2.msra.mxu0 0.0
        %7761 = vmatprep.subr.mxu0 0.0
        %7762 = vmatpush2.msra.mxu0 0.0
        %7763 = vmatprep.subr.mxu0 0.0
        %7764 = vmatpush2.msra.mxu0 0.0
        %7765 = vmatprep.mubr.f32.mxu0 0.0
        %7766 = vmatmul.mubr.f32.gmra.mxu0 %v7412
        %v7767 = vpop.f32.mrf.mxu0
        %v7768 = vadd.f32 %v7543, %v7767
        %v7769 = vpop.f32.mrf.mxu0
        %7770 = vmatprep.mubr.f32.mxu0 0.0
        %7771 = vmatmul.mubr.f32.gmra.mxu0 %v7414
        %v7772 = vpop.f32.mrf.mxu0
        %v7773 = vadd.f32 %v7548, %v7772
        %v7774 = vpop.f32.mrf.mxu0
        %7775 = vmatprep.mubr.f32.mxu0 0.0
        %7776 = vmatmul.mubr.f32.gmra.mxu0 %v7416
        %v7777 = vpop.f32.mrf.mxu0
        %v7778 = vadd.f32 %v7553, %v7777
        %v7779 = vpop.f32.mrf.mxu0
        %7780 = vmatprep.mubr.f32.mxu0 0.0
        %7781 = vmatmul.mubr.f32.gmra.mxu0 %v7418
        %v7782 = vpop.f32.mrf.mxu0
        %v7783 = vadd.f32 %v7558, %v7782
        %v7784 = vpop.f32.mrf.mxu0
        %7785 = vmatprep.mubr.f32.mxu0 0.0
        %7786 = vmatmul.mubr.f32.gmra.mxu0 %v7420
        %v7787 = vpop.f32.mrf.mxu0
        %v7788 = vadd.f32 %v7563, %v7787
        %v7789 = vpop.f32.mrf.mxu0
        %7790 = vmatprep.mubr.f32.mxu0 0.0
        %7791 = vmatmul.mubr.f32.gmra.mxu0 %v7422
        %v7792 = vpop.f32.mrf.mxu0
        %v7793 = vadd.f32 %v7568, %v7792
        %v7794 = vpop.f32.mrf.mxu0
        %7795 = vmatprep.mubr.f32.mxu0 0.0
        %7796 = vmatmul.mubr.f32.gmra.mxu0 %v7424
        %v7797 = vpop.f32.mrf.mxu0
        %v7798 = vadd.f32 %v7573, %v7797
        %v7799 = vpop.f32.mrf.mxu0
        %7800 = vmatprep.mubr.f32.mxu0 0.0
        %7801 = vmatmul.mubr.f32.gmra.mxu0 %v7426
        %v7802 = vpop.f32.mrf.mxu0
        %v7803 = vadd.f32 %v7578, %v7802
        %v7804 = vpop.f32.mrf.mxu0
        %7805 = vmatprep.mubr.f32.mxu0 0.0
        %7806 = vmatmul.mubr.f32.gmra.mxu0 %v7428
        %v7807 = vpop.f32.mrf.mxu0
        %v7808 = vadd.f32 %v7583, %v7807
        %v7809 = vpop.f32.mrf.mxu0
        %7810 = vmatprep.mubr.f32.mxu0 0.0
        %7811 = vmatmul.mubr.f32.gmra.mxu0 %v7430
        %v7812 = vpop.f32.mrf.mxu0
        %v7813 = vadd.f32 %v7588, %v7812
        %v7814 = vpop.f32.mrf.mxu0
        %7815 = vmatprep.mubr.f32.mxu0 0.0
        %7816 = vmatmul.mubr.f32.gmra.mxu0 %v7432
        %v7817 = vpop.f32.mrf.mxu0
        %v7818 = vadd.f32 %v7593, %v7817
        %v7819 = vpop.f32.mrf.mxu0
        %7820 = vmatprep.mubr.f32.mxu0 0.0
        %7821 = vmatmul.mubr.f32.gmra.mxu0 %v7434
        %v7822 = vpop.f32.mrf.mxu0
        %v7823 = vadd.f32 %v7598, %v7822
        %v7824 = vpop.f32.mrf.mxu0
        %7825 = vmatprep.mubr.f32.mxu0 0.0
        %7826 = vmatmul.mubr.f32.gmra.mxu0 %v7436
        %v7827 = vpop.f32.mrf.mxu0
        %v7828 = vadd.f32 %v7603, %v7827
        %v7829 = vpop.f32.mrf.mxu0
        %7830 = vmatprep.mubr.f32.mxu0 0.0
        %7831 = vmatmul.mubr.f32.gmra.mxu0 %v7438
        %v7832 = vpop.f32.mrf.mxu0
        %v7833 = vadd.f32 %v7608, %v7832
        %v7834 = vpop.f32.mrf.mxu0
        %7835 = vmatprep.mubr.f32.mxu0 0.0
        %7836 = vmatmul.mubr.f32.gmra.mxu0 %v7440
        %v7837 = vpop.f32.mrf.mxu0
        %v7838 = vadd.f32 %v7613, %v7837
        %v7839 = vpop.f32.mrf.mxu0
        %7840 = vmatprep.mubr.f32.mxu0 0.0
        %7841 = vmatmul.mubr.f32.gmra.mxu0 %v7442
        %v7842 = vpop.f32.mrf.mxu0
        %v7843 = vadd.f32 %v7618, %v7842
        %v7844 = vpop.f32.mrf.mxu0
        %7845 = vmatprep.mubr.f32.mxu0 0.0
        %7846 = vmatmul.mubr.f32.gmra.mxu0 %v7444
        %v7847 = vpop.f32.mrf.mxu0
        %v7848 = vadd.f32 %v7623, %v7847
        %v7849 = vpop.f32.mrf.mxu0
        %7850 = vmatprep.mubr.f32.mxu0 0.0
        %7851 = vmatmul.mubr.f32.gmra.mxu0 %v7446
        %v7852 = vpop.f32.mrf.mxu0
        %v7853 = vadd.f32 %v7628, %v7852
        %v7854 = vpop.f32.mrf.mxu0
        %7855 = vmatprep.mubr.f32.mxu0 0.0
        %7856 = vmatmul.mubr.f32.gmra.mxu0 %v7448
        %v7857 = vpop.f32.mrf.mxu0
        %v7858 = vadd.f32 %v7633, %v7857
        %v7859 = vpop.f32.mrf.mxu0
        %7860 = vmatprep.mubr.f32.mxu0 0.0
        %7861 = vmatmul.mubr.f32.gmra.mxu0 %v7450
        %v7862 = vpop.f32.mrf.mxu0
        %v7863 = vadd.f32 %v7638, %v7862
        %v7864 = vpop.f32.mrf.mxu0
        %7865 = vmatprep.mubr.f32.mxu0 0.0
        %7866 = vmatmul.mubr.f32.gmra.mxu0 %v7452
        %v7867 = vpop.f32.mrf.mxu0
        %v7868 = vadd.f32 %v7643, %v7867
        %v7869 = vpop.f32.mrf.mxu0
        %7870 = vmatprep.mubr.f32.mxu0 0.0
        %7871 = vmatmul.mubr.f32.gmra.mxu0 %v7454
        %v7872 = vpop.f32.mrf.mxu0
        %v7873 = vadd.f32 %v7648, %v7872
        %v7874 = vpop.f32.mrf.mxu0
        %7875 = vmatprep.mubr.f32.mxu0 0.0
        %7876 = vmatmul.mubr.f32.gmra.mxu0 %v7456
        %v7877 = vpop.f32.mrf.mxu0
        %v7878 = vadd.f32 %v7653, %v7877
        %v7879 = vpop.f32.mrf.mxu0
        %7880 = vmatprep.mubr.f32.mxu0 0.0
        %7881 = vmatmul.mubr.f32.gmra.mxu0 %v7458
        %v7882 = vpop.f32.mrf.mxu0
        %v7883 = vadd.f32 %v7658, %v7882
        %v7884 = vpop.f32.mrf.mxu0
        %7885 = vmatprep.mubr.f32.mxu0 0.0
        %7886 = vmatmul.mubr.f32.gmra.mxu0 %v7460
        %v7887 = vpop.f32.mrf.mxu0
        %v7888 = vadd.f32 %v7663, %v7887
        %v7889 = vpop.f32.mrf.mxu0
        %7890 = vmatprep.mubr.f32.mxu0 0.0
        %7891 = vmatmul.mubr.f32.gmra.mxu0 %v7462
        %v7892 = vpop.f32.mrf.mxu0
        %v7893 = vadd.f32 %v7668, %v7892
        %v7894 = vpop.f32.mrf.mxu0
        %7895 = vmatprep.mubr.f32.mxu0 0.0
        %7896 = vmatmul.mubr.f32.gmra.mxu0 %v7464
        %v7897 = vpop.f32.mrf.mxu0
        %v7898 = vadd.f32 %v7673, %v7897
        %v7899 = vpop.f32.mrf.mxu0
        %7900 = vmatprep.mubr.f32.mxu0 0.0
        %7901 = vmatmul.mubr.f32.gmra.mxu0 %v7466
        %v7902 = vpop.f32.mrf.mxu0
        %v7903 = vadd.f32 %v7678, %v7902
        %v7904 = vpop.f32.mrf.mxu0
        %7905 = vmatprep.mubr.f32.mxu0 0.0
        %7906 = vmatmul.mubr.f32.gmra.mxu0 %v7468
        %v7907 = vpop.f32.mrf.mxu0
        %v7908 = vadd.f32 %v7683, %v7907
        %v7909 = vpop.f32.mrf.mxu0
        %7910 = vmatprep.mubr.f32.mxu0 0.0
        %7911 = vmatmul.mubr.f32.gmra.mxu0 %v7470
        %v7912 = vpop.f32.mrf.mxu0
        %v7913 = vadd.f32 %v7688, %v7912
        %v7914 = vpop.f32.mrf.mxu0
        %7915 = vmatprep.mubr.f32.mxu0 0.0
        %7916 = vmatmul.mubr.f32.gmra.mxu0 %v7472
        %v7917 = vpop.f32.mrf.mxu0
        %v7918 = vadd.f32 %v7693, %v7917
        %v7919 = vpop.f32.mrf.mxu0
        %7920 = vmatprep.mubr.f32.mxu0 0.0
        %7921 = vmatmul.mubr.f32.gmra.mxu0 %v7474
        %v7922 = vpop.f32.mrf.mxu0
        %v7923 = vadd.f32 %v7698, %v7922
        %v7924 = vpop.f32.mrf.mxu0
        %7925 = vdwg.mxu0
        %vm7926 = vcmask 31744
        %7927 = vst.msk [vmem:[%s272] sm:$0xff] %vm7926, %v7768
        %7928 = vst.msk [vmem:[%s272 + $0x8] sm:$0xff] %vm7926, %v7773
        %7929 = vst.msk [vmem:[%s272 + $0x10] sm:$0xff] %vm7926, %v7778
        %7930 = vst.msk [vmem:[%s272 + $0x18] sm:$0xff] %vm7926, %v7783
        %7931 = vst.msk [vmem:[%s272 + $0x20] sm:$0xff] %vm7926, %v7788
        %7932 = vst.msk [vmem:[%s272 + $0x28] sm:$0xff] %vm7926, %v7793
        %7933 = vst.msk [vmem:[%s272 + $0x30] sm:$0xff] %vm7926, %v7798
        %7934 = vst.msk [vmem:[%s272 + $0x38] sm:$0xff] %vm7926, %v7803
        %7935 = vst.msk [vmem:[%s272 + $0x40] sm:$0xff] %vm7926, %v7808
        %7936 = vst.msk [vmem:[%s272 + $0x48] sm:$0xff] %vm7926, %v7813
        %7937 = vst.msk [vmem:[%s272 + $0x50] sm:$0xff] %vm7926, %v7818
        %7938 = vst.msk [vmem:[%s272 + $0x58] sm:$0xff] %vm7926, %v7823
        %7939 = vst.msk [vmem:[%s272 + $0x60] sm:$0xff] %vm7926, %v7828
        %7940 = vst.msk [vmem:[%s272 + $0x68] sm:$0xff] %vm7926, %v7833
        %7941 = vst.msk [vmem:[%s272 + $0x70] sm:$0xff] %vm7926, %v7838
        %7942 = vst.msk [vmem:[%s272 + $0x78] sm:$0xff] %vm7926, %v7843
        %7943 = vst.msk [vmem:[%s272 + $0x80] sm:$0xff] %vm7926, %v7848
        %7944 = vst.msk [vmem:[%s272 + $0x88] sm:$0xff] %vm7926, %v7853
        %7945 = vst.msk [vmem:[%s272 + $0x90] sm:$0xff] %vm7926, %v7858
        %7946 = vst.msk [vmem:[%s272 + $0x98] sm:$0xff] %vm7926, %v7863
        %7947 = vst.msk [vmem:[%s272 + $0xa0] sm:$0xff] %vm7926, %v7868
        %7948 = vst.msk [vmem:[%s272 + $0xa8] sm:$0xff] %vm7926, %v7873
        %7949 = vst.msk [vmem:[%s272 + $0xb0] sm:$0xff] %vm7926, %v7878
        %7950 = vst.msk [vmem:[%s272 + $0xb8] sm:$0xff] %vm7926, %v7883
        %7951 = vst.msk [vmem:[%s272 + $0xc0] sm:$0xff] %vm7926, %v7888
        %7952 = vst.msk [vmem:[%s272 + $0xc8] sm:$0xff] %vm7926, %v7893
        %7953 = vst.msk [vmem:[%s272 + $0xd0] sm:$0xff] %vm7926, %v7898
        %7954 = vst.msk [vmem:[%s272 + $0xd8] sm:$0xff] %vm7926, %v7903
        %7955 = vst.msk [vmem:[%s272 + $0xe0] sm:$0xff] %vm7926, %v7908
        %7956 = vst.msk [vmem:[%s272 + $0xe8] sm:$0xff] %vm7926, %v7913
        %7957 = vst.msk [vmem:[%s272 + $0xf0] sm:$0xff] %vm7926, %v7918
        %7958 = vst.msk [vmem:[%s272 + $0xf8] sm:$0xff] %vm7926, %v7923
        %p7959 = scmp.lt.s32.totalorder %s19, 1
        %s7960 = scalar_select %p7959, %s19, 1
        %s7961 = smul.addr %s7960, 32
        %s7962 = smul.addr %s7961, 8
        %s7963 = scalar_lea.vmem %s7, %s7962
        // Predicated region
        $region53: #{meta_to_image_pallas.1} parent=47 // pred_check
          %p7964 = pneg %p184
        $region54: #{meta_to_image_pallas.1} parent=47 // pred_check_branch
          %7966 = sbr.rel (%p7964) target = $region56
        $region55: #{meta_to_image_pallas.1} parent=47 // pred_region
          _
        $region56: #{meta_to_image_pallas.1} parent=47 // pred_fallthru
          _
      $region48: #{meta_to_image_pallas.1} parent=5 // pred_fallthru
        _
      %p7967 = scmp.le.s32.totalorder 2, %s14
      // Predicated region
      $region57: #{meta_to_image_pallas.1} parent=5 // pred_check
        %p7968 = pneg %p7967
      $region58: #{meta_to_image_pallas.1} parent=5 // pred_check_branch
        %7970 = sbr.rel (%p7968) target = $region60
      $region59: #{meta_to_image_pallas.1} parent=5 // pred_region
        %s7971 = ssub.s32 %s14, 2
        // Predicated region
        $region61: #{meta_to_image_pallas.1} parent=59 // pred_check
          %p7972 = pneg %p190
        $region62: #{meta_to_image_pallas.1} parent=59 // pred_check_branch
          %7974 = sbr.rel (%p7972) target = $region64
        $region63: #{meta_to_image_pallas.1} parent=59 // pred_region
          %p7975 = scmp.lt.s32.totalorder %s20, 1
          %s7976 = scalar_select %p7975, %s20, 1
          %s7977 = smul.addr %s7976, 32
          %s7978 = smul.addr %s7977, 8
          %s7979 = scalar_lea.vmem %s7, %s7978
        $region64: #{meta_to_image_pallas.1} parent=59 // pred_fallthru
          _
      $region60: #{meta_to_image_pallas.1} parent=5 // pred_fallthru
        _
    $region6: #{meta_to_image_pallas.1} parent=1 // loop_footer
      %s18 = sadd.s32 1, %s14
    $region7: #{meta_to_image_pallas.1} parent=1 // loop_footer_branch
      %13 = sbr.rel target = $region3
    $region8: #{meta_to_image_pallas.1} parent=1 // loop_exit
      _
    %7980 = vsyncpa [#allocation4], 1
    %s7981 = scalar_lea.sflag [#allocation4], 1
    %7982 = vsyncpa %s7981, 1

</llo_original>
